<compile_context>
chip_gen: v7x
topology: tpu7x:2x2x1
jax: 0.10.0
libtpu: 0.0.40
codegen_flags: <defaults>
</compile_context>

<pallas_src>
import functools

import jax
import jax.numpy as jnp
import numpy as np
from jax.experimental import pallas as pl
from jax.experimental.pallas import tpu as pltpu


def _round_up(x, m):
    return ((x + m - 1) // m) * m


def _pick_tile(dim, cap, unit):
    """Largest tile <= cap that divides dim and is a multiple of `unit`;
    the full dim if dim <= cap; None if nothing fits."""
    if dim <= cap:
        return dim
    t = (cap // unit) * unit
    while t >= unit:
        if dim % t == 0:
            return t
        t -= unit
    return None


# ---------------------------------------------------------------------------
# Pallas kernel: tiled (x @ w) + bias, f32 accumulation, bf16 writeback.
# ---------------------------------------------------------------------------
def _matmul_bias_kernel(x_ref, w_ref, b_ref, o_ref, acc_ref):
    k = pl.program_id(2)

    @pl.when(k == 0)
    def _():
        acc_ref[...] = jnp.zeros_like(acc_ref)

    acc_ref[...] += jnp.dot(x_ref[...], w_ref[...],
                            preferred_element_type=jnp.float32)

    @pl.when(k == pl.num_programs(2) - 1)
    def _():
        o_ref[...] = (acc_ref[...] + b_ref[...]).astype(o_ref.dtype)


def _fused_matmul(x2d, w2d, b2d):
    """x2d: (M,K) bf16; w2d: (K,NTp) bf16; b2d: (1,NTp) f32 -> (M,NTp) bf16."""
    M, K = x2d.shape
    NTp = w2d.shape[1]

    tm = _pick_tile(M, 1024, 8)
    if tm is None:                       # awkward M: pad rows, slice afterwards
        tm = 1024
        Mp = _round_up(M, tm)
        x2d = jnp.pad(x2d, ((0, Mp - M), (0, 0)))
    else:
        Mp = M
    tk = _pick_tile(K, 512, 128) or K
    tn = _pick_tile(NTp, 512, 128) or NTp
    # v7x: weight-streaming early layers have an i-grid of 1; keep >= 2 steps
    # on the parallel j axis so both TensorCores get work.
    if Mp // tm == 1 and tn == NTp and NTp >= 256:
        tn = _pick_tile(NTp, NTp // 2, 128) or tn

    grid = (Mp // tm, NTp // tn, K // tk)

    out = pl.pallas_call(
        _matmul_bias_kernel,
        out_shape=jax.ShapeDtypeStruct((Mp, NTp), jnp.bfloat16),
        grid_spec=pltpu.PrefetchScalarGridSpec(
            num_scalar_prefetch=0,
            grid=grid,
            in_specs=[
                pl.BlockSpec((tm, tk), lambda i, j, k: (i, k)),
                pl.BlockSpec((tk, tn), lambda i, j, k: (k, j)),
                pl.BlockSpec((1, tn), lambda i, j, k: (0, j)),
            ],
            out_specs=pl.BlockSpec((tm, tn), lambda i, j, k: (i, j)),
            scratch_shapes=[pltpu.VMEM((tm, tn), jnp.float32)],
        ),
        compiler_params=pltpu.CompilerParams(
            dimension_semantics=("parallel", "parallel", "arbitrary"),
            vmem_limit_bytes=32 * 1024 * 1024),
    )(x2d, w2d, b2d)
    if Mp != M:
        out = out[:M]
    return out


# ---------------------------------------------------------------------------
# DECBR2d: ConvTranspose2d(k=4, s=2, p=1) + bias [+ act]; NHWC activations.
# One dense matmul (N*H*W, Cin) @ (Cin, 16*Cout) + cheap XLA col2im.
# ---------------------------------------------------------------------------
_TAPS = {0: ((1, 1), (3, 0)),    # output parity -> ((kernel tap, padded slice start), ...)
         1: ((0, 2), (2, 1))}


def decbr2d(x_nhwc, wbig, bbig, cout, act, out_dtype):
    N, H, W, Cin = x_nhwc.shape
    NT = 16 * cout

    x2d = x_nhwc.reshape(N * H * W, Cin)
    v = _fused_matmul(x2d, wbig, bbig)                         # (M, NTp) bf16
    v = v[:, :NT].reshape(N, H, W, 4, 4, cout)

    # col2im overlap-add for stride 2, padding 1; f32 adds of bf16 terms,
    # assembled directly in (N, H, py, W, px, C) order -> final interleave is
    # a free reshape (no 6-D transpose).
    vp = jnp.pad(v, ((0, 0), (1, 1), (1, 1), (0, 0), (0, 0), (0, 0)))
    py_rows = []
    for py in (0, 1):
        px_cols = []
        for px in (0, 1):
            acc = jnp.zeros((N, H, W, cout), jnp.float32)
            for ky, sy in _TAPS[py]:
                for kx, sx in _TAPS[px]:
                    acc = acc + vp[:, sy:sy + H, sx:sx + W, ky, kx, :].astype(jnp.float32)
            px_cols.append(acc)
        py_rows.append(jnp.stack(px_cols, axis=3))             # (N, H, W, 2, C)
    q = jnp.stack(py_rows, axis=2)                             # (N, H, 2, W, 2, C)
    out = q.reshape(N, 2 * H, 2 * W, cout)

    if act == "relu":
        out = jnp.maximum(out, 0.0)
    else:                                                      # "sigmoid"
        out = jax.nn.sigmoid(out)
    return out.astype(out_dtype)


# ---------------------------------------------------------------------------
# One-time parameter prep (hoisted out of the forward path).
# ---------------------------------------------------------------------------
def prep_params(params):
    """(Cin,Cout,4,4) f32 + (Cout,) f32 -> ((Cin,NTp) bf16, (1,NTp) f32), couts.
    Bias is attached to the 4 centre taps (ky,kx in {1,2}x{1,2}); every output
    pixel consumes exactly one of them, so the bias is added exactly once."""
    prepped = []
    couts = []
    for w, b in params:
        cin, cout = int(w.shape[0]), int(w.shape[1])
        wbig = jnp.transpose(w, (0, 2, 3, 1)).reshape(cin, 16 * cout)
        bbig = jnp.zeros((4, 4, cout), jnp.float32)
        bbig = bbig.at[1:3, 1:3, :].set(b[None, None, :]).reshape(1, 16 * cout)
        nt = 16 * cout
        ntp = _round_up(nt, 128)                 # lane-dense output lanes
        if ntp != nt:
            wbig = jnp.pad(wbig, ((0, 0), (0, ntp - nt)))
            bbig = jnp.pad(bbig, ((0, 0), (0, ntp - nt)))
        prepped.append((wbig.astype(jnp.bfloat16), bbig))
        couts.append(cout)
    return prepped, tuple(couts)


# ---------------------------------------------------------------------------
# AutoEncoder_De forward (== netD forward); NCHW at the module boundary.
# ---------------------------------------------------------------------------
@functools.partial(jax.jit, static_argnums=(2,))
def autoencoder_de_forward(x_nchw, prepped, couts):
    h = jnp.transpose(x_nchw, (0, 2, 3, 1)).astype(jnp.bfloat16)   # NCHW->NHWC once
    last = len(couts) - 1
    for li, ((wbig, bbig), cout) in enumerate(zip(prepped, couts)):
        act = "relu" if li < last else "sigmoid"                   # dec6: no ReLU
        out_dtype = jnp.bfloat16 if li < last else jnp.float32
        h = decbr2d(h, wbig, bbig, cout, act, out_dtype)
    return jnp.transpose(h, (0, 3, 1, 2))                          # NHWC->NCHW once


def init_params(key, nker, out_channels):
    chans = [32 * nker, 16 * nker, 8 * nker, 4 * nker, 2 * nker, 1 * nker,
             out_channels]
    params = []
    for li in range(6):
        key, kw, kb = jax.random.split(key, 3)
        cin, cout = chans[li], chans[li + 1]
        w = jax.random.normal(kw, (cin, cout, 4, 4), jnp.float32)
        w = w * (1.0 / np.sqrt(cin * 16))
        b = 0.01 * jax.random.normal(kb, (cout,), jnp.float32)
        params.append((w, b))
    return params


# ---------------------------------------------------------------------------
# Pure-JAX reference: direct ConvTranspose2d scatter, mirroring the kernel's
# quantization (bf16 inputs/weights, f32 accumulate, per-tap bf16 writeback
# with bias on the centre taps, f32 overlap-add).  All dots are f32 x f32 of
# bf16-rounded values -> no backend needs a mixed bf16->f32 dot.
# ---------------------------------------------------------------------------
def _convT_ref(x, w, b):
    N, Cin, H, W = x.shape
    Cout = w.shape[1]
    xq = x.astype(jnp.bfloat16).astype(jnp.float32)
    wq = w.astype(jnp.bfloat16).astype(jnp.float32)
    full = jnp.zeros((N, Cout, 2 * H + 2, 2 * W + 2), jnp.float32)
    for ky in range(4):
        for kx in range(4):
            contrib = jnp.einsum("nchw,cd->ndhw", xq, wq[:, :, ky, kx],
                                 preferred_element_type=jnp.float32)
            if 1 <= ky <= 2 and 1 <= kx <= 2:
                contrib = contrib + b[None, :, None, None]
            contrib = contrib.astype(jnp.bfloat16).astype(jnp.float32)
            full = full.at[:, :, ky:ky + 2 * H:2, kx:kx + 2 * W:2].add(contrib)
    return full[:, :, 1:1 + 2 * H, 1:1 + 2 * W]


@jax.jit
def reference_forward(x, params):
    h = x
    n = len(params)
    for li, (w, b) in enumerate(params):
        h = _convT_ref(h, w, b)
        if li < n - 1:
            h = jnp.maximum(h, 0.0)
    return jax.nn.sigmoid(h)


if __name__ == "__main__":
    nker = 4            # small demo (module default is 32)
    out_channels = 3
    N, H, W = 2, 2, 2   # netD input is the 32*nker-channel latent

    key = jax.random.PRNGKey(0)
    key, kx = jax.random.split(key)
    x = jax.random.normal(kx, (N, 32 * nker, H, W), jnp.float32)
    params = init_params(jax.random.PRNGKey(1), nker, out_channels)
    prepped, couts = prep_params(params)

    out = autoencoder_de_forward(x, prepped, couts)
    out = jax.block_until_ready(out)
    assert out.shape == (N, out_channels, H * 64, W * 64)

    ref = jax.block_until_ready(reference_forward(x, params))
    np.testing.assert_allclose(np.asarray(out, dtype=np.float32),
                               np.asarray(ref, dtype=np.float32),
                               rtol=5e-3, atol=5e-3)
    print("KERNEL_OK")
</pallas_src>

<mosaic_0001>
module attributes {stable_mosaic.version = 11 : i64} {
  func.func @_matmul_bias_kernel(%arg0: i32, %arg1: i32, %arg2: i32, %arg3: memref<8x128xbf16, #tpu.memory_space<vmem>>, %arg4: memref<128x512xbf16, #tpu.memory_space<vmem>>, %arg5: memref<1x512xf32, #tpu.memory_space<vmem>>, %arg6: memref<8x512xbf16, #tpu.memory_space<vmem>>, %arg7: memref<8x512xf32, #tpu.memory_space<vmem>>) attributes {dimension_semantics = [#tpu.dimension_semantics<parallel>, #tpu.dimension_semantics<parallel>, #tpu.dimension_semantics<arbitrary>], iteration_bounds = array<i64: 1, 2, 1>, scalar_prefetch = 0 : i64, scratch_operands = 1 : i64, tpu.core_type = #tpu.core_type<tc>, window_params = [{transform_indices = @transform_0, window_bounds = array<i64: 8, 128>}, {transform_indices = @transform_1, window_bounds = array<i64: 128, 512>}, {transform_indices = @transform_2, window_bounds = array<i64: 1, 512>}, {transform_indices = @transform_3, window_bounds = array<i64: 8, 512>}]} {
    %c0_i32 = arith.constant 0 : i32
    %0 = arith.cmpi eq, %arg2, %c0_i32 : i32
    %1 = arith.extui %0 : i1 to i32
    %c0_i32_0 = arith.constant 0 : i32
    %2 = arith.cmpi ne, %1, %c0_i32_0 : i32
    scf.if %2 {
      %cst_10 = arith.constant 0.000000e+00 : f32
      %12 = vector.broadcast %cst_10 : f32 to vector<8x512xf32>
      %c0_11 = arith.constant 0 : index
      %c0_12 = arith.constant 0 : index
      %13 = vector.load %arg7[%c0_11, %c0_12] : memref<8x512xf32, #tpu.memory_space<vmem>>, vector<8x512xf32>
      tpu.vector_store %arg7[%c0_11, %c0_12], %12 {strides = array<i32>} : memref<8x512xf32, #tpu.memory_space<vmem>>, vector<8x512xf32>,
    } else {
    }
    %c0 = arith.constant 0 : index
    %c0_1 = arith.constant 0 : index
    %3 = vector.load %arg7[%c0, %c0_1] : memref<8x512xf32, #tpu.memory_space<vmem>>, vector<8x512xf32>
    %c0_2 = arith.constant 0 : index
    %c0_3 = arith.constant 0 : index
    %4 = vector.load %arg3[%c0_2, %c0_3] : memref<8x128xbf16, #tpu.memory_space<vmem>>, vector<8x128xbf16>
    %c0_4 = arith.constant 0 : index
    %c0_5 = arith.constant 0 : index
    %5 = vector.load %arg4[%c0_4, %c0_5] : memref<128x512xbf16, #tpu.memory_space<vmem>>, vector<128x512xbf16>
    %cst = arith.constant dense<0.000000e+00> : vector<8x512xf32>
    %6 = tpu.matmul %4, %5, %cst {dimension_numbers = #tpu.dot_dimension_numbers<[1], [0], [0], [1], [0, 0, 1, 1], [], []>} : vector<8x128xbf16>, vector<128x512xbf16>, vector<8x512xf32> -> vector<8x512xf32>
    %7 = arith.addf %3, %6 : vector<8x512xf32>
    %c0_6 = arith.constant 0 : index
    %c0_7 = arith.constant 0 : index
    %8 = vector.load %arg7[%c0_6, %c0_7] : memref<8x512xf32, #tpu.memory_space<vmem>>, vector<8x512xf32>
    tpu.vector_store %arg7[%c0_6, %c0_7], %7 {strides = array<i32>} : memref<8x512xf32, #tpu.memory_space<vmem>>, vector<8x512xf32>,
    %c0_i32_8 = arith.constant 0 : i32
    %9 = arith.cmpi eq, %arg2, %c0_i32_8 : i32
    %10 = arith.extui %9 : i1 to i32
    %c0_i32_9 = arith.constant 0 : i32
    %11 = arith.cmpi ne, %10, %c0_i32_9 : i32
    scf.if %11 {
      %c0_10 = arith.constant 0 : index
      %c0_11 = arith.constant 0 : index
      %12 = vector.load %arg7[%c0_10, %c0_11] : memref<8x512xf32, #tpu.memory_space<vmem>>, vector<8x512xf32>
      %c0_12 = arith.constant 0 : index
      %c0_13 = arith.constant 0 : index
      %13 = vector.load %arg5[%c0_12, %c0_13] : memref<1x512xf32, #tpu.memory_space<vmem>>, vector<1x512xf32>
      %14 = vector.broadcast %13 : vector<1x512xf32> to vector<8x512xf32>
      %15 = arith.addf %12, %14 : vector<8x512xf32>
      %16 = arith.truncf %15 : vector<8x512xf32> to vector<8x512xbf16>
      %c0_14 = arith.constant 0 : index
      %c0_15 = arith.constant 0 : index
      %17 = vector.load %arg6[%c0_14, %c0_15] : memref<8x512xbf16, #tpu.memory_space<vmem>>, vector<8x512xbf16>
      tpu.vector_store %arg6[%c0_14, %c0_15], %16 {strides = array<i32>} : memref<8x512xbf16, #tpu.memory_space<vmem>>, vector<8x512xbf16>,
    } else {
    }
    return
  }
  func.func @transform_0(%arg0: i32, %arg1: i32, %arg2: i32) -> (i32, i32) {
    %c0_i32 = arith.constant 0 : i32
    return %arg0, %arg2 : i32, i32
  }
  func.func @transform_1(%arg0: i32, %arg1: i32, %arg2: i32) -> (i32, i32) {
    %c0_i32 = arith.constant 0 : i32
    return %arg2, %arg1 : i32, i32
  }
  func.func @transform_2(%arg0: i32, %arg1: i32, %arg2: i32) -> (i32, i32) {
    %c0_i32 = arith.constant 0 : i32
    %c0_i32_0 = arith.constant 0 : i32
    return %c0_i32, %arg1 : i32, i32
  }
  func.func @transform_3(%arg0: i32, %arg1: i32, %arg2: i32) -> (i32, i32) {
    %c0_i32 = arith.constant 0 : i32
    return %arg0, %arg1 : i32, i32
  }
}

module attributes {stable_mosaic.version = 11 : i64} {
  func.func @_matmul_bias_kernel(%arg0: i32, %arg1: i32, %arg2: i32, %arg3: memref<32x64xbf16, #tpu.memory_space<vmem>>, %arg4: memref<64x256xbf16, #tpu.memory_space<vmem>>, %arg5: memref<1x256xf32, #tpu.memory_space<vmem>>, %arg6: memref<32x256xbf16, #tpu.memory_space<vmem>>, %arg7: memref<32x256xf32, #tpu.memory_space<vmem>>) attributes {dimension_semantics = [#tpu.dimension_semantics<parallel>, #tpu.dimension_semantics<parallel>, #tpu.dimension_semantics<arbitrary>], iteration_bounds = array<i64: 1, 2, 1>, scalar_prefetch = 0 : i64, scratch_operands = 1 : i64, tpu.core_type = #tpu.core_type<tc>, window_params = [{transform_indices = @transform_0, window_bounds = array<i64: 32, 64>}, {transform_indices = @transform_1, window_bounds = array<i64: 64, 256>}, {transform_indices = @transform_2, window_bounds = array<i64: 1, 256>}, {transform_indices = @transform_3, window_bounds = array<i64: 32, 256>}]} {
    %c0_i32 = arith.constant 0 : i32
    %0 = arith.cmpi eq, %arg2, %c0_i32 : i32
    %1 = arith.extui %0 : i1 to i32
    %c0_i32_0 = arith.constant 0 : i32
    %2 = arith.cmpi ne, %1, %c0_i32_0 : i32
    scf.if %2 {
      %cst_10 = arith.constant 0.000000e+00 : f32
      %12 = vector.broadcast %cst_10 : f32 to vector<32x256xf32>
      %c0_11 = arith.constant 0 : index
      %c0_12 = arith.constant 0 : index
      %13 = vector.load %arg7[%c0_11, %c0_12] : memref<32x256xf32, #tpu.memory_space<vmem>>, vector<32x256xf32>
      tpu.vector_store %arg7[%c0_11, %c0_12], %12 {strides = array<i32>} : memref<32x256xf32, #tpu.memory_space<vmem>>, vector<32x256xf32>,
    } else {
    }
    %c0 = arith.constant 0 : index
    %c0_1 = arith.constant 0 : index
    %3 = vector.load %arg7[%c0, %c0_1] : memref<32x256xf32, #tpu.memory_space<vmem>>, vector<32x256xf32>
    %c0_2 = arith.constant 0 : index
    %c0_3 = arith.constant 0 : index
    %4 = vector.load %arg3[%c0_2, %c0_3] : memref<32x64xbf16, #tpu.memory_space<vmem>>, vector<32x64xbf16>
    %c0_4 = arith.constant 0 : index
    %c0_5 = arith.constant 0 : index
    %5 = vector.load %arg4[%c0_4, %c0_5] : memref<64x256xbf16, #tpu.memory_space<vmem>>, vector<64x256xbf16>
    %cst = arith.constant dense<0.000000e+00> : vector<32x256xf32>
    %6 = tpu.matmul %4, %5, %cst {dimension_numbers = #tpu.dot_dimension_numbers<[1], [0], [0], [1], [0, 0, 1, 1], [], []>} : vector<32x64xbf16>, vector<64x256xbf16>, vector<32x256xf32> -> vector<32x256xf32>
    %7 = arith.addf %3, %6 : vector<32x256xf32>
    %c0_6 = arith.constant 0 : index
    %c0_7 = arith.constant 0 : index
    %8 = vector.load %arg7[%c0_6, %c0_7] : memref<32x256xf32, #tpu.memory_space<vmem>>, vector<32x256xf32>
    tpu.vector_store %arg7[%c0_6, %c0_7], %7 {strides = array<i32>} : memref<32x256xf32, #tpu.memory_space<vmem>>, vector<32x256xf32>,
    %c0_i32_8 = arith.constant 0 : i32
    %9 = arith.cmpi eq, %arg2, %c0_i32_8 : i32
    %10 = arith.extui %9 : i1 to i32
    %c0_i32_9 = arith.constant 0 : i32
    %11 = arith.cmpi ne, %10, %c0_i32_9 : i32
    scf.if %11 {
      %c0_10 = arith.constant 0 : index
      %c0_11 = arith.constant 0 : index
      %12 = vector.load %arg7[%c0_10, %c0_11] : memref<32x256xf32, #tpu.memory_space<vmem>>, vector<32x256xf32>
      %c0_12 = arith.constant 0 : index
      %c0_13 = arith.constant 0 : index
      %13 = vector.load %arg5[%c0_12, %c0_13] : memref<1x256xf32, #tpu.memory_space<vmem>>, vector<1x256xf32>
      %14 = vector.broadcast %13 : vector<1x256xf32> to vector<32x256xf32>
      %15 = arith.addf %12, %14 : vector<32x256xf32>
      %16 = arith.truncf %15 : vector<32x256xf32> to vector<32x256xbf16>
      %c0_14 = arith.constant 0 : index
      %c0_15 = arith.constant 0 : index
      %17 = vector.load %arg6[%c0_14, %c0_15] : memref<32x256xbf16, #tpu.memory_space<vmem>>, vector<32x256xbf16>
      tpu.vector_store %arg6[%c0_14, %c0_15], %16 {strides = array<i32>} : memref<32x256xbf16, #tpu.memory_space<vmem>>, vector<32x256xbf16>,
    } else {
    }
    return
  }
  func.func @transform_0(%arg0: i32, %arg1: i32, %arg2: i32) -> (i32, i32) {
    %c0_i32 = arith.constant 0 : i32
    return %arg0, %arg2 : i32, i32
  }
  func.func @transform_1(%arg0: i32, %arg1: i32, %arg2: i32) -> (i32, i32) {
    %c0_i32 = arith.constant 0 : i32
    return %arg2, %arg1 : i32, i32
  }
  func.func @transform_2(%arg0: i32, %arg1: i32, %arg2: i32) -> (i32, i32) {
    %c0_i32 = arith.constant 0 : i32
    %c0_i32_0 = arith.constant 0 : i32
    return %c0_i32, %arg1 : i32, i32
  }
  func.func @transform_3(%arg0: i32, %arg1: i32, %arg2: i32) -> (i32, i32) {
    %c0_i32 = arith.constant 0 : i32
    return %arg0, %arg1 : i32, i32
  }
}

module attributes {stable_mosaic.version = 11 : i64} {
  func.func @_matmul_bias_kernel(%arg0: i32, %arg1: i32, %arg2: i32, %arg3: memref<128x32xbf16, #tpu.memory_space<vmem>>, %arg4: memref<32x128xbf16, #tpu.memory_space<vmem>>, %arg5: memref<1x128xf32, #tpu.memory_space<vmem>>, %arg6: memref<128x128xbf16, #tpu.memory_space<vmem>>, %arg7: memref<128x128xf32, #tpu.memory_space<vmem>>) attributes {dimension_semantics = [#tpu.dimension_semantics<parallel>, #tpu.dimension_semantics<parallel>, #tpu.dimension_semantics<arbitrary>], iteration_bounds = array<i64: 1, 2, 1>, scalar_prefetch = 0 : i64, scratch_operands = 1 : i64, tpu.core_type = #tpu.core_type<tc>, window_params = [{transform_indices = @transform_0, window_bounds = array<i64: 128, 32>}, {transform_indices = @transform_1, window_bounds = array<i64: 32, 128>}, {transform_indices = @transform_2, window_bounds = array<i64: 1, 128>}, {transform_indices = @transform_3, window_bounds = array<i64: 128, 128>}]} {
    %c0_i32 = arith.constant 0 : i32
    %0 = arith.cmpi eq, %arg2, %c0_i32 : i32
    %1 = arith.extui %0 : i1 to i32
    %c0_i32_0 = arith.constant 0 : i32
    %2 = arith.cmpi ne, %1, %c0_i32_0 : i32
    scf.if %2 {
      %cst_10 = arith.constant 0.000000e+00 : f32
      %12 = vector.broadcast %cst_10 : f32 to vector<128x128xf32>
      %c0_11 = arith.constant 0 : index
      %c0_12 = arith.constant 0 : index
      %13 = vector.load %arg7[%c0_11, %c0_12] : memref<128x128xf32, #tpu.memory_space<vmem>>, vector<128x128xf32>
      tpu.vector_store %arg7[%c0_11, %c0_12], %12 {strides = array<i32>} : memref<128x128xf32, #tpu.memory_space<vmem>>, vector<128x128xf32>,
    } else {
    }
    %c0 = arith.constant 0 : index
    %c0_1 = arith.constant 0 : index
    %3 = vector.load %arg7[%c0, %c0_1] : memref<128x128xf32, #tpu.memory_space<vmem>>, vector<128x128xf32>
    %c0_2 = arith.constant 0 : index
    %c0_3 = arith.constant 0 : index
    %4 = vector.load %arg3[%c0_2, %c0_3] : memref<128x32xbf16, #tpu.memory_space<vmem>>, vector<128x32xbf16>
    %c0_4 = arith.constant 0 : index
    %c0_5 = arith.constant 0 : index
    %5 = vector.load %arg4[%c0_4, %c0_5] : memref<32x128xbf16, #tpu.memory_space<vmem>>, vector<32x128xbf16>
    %cst = arith.constant dense<0.000000e+00> : vector<128x128xf32>
    %6 = tpu.matmul %4, %5, %cst {dimension_numbers = #tpu.dot_dimension_numbers<[1], [0], [0], [1], [0, 0, 1, 1], [], []>} : vector<128x32xbf16>, vector<32x128xbf16>, vector<128x128xf32> -> vector<128x128xf32>
    %7 = arith.addf %3, %6 : vector<128x128xf32>
    %c0_6 = arith.constant 0 : index
    %c0_7 = arith.constant 0 : index
    %8 = vector.load %arg7[%c0_6, %c0_7] : memref<128x128xf32, #tpu.memory_space<vmem>>, vector<128x128xf32>
    tpu.vector_store %arg7[%c0_6, %c0_7], %7 {strides = array<i32>} : memref<128x128xf32, #tpu.memory_space<vmem>>, vector<128x128xf32>,
    %c0_i32_8 = arith.constant 0 : i32
    %9 = arith.cmpi eq, %arg2, %c0_i32_8 : i32
    %10 = arith.extui %9 : i1 to i32
    %c0_i32_9 = arith.constant 0 : i32
    %11 = arith.cmpi ne, %10, %c0_i32_9 : i32
    scf.if %11 {
      %c0_10 = arith.constant 0 : index
      %c0_11 = arith.constant 0 : index
      %12 = vector.load %arg7[%c0_10, %c0_11] : memref<128x128xf32, #tpu.memory_space<vmem>>, vector<128x128xf32>
      %c0_12 = arith.constant 0 : index
      %c0_13 = arith.constant 0 : index
      %13 = vector.load %arg5[%c0_12, %c0_13] : memref<1x128xf32, #tpu.memory_space<vmem>>, vector<1x128xf32>
      %14 = vector.broadcast %13 : vector<1x128xf32> to vector<128x128xf32>
      %15 = arith.addf %12, %14 : vector<128x128xf32>
      %16 = arith.truncf %15 : vector<128x128xf32> to vector<128x128xbf16>
      %c0_14 = arith.constant 0 : index
      %c0_15 = arith.constant 0 : index
      %17 = vector.load %arg6[%c0_14, %c0_15] : memref<128x128xbf16, #tpu.memory_space<vmem>>, vector<128x128xbf16>
      tpu.vector_store %arg6[%c0_14, %c0_15], %16 {strides = array<i32>} : memref<128x128xbf16, #tpu.memory_space<vmem>>, vector<128x128xbf16>,
    } else {
    }
    return
  }
  func.func @transform_0(%arg0: i32, %arg1: i32, %arg2: i32) -> (i32, i32) {
    %c0_i32 = arith.constant 0 : i32
    return %arg0, %arg2 : i32, i32
  }
  func.func @transform_1(%arg0: i32, %arg1: i32, %arg2: i32) -> (i32, i32) {
    %c0_i32 = arith.constant 0 : i32
    return %arg2, %arg1 : i32, i32
  }
  func.func @transform_2(%arg0: i32, %arg1: i32, %arg2: i32) -> (i32, i32) {
    %c0_i32 = arith.constant 0 : i32
    %c0_i32_0 = arith.constant 0 : i32
    return %c0_i32, %arg1 : i32, i32
  }
  func.func @transform_3(%arg0: i32, %arg1: i32, %arg2: i32) -> (i32, i32) {
    %c0_i32 = arith.constant 0 : i32
    return %arg0, %arg1 : i32, i32
  }
}

module attributes {stable_mosaic.version = 11 : i64} {
  func.func @_matmul_bias_kernel(%arg0: i32, %arg1: i32, %arg2: i32, %arg3: memref<512x16xbf16, #tpu.memory_space<vmem>>, %arg4: memref<16x128xbf16, #tpu.memory_space<vmem>>, %arg5: memref<1x128xf32, #tpu.memory_space<vmem>>, %arg6: memref<512x128xbf16, #tpu.memory_space<vmem>>, %arg7: memref<512x128xf32, #tpu.memory_space<vmem>>) attributes {dimension_semantics = [#tpu.dimension_semantics<parallel>, #tpu.dimension_semantics<parallel>, #tpu.dimension_semantics<arbitrary>], iteration_bounds = array<i64: 1, 1, 1>, scalar_prefetch = 0 : i64, scratch_operands = 1 : i64, tpu.core_type = #tpu.core_type<tc>, window_params = [{transform_indices = @transform_0, window_bounds = array<i64: 512, 16>}, {transform_indices = @transform_1, window_bounds = array<i64: 16, 128>}, {transform_indices = @transform_2, window_bounds = array<i64: 1, 128>}, {transform_indices = @transform_3, window_bounds = array<i64: 512, 128>}]} {
    %c0_i32 = arith.constant 0 : i32
    %0 = arith.cmpi eq, %arg2, %c0_i32 : i32
    %1 = arith.extui %0 : i1 to i32
    %c0_i32_0 = arith.constant 0 : i32
    %2 = arith.cmpi ne, %1, %c0_i32_0 : i32
    scf.if %2 {
      %cst_10 = arith.constant 0.000000e+00 : f32
      %12 = vector.broadcast %cst_10 : f32 to vector<512x128xf32>
      %c0_11 = arith.constant 0 : index
      %c0_12 = arith.constant 0 : index
      %13 = vector.load %arg7[%c0_11, %c0_12] : memref<512x128xf32, #tpu.memory_space<vmem>>, vector<512x128xf32>
      tpu.vector_store %arg7[%c0_11, %c0_12], %12 {strides = array<i32>} : memref<512x128xf32, #tpu.memory_space<vmem>>, vector<512x128xf32>,
    } else {
    }
    %c0 = arith.constant 0 : index
    %c0_1 = arith.constant 0 : index
    %3 = vector.load %arg7[%c0, %c0_1] : memref<512x128xf32, #tpu.memory_space<vmem>>, vector<512x128xf32>
    %c0_2 = arith.constant 0 : index
    %c0_3 = arith.constant 0 : index
    %4 = vector.load %arg3[%c0_2, %c0_3] : memref<512x16xbf16, #tpu.memory_space<vmem>>, vector<512x16xbf16>
    %c0_4 = arith.constant 0 : index
    %c0_5 = arith.constant 0 : index
    %5 = vector.load %arg4[%c0_4, %c0_5] : memref<16x128xbf16, #tpu.memory_space<vmem>>, vector<16x128xbf16>
    %cst = arith.constant dense<0.000000e+00> : vector<512x128xf32>
    %6 = tpu.matmul %4, %5, %cst {dimension_numbers = #tpu.dot_dimension_numbers<[1], [0], [0], [1], [0, 0, 1, 1], [], []>} : vector<512x16xbf16>, vector<16x128xbf16>, vector<512x128xf32> -> vector<512x128xf32>
    %7 = arith.addf %3, %6 : vector<512x128xf32>
    %c0_6 = arith.constant 0 : index
    %c0_7 = arith.constant 0 : index
    %8 = vector.load %arg7[%c0_6, %c0_7] : memref<512x128xf32, #tpu.memory_space<vmem>>, vector<512x128xf32>
    tpu.vector_store %arg7[%c0_6, %c0_7], %7 {strides = array<i32>} : memref<512x128xf32, #tpu.memory_space<vmem>>, vector<512x128xf32>,
    %c0_i32_8 = arith.constant 0 : i32
    %9 = arith.cmpi eq, %arg2, %c0_i32_8 : i32
    %10 = arith.extui %9 : i1 to i32
    %c0_i32_9 = arith.constant 0 : i32
    %11 = arith.cmpi ne, %10, %c0_i32_9 : i32
    scf.if %11 {
      %c0_10 = arith.constant 0 : index
      %c0_11 = arith.constant 0 : index
      %12 = vector.load %arg7[%c0_10, %c0_11] : memref<512x128xf32, #tpu.memory_space<vmem>>, vector<512x128xf32>
      %c0_12 = arith.constant 0 : index
      %c0_13 = arith.constant 0 : index
      %13 = vector.load %arg5[%c0_12, %c0_13] : memref<1x128xf32, #tpu.memory_space<vmem>>, vector<1x128xf32>
      %14 = vector.broadcast %13 : vector<1x128xf32> to vector<512x128xf32>
      %15 = arith.addf %12, %14 : vector<512x128xf32>
      %16 = arith.truncf %15 : vector<512x128xf32> to vector<512x128xbf16>
      %c0_14 = arith.constant 0 : index
      %c0_15 = arith.constant 0 : index
      %17 = vector.load %arg6[%c0_14, %c0_15] : memref<512x128xbf16, #tpu.memory_space<vmem>>, vector<512x128xbf16>
      tpu.vector_store %arg6[%c0_14, %c0_15], %16 {strides = array<i32>} : memref<512x128xbf16, #tpu.memory_space<vmem>>, vector<512x128xbf16>,
    } else {
    }
    return
  }
  func.func @transform_0(%arg0: i32, %arg1: i32, %arg2: i32) -> (i32, i32) {
    %c0_i32 = arith.constant 0 : i32
    return %arg0, %arg2 : i32, i32
  }
  func.func @transform_1(%arg0: i32, %arg1: i32, %arg2: i32) -> (i32, i32) {
    %c0_i32 = arith.constant 0 : i32
    return %arg2, %arg1 : i32, i32
  }
  func.func @transform_2(%arg0: i32, %arg1: i32, %arg2: i32) -> (i32, i32) {
    %c0_i32 = arith.constant 0 : i32
    %c0_i32_0 = arith.constant 0 : i32
    return %c0_i32, %arg1 : i32, i32
  }
  func.func @transform_3(%arg0: i32, %arg1: i32, %arg2: i32) -> (i32, i32) {
    %c0_i32 = arith.constant 0 : i32
    return %arg0, %arg1 : i32, i32
  }
}

module attributes {stable_mosaic.version = 11 : i64} {
  func.func @_matmul_bias_kernel(%arg0: i32, %arg1: i32, %arg2: i32, %arg3: memref<1024x8xbf16, #tpu.memory_space<vmem>>, %arg4: memref<8x128xbf16, #tpu.memory_space<vmem>>, %arg5: memref<1x128xf32, #tpu.memory_space<vmem>>, %arg6: memref<1024x128xbf16, #tpu.memory_space<vmem>>, %arg7: memref<1024x128xf32, #tpu.memory_space<vmem>>) attributes {dimension_semantics = [#tpu.dimension_semantics<parallel>, #tpu.dimension_semantics<parallel>, #tpu.dimension_semantics<arbitrary>], iteration_bounds = array<i64: 2, 1, 1>, scalar_prefetch = 0 : i64, scratch_operands = 1 : i64, tpu.core_type = #tpu.core_type<tc>, window_params = [{transform_indices = @transform_0, window_bounds = array<i64: 1024, 8>}, {transform_indices = @transform_1, window_bounds = array<i64: 8, 128>}, {transform_indices = @transform_2, window_bounds = array<i64: 1, 128>}, {transform_indices = @transform_3, window_bounds = array<i64: 1024, 128>}]} {
    %c0_i32 = arith.constant 0 : i32
    %0 = arith.cmpi eq, %arg2, %c0_i32 : i32
    %1 = arith.extui %0 : i1 to i32
    %c0_i32_0 = arith.constant 0 : i32
    %2 = arith.cmpi ne, %1, %c0_i32_0 : i32
    scf.if %2 {
      %cst_10 = arith.constant 0.000000e+00 : f32
      %12 = vector.broadcast %cst_10 : f32 to vector<1024x128xf32>
      %c0_11 = arith.constant 0 : index
      %c0_12 = arith.constant 0 : index
      %13 = vector.load %arg7[%c0_11, %c0_12] : memref<1024x128xf32, #tpu.memory_space<vmem>>, vector<1024x128xf32>
      tpu.vector_store %arg7[%c0_11, %c0_12], %12 {strides = array<i32>} : memref<1024x128xf32, #tpu.memory_space<vmem>>, vector<1024x128xf32>,
    } else {
    }
    %c0 = arith.constant 0 : index
    %c0_1 = arith.constant 0 : index
    %3 = vector.load %arg7[%c0, %c0_1] : memref<1024x128xf32, #tpu.memory_space<vmem>>, vector<1024x128xf32>
    %c0_2 = arith.constant 0 : index
    %c0_3 = arith.constant 0 : index
    %4 = vector.load %arg3[%c0_2, %c0_3] : memref<1024x8xbf16, #tpu.memory_space<vmem>>, vector<1024x8xbf16>
    %c0_4 = arith.constant 0 : index
    %c0_5 = arith.constant 0 : index
    %5 = vector.load %arg4[%c0_4, %c0_5] : memref<8x128xbf16, #tpu.memory_space<vmem>>, vector<8x128xbf16>
    %cst = arith.constant dense<0.000000e+00> : vector<1024x128xf32>
    %6 = tpu.matmul %4, %5, %cst {dimension_numbers = #tpu.dot_dimension_numbers<[1], [0], [0], [1], [0, 0, 1, 1], [], []>} : vector<1024x8xbf16>, vector<8x128xbf16>, vector<1024x128xf32> -> vector<1024x128xf32>
    %7 = arith.addf %3, %6 : vector<1024x128xf32>
    %c0_6 = arith.constant 0 : index
    %c0_7 = arith.constant 0 : index
    %8 = vector.load %arg7[%c0_6, %c0_7] : memref<1024x128xf32, #tpu.memory_space<vmem>>, vector<1024x128xf32>
    tpu.vector_store %arg7[%c0_6, %c0_7], %7 {strides = array<i32>} : memref<1024x128xf32, #tpu.memory_space<vmem>>, vector<1024x128xf32>,
    %c0_i32_8 = arith.constant 0 : i32
    %9 = arith.cmpi eq, %arg2, %c0_i32_8 : i32
    %10 = arith.extui %9 : i1 to i32
    %c0_i32_9 = arith.constant 0 : i32
    %11 = arith.cmpi ne, %10, %c0_i32_9 : i32
    scf.if %11 {
      %c0_10 = arith.constant 0 : index
      %c0_11 = arith.constant 0 : index
      %12 = vector.load %arg7[%c0_10, %c0_11] : memref<1024x128xf32, #tpu.memory_space<vmem>>, vector<1024x128xf32>
      %c0_12 = arith.constant 0 : index
      %c0_13 = arith.constant 0 : index
      %13 = vector.load %arg5[%c0_12, %c0_13] : memref<1x128xf32, #tpu.memory_space<vmem>>, vector<1x128xf32>
      %14 = vector.broadcast %13 : vector<1x128xf32> to vector<1024x128xf32>
      %15 = arith.addf %12, %14 : vector<1024x128xf32>
      %16 = arith.truncf %15 : vector<1024x128xf32> to vector<1024x128xbf16>
      %c0_14 = arith.constant 0 : index
      %c0_15 = arith.constant 0 : index
      %17 = vector.load %arg6[%c0_14, %c0_15] : memref<1024x128xbf16, #tpu.memory_space<vmem>>, vector<1024x128xbf16>
      tpu.vector_store %arg6[%c0_14, %c0_15], %16 {strides = array<i32>} : memref<1024x128xbf16, #tpu.memory_space<vmem>>, vector<1024x128xbf16>,
    } else {
    }
    return
  }
  func.func @transform_0(%arg0: i32, %arg1: i32, %arg2: i32) -> (i32, i32) {
    %c0_i32 = arith.constant 0 : i32
    return %arg0, %arg2 : i32, i32
  }
  func.func @transform_1(%arg0: i32, %arg1: i32, %arg2: i32) -> (i32, i32) {
    %c0_i32 = arith.constant 0 : i32
    return %arg2, %arg1 : i32, i32
  }
  func.func @transform_2(%arg0: i32, %arg1: i32, %arg2: i32) -> (i32, i32) {
    %c0_i32 = arith.constant 0 : i32
    %c0_i32_0 = arith.constant 0 : i32
    return %c0_i32, %arg1 : i32, i32
  }
  func.func @transform_3(%arg0: i32, %arg1: i32, %arg2: i32) -> (i32, i32) {
    %c0_i32 = arith.constant 0 : i32
    return %arg0, %arg1 : i32, i32
  }
}

module attributes {stable_mosaic.version = 11 : i64} {
  func.func @_matmul_bias_kernel(%arg0: i32, %arg1: i32, %arg2: i32, %arg3: memref<1024x4xbf16, #tpu.memory_space<vmem>>, %arg4: memref<4x128xbf16, #tpu.memory_space<vmem>>, %arg5: memref<1x128xf32, #tpu.memory_space<vmem>>, %arg6: memref<1024x128xbf16, #tpu.memory_space<vmem>>, %arg7: memref<1024x128xf32, #tpu.memory_space<vmem>>) attributes {dimension_semantics = [#tpu.dimension_semantics<parallel>, #tpu.dimension_semantics<parallel>, #tpu.dimension_semantics<arbitrary>], iteration_bounds = array<i64: 8, 1, 1>, scalar_prefetch = 0 : i64, scratch_operands = 1 : i64, tpu.core_type = #tpu.core_type<tc>, window_params = [{transform_indices = @transform_0, window_bounds = array<i64: 1024, 4>}, {transform_indices = @transform_1, window_bounds = array<i64: 4, 128>}, {transform_indices = @transform_2, window_bounds = array<i64: 1, 128>}, {transform_indices = @transform_3, window_bounds = array<i64: 1024, 128>}]} {
    %c0_i32 = arith.constant 0 : i32
    %0 = arith.cmpi eq, %arg2, %c0_i32 : i32
    %1 = arith.extui %0 : i1 to i32
    %c0_i32_0 = arith.constant 0 : i32
    %2 = arith.cmpi ne, %1, %c0_i32_0 : i32
    scf.if %2 {
      %cst_10 = arith.constant 0.000000e+00 : f32
      %12 = vector.broadcast %cst_10 : f32 to vector<1024x128xf32>
      %c0_11 = arith.constant 0 : index
      %c0_12 = arith.constant 0 : index
      %13 = vector.load %arg7[%c0_11, %c0_12] : memref<1024x128xf32, #tpu.memory_space<vmem>>, vector<1024x128xf32>
      tpu.vector_store %arg7[%c0_11, %c0_12], %12 {strides = array<i32>} : memref<1024x128xf32, #tpu.memory_space<vmem>>, vector<1024x128xf32>,
    } else {
    }
    %c0 = arith.constant 0 : index
    %c0_1 = arith.constant 0 : index
    %3 = vector.load %arg7[%c0, %c0_1] : memref<1024x128xf32, #tpu.memory_space<vmem>>, vector<1024x128xf32>
    %c0_2 = arith.constant 0 : index
    %c0_3 = arith.constant 0 : index
    %4 = vector.load %arg3[%c0_2, %c0_3] : memref<1024x4xbf16, #tpu.memory_space<vmem>>, vector<1024x4xbf16>
    %c0_4 = arith.constant 0 : index
    %c0_5 = arith.constant 0 : index
    %5 = vector.load %arg4[%c0_4, %c0_5] : memref<4x128xbf16, #tpu.memory_space<vmem>>, vector<4x128xbf16>
    %cst = arith.constant dense<0.000000e+00> : vector<1024x128xf32>
    %6 = tpu.matmul %4, %5, %cst {dimension_numbers = #tpu.dot_dimension_numbers<[1], [0], [0], [1], [0, 0, 1, 1], [], []>} : vector<1024x4xbf16>, vector<4x128xbf16>, vector<1024x128xf32> -> vector<1024x128xf32>
    %7 = arith.addf %3, %6 : vector<1024x128xf32>
    %c0_6 = arith.constant 0 : index
    %c0_7 = arith.constant 0 : index
    %8 = vector.load %arg7[%c0_6, %c0_7] : memref<1024x128xf32, #tpu.memory_space<vmem>>, vector<1024x128xf32>
    tpu.vector_store %arg7[%c0_6, %c0_7], %7 {strides = array<i32>} : memref<1024x128xf32, #tpu.memory_space<vmem>>, vector<1024x128xf32>,
    %c0_i32_8 = arith.constant 0 : i32
    %9 = arith.cmpi eq, %arg2, %c0_i32_8 : i32
    %10 = arith.extui %9 : i1 to i32
    %c0_i32_9 = arith.constant 0 : i32
    %11 = arith.cmpi ne, %10, %c0_i32_9 : i32
    scf.if %11 {
      %c0_10 = arith.constant 0 : index
      %c0_11 = arith.constant 0 : index
      %12 = vector.load %arg7[%c0_10, %c0_11] : memref<1024x128xf32, #tpu.memory_space<vmem>>, vector<1024x128xf32>
      %c0_12 = arith.constant 0 : index
      %c0_13 = arith.constant 0 : index
      %13 = vector.load %arg5[%c0_12, %c0_13] : memref<1x128xf32, #tpu.memory_space<vmem>>, vector<1x128xf32>
      %14 = vector.broadcast %13 : vector<1x128xf32> to vector<1024x128xf32>
      %15 = arith.addf %12, %14 : vector<1024x128xf32>
      %16 = arith.truncf %15 : vector<1024x128xf32> to vector<1024x128xbf16>
      %c0_14 = arith.constant 0 : index
      %c0_15 = arith.constant 0 : index
      %17 = vector.load %arg6[%c0_14, %c0_15] : memref<1024x128xbf16, #tpu.memory_space<vmem>>, vector<1024x128xbf16>
      tpu.vector_store %arg6[%c0_14, %c0_15], %16 {strides = array<i32>} : memref<1024x128xbf16, #tpu.memory_space<vmem>>, vector<1024x128xbf16>,
    } else {
    }
    return
  }
  func.func @transform_0(%arg0: i32, %arg1: i32, %arg2: i32) -> (i32, i32) {
    %c0_i32 = arith.constant 0 : i32
    return %arg0, %arg2 : i32, i32
  }
  func.func @transform_1(%arg0: i32, %arg1: i32, %arg2: i32) -> (i32, i32) {
    %c0_i32 = arith.constant 0 : i32
    return %arg2, %arg1 : i32, i32
  }
  func.func @transform_2(%arg0: i32, %arg1: i32, %arg2: i32) -> (i32, i32) {
    %c0_i32 = arith.constant 0 : i32
    %c0_i32_0 = arith.constant 0 : i32
    return %c0_i32, %arg1 : i32, i32
  }
  func.func @transform_3(%arg0: i32, %arg1: i32, %arg2: i32) -> (i32, i32) {
    %c0_i32 = arith.constant 0 : i32
    return %arg0, %arg1 : i32, i32
  }
}

</mosaic_0001>

<llo_original>
// kernel: autoencoder_de_forward.6
$region0: #{autoencoder_de_forward.6}
  #allocation0 [shape = 'u32[]', space=smem, size = 0x4, offset = 0x4, fixed_abs, tag = 'smem constant byte address 0x4 - core index']
  #allocation1 [shape = 'u32[144,128]{1,0:T(1,128)}', space=vmem, size = 0x12000, scoped, tag = 'internal scratch']
  #allocation2 [shape = 'f32[8,512]{1,0:T(8,128)}', space=vmem, size = 0x4000, scoped, tag = 'scratch operand']
  %s0 = inlined_call_operand.vmem [shape: bf16[8,128], index: 0, kind: input, shape index: {}]
  %s1 = inlined_call_operand.hbm [shape: bf16[128,1024], index: 1, kind: input, shape index: {}]
  %s2 = inlined_call_operand.hbm [shape: f32[1,1024], index: 2, kind: input, shape index: {}]
  %s3 = inlined_call_operand.vmem [shape: bf16[8,1024], index: 3, kind: output, shape index: {}]
  %s4 = sld [smem:[#allocation0]]
  $region61: #{autoencoder_de_forward.6} parent=0
    _
  %s6 = ssub.s32 1, %s4
  %s7 = scalar_select 0, %s6, %s4
  $region1: #{autoencoder_de_forward.6} parent=0
    #allocation3 [shape = 'u8[262144]{0}', space=vmem, size = 0x40000, scoped, tag = 'input window, operand 1']
    #allocation4 [shape = 's32[2]{0}', space=sflag, size = 0x8, scoped, tag = 'scoped memory for autoencoder_de_forward.6']
    #allocation5 [shape = 'u8[4096]{0}', space=vmem, size = 0x1000, scoped, tag = 'input window, operand 2']
    #allocation6 [shape = 's32[2]{0}', space=sflag, size = 0x8, scoped, tag = 'scoped memory for autoencoder_de_forward.6']
    %8 = vsyncpa [#allocation4], 0
    %s9 = scalar_lea.sflag [#allocation4], 1
    %10 = vsyncpa %s9, 0
    %11 = vsyncpa [#allocation6], 0
    %s12 = scalar_lea.sflag [#allocation6], 1
    %13 = vsyncpa %s12, 0
    loop: start=0, step=1, limit=4
    $region2: #{autoencoder_de_forward.6} parent=1 // loop_pre_header
      _
    $region3: #{autoencoder_de_forward.6} parent=1 // loop_header
      %s15 = sphi 0, %s19
      %p16 = scmp.ge.s32.totalorder %s15, 4
      %s22 = sphi 0, %s41
      %s23 = sphi 0, %s37
      %s24 = sphi 0, %s33
      %s25 = sphi 0, %s22
      %s26 = sphi 0, %s23
      %s27 = sphi 0, %s24
      %s28 = sphi 0, %s25
      %s29 = sphi 0, %s26
      %s30 = sphi 0, %s27
      %s46 = sphi 0, %s48
      %s49 = sphi 0, %s46
      %s50 = sphi 0, %s49
      %s66 = sphi 0, %s50
      %s74 = sphi 0, %s76
      %s77 = sphi 0, %s74
      %s78 = sphi 0, %s77
      %s94 = sphi 0, %s78
      %s100 = sphi 0, %s102
      %s103 = sphi 0, %s100
      %s104 = sphi 0, %s103
      %s120 = sphi 0, %s104
      %s128 = sphi 0, %s130
      %s131 = sphi 0, %s128
      %s132 = sphi 0, %s131
      %s148 = sphi 0, %s132
    $region4: #{autoencoder_de_forward.6} parent=1 // loop_header_branch
      %18 = sbr.rel (%p16) target = $region8
    $region5: #{autoencoder_de_forward.6} parent=1 // loop_body
      %s20 = ssub.s32 %s15, 1
      %s21 = ssub.s32 %s15, 2
      %s31 = sadd.s32 1, %s24
      %p32 = scmp.ge.s32.totalorder %s31, 1
      %s33 = scalar_select %p32, 0, %s31
      %s34 = sadd.s32 1, %s23
      %s35 = scalar_select %p32, %s34, %s23
      %p36 = scmp.ge.s32.totalorder %s35, 2
      %s37 = scalar_select %p36, 0, %s35
      %s38 = sadd.s32 1, %s22
      %s39 = scalar_select %p36, %s38, %s22
      %p40 = scmp.ge.s32.totalorder %s39, 1
      %s41 = scalar_select %p40, 0, %s39
      %s42 = ssub.s32 %s22, %s41
      %s43 = ssub.s32 %s24, %s33
      %s44 = sor.u32 %s42, %s43
      %p45 = scmp.eq.s32.totalorder %s44, 0
      %s47 = sadd.s32 %s46, 1
      %s48 = scalar_select %p45, %s46, %s47
      %p51 = pneg %p45
      %p52 = scmp.eq.s32.totalorder %s15, 1
      %p53 = por %p51, %p52
      %p54 = scmp.ne.s32.totalorder %s46, %s49
      %p55 = scmp.eq.s32.totalorder %s15, 0
      %p56 = por %p54, %p55
      %p57 = scmp.ne.s32.totalorder %s46, %s49
      %p58 = scmp.eq.s32.totalorder %s20, 1
      %p59 = por %p57, %p58
      %p60 = scmp.ne.s32.totalorder %s49, %s50
      %p61 = scmp.eq.s32.totalorder %s20, 0
      %p62 = por %p60, %p61
      %p63 = scmp.ne.s32.totalorder %s49, %s50
      %p64 = scmp.eq.s32.totalorder %s21, 1
      %p65 = por %p63, %p64
      %p67 = scmp.ne.s32.totalorder %s50, %s66
      %p68 = scmp.eq.s32.totalorder %s21, 0
      %p69 = por %p67, %p68
      %s70 = ssub.s32 %s24, %s33
      %s71 = ssub.s32 %s23, %s37
      %s72 = sor.u32 %s70, %s71
      %p73 = scmp.eq.s32.totalorder %s72, 0
      %s75 = sadd.s32 %s74, 1
      %s76 = scalar_select %p73, %s74, %s75
      %p79 = pneg %p73
      %p80 = scmp.eq.s32.totalorder %s15, 1
      %p81 = por %p79, %p80
      %p82 = scmp.ne.s32.totalorder %s74, %s77
      %p83 = scmp.eq.s32.totalorder %s15, 0
      %p84 = por %p82, %p83
      %p85 = scmp.ne.s32.totalorder %s74, %s77
      %p86 = scmp.eq.s32.totalorder %s20, 1
      %p87 = por %p85, %p86
      %p88 = scmp.ne.s32.totalorder %s77, %s78
      %p89 = scmp.eq.s32.totalorder %s20, 0
      %p90 = por %p88, %p89
      %p91 = scmp.ne.s32.totalorder %s77, %s78
      %p92 = scmp.eq.s32.totalorder %s21, 1
      %p93 = por %p91, %p92
      %p95 = scmp.ne.s32.totalorder %s78, %s94
      %p96 = scmp.eq.s32.totalorder %s21, 0
      %p97 = por %p95, %p96
      %s98 = ssub.s32 %s23, %s37
      %p99 = scmp.eq.s32.totalorder %s98, 0
      %s101 = sadd.s32 %s100, 1
      %s102 = scalar_select %p99, %s100, %s101
      %p105 = pneg %p99
      %p106 = scmp.eq.s32.totalorder %s15, 1
      %p107 = por %p105, %p106
      %p108 = scmp.ne.s32.totalorder %s100, %s103
      %p109 = scmp.eq.s32.totalorder %s15, 0
      %p110 = por %p108, %p109
      %p111 = scmp.ne.s32.totalorder %s100, %s103
      %p112 = scmp.eq.s32.totalorder %s20, 1
      %p113 = por %p111, %p112
      %p114 = scmp.ne.s32.totalorder %s103, %s104
      %p115 = scmp.eq.s32.totalorder %s20, 0
      %p116 = por %p114, %p115
      %p117 = scmp.ne.s32.totalorder %s103, %s104
      %p118 = scmp.eq.s32.totalorder %s21, 1
      %p119 = por %p117, %p118
      %p121 = scmp.ne.s32.totalorder %s104, %s120
      %p122 = scmp.eq.s32.totalorder %s21, 0
      %p123 = por %p121, %p122
      %s124 = ssub.s32 %s22, %s41
      %s125 = ssub.s32 %s23, %s37
      %s126 = sor.u32 %s124, %s125
      %p127 = scmp.eq.s32.totalorder %s126, 0
      %s129 = sadd.s32 %s128, 1
      %s130 = scalar_select %p127, %s128, %s129
      %p133 = pneg %p127
      %p134 = scmp.eq.s32.totalorder %s15, 1
      %p135 = por %p133, %p134
      %p136 = scmp.ne.s32.totalorder %s128, %s131
      %p137 = scmp.eq.s32.totalorder %s15, 0
      %p138 = por %p136, %p137
      %p139 = scmp.ne.s32.totalorder %s128, %s131
      %p140 = scmp.eq.s32.totalorder %s20, 1
      %p141 = por %p139, %p140
      %p142 = scmp.ne.s32.totalorder %s131, %s132
      %p143 = scmp.eq.s32.totalorder %s20, 0
      %p144 = por %p142, %p143
      %p145 = scmp.ne.s32.totalorder %s131, %s132
      %p146 = scmp.eq.s32.totalorder %s21, 1
      %p147 = por %p145, %p146
      %p149 = scmp.ne.s32.totalorder %s132, %s148
      %p150 = scmp.eq.s32.totalorder %s21, 0
      %p151 = por %p149, %p150
      %p152 = scmp.le.s32.totalorder 1, %s15
      %p153 = scmp.lt.s32.totalorder %s15, 3
      %p154 = pnand %p152, %p153
      %p155 = pneg %p154
      // Predicated region
      $region9: #{autoencoder_de_forward.6} parent=5 // pred_check
        _
      $region10: #{autoencoder_de_forward.6} parent=5 // pred_check_branch
        %157 = sbr.rel (%p154) target = $region12
      $region11: #{autoencoder_de_forward.6} parent=5 // pred_region
        %s158 = ssub.s32 %s15, 1
        // Predicated region
        $region13: #{autoencoder_de_forward.6} parent=11 // pred_check
          %p159 = pneg %p62
        $region14: #{autoencoder_de_forward.6} parent=11 // pred_check_branch
          %161 = sbr.rel (%p159) target = $region16
        $region15: #{autoencoder_de_forward.6} parent=11 // pred_region
          %p162 = scmp.lt.s32.totalorder %s25, 0
          %s163 = scalar_select %p162, %s25, 0
          %p164 = scmp.lt.s32.totalorder %s27, 0
          %s165 = scalar_select %p164, %s27, 0
          %s166 = sadd.s32 %s165, %s163
          %s167 = smul.addr %s166, 4
          %s168 = scalar_lea.vmem %s0, %s167
        $region16: #{autoencoder_de_forward.6} parent=11 // pred_fallthru
          _
      $region12: #{autoencoder_de_forward.6} parent=5 // pred_fallthru
        _
      %p169 = scmp.lt.s32.totalorder %s15, 2
      // Predicated region
      $region17: #{autoencoder_de_forward.6} parent=5 // pred_check
        %p170 = pneg %p169
      $region18: #{autoencoder_de_forward.6} parent=5 // pred_check_branch
        %172 = sbr.rel (%p170) target = $region20
      $region19: #{autoencoder_de_forward.6} parent=5 // pred_region
        // Predicated region
        $region21: #{autoencoder_de_forward.6} parent=19 // pred_check
          %p173 = pneg %p84
        $region22: #{autoencoder_de_forward.6} parent=19 // pred_check_branch
          %175 = sbr.rel (%p173) target = $region24
        $region23: #{autoencoder_de_forward.6} parent=19 // pred_region
          %s176 = sand.u32 %s74, 1
          %s177 = scalar_lea.sflag [#allocation4], %s176
          %s178 = sand.u32 %s74, 1
          %s179 = smul.addr %s178, 256
          %s180 = scalar_lea.vmem [#allocation3], %s179
          %s181 = smul.u32 16, %s24
          %s182 = smul.u32 4, %s23
          %s184 = ssub.s32 4096, 4096
          %185 = vsyncadd %s177, %s184
          %s186 = smul.addr %s181, 8
          %s187 = sadd.s32 %s182, %s186
          %s188 = smul.addr %s187, 64
          %s189 = scalar_lea.hbm %s1, %s188
          %s190 = sshll.u32 %s180, 4
          %s191 = int_to_ptr.vmem [resolvable:$true] %s190
          %196 = dma.hbm_to_vmem [thread:$0]  %s189, 4096, %s191, %s177, 512, 256, 16
        $region24: #{autoencoder_de_forward.6} parent=19 // pred_fallthru
          _
        // Predicated region
        $region25: #{autoencoder_de_forward.6} parent=19 // pred_check
          %p197 = pneg %p110
        $region26: #{autoencoder_de_forward.6} parent=19 // pred_check_branch
          %199 = sbr.rel (%p197) target = $region28
        $region27: #{autoencoder_de_forward.6} parent=19 // pred_region
          %s200 = sand.u32 %s100, 1
          %s201 = scalar_lea.sflag [#allocation6], %s200
          %s202 = sand.u32 %s100, 1
          %s203 = smul.addr %s202, 4
          %s204 = scalar_lea.vmem [#allocation5], %s203
          %s205 = smul.u32 4, %s23
          %s207 = ssub.s32 64, 64
          %208 = vsyncadd %s201, %s207
          %s209 = smul.addr %s205, 16
          %s210 = scalar_lea.hbm %s2, %s209
          %s212 = sshll.u32 %s204, 4
          %s213 = int_to_ptr.vmem [resolvable:$true] %s212
          %215 = dma.hbm_to_vmem [thread:$0]  %s210, 64, %s213, %s201
        $region28: #{autoencoder_de_forward.6} parent=19 // pred_fallthru
          _
      $region20: #{autoencoder_de_forward.6} parent=5 // pred_fallthru
        _
      %p216 = scmp.le.s32.totalorder 1, %s15
      %p217 = scmp.lt.s32.totalorder %s15, 3
      %p218 = pnand %p216, %p217
      %p219 = pneg %p218
      // Predicated region
      $region29: #{autoencoder_de_forward.6} parent=5 // pred_check
        _
      $region30: #{autoencoder_de_forward.6} parent=5 // pred_check_branch
        %221 = sbr.rel (%p218) target = $region32
      $region31: #{autoencoder_de_forward.6} parent=5 // pred_region
        %s222 = ssub.s32 %s15, 1
        %s223 = sand.u32 %s77, 1
        %s224 = scalar_lea.sflag [#allocation4], %s223
        %s225 = sand.u32 %s77, 1
        %s226 = smul.addr %s225, 256
        %s227 = scalar_lea.vmem [#allocation3], %s226
        // Predicated region
        $region33: #{autoencoder_de_forward.6} parent=31 // pred_check
          %p228 = pneg %p90
        $region34: #{autoencoder_de_forward.6} parent=31 // pred_check_branch
          %230 = sbr.rel (%p228) target = $region36
        $region35: #{autoencoder_de_forward.6} parent=31 // pred_region
          %231 = dma.done %s224, 4096
        $region36: #{autoencoder_de_forward.6} parent=31 // pred_fallthru
          _
        %s232 = sand.u32 %s103, 1
        %s233 = scalar_lea.sflag [#allocation6], %s232
        %s234 = sand.u32 %s103, 1
        %s235 = smul.addr %s234, 4
        %s236 = scalar_lea.vmem [#allocation5], %s235
        // Predicated region
        $region37: #{autoencoder_de_forward.6} parent=31 // pred_check
          %p237 = pneg %p116
        $region38: #{autoencoder_de_forward.6} parent=31 // pred_check_branch
          %239 = sbr.rel (%p237) target = $region40
        $region39: #{autoencoder_de_forward.6} parent=31 // pred_region
          %240 = dma.done %s233, 64
        $region40: #{autoencoder_de_forward.6} parent=31 // pred_fallthru
          _
        %p241 = scmp.lt.s32.totalorder %s25, 0
        %s242 = scalar_select %p241, %s25, 0
        %p243 = scmp.lt.s32.totalorder %s27, 0
        %s244 = scalar_select %p243, %s27, 0
        %s245 = sadd.s32 %s244, %s242
        %s246 = smul.addr %s245, 4
        %s247 = scalar_lea.vmem %s0, %s246
        %p248 = pneg %p62
        %p249 = pneg %p59
        %s250 = sand.u32 %s77, 1
        %s251 = scalar_lea.sflag [#allocation4], %s250
        %s252 = sand.u32 %s77, 1
        %s253 = smul.addr %s252, 256
        %s254 = scalar_lea.vmem [#allocation3], %s253
        %p255 = pneg %p90
        %p256 = pneg %p87
        %s257 = sand.u32 %s103, 1
        %s258 = scalar_lea.sflag [#allocation6], %s257
        %s259 = sand.u32 %s103, 1
        %s260 = smul.addr %s259, 4
        %s261 = scalar_lea.vmem [#allocation5], %s260
        %p262 = pneg %p116
        %p263 = pneg %p113
        %p264 = pneg %p144
        %p265 = pneg %p141
        %s266 = smul.u32 4, %s26
        %p267 = scmp.lt.s32.totalorder %s25, 0
        %s268 = scalar_select %p267, %s25, 0
        %p269 = scmp.lt.s32.totalorder %s266, 7
        %s270 = scalar_select %p269, %s266, 7
        %s271 = smul.addr %s268, 8
        %s272 = sadd.s32 %s270, %s271
        %s273 = smul.addr %s272, 4
        %s274 = scalar_lea.vmem %s3, %s273
        %p275 = scmp.lt.s32.totalorder %s25, 0
        %s276 = scalar_select %p275, %s25, 0
        %p277 = scmp.lt.s32.totalorder %s27, 0
        %s278 = scalar_select %p277, %s27, 0
        %s279 = sadd.s32 %s278, %s276
        %s280 = smul.addr %s279, 4
        %s281 = scalar_lea.vmem %s0, %s280
        %s282 = smul.u32 16, %s27
        %s283 = smul.u32 4, %s26
        %s284 = smul.u32 4, %s26
        %s285 = smul.u32 4, %s26
        %p286 = scmp.lt.s32.totalorder %s25, 0
        %s287 = scalar_select %p286, %s25, 0
        %p288 = scmp.lt.s32.totalorder %s285, 7
        %s289 = scalar_select %p288, %s285, 7
        %s290 = smul.addr %s287, 8
        %s291 = sadd.s32 %s289, %s290
        %s292 = smul.addr %s291, 4
        %s293 = scalar_lea.vmem %s3, %s292
        %s294 = smul.u32 4, %s26
        %p296 = scmp.eq.s32.totalorder %s27, 0
        // Predicated region
        $region41: #{autoencoder_de_forward.6} parent=31 // pred_check
          %p297 = pneg %p296
        $region42: #{autoencoder_de_forward.6} parent=31 // pred_check_branch
          %299 = sbr.rel (%p297) target = $region44
        $region43: #{autoencoder_de_forward.6} parent=31 // pred_region
          %300 = vst [vmem:[#allocation2] sm:$0xff] 0.0
          %301 = vst [vmem:[#allocation2 + $0x8] sm:$0xff] 0.0
          %302 = vst [vmem:[#allocation2 + $0x10] sm:$0xff] 0.0
          %303 = vst [vmem:[#allocation2 + $0x18] sm:$0xff] 0.0
        $region44: #{autoencoder_de_forward.6} parent=31 // pred_fallthru
          _
        %v304 = vld [vmem:[#allocation2] sm:$0xff]
        %v305 = vld [vmem:[#allocation2 + $0x8] sm:$0xff]
        %v306 = vld [vmem:[#allocation2 + $0x10] sm:$0xff]
        %v307 = vld [vmem:[#allocation2 + $0x18] sm:$0xff]
        %v308 = vld [vmem:[%s281] sm:$0xf]
        %v309 = vld [vmem:[%s227] sm:$0xff]
        %v310 = vld [vmem:[%s227 + $0x8] sm:$0xff]
        %v311 = vld [vmem:[%s227 + $0x10] sm:$0xff]
        %v312 = vld [vmem:[%s227 + $0x18] sm:$0xff]
        %v313 = vld [vmem:[%s227 + $0x20] sm:$0xff]
        %v314 = vld [vmem:[%s227 + $0x28] sm:$0xff]
        %v315 = vld [vmem:[%s227 + $0x30] sm:$0xff]
        %v316 = vld [vmem:[%s227 + $0x38] sm:$0xff]
        %v317 = vld [vmem:[%s227 + $0x40] sm:$0xff]
        %v318 = vld [vmem:[%s227 + $0x48] sm:$0xff]
        %v319 = vld [vmem:[%s227 + $0x50] sm:$0xff]
        %v320 = vld [vmem:[%s227 + $0x58] sm:$0xff]
        %v321 = vld [vmem:[%s227 + $0x60] sm:$0xff]
        %v322 = vld [vmem:[%s227 + $0x68] sm:$0xff]
        %v323 = vld [vmem:[%s227 + $0x70] sm:$0xff]
        %v324 = vld [vmem:[%s227 + $0x78] sm:$0xff]
        %v325 = vld [vmem:[%s227 + $0x80] sm:$0xff]
        %v326 = vld [vmem:[%s227 + $0x88] sm:$0xff]
        %v327 = vld [vmem:[%s227 + $0x90] sm:$0xff]
        %v328 = vld [vmem:[%s227 + $0x98] sm:$0xff]
        %v329 = vld [vmem:[%s227 + $0xa0] sm:$0xff]
        %v330 = vld [vmem:[%s227 + $0xa8] sm:$0xff]
        %v331 = vld [vmem:[%s227 + $0xb0] sm:$0xff]
        %v332 = vld [vmem:[%s227 + $0xb8] sm:$0xff]
        %v333 = vld [vmem:[%s227 + $0xc0] sm:$0xff]
        %v334 = vld [vmem:[%s227 + $0xc8] sm:$0xff]
        %v335 = vld [vmem:[%s227 + $0xd0] sm:$0xff]
        %v336 = vld [vmem:[%s227 + $0xd8] sm:$0xff]
        %v337 = vld [vmem:[%s227 + $0xe0] sm:$0xff]
        %v338 = vld [vmem:[%s227 + $0xe8] sm:$0xff]
        %v339 = vld [vmem:[%s227 + $0xf0] sm:$0xff]
        %v340 = vld [vmem:[%s227 + $0xf8] sm:$0xff]
        %v373 = vunpack.c.l.b16 %v309
        %v374 = vunpack.c.h.b16 %v309
        %v375 = vunpack.c.l.b16 %v310
        %v376 = vunpack.c.h.b16 %v310
        %v377 = vunpack.c.l.b16 %v311
        %v378 = vunpack.c.h.b16 %v311
        %v379 = vunpack.c.l.b16 %v312
        %v380 = vunpack.c.h.b16 %v312
        %v381 = vunpack.c.l.b16 %v313
        %v382 = vunpack.c.h.b16 %v313
        %v383 = vunpack.c.l.b16 %v314
        %v384 = vunpack.c.h.b16 %v314
        %v385 = vunpack.c.l.b16 %v315
        %v386 = vunpack.c.h.b16 %v315
        %v387 = vunpack.c.l.b16 %v316
        %v388 = vunpack.c.h.b16 %v316
        %v389 = vunpack.c.l.b16 %v317
        %v390 = vunpack.c.h.b16 %v317
        %v391 = vunpack.c.l.b16 %v318
        %v392 = vunpack.c.h.b16 %v318
        %v393 = vunpack.c.l.b16 %v319
        %v394 = vunpack.c.h.b16 %v319
        %v395 = vunpack.c.l.b16 %v320
        %v396 = vunpack.c.h.b16 %v320
        %v397 = vunpack.c.l.b16 %v321
        %v398 = vunpack.c.h.b16 %v321
        %v399 = vunpack.c.l.b16 %v322
        %v400 = vunpack.c.h.b16 %v322
        %v401 = vunpack.c.l.b16 %v323
        %v402 = vunpack.c.h.b16 %v323
        %v403 = vunpack.c.l.b16 %v324
        %v404 = vunpack.c.h.b16 %v324
        %v405 = vunpack.c.l.b16 %v325
        %v406 = vunpack.c.h.b16 %v325
        %v407 = vunpack.c.l.b16 %v326
        %v408 = vunpack.c.h.b16 %v326
        %v409 = vunpack.c.l.b16 %v327
        %v410 = vunpack.c.h.b16 %v327
        %v411 = vunpack.c.l.b16 %v328
        %v412 = vunpack.c.h.b16 %v328
        %v413 = vunpack.c.l.b16 %v329
        %v414 = vunpack.c.h.b16 %v329
        %v415 = vunpack.c.l.b16 %v330
        %v416 = vunpack.c.h.b16 %v330
        %v417 = vunpack.c.l.b16 %v331
        %v418 = vunpack.c.h.b16 %v331
        %v419 = vunpack.c.l.b16 %v332
        %v420 = vunpack.c.h.b16 %v332
        %v421 = vunpack.c.l.b16 %v333
        %v422 = vunpack.c.h.b16 %v333
        %v423 = vunpack.c.l.b16 %v334
        %v424 = vunpack.c.h.b16 %v334
        %v425 = vunpack.c.l.b16 %v335
        %v426 = vunpack.c.h.b16 %v335
        %v427 = vunpack.c.l.b16 %v336
        %v428 = vunpack.c.h.b16 %v336
        %v429 = vunpack.c.l.b16 %v337
        %v430 = vunpack.c.h.b16 %v337
        %v431 = vunpack.c.l.b16 %v338
        %v432 = vunpack.c.h.b16 %v338
        %v433 = vunpack.c.l.b16 %v339
        %v434 = vunpack.c.h.b16 %v339
        %v435 = vunpack.c.l.b16 %v340
        %v436 = vunpack.c.h.b16 %v340
        %v437 = vpack.c.b16 %v377, %v373
        %v438 = vpack.c.b16 %v378, %v374
        %v439 = vpack.c.b16 %v379, %v375
        %v440 = vpack.c.b16 %v380, %v376
        %v441 = vpack.c.b16 %v385, %v381
        %v442 = vpack.c.b16 %v386, %v382
        %v443 = vpack.c.b16 %v387, %v383
        %v444 = vpack.c.b16 %v388, %v384
        %v445 = vpack.c.b16 %v393, %v389
        %v446 = vpack.c.b16 %v394, %v390
        %v447 = vpack.c.b16 %v395, %v391
        %v448 = vpack.c.b16 %v396, %v392
        %v449 = vpack.c.b16 %v401, %v397
        %v450 = vpack.c.b16 %v402, %v398
        %v451 = vpack.c.b16 %v403, %v399
        %v452 = vpack.c.b16 %v404, %v400
        %v453 = vpack.c.b16 %v409, %v405
        %v454 = vpack.c.b16 %v410, %v406
        %v455 = vpack.c.b16 %v411, %v407
        %v456 = vpack.c.b16 %v412, %v408
        %v457 = vpack.c.b16 %v417, %v413
        %v458 = vpack.c.b16 %v418, %v414
        %v459 = vpack.c.b16 %v419, %v415
        %v460 = vpack.c.b16 %v420, %v416
        %v461 = vpack.c.b16 %v425, %v421
        %v462 = vpack.c.b16 %v426, %v422
        %v463 = vpack.c.b16 %v427, %v423
        %v464 = vpack.c.b16 %v428, %v424
        %v465 = vpack.c.b16 %v433, %v429
        %v466 = vpack.c.b16 %v434, %v430
        %v467 = vpack.c.b16 %v435, %v431
        %v468 = vpack.c.b16 %v436, %v432
        %501 = vmatprep.subr.bf16.mxu0 %v438
        %502 = vmatpush1.bf16.msra.mxu0 %v437
        %503 = vmatprep.subr.bf16.mxu0 %v442
        %504 = vmatpush1.bf16.msra.mxu0 %v441
        %505 = vmatprep.subr.bf16.mxu0 %v446
        %506 = vmatpush1.bf16.msra.mxu0 %v445
        %507 = vmatprep.subr.bf16.mxu0 %v450
        %508 = vmatpush1.bf16.msra.mxu0 %v449
        %509 = vmatprep.subr.bf16.mxu0 %v454
        %510 = vmatpush1.bf16.msra.mxu0 %v453
        %511 = vmatprep.subr.bf16.mxu0 %v458
        %512 = vmatpush1.bf16.msra.mxu0 %v457
        %513 = vmatprep.subr.bf16.mxu0 %v462
        %514 = vmatpush1.bf16.msra.mxu0 %v461
        %515 = vmatprep.subr.bf16.mxu0 %v466
        %516 = vmatpush1.bf16.msra.mxu0 %v465
        %517 = vmatprep.subr.bf16.mxu0 0
        %518 = vmatpush1.bf16.msra.mxu0 0
        %519 = vmatprep.subr.bf16.mxu0 0
        %520 = vmatpush1.bf16.msra.mxu0 0
        %521 = vmatprep.subr.bf16.mxu0 0
        %522 = vmatpush1.bf16.msra.mxu0 0
        %523 = vmatprep.subr.bf16.mxu0 0
        %524 = vmatpush1.bf16.msra.mxu0 0
        %525 = vmatprep.subr.bf16.mxu0 0
        %526 = vmatpush1.bf16.msra.mxu0 0
        %527 = vmatprep.subr.bf16.mxu0 0
        %528 = vmatpush1.bf16.msra.mxu0 0
        %529 = vmatprep.subr.bf16.mxu0 0
        %530 = vmatpush1.bf16.msra.mxu0 0
        %531 = vmatprep.subr.bf16.mxu0 0
        %532 = vmatpush1.bf16.msra.mxu0 0
        %533 = vmatprep.mubr.bf16.mxu0 0
        %534 = vmatmul.mubr.bf16.gmra.mrb[0].mxu0 %v308
        %v535 = vpop.f32.mrb[0].mxu0
        %v536 = vadd.f32 0.0, %v535
        %v537 = vpop.f32.mrb[0].mxu0
        %v538 = vadd.f32 0.0, %v537
        %v539 = vpop.f32.mrb[0].mxu0
        %v540 = vpop.f32.mrb[0].mxu0
        %541 = vdwg.mxu0
        %542 = vmatprep.subr.bf16.mxu0 %v440
        %543 = vmatpush1.bf16.msra.mxu0 %v439
        %544 = vmatprep.subr.bf16.mxu0 %v444
        %545 = vmatpush1.bf16.msra.mxu0 %v443
        %546 = vmatprep.subr.bf16.mxu0 %v448
        %547 = vmatpush1.bf16.msra.mxu0 %v447
        %548 = vmatprep.subr.bf16.mxu0 %v452
        %549 = vmatpush1.bf16.msra.mxu0 %v451
        %550 = vmatprep.subr.bf16.mxu0 %v456
        %551 = vmatpush1.bf16.msra.mxu0 %v455
        %552 = vmatprep.subr.bf16.mxu0 %v460
        %553 = vmatpush1.bf16.msra.mxu0 %v459
        %554 = vmatprep.subr.bf16.mxu0 %v464
        %555 = vmatpush1.bf16.msra.mxu0 %v463
        %556 = vmatprep.subr.bf16.mxu0 %v468
        %557 = vmatpush1.bf16.msra.mxu0 %v467
        %558 = vmatprep.subr.bf16.mxu0 0
        %559 = vmatpush1.bf16.msra.mxu0 0
        %560 = vmatprep.subr.bf16.mxu0 0
        %561 = vmatpush1.bf16.msra.mxu0 0
        %562 = vmatprep.subr.bf16.mxu0 0
        %563 = vmatpush1.bf16.msra.mxu0 0
        %564 = vmatprep.subr.bf16.mxu0 0
        %565 = vmatpush1.bf16.msra.mxu0 0
        %566 = vmatprep.subr.bf16.mxu0 0
        %567 = vmatpush1.bf16.msra.mxu0 0
        %568 = vmatprep.subr.bf16.mxu0 0
        %569 = vmatpush1.bf16.msra.mxu0 0
        %570 = vmatprep.subr.bf16.mxu0 0
        %571 = vmatpush1.bf16.msra.mxu0 0
        %572 = vmatprep.subr.bf16.mxu0 0
        %573 = vmatpush1.bf16.msra.mxu0 0
        %574 = vmatprep.mubr.bf16.mxu0 0
        %575 = vmatmul.mubr.bf16.gmra.mrb[0].mxu0 %v308
        %v576 = vpop.f32.mrb[0].mxu0
        %v577 = vadd.f32 0.0, %v576
        %v578 = vpop.f32.mrb[0].mxu0
        %v579 = vadd.f32 0.0, %v578
        %v580 = vpop.f32.mrb[0].mxu0
        %v581 = vpop.f32.mrb[0].mxu0
        %582 = vdwg.mxu0
        %v583 = vadd.f32 %v304, %v536
        %v584 = vadd.f32 %v305, %v538
        %v585 = vadd.f32 %v306, %v577
        %v586 = vadd.f32 %v307, %v579
        %587 = vst [vmem:[#allocation2] sm:$0xff] %v583
        %588 = vst [vmem:[#allocation2 + $0x8] sm:$0xff] %v584
        %589 = vst [vmem:[#allocation2 + $0x10] sm:$0xff] %v585
        %590 = vst [vmem:[#allocation2 + $0x18] sm:$0xff] %v586
        // Predicated region
        $region45: #{autoencoder_de_forward.6} parent=31 // pred_check
          %p591 = pneg %p296
        $region46: #{autoencoder_de_forward.6} parent=31 // pred_check_branch
          %593 = sbr.rel (%p591) target = $region48
        $region47: #{autoencoder_de_forward.6} parent=31 // pred_region
          %v594 = vld [vmem:[#allocation2] sm:$0xff]
          %v595 = vld [vmem:[#allocation2 + $0x8] sm:$0xff]
          %v596 = vld [vmem:[#allocation2 + $0x10] sm:$0xff]
          %v597 = vld [vmem:[#allocation2 + $0x18] sm:$0xff]
          %v598 = vld [vmem:[%s236] sm:$0xf]
          %v600 = vlaneseq
          %v601 = vshrl.u32 %v600, 7
          %v602 = vsub.s32 0, %v601
          %v603 = vrot.slane %v598, %v602
          %v604 = vlaneseq
          %v605 = vshrl.u32 %v604, 7
          %v606 = vsub.s32 1, %v605
          %v607 = vrot.slane %v598, %v606
          %v608 = vlaneseq
          %v609 = vshrl.u32 %v608, 7
          %v610 = vsub.s32 2, %v609
          %v611 = vrot.slane %v598, %v610
          %v612 = vlaneseq
          %v613 = vshrl.u32 %v612, 7
          %v614 = vsub.s32 3, %v613
          %v615 = vrot.slane %v598, %v614
          %v620 = vadd.f32 %v594, %v603
          %v621 = vadd.f32 %v595, %v607
          %v622 = vadd.f32 %v596, %v611
          %v623 = vadd.f32 %v597, %v615
          %v624 = vpack.c.bf16 %v620, %v620
          %v625 = vpack.c.bf16 %v621, %v621
          %v626 = vpack.c.bf16 %v622, %v622
          %v627 = vpack.c.bf16 %v623, %v623
          %v632 = vunpack.c.l.b16 %v624
          %v633 = vunpack.c.l.b16 %v625
          %v634 = vunpack.c.l.b16 %v626
          %v635 = vunpack.c.l.b16 %v627
          %v636 = vpack.c.b16 %v633, %v632
          %v637 = vpack.c.b16 %v635, %v634
          %640 = vst [vmem:[%s293] sm:$0xff] %v636
          %641 = vst [vmem:[%s293 + $0x8] sm:$0xff] %v637
        $region48: #{autoencoder_de_forward.6} parent=31 // pred_fallthru
          _
        %s642 = smul.u32 4, %s26
        %p643 = scmp.lt.s32.totalorder %s25, 0
        %s644 = scalar_select %p643, %s25, 0
        %p645 = scmp.lt.s32.totalorder %s642, 7
        %s646 = scalar_select %p645, %s642, 7
        %s647 = smul.addr %s644, 8
        %s648 = sadd.s32 %s646, %s647
        %s649 = smul.addr %s648, 4
        %s650 = scalar_lea.vmem %s3, %s649
        // Predicated region
        $region49: #{autoencoder_de_forward.6} parent=31 // pred_check
          %p651 = pneg %p141
        $region50: #{autoencoder_de_forward.6} parent=31 // pred_check_branch
          %653 = sbr.rel (%p651) target = $region52
        $region51: #{autoencoder_de_forward.6} parent=31 // pred_region
          %s654 = smul.u32 4, %s26
        $region52: #{autoencoder_de_forward.6} parent=31 // pred_fallthru
          _
      $region32: #{autoencoder_de_forward.6} parent=5 // pred_fallthru
        _
      %p655 = scmp.le.s32.totalorder 2, %s15
      // Predicated region
      $region53: #{autoencoder_de_forward.6} parent=5 // pred_check
        %p656 = pneg %p655
      $region54: #{autoencoder_de_forward.6} parent=5 // pred_check_branch
        %658 = sbr.rel (%p656) target = $region56
      $region55: #{autoencoder_de_forward.6} parent=5 // pred_region
        %s659 = ssub.s32 %s15, 2
        // Predicated region
        $region57: #{autoencoder_de_forward.6} parent=55 // pred_check
          %p660 = pneg %p147
        $region58: #{autoencoder_de_forward.6} parent=55 // pred_check_branch
          %662 = sbr.rel (%p660) target = $region60
        $region59: #{autoencoder_de_forward.6} parent=55 // pred_region
          %s663 = smul.u32 4, %s29
          %p664 = scmp.lt.s32.totalorder %s28, 0
          %s665 = scalar_select %p664, %s28, 0
          %p666 = scmp.lt.s32.totalorder %s663, 7
          %s667 = scalar_select %p666, %s663, 7
          %s668 = smul.addr %s665, 8
          %s669 = sadd.s32 %s667, %s668
          %s670 = smul.addr %s669, 4
          %s671 = scalar_lea.vmem %s3, %s670
        $region60: #{autoencoder_de_forward.6} parent=55 // pred_fallthru
          _
      $region56: #{autoencoder_de_forward.6} parent=5 // pred_fallthru
        _
    $region6: #{autoencoder_de_forward.6} parent=1 // loop_footer
      %s19 = sadd.s32 1, %s15
    $region7: #{autoencoder_de_forward.6} parent=1 // loop_footer_branch
      %14 = sbr.rel target = $region3
    $region8: #{autoencoder_de_forward.6} parent=1 // loop_exit
      _
    %672 = vsyncpa [#allocation4], 1
    %s673 = scalar_lea.sflag [#allocation4], 1
    %674 = vsyncpa %s673, 1
    %675 = vsyncpa [#allocation6], 1
    %s676 = scalar_lea.sflag [#allocation6], 1
    %677 = vsyncpa %s676, 1

// kernel: autoencoder_de_forward.7
$region0: #{autoencoder_de_forward.7}
  #allocation0 [shape = 'u32[]', space=smem, size = 0x4, offset = 0x4, fixed_abs, tag = 'smem constant byte address 0x4 - core index']
  #allocation1 [shape = 'u32[144,128]{1,0:T(1,128)}', space=vmem, size = 0x12000, scoped, tag = 'internal scratch']
  #allocation2 [shape = 'f32[32,256]{1,0:T(8,128)}', space=vmem, size = 0x8000, scoped, tag = 'scratch operand']
  %s0 = inlined_call_operand.vmem [shape: bf16[32,64], index: 0, kind: input, shape index: {}]
  %s1 = inlined_call_operand.hbm [shape: bf16[64,512], index: 1, kind: input, shape index: {}]
  %s2 = inlined_call_operand.hbm [shape: f32[1,512], index: 2, kind: input, shape index: {}]
  %s3 = inlined_call_operand.vmem [shape: bf16[32,512], index: 3, kind: output, shape index: {}]
  %s4 = sld [smem:[#allocation0]]
  $region95: #{autoencoder_de_forward.7} parent=0
    _
  %s6 = ssub.s32 1, %s4
  %s7 = scalar_select 0, %s6, %s4
  $region1: #{autoencoder_de_forward.7} parent=0
    #allocation3 [shape = 'u8[65536]{0}', space=vmem, size = 0x10000, scoped, tag = 'input window, operand 1']
    #allocation4 [shape = 's32[2]{0}', space=sflag, size = 0x8, scoped, tag = 'scoped memory for autoencoder_de_forward.7']
    #allocation5 [shape = 'u8[2048]{0}', space=vmem, size = 0x800, scoped, tag = 'input window, operand 2']
    #allocation6 [shape = 's32[2]{0}', space=sflag, size = 0x8, scoped, tag = 'scoped memory for autoencoder_de_forward.7']
    #allocation7 [shape = 'u8[32768]{0}', space=vmem, size = 0x8000, scoped, tag = 'output window, operand 0']
    %8 = vsyncpa [#allocation4], 0
    %s9 = scalar_lea.sflag [#allocation4], 1
    %10 = vsyncpa %s9, 0
    %11 = vsyncpa [#allocation6], 0
    %s12 = scalar_lea.sflag [#allocation6], 1
    %13 = vsyncpa %s12, 0
    loop: start=0, step=1, limit=4
    $region2: #{autoencoder_de_forward.7} parent=1 // loop_pre_header
      _
    $region3: #{autoencoder_de_forward.7} parent=1 // loop_header
      %s15 = sphi 0, %s19
      %p16 = scmp.ge.s32.totalorder %s15, 4
      %s22 = sphi 0, %s41
      %s23 = sphi 0, %s37
      %s24 = sphi 0, %s33
      %s25 = sphi 0, %s22
      %s26 = sphi 0, %s23
      %s27 = sphi 0, %s24
      %s28 = sphi 0, %s25
      %s29 = sphi 0, %s26
      %s30 = sphi 0, %s27
      %s46 = sphi 0, %s48
      %s49 = sphi 0, %s46
      %s50 = sphi 0, %s49
      %s66 = sphi 0, %s50
      %s74 = sphi 0, %s76
      %s77 = sphi 0, %s74
      %s78 = sphi 0, %s77
      %s94 = sphi 0, %s78
      %s100 = sphi 0, %s102
      %s103 = sphi 0, %s100
      %s104 = sphi 0, %s103
      %s120 = sphi 0, %s104
      %s128 = sphi 0, %s130
      %s131 = sphi 0, %s128
      %s132 = sphi 0, %s131
      %s148 = sphi 0, %s132
    $region4: #{autoencoder_de_forward.7} parent=1 // loop_header_branch
      %18 = sbr.rel (%p16) target = $region8
    $region5: #{autoencoder_de_forward.7} parent=1 // loop_body
      %s20 = ssub.s32 %s15, 1
      %s21 = ssub.s32 %s15, 2
      %s31 = sadd.s32 1, %s24
      %p32 = scmp.ge.s32.totalorder %s31, 1
      %s33 = scalar_select %p32, 0, %s31
      %s34 = sadd.s32 1, %s23
      %s35 = scalar_select %p32, %s34, %s23
      %p36 = scmp.ge.s32.totalorder %s35, 2
      %s37 = scalar_select %p36, 0, %s35
      %s38 = sadd.s32 1, %s22
      %s39 = scalar_select %p36, %s38, %s22
      %p40 = scmp.ge.s32.totalorder %s39, 1
      %s41 = scalar_select %p40, 0, %s39
      %s42 = ssub.s32 %s22, %s41
      %s43 = ssub.s32 %s24, %s33
      %s44 = sor.u32 %s42, %s43
      %p45 = scmp.eq.s32.totalorder %s44, 0
      %s47 = sadd.s32 %s46, 1
      %s48 = scalar_select %p45, %s46, %s47
      %p51 = pneg %p45
      %p52 = scmp.eq.s32.totalorder %s15, 1
      %p53 = por %p51, %p52
      %p54 = scmp.ne.s32.totalorder %s46, %s49
      %p55 = scmp.eq.s32.totalorder %s15, 0
      %p56 = por %p54, %p55
      %p57 = scmp.ne.s32.totalorder %s46, %s49
      %p58 = scmp.eq.s32.totalorder %s20, 1
      %p59 = por %p57, %p58
      %p60 = scmp.ne.s32.totalorder %s49, %s50
      %p61 = scmp.eq.s32.totalorder %s20, 0
      %p62 = por %p60, %p61
      %p63 = scmp.ne.s32.totalorder %s49, %s50
      %p64 = scmp.eq.s32.totalorder %s21, 1
      %p65 = por %p63, %p64
      %p67 = scmp.ne.s32.totalorder %s50, %s66
      %p68 = scmp.eq.s32.totalorder %s21, 0
      %p69 = por %p67, %p68
      %s70 = ssub.s32 %s24, %s33
      %s71 = ssub.s32 %s23, %s37
      %s72 = sor.u32 %s70, %s71
      %p73 = scmp.eq.s32.totalorder %s72, 0
      %s75 = sadd.s32 %s74, 1
      %s76 = scalar_select %p73, %s74, %s75
      %p79 = pneg %p73
      %p80 = scmp.eq.s32.totalorder %s15, 1
      %p81 = por %p79, %p80
      %p82 = scmp.ne.s32.totalorder %s74, %s77
      %p83 = scmp.eq.s32.totalorder %s15, 0
      %p84 = por %p82, %p83
      %p85 = scmp.ne.s32.totalorder %s74, %s77
      %p86 = scmp.eq.s32.totalorder %s20, 1
      %p87 = por %p85, %p86
      %p88 = scmp.ne.s32.totalorder %s77, %s78
      %p89 = scmp.eq.s32.totalorder %s20, 0
      %p90 = por %p88, %p89
      %p91 = scmp.ne.s32.totalorder %s77, %s78
      %p92 = scmp.eq.s32.totalorder %s21, 1
      %p93 = por %p91, %p92
      %p95 = scmp.ne.s32.totalorder %s78, %s94
      %p96 = scmp.eq.s32.totalorder %s21, 0
      %p97 = por %p95, %p96
      %s98 = ssub.s32 %s23, %s37
      %p99 = scmp.eq.s32.totalorder %s98, 0
      %s101 = sadd.s32 %s100, 1
      %s102 = scalar_select %p99, %s100, %s101
      %p105 = pneg %p99
      %p106 = scmp.eq.s32.totalorder %s15, 1
      %p107 = por %p105, %p106
      %p108 = scmp.ne.s32.totalorder %s100, %s103
      %p109 = scmp.eq.s32.totalorder %s15, 0
      %p110 = por %p108, %p109
      %p111 = scmp.ne.s32.totalorder %s100, %s103
      %p112 = scmp.eq.s32.totalorder %s20, 1
      %p113 = por %p111, %p112
      %p114 = scmp.ne.s32.totalorder %s103, %s104
      %p115 = scmp.eq.s32.totalorder %s20, 0
      %p116 = por %p114, %p115
      %p117 = scmp.ne.s32.totalorder %s103, %s104
      %p118 = scmp.eq.s32.totalorder %s21, 1
      %p119 = por %p117, %p118
      %p121 = scmp.ne.s32.totalorder %s104, %s120
      %p122 = scmp.eq.s32.totalorder %s21, 0
      %p123 = por %p121, %p122
      %s124 = ssub.s32 %s22, %s41
      %s125 = ssub.s32 %s23, %s37
      %s126 = sor.u32 %s124, %s125
      %p127 = scmp.eq.s32.totalorder %s126, 0
      %s129 = sadd.s32 %s128, 1
      %s130 = scalar_select %p127, %s128, %s129
      %p133 = pneg %p127
      %p134 = scmp.eq.s32.totalorder %s15, 1
      %p135 = por %p133, %p134
      %p136 = scmp.ne.s32.totalorder %s128, %s131
      %p137 = scmp.eq.s32.totalorder %s15, 0
      %p138 = por %p136, %p137
      %p139 = scmp.ne.s32.totalorder %s128, %s131
      %p140 = scmp.eq.s32.totalorder %s20, 1
      %p141 = por %p139, %p140
      %p142 = scmp.ne.s32.totalorder %s131, %s132
      %p143 = scmp.eq.s32.totalorder %s20, 0
      %p144 = por %p142, %p143
      %p145 = scmp.ne.s32.totalorder %s131, %s132
      %p146 = scmp.eq.s32.totalorder %s21, 1
      %p147 = por %p145, %p146
      %p149 = scmp.ne.s32.totalorder %s132, %s148
      %p150 = scmp.eq.s32.totalorder %s21, 0
      %p151 = por %p149, %p150
      %p152 = scmp.le.s32.totalorder 1, %s15
      %p153 = scmp.lt.s32.totalorder %s15, 3
      %p154 = pnand %p152, %p153
      %p155 = pneg %p154
      // Predicated region
      $region9: #{autoencoder_de_forward.7} parent=5 // pred_check
        _
      $region10: #{autoencoder_de_forward.7} parent=5 // pred_check_branch
        %157 = sbr.rel (%p154) target = $region12
      $region11: #{autoencoder_de_forward.7} parent=5 // pred_region
        %s158 = ssub.s32 %s15, 1
        // Predicated region
        $region13: #{autoencoder_de_forward.7} parent=11 // pred_check
          %p159 = pneg %p62
        $region14: #{autoencoder_de_forward.7} parent=11 // pred_check_branch
          %161 = sbr.rel (%p159) target = $region16
        $region15: #{autoencoder_de_forward.7} parent=11 // pred_region
          %s162 = smul.u32 4, %s25
          %p163 = scmp.lt.s32.totalorder %s162, 3
          %s164 = scalar_select %p163, %s162, 3
          %p165 = scmp.lt.s32.totalorder %s27, 0
          %s166 = scalar_select %p165, %s27, 0
          %s167 = sadd.s32 %s166, %s164
          %s168 = smul.addr %s167, 4
          %s169 = scalar_lea.vmem %s0, %s168
          %s170 = smul.u32 4, %s25
        $region16: #{autoencoder_de_forward.7} parent=11 // pred_fallthru
          _
      $region12: #{autoencoder_de_forward.7} parent=5 // pred_fallthru
        _
      %p171 = scmp.lt.s32.totalorder %s15, 2
      // Predicated region
      $region17: #{autoencoder_de_forward.7} parent=5 // pred_check
        %p172 = pneg %p171
      $region18: #{autoencoder_de_forward.7} parent=5 // pred_check_branch
        %174 = sbr.rel (%p172) target = $region20
      $region19: #{autoencoder_de_forward.7} parent=5 // pred_region
        // Predicated region
        $region21: #{autoencoder_de_forward.7} parent=19 // pred_check
          %p175 = pneg %p84
        $region22: #{autoencoder_de_forward.7} parent=19 // pred_check_branch
          %177 = sbr.rel (%p175) target = $region24
        $region23: #{autoencoder_de_forward.7} parent=19 // pred_region
          %s178 = sand.u32 %s74, 1
          %s179 = scalar_lea.sflag [#allocation4], %s178
          %s180 = sand.u32 %s74, 1
          %s181 = smul.addr %s180, 64
          %s182 = scalar_lea.vmem [#allocation3], %s181
          %s183 = smul.u32 8, %s24
          %s184 = smul.u32 2, %s23
          %s186 = ssub.s32 1024, 1024
          %187 = vsyncadd %s179, %s186
          %s188 = smul.addr %s183, 4
          %s189 = sadd.s32 %s184, %s188
          %s190 = smul.addr %s189, 64
          %s191 = scalar_lea.hbm %s1, %s190
          %s192 = sshll.u32 %s182, 4
          %s193 = int_to_ptr.vmem [resolvable:$true] %s192
          %198 = dma.hbm_to_vmem [thread:$0]  %s191, 1024, %s193, %s179, 256, 128, 8
        $region24: #{autoencoder_de_forward.7} parent=19 // pred_fallthru
          _
        // Predicated region
        $region25: #{autoencoder_de_forward.7} parent=19 // pred_check
          %p199 = pneg %p110
        $region26: #{autoencoder_de_forward.7} parent=19 // pred_check_branch
          %201 = sbr.rel (%p199) target = $region28
        $region27: #{autoencoder_de_forward.7} parent=19 // pred_region
          %s202 = sand.u32 %s100, 1
          %s203 = scalar_lea.sflag [#allocation6], %s202
          %s204 = sand.u32 %s100, 1
          %s205 = smul.addr %s204, 2
          %s206 = scalar_lea.vmem [#allocation5], %s205
          %s207 = smul.u32 2, %s23
          %s209 = ssub.s32 32, 32
          %210 = vsyncadd %s203, %s209
          %s211 = smul.addr %s207, 16
          %s212 = scalar_lea.hbm %s2, %s211
          %s214 = sshll.u32 %s206, 4
          %s215 = int_to_ptr.vmem [resolvable:$true] %s214
          %217 = dma.hbm_to_vmem [thread:$0]  %s212, 32, %s215, %s203
        $region28: #{autoencoder_de_forward.7} parent=19 // pred_fallthru
          _
      $region20: #{autoencoder_de_forward.7} parent=5 // pred_fallthru
        _
      %p218 = scmp.le.s32.totalorder 1, %s15
      %p219 = scmp.lt.s32.totalorder %s15, 3
      %p220 = pnand %p218, %p219
      %p221 = pneg %p220
      // Predicated region
      $region29: #{autoencoder_de_forward.7} parent=5 // pred_check
        _
      $region30: #{autoencoder_de_forward.7} parent=5 // pred_check_branch
        %223 = sbr.rel (%p220) target = $region32
      $region31: #{autoencoder_de_forward.7} parent=5 // pred_region
        %s224 = ssub.s32 %s15, 1
        %s225 = sand.u32 %s77, 1
        %s226 = scalar_lea.sflag [#allocation4], %s225
        %s227 = sand.u32 %s77, 1
        %s228 = smul.addr %s227, 64
        %s229 = scalar_lea.vmem [#allocation3], %s228
        // Predicated region
        $region33: #{autoencoder_de_forward.7} parent=31 // pred_check
          %p230 = pneg %p90
        $region34: #{autoencoder_de_forward.7} parent=31 // pred_check_branch
          %232 = sbr.rel (%p230) target = $region36
        $region35: #{autoencoder_de_forward.7} parent=31 // pred_region
          %233 = dma.done %s226, 1024
        $region36: #{autoencoder_de_forward.7} parent=31 // pred_fallthru
          _
        %s234 = sand.u32 %s103, 1
        %s235 = scalar_lea.sflag [#allocation6], %s234
        %s236 = sand.u32 %s103, 1
        %s237 = smul.addr %s236, 2
        %s238 = scalar_lea.vmem [#allocation5], %s237
        // Predicated region
        $region37: #{autoencoder_de_forward.7} parent=31 // pred_check
          %p239 = pneg %p116
        $region38: #{autoencoder_de_forward.7} parent=31 // pred_check_branch
          %241 = sbr.rel (%p239) target = $region40
        $region39: #{autoencoder_de_forward.7} parent=31 // pred_region
          %242 = dma.done %s235, 32
        $region40: #{autoencoder_de_forward.7} parent=31 // pred_fallthru
          _
        %s243 = smul.u32 4, %s25
        %p244 = scmp.lt.s32.totalorder %s243, 3
        %s245 = scalar_select %p244, %s243, 3
        %p246 = scmp.lt.s32.totalorder %s27, 0
        %s247 = scalar_select %p246, %s27, 0
        %s248 = sadd.s32 %s247, %s245
        %s249 = smul.addr %s248, 4
        %s250 = scalar_lea.vmem %s0, %s249
        %p251 = pneg %p62
        %p252 = pneg %p59
        %s253 = sand.u32 %s77, 1
        %s254 = scalar_lea.sflag [#allocation4], %s253
        %s255 = sand.u32 %s77, 1
        %s256 = smul.addr %s255, 64
        %s257 = scalar_lea.vmem [#allocation3], %s256
        %p258 = pneg %p90
        %p259 = pneg %p87
        %s260 = sand.u32 %s103, 1
        %s261 = scalar_lea.sflag [#allocation6], %s260
        %s262 = sand.u32 %s103, 1
        %s263 = smul.addr %s262, 2
        %s264 = scalar_lea.vmem [#allocation5], %s263
        %p265 = pneg %p116
        %p266 = pneg %p113
        %p267 = pneg %p144
        %p268 = pneg %p141
        %s269 = sand.u32 %s131, 1
        %s270 = sand.u32 %s131, 1
        %s271 = smul.addr %s270, 32
        %s272 = scalar_lea.vmem [#allocation7], %s271
        %s273 = smul.u32 4, %s25
        %p274 = scmp.lt.s32.totalorder %s273, 3
        %s275 = scalar_select %p274, %s273, 3
        %p276 = scmp.lt.s32.totalorder %s27, 0
        %s277 = scalar_select %p276, %s27, 0
        %s278 = sadd.s32 %s277, %s275
        %s279 = smul.addr %s278, 4
        %s280 = scalar_lea.vmem %s0, %s279
        %s281 = smul.u32 4, %s25
        %s282 = smul.u32 8, %s27
        %s283 = smul.u32 2, %s26
        %s284 = smul.u32 2, %s26
        %s285 = smul.u32 4, %s25
        %s286 = smul.u32 2, %s26
        %p288 = scmp.eq.s32.totalorder %s27, 0
        // Predicated region
        $region41: #{autoencoder_de_forward.7} parent=31 // pred_check
          %p289 = pneg %p288
        $region42: #{autoencoder_de_forward.7} parent=31 // pred_check_branch
          %291 = sbr.rel (%p289) target = $region44
        $region43: #{autoencoder_de_forward.7} parent=31 // pred_region
          %292 = vst [vmem:[#allocation2] sm:$0xff] 0.0
          %293 = vst [vmem:[#allocation2 + $0x8] sm:$0xff] 0.0
          %294 = vst [vmem:[#allocation2 + $0x10] sm:$0xff] 0.0
          %295 = vst [vmem:[#allocation2 + $0x18] sm:$0xff] 0.0
          %296 = vst [vmem:[#allocation2 + $0x20] sm:$0xff] 0.0
          %297 = vst [vmem:[#allocation2 + $0x28] sm:$0xff] 0.0
          %298 = vst [vmem:[#allocation2 + $0x30] sm:$0xff] 0.0
          %299 = vst [vmem:[#allocation2 + $0x38] sm:$0xff] 0.0
        $region44: #{autoencoder_de_forward.7} parent=31 // pred_fallthru
          _
        %v300 = vld [vmem:[#allocation2] sm:$0xff]
        %v301 = vld [vmem:[#allocation2 + $0x8] sm:$0xff]
        %v302 = vld [vmem:[#allocation2 + $0x10] sm:$0xff]
        %v303 = vld [vmem:[#allocation2 + $0x18] sm:$0xff]
        %v304 = vld [vmem:[#allocation2 + $0x20] sm:$0xff]
        %v305 = vld [vmem:[#allocation2 + $0x28] sm:$0xff]
        %v306 = vld [vmem:[#allocation2 + $0x30] sm:$0xff]
        %v307 = vld [vmem:[#allocation2 + $0x38] sm:$0xff]
        %v308 = vld [vmem:[%s280] sm:$0xf]
        %v309 = vld [vmem:[%s280 + $0x4] sm:$0xf]
        %v310 = vld [vmem:[%s280 + $0x8] sm:$0xf]
        %v311 = vld [vmem:[%s280 + $0xc] sm:$0xf]
        %v312 = vld [vmem:[%s229] sm:$0xff]
        %v313 = vld [vmem:[%s229 + $0x8] sm:$0xff]
        %v314 = vld [vmem:[%s229 + $0x10] sm:$0xff]
        %v315 = vld [vmem:[%s229 + $0x18] sm:$0xff]
        %v316 = vld [vmem:[%s229 + $0x20] sm:$0xff]
        %v317 = vld [vmem:[%s229 + $0x28] sm:$0xff]
        %v318 = vld [vmem:[%s229 + $0x30] sm:$0xff]
        %v319 = vld [vmem:[%s229 + $0x38] sm:$0xff]
        %v324 = vunpack.c.l.b16 %v308
        %v325 = vunpack.c.l.b16 %v309
        %v326 = vunpack.c.l.b16 %v310
        %v327 = vunpack.c.l.b16 %v311
        %v328 = vpack.c.b16 %v325, %v324
        %v329 = vpack.c.b16 %v327, %v326
        %v338 = vunpack.c.l.b16 %v312
        %v339 = vunpack.c.h.b16 %v312
        %v340 = vunpack.c.l.b16 %v313
        %v341 = vunpack.c.h.b16 %v313
        %v342 = vunpack.c.l.b16 %v314
        %v343 = vunpack.c.h.b16 %v314
        %v344 = vunpack.c.l.b16 %v315
        %v345 = vunpack.c.h.b16 %v315
        %v346 = vunpack.c.l.b16 %v316
        %v347 = vunpack.c.h.b16 %v316
        %v348 = vunpack.c.l.b16 %v317
        %v349 = vunpack.c.h.b16 %v317
        %v350 = vunpack.c.l.b16 %v318
        %v351 = vunpack.c.h.b16 %v318
        %v352 = vunpack.c.l.b16 %v319
        %v353 = vunpack.c.h.b16 %v319
        %v354 = vpack.c.b16 %v340, %v338
        %v355 = vpack.c.b16 %v341, %v339
        %v356 = vpack.c.b16 %v344, %v342
        %v357 = vpack.c.b16 %v345, %v343
        %v358 = vpack.c.b16 %v348, %v346
        %v359 = vpack.c.b16 %v349, %v347
        %v360 = vpack.c.b16 %v352, %v350
        %v361 = vpack.c.b16 %v353, %v351
        %vm370 = vcmask 523264
        %v372 = vsel %vm370, %v328, 0
        %v375 = vsel %vm370, %v329, 0
        %377 = vmatprep.subr.bf16.mxu0 %v355
        %378 = vmatpush1.bf16.msra.mxu0 %v354
        %379 = vmatprep.subr.bf16.mxu0 %v357
        %380 = vmatpush1.bf16.msra.mxu0 %v356
        %381 = vmatprep.subr.bf16.mxu0 %v359
        %382 = vmatpush1.bf16.msra.mxu0 %v358
        %383 = vmatprep.subr.bf16.mxu0 %v361
        %384 = vmatpush1.bf16.msra.mxu0 %v360
        %385 = vmatprep.subr.bf16.mxu0 0
        %386 = vmatpush1.bf16.msra.mxu0 0
        %387 = vmatprep.subr.bf16.mxu0 0
        %388 = vmatpush1.bf16.msra.mxu0 0
        %389 = vmatprep.subr.bf16.mxu0 0
        %390 = vmatpush1.bf16.msra.mxu0 0
        %391 = vmatprep.subr.bf16.mxu0 0
        %392 = vmatpush1.bf16.msra.mxu0 0
        %393 = vmatprep.subr.bf16.mxu0 0
        %394 = vmatpush1.bf16.msra.mxu0 0
        %395 = vmatprep.subr.bf16.mxu0 0
        %396 = vmatpush1.bf16.msra.mxu0 0
        %397 = vmatprep.subr.bf16.mxu0 0
        %398 = vmatpush1.bf16.msra.mxu0 0
        %399 = vmatprep.subr.bf16.mxu0 0
        %400 = vmatpush1.bf16.msra.mxu0 0
        %401 = vmatprep.subr.bf16.mxu0 0
        %402 = vmatpush1.bf16.msra.mxu0 0
        %403 = vmatprep.subr.bf16.mxu0 0
        %404 = vmatpush1.bf16.msra.mxu0 0
        %405 = vmatprep.subr.bf16.mxu0 0
        %406 = vmatpush1.bf16.msra.mxu0 0
        %407 = vmatprep.subr.bf16.mxu0 0
        %408 = vmatpush1.bf16.msra.mxu0 0
        %409 = vmatprep.mubr.bf16.mxu0 0
        %410 = vmatmul.mubr.bf16.gmra.mrb[0].mxu0 %v372
        %v411 = vpop.f32.mrb[0].mxu0
        %v412 = vadd.f32 0.0, %v411
        %v413 = vpop.f32.mrb[0].mxu0
        %v414 = vadd.f32 0.0, %v413
        %v415 = vpop.f32.mrb[0].mxu0
        %v416 = vadd.f32 0.0, %v415
        %v417 = vpop.f32.mrb[0].mxu0
        %v418 = vadd.f32 0.0, %v417
        %419 = vmatprep.mubr.bf16.mxu0 0
        %420 = vmatmul.mubr.bf16.gmra.mrb[0].mxu0 %v375
        %v421 = vpop.f32.mrb[0].mxu0
        %v422 = vadd.f32 0.0, %v421
        %v423 = vpop.f32.mrb[0].mxu0
        %v424 = vadd.f32 0.0, %v423
        %v425 = vpop.f32.mrb[0].mxu0
        %v426 = vadd.f32 0.0, %v425
        %v427 = vpop.f32.mrb[0].mxu0
        %v428 = vadd.f32 0.0, %v427
        %429 = vdwg.mxu0
        %v430 = vadd.f32 %v300, %v412
        %v431 = vadd.f32 %v301, %v414
        %v432 = vadd.f32 %v302, %v416
        %v433 = vadd.f32 %v303, %v418
        %v434 = vadd.f32 %v304, %v422
        %v435 = vadd.f32 %v305, %v424
        %v436 = vadd.f32 %v306, %v426
        %v437 = vadd.f32 %v307, %v428
        %438 = vst [vmem:[#allocation2] sm:$0xff] %v430
        %439 = vst [vmem:[#allocation2 + $0x8] sm:$0xff] %v431
        %440 = vst [vmem:[#allocation2 + $0x10] sm:$0xff] %v432
        %441 = vst [vmem:[#allocation2 + $0x18] sm:$0xff] %v433
        %442 = vst [vmem:[#allocation2 + $0x20] sm:$0xff] %v434
        %443 = vst [vmem:[#allocation2 + $0x28] sm:$0xff] %v435
        %444 = vst [vmem:[#allocation2 + $0x30] sm:$0xff] %v436
        %445 = vst [vmem:[#allocation2 + $0x38] sm:$0xff] %v437
        // Predicated region
        $region45: #{autoencoder_de_forward.7} parent=31 // pred_check
          %p446 = pneg %p288
        $region46: #{autoencoder_de_forward.7} parent=31 // pred_check_branch
          %448 = sbr.rel (%p446) target = $region48
        $region47: #{autoencoder_de_forward.7} parent=31 // pred_region
          %v449 = vld [vmem:[#allocation2] sm:$0xff]
          %v450 = vld [vmem:[#allocation2 + $0x8] sm:$0xff]
          %v451 = vld [vmem:[#allocation2 + $0x10] sm:$0xff]
          %v452 = vld [vmem:[#allocation2 + $0x18] sm:$0xff]
          %v453 = vld [vmem:[#allocation2 + $0x20] sm:$0xff]
          %v454 = vld [vmem:[#allocation2 + $0x28] sm:$0xff]
          %v455 = vld [vmem:[#allocation2 + $0x30] sm:$0xff]
          %v456 = vld [vmem:[#allocation2 + $0x38] sm:$0xff]
          %v457 = vld [vmem:[%s238] sm:$0x3]
          %v459 = vlaneseq
          %v460 = vshrl.u32 %v459, 7
          %v461 = vsub.s32 0, %v460
          %v462 = vrot.slane %v457, %v461
          %v463 = vlaneseq
          %v464 = vshrl.u32 %v463, 7
          %v465 = vsub.s32 1, %v464
          %v466 = vrot.slane %v457, %v465
          %v469 = vadd.f32 %v449, %v462
          %v470 = vadd.f32 %v450, %v466
          %v471 = vadd.f32 %v451, %v462
          %v472 = vadd.f32 %v452, %v466
          %v473 = vadd.f32 %v453, %v462
          %v474 = vadd.f32 %v454, %v466
          %v475 = vadd.f32 %v455, %v462
          %v476 = vadd.f32 %v456, %v466
          %v477 = vpack.c.bf16 %v471, %v469
          %v478 = vpack.c.bf16 %v472, %v470
          %v479 = vpack.c.bf16 %v475, %v473
          %v480 = vpack.c.bf16 %v476, %v474
          %v485 = vunpack.c.l.b16 %v477
          %v486 = vunpack.c.l.b16 %v478
          %v487 = vunpack.c.h.b16 %v477
          %v488 = vunpack.c.h.b16 %v478
          %v489 = vunpack.c.l.b16 %v479
          %v490 = vunpack.c.l.b16 %v480
          %v491 = vunpack.c.h.b16 %v479
          %v492 = vunpack.c.h.b16 %v480
          %v493 = vpack.c.b16 %v486, %v485
          %v494 = vpack.c.b16 %v488, %v487
          %v495 = vpack.c.b16 %v490, %v489
          %v496 = vpack.c.b16 %v492, %v491
          %501 = vst [vmem:[%s272] sm:$0xff] %v493
          %502 = vst [vmem:[%s272 + $0x8] sm:$0xff] %v494
          %503 = vst [vmem:[%s272 + $0x10] sm:$0xff] %v495
          %504 = vst [vmem:[%s272 + $0x18] sm:$0xff] %v496
        $region48: #{autoencoder_de_forward.7} parent=31 // pred_fallthru
          _
        %s505 = sand.u32 %s131, 1
        %s506 = sand.u32 %s131, 1
        %s507 = smul.addr %s506, 32
        %s508 = scalar_lea.vmem [#allocation7], %s507
        // Predicated region
        $region49: #{autoencoder_de_forward.7} parent=31 // pred_check
          %p509 = pneg %p141
        $region50: #{autoencoder_de_forward.7} parent=31 // pred_check_branch
          %511 = sbr.rel (%p509) target = $region52
        $region51: #{autoencoder_de_forward.7} parent=31 // pred_region
          %s512 = smul.u32 4, %s25
          %s513 = smul.u32 2, %s26
          %s514 = smul.addr %s512, 4
          %s515 = sadd.s32 %s513, %s514
          %s516 = smul.addr %s515, 4
          %s517 = scalar_lea.vmem %s3, %s516
          // Predicated region
          $region53: #{autoencoder_de_forward.7} parent=51 // pred_check
            _
          $region54: #{autoencoder_de_forward.7} parent=51 // pred_check_branch
            %519 = sbr.rel (0) target = $region56
          $region55: #{autoencoder_de_forward.7} parent=51 // pred_region
            // Predicated region
            $region57: #{autoencoder_de_forward.7} parent=55 // pred_check
              _
            $region58: #{autoencoder_de_forward.7} parent=55 // pred_check_branch
              %521 = sbr.rel (0) target = $region60
            $region59: #{autoencoder_de_forward.7} parent=55 // pred_region
              // Predicated region
              $region72: #{autoencoder_de_forward.7} parent=59 // pred_check
                _
              $region73: #{autoencoder_de_forward.7} parent=59 // pred_check_branch
                %542 = sbr.rel (0) target = $region75
              $region74: #{autoencoder_de_forward.7} parent=59 // pred_region
                loop: start=0, step=1, limit=1
                $region76: #{autoencoder_de_forward.7} parent=74 // loop_pre_header
                  _
                $region77: #{autoencoder_de_forward.7} parent=74 // loop_header
                  %s544 = sphi 0, %s548
                  %p545 = scmp.ge.s32.totalorder %s544, 1
                  %s549 = sphi %s508, %s508
                  %s550 = sphi %s517, %s517
                $region78: #{autoencoder_de_forward.7} parent=74 // loop_header_branch
                  %547 = sbr.rel (%p545) target = $region82
                $region79: #{autoencoder_de_forward.7} parent=74 // loop_body
                  %v551 = vld [vmem:[%s549] sm:$0xff]
                  %552 = vst [vmem:[%s550] sm:$0xff] %v551
                  %v553 = vld [vmem:[%s549 + $0x8] sm:$0xff]
                  %554 = vst [vmem:[%s550 + $0x10] sm:$0xff] %v553
                  %v555 = vld [vmem:[%s549 + $0x10] sm:$0xff]
                  %556 = vst [vmem:[%s550 + $0x20] sm:$0xff] %v555
                  %v557 = vld [vmem:[%s549 + $0x18] sm:$0xff]
                  %558 = vst [vmem:[%s550 + $0x30] sm:$0xff] %v557
                $region80: #{autoencoder_de_forward.7} parent=74 // loop_footer
                  %s548 = sadd.s32 1, %s544
                $region81: #{autoencoder_de_forward.7} parent=74 // loop_footer_branch
                  %543 = sbr.rel target = $region77
                $region82: #{autoencoder_de_forward.7} parent=74 // loop_exit
                  _
              $region75: #{autoencoder_de_forward.7} parent=59 // pred_fallthru
                _
              // Predicated region
              $region83: #{autoencoder_de_forward.7} parent=59 // pred_check
                _
              $region84: #{autoencoder_de_forward.7} parent=59 // pred_check_branch
                %560 = sbr.rel target = $region86
              $region85: #{autoencoder_de_forward.7} parent=59 // pred_region
                _
              $region86: #{autoencoder_de_forward.7} parent=59 // pred_fallthru
                _
            $region60: #{autoencoder_de_forward.7} parent=55 // pred_fallthru
              _
            // Predicated region
            $region61: #{autoencoder_de_forward.7} parent=55 // pred_check
              _
            $region62: #{autoencoder_de_forward.7} parent=55 // pred_check_branch
              %523 = sbr.rel target = $region64
            $region63: #{autoencoder_de_forward.7} parent=55 // pred_region
              loop: start=0, step=1, limit=1
              $region65: #{autoencoder_de_forward.7} parent=63 // loop_pre_header
                _
              $region66: #{autoencoder_de_forward.7} parent=63 // loop_header
                %s526 = sphi 0, %s530
                %p527 = scmp.ge.s32.totalorder %s526, 1
                %s531 = sphi %s508, %s508
                %s532 = sphi %s517, %s517
              $region67: #{autoencoder_de_forward.7} parent=63 // loop_header_branch
                %529 = sbr.rel (%p527) target = $region71
              $region68: #{autoencoder_de_forward.7} parent=63 // loop_body
                %v533 = vld [vmem:[%s531] sm:$0xff]
                %534 = vst [vmem:[%s532] sm:$0xff] %v533
                %v535 = vld [vmem:[%s531 + $0x8] sm:$0xff]
                %536 = vst [vmem:[%s532 + $0x10] sm:$0xff] %v535
                %v537 = vld [vmem:[%s531 + $0x10] sm:$0xff]
                %538 = vst [vmem:[%s532 + $0x20] sm:$0xff] %v537
                %v539 = vld [vmem:[%s531 + $0x18] sm:$0xff]
                %540 = vst [vmem:[%s532 + $0x30] sm:$0xff] %v539
              $region69: #{autoencoder_de_forward.7} parent=63 // loop_footer
                %s530 = sadd.s32 1, %s526
              $region70: #{autoencoder_de_forward.7} parent=63 // loop_footer_branch
                %525 = sbr.rel target = $region66
              $region71: #{autoencoder_de_forward.7} parent=63 // loop_exit
                _
            $region64: #{autoencoder_de_forward.7} parent=55 // pred_fallthru
              _
          $region56: #{autoencoder_de_forward.7} parent=51 // pred_fallthru
            _
          %561 = vnop
        $region52: #{autoencoder_de_forward.7} parent=31 // pred_fallthru
          _
      $region32: #{autoencoder_de_forward.7} parent=5 // pred_fallthru
        _
      %p562 = scmp.le.s32.totalorder 2, %s15
      // Predicated region
      $region87: #{autoencoder_de_forward.7} parent=5 // pred_check
        %p563 = pneg %p562
      $region88: #{autoencoder_de_forward.7} parent=5 // pred_check_branch
        %565 = sbr.rel (%p563) target = $region90
      $region89: #{autoencoder_de_forward.7} parent=5 // pred_region
        %s566 = ssub.s32 %s15, 2
        // Predicated region
        $region91: #{autoencoder_de_forward.7} parent=89 // pred_check
          %p567 = pneg %p147
        $region92: #{autoencoder_de_forward.7} parent=89 // pred_check_branch
          %569 = sbr.rel (%p567) target = $region94
        $region93: #{autoencoder_de_forward.7} parent=89 // pred_region
          %s570 = sand.u32 %s132, 1
          %s571 = sand.u32 %s132, 1
          %s572 = smul.addr %s571, 32
          %s573 = scalar_lea.vmem [#allocation7], %s572
        $region94: #{autoencoder_de_forward.7} parent=89 // pred_fallthru
          _
      $region90: #{autoencoder_de_forward.7} parent=5 // pred_fallthru
        _
    $region6: #{autoencoder_de_forward.7} parent=1 // loop_footer
      %s19 = sadd.s32 1, %s15
    $region7: #{autoencoder_de_forward.7} parent=1 // loop_footer_branch
      %14 = sbr.rel target = $region3
    $region8: #{autoencoder_de_forward.7} parent=1 // loop_exit
      _
    %574 = vsyncpa [#allocation4], 1
    %s575 = scalar_lea.sflag [#allocation4], 1
    %576 = vsyncpa %s575, 1
    %577 = vsyncpa [#allocation6], 1
    %s578 = scalar_lea.sflag [#allocation6], 1
    %579 = vsyncpa %s578, 1

// kernel: autoencoder_de_forward.8
$region0: #{autoencoder_de_forward.8}
  #allocation0 [shape = 'u32[]', space=smem, size = 0x4, offset = 0x4, fixed_abs, tag = 'smem constant byte address 0x4 - core index']
  #allocation1 [shape = 'u32[144,128]{1,0:T(1,128)}', space=vmem, size = 0x12000, scoped, tag = 'internal scratch']
  #allocation2 [shape = 'f32[128,128]{1,0:T(8,128)}', space=vmem, size = 0x10000, scoped, tag = 'scratch operand']
  %s0 = inlined_call_operand.vmem [shape: bf16[128,32], index: 0, kind: input, shape index: {}]
  %s1 = inlined_call_operand.vmem [shape: bf16[32,256], index: 1, kind: input, shape index: {}]
  %s2 = inlined_call_operand.vmem [shape: f32[1,256], index: 2, kind: input, shape index: {}]
  %s3 = inlined_call_operand.vmem [shape: bf16[128,256], index: 3, kind: output, shape index: {}]
  %s4 = sld [smem:[#allocation0]]
  $region131: #{autoencoder_de_forward.8} parent=0
    _
  %s6 = ssub.s32 1, %s4
  %s7 = scalar_select 0, %s6, %s4
  $region1: #{autoencoder_de_forward.8} parent=0
    #allocation3 [shape = 'u8[16384]{0}', space=vmem, size = 0x4000, scoped, tag = 'input window, operand 1']
    #allocation4 [shape = 'u8[65536]{0}', space=vmem, size = 0x10000, scoped, tag = 'output window, operand 0']
    loop: start=0, step=1, limit=4
    $region2: #{autoencoder_de_forward.8} parent=1 // loop_pre_header
      _
    $region3: #{autoencoder_de_forward.8} parent=1 // loop_header
      %s9 = sphi 0, %s13
      %p10 = scmp.ge.s32.totalorder %s9, 4
      %s16 = sphi 0, %s35
      %s17 = sphi 0, %s31
      %s18 = sphi 0, %s27
      %s19 = sphi 0, %s16
      %s20 = sphi 0, %s17
      %s21 = sphi 0, %s18
      %s22 = sphi 0, %s19
      %s23 = sphi 0, %s20
      %s24 = sphi 0, %s21
      %s40 = sphi 0, %s42
      %s43 = sphi 0, %s40
      %s44 = sphi 0, %s43
      %s60 = sphi 0, %s44
      %s68 = sphi 0, %s70
      %s71 = sphi 0, %s68
      %s72 = sphi 0, %s71
      %s88 = sphi 0, %s72
      %s94 = sphi 0, %s96
      %s97 = sphi 0, %s94
      %s98 = sphi 0, %s97
      %s114 = sphi 0, %s98
      %s122 = sphi 0, %s124
      %s125 = sphi 0, %s122
      %s126 = sphi 0, %s125
      %s142 = sphi 0, %s126
    $region4: #{autoencoder_de_forward.8} parent=1 // loop_header_branch
      %12 = sbr.rel (%p10) target = $region8
    $region5: #{autoencoder_de_forward.8} parent=1 // loop_body
      %s14 = ssub.s32 %s9, 1
      %s15 = ssub.s32 %s9, 2
      %s25 = sadd.s32 1, %s18
      %p26 = scmp.ge.s32.totalorder %s25, 1
      %s27 = scalar_select %p26, 0, %s25
      %s28 = sadd.s32 1, %s17
      %s29 = scalar_select %p26, %s28, %s17
      %p30 = scmp.ge.s32.totalorder %s29, 2
      %s31 = scalar_select %p30, 0, %s29
      %s32 = sadd.s32 1, %s16
      %s33 = scalar_select %p30, %s32, %s16
      %p34 = scmp.ge.s32.totalorder %s33, 1
      %s35 = scalar_select %p34, 0, %s33
      %s36 = ssub.s32 %s16, %s35
      %s37 = ssub.s32 %s18, %s27
      %s38 = sor.u32 %s36, %s37
      %p39 = scmp.eq.s32.totalorder %s38, 0
      %s41 = sadd.s32 %s40, 1
      %s42 = scalar_select %p39, %s40, %s41
      %p45 = pneg %p39
      %p46 = scmp.eq.s32.totalorder %s9, 1
      %p47 = por %p45, %p46
      %p48 = scmp.ne.s32.totalorder %s40, %s43
      %p49 = scmp.eq.s32.totalorder %s9, 0
      %p50 = por %p48, %p49
      %p51 = scmp.ne.s32.totalorder %s40, %s43
      %p52 = scmp.eq.s32.totalorder %s14, 1
      %p53 = por %p51, %p52
      %p54 = scmp.ne.s32.totalorder %s43, %s44
      %p55 = scmp.eq.s32.totalorder %s14, 0
      %p56 = por %p54, %p55
      %p57 = scmp.ne.s32.totalorder %s43, %s44
      %p58 = scmp.eq.s32.totalorder %s15, 1
      %p59 = por %p57, %p58
      %p61 = scmp.ne.s32.totalorder %s44, %s60
      %p62 = scmp.eq.s32.totalorder %s15, 0
      %p63 = por %p61, %p62
      %s64 = ssub.s32 %s18, %s27
      %s65 = ssub.s32 %s17, %s31
      %s66 = sor.u32 %s64, %s65
      %p67 = scmp.eq.s32.totalorder %s66, 0
      %s69 = sadd.s32 %s68, 1
      %s70 = scalar_select %p67, %s68, %s69
      %p73 = pneg %p67
      %p74 = scmp.eq.s32.totalorder %s9, 1
      %p75 = por %p73, %p74
      %p76 = scmp.ne.s32.totalorder %s68, %s71
      %p77 = scmp.eq.s32.totalorder %s9, 0
      %p78 = por %p76, %p77
      %p79 = scmp.ne.s32.totalorder %s68, %s71
      %p80 = scmp.eq.s32.totalorder %s14, 1
      %p81 = por %p79, %p80
      %p82 = scmp.ne.s32.totalorder %s71, %s72
      %p83 = scmp.eq.s32.totalorder %s14, 0
      %p84 = por %p82, %p83
      %p85 = scmp.ne.s32.totalorder %s71, %s72
      %p86 = scmp.eq.s32.totalorder %s15, 1
      %p87 = por %p85, %p86
      %p89 = scmp.ne.s32.totalorder %s72, %s88
      %p90 = scmp.eq.s32.totalorder %s15, 0
      %p91 = por %p89, %p90
      %s92 = ssub.s32 %s17, %s31
      %p93 = scmp.eq.s32.totalorder %s92, 0
      %s95 = sadd.s32 %s94, 1
      %s96 = scalar_select %p93, %s94, %s95
      %p99 = pneg %p93
      %p100 = scmp.eq.s32.totalorder %s9, 1
      %p101 = por %p99, %p100
      %p102 = scmp.ne.s32.totalorder %s94, %s97
      %p103 = scmp.eq.s32.totalorder %s9, 0
      %p104 = por %p102, %p103
      %p105 = scmp.ne.s32.totalorder %s94, %s97
      %p106 = scmp.eq.s32.totalorder %s14, 1
      %p107 = por %p105, %p106
      %p108 = scmp.ne.s32.totalorder %s97, %s98
      %p109 = scmp.eq.s32.totalorder %s14, 0
      %p110 = por %p108, %p109
      %p111 = scmp.ne.s32.totalorder %s97, %s98
      %p112 = scmp.eq.s32.totalorder %s15, 1
      %p113 = por %p111, %p112
      %p115 = scmp.ne.s32.totalorder %s98, %s114
      %p116 = scmp.eq.s32.totalorder %s15, 0
      %p117 = por %p115, %p116
      %s118 = ssub.s32 %s16, %s35
      %s119 = ssub.s32 %s17, %s31
      %s120 = sor.u32 %s118, %s119
      %p121 = scmp.eq.s32.totalorder %s120, 0
      %s123 = sadd.s32 %s122, 1
      %s124 = scalar_select %p121, %s122, %s123
      %p127 = pneg %p121
      %p128 = scmp.eq.s32.totalorder %s9, 1
      %p129 = por %p127, %p128
      %p130 = scmp.ne.s32.totalorder %s122, %s125
      %p131 = scmp.eq.s32.totalorder %s9, 0
      %p132 = por %p130, %p131
      %p133 = scmp.ne.s32.totalorder %s122, %s125
      %p134 = scmp.eq.s32.totalorder %s14, 1
      %p135 = por %p133, %p134
      %p136 = scmp.ne.s32.totalorder %s125, %s126
      %p137 = scmp.eq.s32.totalorder %s14, 0
      %p138 = por %p136, %p137
      %p139 = scmp.ne.s32.totalorder %s125, %s126
      %p140 = scmp.eq.s32.totalorder %s15, 1
      %p141 = por %p139, %p140
      %p143 = scmp.ne.s32.totalorder %s126, %s142
      %p144 = scmp.eq.s32.totalorder %s15, 0
      %p145 = por %p143, %p144
      %p146 = scmp.le.s32.totalorder 1, %s9
      %p147 = scmp.lt.s32.totalorder %s9, 3
      %p148 = pnand %p146, %p147
      %p149 = pneg %p148
      // Predicated region
      $region9: #{autoencoder_de_forward.8} parent=5 // pred_check
        _
      $region10: #{autoencoder_de_forward.8} parent=5 // pred_check_branch
        %151 = sbr.rel (%p148) target = $region12
      $region11: #{autoencoder_de_forward.8} parent=5 // pred_region
        %s152 = ssub.s32 %s9, 1
        // Predicated region
        $region13: #{autoencoder_de_forward.8} parent=11 // pred_check
          %p153 = pneg %p56
        $region14: #{autoencoder_de_forward.8} parent=11 // pred_check_branch
          %155 = sbr.rel (%p153) target = $region16
        $region15: #{autoencoder_de_forward.8} parent=11 // pred_region
          %s156 = smul.u32 16, %s19
          %p157 = scmp.lt.s32.totalorder %s156, 15
          %s158 = scalar_select %p157, %s156, 15
          %p159 = scmp.lt.s32.totalorder %s21, 0
          %s160 = scalar_select %p159, %s21, 0
          %s161 = sadd.s32 %s160, %s158
          %s162 = smul.addr %s161, 4
          %s163 = scalar_lea.vmem %s0, %s162
          %s164 = smul.u32 16, %s19
        $region16: #{autoencoder_de_forward.8} parent=11 // pred_fallthru
          _
      $region12: #{autoencoder_de_forward.8} parent=5 // pred_fallthru
        _
      %p165 = scmp.lt.s32.totalorder %s9, 2
      // Predicated region
      $region17: #{autoencoder_de_forward.8} parent=5 // pred_check
        %p166 = pneg %p165
      $region18: #{autoencoder_de_forward.8} parent=5 // pred_check_branch
        %168 = sbr.rel (%p166) target = $region20
      $region19: #{autoencoder_de_forward.8} parent=5 // pred_region
        // Predicated region
        $region21: #{autoencoder_de_forward.8} parent=19 // pred_check
          %p169 = pneg %p78
        $region22: #{autoencoder_de_forward.8} parent=19 // pred_check_branch
          %171 = sbr.rel (%p169) target = $region24
        $region23: #{autoencoder_de_forward.8} parent=19 // pred_region
          %s172 = sand.u32 %s68, 1
          %s173 = sand.u32 %s68, 1
          %s174 = smul.addr %s173, 16
          %s175 = scalar_lea.vmem [#allocation3], %s174
          %s176 = smul.u32 4, %s18
          %s177 = smul.addr %s176, 2
          %s178 = sadd.s32 %s17, %s177
          %s179 = smul.addr %s178, 4
          %s180 = scalar_lea.vmem %s1, %s179
          // Predicated region
          $region25: #{autoencoder_de_forward.8} parent=23 // pred_check
            _
          $region26: #{autoencoder_de_forward.8} parent=23 // pred_check_branch
            %182 = sbr.rel (0) target = $region28
          $region27: #{autoencoder_de_forward.8} parent=23 // pred_region
            // Predicated region
            $region29: #{autoencoder_de_forward.8} parent=27 // pred_check
              _
            $region30: #{autoencoder_de_forward.8} parent=27 // pred_check_branch
              %184 = sbr.rel target = $region32
            $region31: #{autoencoder_de_forward.8} parent=27 // pred_region
              // Predicated region
              $region44: #{autoencoder_de_forward.8} parent=31 // pred_check
                _
              $region45: #{autoencoder_de_forward.8} parent=31 // pred_check_branch
                %205 = sbr.rel (0) target = $region47
              $region46: #{autoencoder_de_forward.8} parent=31 // pred_region
                loop: start=0, step=1, limit=1
                $region48: #{autoencoder_de_forward.8} parent=46 // loop_pre_header
                  _
                $region49: #{autoencoder_de_forward.8} parent=46 // loop_header
                  %s207 = sphi 0, %s211
                  %p208 = scmp.ge.s32.totalorder %s207, 1
                  %s212 = sphi %s180, %s180
                  %s213 = sphi %s175, %s175
                $region50: #{autoencoder_de_forward.8} parent=46 // loop_header_branch
                  %210 = sbr.rel (%p208) target = $region54
                $region51: #{autoencoder_de_forward.8} parent=46 // loop_body
                  _
                $region52: #{autoencoder_de_forward.8} parent=46 // loop_footer
                  %s211 = sadd.s32 1, %s207
                $region53: #{autoencoder_de_forward.8} parent=46 // loop_footer_branch
                  %206 = sbr.rel target = $region49
                $region54: #{autoencoder_de_forward.8} parent=46 // loop_exit
                  _
                loop: start=0, step=1, limit=1
                $region55: #{autoencoder_de_forward.8} parent=46 // loop_pre_header
                  _
                $region56: #{autoencoder_de_forward.8} parent=46 // loop_header
                  %s216 = sphi 0, %s220
                  %p217 = scmp.ge.s32.totalorder %s216, 1
                  %s221 = sphi %s180, %s180
                  %s222 = sphi %s175, %s175
                $region57: #{autoencoder_de_forward.8} parent=46 // loop_header_branch
                  %219 = sbr.rel (%p217) target = $region61
                $region58: #{autoencoder_de_forward.8} parent=46 // loop_body
                  %v223 = vld [vmem:[%s221] sm:$0xf]
                  %224 = vst [vmem:[%s222] sm:$0xf] %v223
                  %v225 = vld [vmem:[%s221 + $0x8] sm:$0xf]
                  %226 = vst [vmem:[%s222 + $0x4] sm:$0xf] %v225
                  %v227 = vld [vmem:[%s221 + $0x10] sm:$0xf]
                  %228 = vst [vmem:[%s222 + $0x8] sm:$0xf] %v227
                  %v229 = vld [vmem:[%s221 + $0x18] sm:$0xf]
                  %230 = vst [vmem:[%s222 + $0xc] sm:$0xf] %v229
                $region59: #{autoencoder_de_forward.8} parent=46 // loop_footer
                  %s220 = sadd.s32 1, %s216
                $region60: #{autoencoder_de_forward.8} parent=46 // loop_footer_branch
                  %215 = sbr.rel target = $region56
                $region61: #{autoencoder_de_forward.8} parent=46 // loop_exit
                  _
              $region47: #{autoencoder_de_forward.8} parent=31 // pred_fallthru
                _
            $region32: #{autoencoder_de_forward.8} parent=27 // pred_fallthru
              _
            // Predicated region
            $region33: #{autoencoder_de_forward.8} parent=27 // pred_check
              _
            $region34: #{autoencoder_de_forward.8} parent=27 // pred_check_branch
              %186 = sbr.rel (0) target = $region36
            $region35: #{autoencoder_de_forward.8} parent=27 // pred_region
              loop: start=0, step=1, limit=1
              $region37: #{autoencoder_de_forward.8} parent=35 // loop_pre_header
                _
              $region38: #{autoencoder_de_forward.8} parent=35 // loop_header
                %s189 = sphi 0, %s193
                %p190 = scmp.ge.s32.totalorder %s189, 1
                %s194 = sphi %s180, %s180
                %s195 = sphi %s175, %s175
              $region39: #{autoencoder_de_forward.8} parent=35 // loop_header_branch
                %192 = sbr.rel (%p190) target = $region43
              $region40: #{autoencoder_de_forward.8} parent=35 // loop_body
                %v196 = vld [vmem:[%s194] sm:$0xf]
                %197 = vst [vmem:[%s195] sm:$0xf] %v196
                %v198 = vld [vmem:[%s194 + $0x8] sm:$0xf]
                %199 = vst [vmem:[%s195 + $0x4] sm:$0xf] %v198
                %v200 = vld [vmem:[%s194 + $0x10] sm:$0xf]
                %201 = vst [vmem:[%s195 + $0x8] sm:$0xf] %v200
                %v202 = vld [vmem:[%s194 + $0x18] sm:$0xf]
                %203 = vst [vmem:[%s195 + $0xc] sm:$0xf] %v202
              $region41: #{autoencoder_de_forward.8} parent=35 // loop_footer
                %s193 = sadd.s32 1, %s189
              $region42: #{autoencoder_de_forward.8} parent=35 // loop_footer_branch
                %188 = sbr.rel target = $region38
              $region43: #{autoencoder_de_forward.8} parent=35 // loop_exit
                _
            $region36: #{autoencoder_de_forward.8} parent=27 // pred_fallthru
              _
          $region28: #{autoencoder_de_forward.8} parent=23 // pred_fallthru
            _
          %231 = vnop
        $region24: #{autoencoder_de_forward.8} parent=19 // pred_fallthru
          _
        // Predicated region
        $region62: #{autoencoder_de_forward.8} parent=19 // pred_check
          %p232 = pneg %p104
        $region63: #{autoencoder_de_forward.8} parent=19 // pred_check_branch
          %234 = sbr.rel (%p232) target = $region65
        $region64: #{autoencoder_de_forward.8} parent=19 // pred_region
          %p235 = scmp.lt.s32.totalorder %s17, 1
          %s236 = scalar_select %p235, %s17, 1
          %s237 = scalar_lea.vmem %s2, %s236
        $region65: #{autoencoder_de_forward.8} parent=19 // pred_fallthru
          _
      $region20: #{autoencoder_de_forward.8} parent=5 // pred_fallthru
        _
      %p238 = scmp.le.s32.totalorder 1, %s9
      %p239 = scmp.lt.s32.totalorder %s9, 3
      %p240 = pnand %p238, %p239
      %p241 = pneg %p240
      // Predicated region
      $region66: #{autoencoder_de_forward.8} parent=5 // pred_check
        _
      $region67: #{autoencoder_de_forward.8} parent=5 // pred_check_branch
        %243 = sbr.rel (%p240) target = $region69
      $region68: #{autoencoder_de_forward.8} parent=5 // pred_region
        %s244 = ssub.s32 %s9, 1
        %s245 = sand.u32 %s71, 1
        %s246 = sand.u32 %s71, 1
        %s247 = smul.addr %s246, 16
        %s248 = scalar_lea.vmem [#allocation3], %s247
        // Predicated region
        $region70: #{autoencoder_de_forward.8} parent=68 // pred_check
          %p249 = pneg %p84
        $region71: #{autoencoder_de_forward.8} parent=68 // pred_check_branch
          %251 = sbr.rel (%p249) target = $region73
        $region72: #{autoencoder_de_forward.8} parent=68 // pred_region
          _
        $region73: #{autoencoder_de_forward.8} parent=68 // pred_fallthru
          _
        %s252 = smul.u32 16, %s19
        %p253 = scmp.lt.s32.totalorder %s252, 15
        %s254 = scalar_select %p253, %s252, 15
        %p255 = scmp.lt.s32.totalorder %s21, 0
        %s256 = scalar_select %p255, %s21, 0
        %s257 = sadd.s32 %s256, %s254
        %s258 = smul.addr %s257, 4
        %s259 = scalar_lea.vmem %s0, %s258
        %p260 = pneg %p56
        %p261 = pneg %p53
        %s262 = sand.u32 %s71, 1
        %s263 = sand.u32 %s71, 1
        %s264 = smul.addr %s263, 16
        %s265 = scalar_lea.vmem [#allocation3], %s264
        %p266 = pneg %p84
        %p267 = pneg %p81
        %p268 = scmp.lt.s32.totalorder %s20, 1
        %s269 = scalar_select %p268, %s20, 1
        %s270 = scalar_lea.vmem %s2, %s269
        %p271 = pneg %p110
        %p272 = pneg %p107
        %p273 = pneg %p138
        %p274 = pneg %p135
        %s275 = sand.u32 %s125, 1
        %s276 = sand.u32 %s125, 1
        %s277 = smul.addr %s276, 64
        %s278 = scalar_lea.vmem [#allocation4], %s277
        %s279 = smul.u32 16, %s19
        %p280 = scmp.lt.s32.totalorder %s279, 15
        %s281 = scalar_select %p280, %s279, 15
        %p282 = scmp.lt.s32.totalorder %s21, 0
        %s283 = scalar_select %p282, %s21, 0
        %s284 = sadd.s32 %s283, %s281
        %s285 = smul.addr %s284, 4
        %s286 = scalar_lea.vmem %s0, %s285
        %s287 = smul.u32 16, %s19
        %s288 = smul.u32 4, %s21
        %p289 = scmp.lt.s32.totalorder %s20, 1
        %s290 = scalar_select %p289, %s20, 1
        %s291 = scalar_lea.vmem %s2, %s290
        %s292 = smul.u32 16, %s19
        %p294 = scmp.eq.s32.totalorder %s21, 0
        // Predicated region
        $region74: #{autoencoder_de_forward.8} parent=68 // pred_check
          %p295 = pneg %p294
        $region75: #{autoencoder_de_forward.8} parent=68 // pred_check_branch
          %297 = sbr.rel (%p295) target = $region77
        $region76: #{autoencoder_de_forward.8} parent=68 // pred_region
          %298 = vst [vmem:[#allocation2] sm:$0xff] 0.0
          %299 = vst [vmem:[#allocation2 + $0x8] sm:$0xff] 0.0
          %300 = vst [vmem:[#allocation2 + $0x10] sm:$0xff] 0.0
          %301 = vst [vmem:[#allocation2 + $0x18] sm:$0xff] 0.0
          %302 = vst [vmem:[#allocation2 + $0x20] sm:$0xff] 0.0
          %303 = vst [vmem:[#allocation2 + $0x28] sm:$0xff] 0.0
          %304 = vst [vmem:[#allocation2 + $0x30] sm:$0xff] 0.0
          %305 = vst [vmem:[#allocation2 + $0x38] sm:$0xff] 0.0
          %306 = vst [vmem:[#allocation2 + $0x40] sm:$0xff] 0.0
          %307 = vst [vmem:[#allocation2 + $0x48] sm:$0xff] 0.0
          %308 = vst [vmem:[#allocation2 + $0x50] sm:$0xff] 0.0
          %309 = vst [vmem:[#allocation2 + $0x58] sm:$0xff] 0.0
          %310 = vst [vmem:[#allocation2 + $0x60] sm:$0xff] 0.0
          %311 = vst [vmem:[#allocation2 + $0x68] sm:$0xff] 0.0
          %312 = vst [vmem:[#allocation2 + $0x70] sm:$0xff] 0.0
          %313 = vst [vmem:[#allocation2 + $0x78] sm:$0xff] 0.0
        $region77: #{autoencoder_de_forward.8} parent=68 // pred_fallthru
          _
        %v314 = vld [vmem:[#allocation2] sm:$0xff]
        %v315 = vld [vmem:[#allocation2 + $0x8] sm:$0xff]
        %v316 = vld [vmem:[#allocation2 + $0x10] sm:$0xff]
        %v317 = vld [vmem:[#allocation2 + $0x18] sm:$0xff]
        %v318 = vld [vmem:[#allocation2 + $0x20] sm:$0xff]
        %v319 = vld [vmem:[#allocation2 + $0x28] sm:$0xff]
        %v320 = vld [vmem:[#allocation2 + $0x30] sm:$0xff]
        %v321 = vld [vmem:[#allocation2 + $0x38] sm:$0xff]
        %v322 = vld [vmem:[#allocation2 + $0x40] sm:$0xff]
        %v323 = vld [vmem:[#allocation2 + $0x48] sm:$0xff]
        %v324 = vld [vmem:[#allocation2 + $0x50] sm:$0xff]
        %v325 = vld [vmem:[#allocation2 + $0x58] sm:$0xff]
        %v326 = vld [vmem:[#allocation2 + $0x60] sm:$0xff]
        %v327 = vld [vmem:[#allocation2 + $0x68] sm:$0xff]
        %v328 = vld [vmem:[#allocation2 + $0x70] sm:$0xff]
        %v329 = vld [vmem:[#allocation2 + $0x78] sm:$0xff]
        %v330 = vld [vmem:[%s286] sm:$0xf]
        %v331 = vld [vmem:[%s286 + $0x4] sm:$0xf]
        %v332 = vld [vmem:[%s286 + $0x8] sm:$0xf]
        %v333 = vld [vmem:[%s286 + $0xc] sm:$0xf]
        %v334 = vld [vmem:[%s286 + $0x10] sm:$0xf]
        %v335 = vld [vmem:[%s286 + $0x14] sm:$0xf]
        %v336 = vld [vmem:[%s286 + $0x18] sm:$0xf]
        %v337 = vld [vmem:[%s286 + $0x1c] sm:$0xf]
        %v338 = vld [vmem:[%s286 + $0x20] sm:$0xf]
        %v339 = vld [vmem:[%s286 + $0x24] sm:$0xf]
        %v340 = vld [vmem:[%s286 + $0x28] sm:$0xf]
        %v341 = vld [vmem:[%s286 + $0x2c] sm:$0xf]
        %v342 = vld [vmem:[%s286 + $0x30] sm:$0xf]
        %v343 = vld [vmem:[%s286 + $0x34] sm:$0xf]
        %v344 = vld [vmem:[%s286 + $0x38] sm:$0xf]
        %v345 = vld [vmem:[%s286 + $0x3c] sm:$0xf]
        %v346 = vld [vmem:[%s248] sm:$0xf]
        %v347 = vld [vmem:[%s248 + $0x4] sm:$0xf]
        %v348 = vld [vmem:[%s248 + $0x8] sm:$0xf]
        %v349 = vld [vmem:[%s248 + $0xc] sm:$0xf]
        %v366 = vunpack.c.l.b16 %v330
        %v367 = vunpack.c.l.b16 %v331
        %v368 = vunpack.c.l.b16 %v332
        %v369 = vunpack.c.l.b16 %v333
        %v370 = vunpack.c.l.b16 %v334
        %v371 = vunpack.c.l.b16 %v335
        %v372 = vunpack.c.l.b16 %v336
        %v373 = vunpack.c.l.b16 %v337
        %v374 = vunpack.c.l.b16 %v338
        %v375 = vunpack.c.l.b16 %v339
        %v376 = vunpack.c.l.b16 %v340
        %v377 = vunpack.c.l.b16 %v341
        %v378 = vunpack.c.l.b16 %v342
        %v379 = vunpack.c.l.b16 %v343
        %v380 = vunpack.c.l.b16 %v344
        %v381 = vunpack.c.l.b16 %v345
        %v382 = vpack.c.b16 %v367, %v366
        %v383 = vpack.c.b16 %v369, %v368
        %v384 = vpack.c.b16 %v371, %v370
        %v385 = vpack.c.b16 %v373, %v372
        %v386 = vpack.c.b16 %v375, %v374
        %v387 = vpack.c.b16 %v377, %v376
        %v388 = vpack.c.b16 %v379, %v378
        %v389 = vpack.c.b16 %v381, %v380
        %v394 = vunpack.c.l.b16 %v346
        %v395 = vunpack.c.l.b16 %v347
        %v396 = vunpack.c.l.b16 %v348
        %v397 = vunpack.c.l.b16 %v349
        %v398 = vpack.c.b16 %v395, %v394
        %v399 = vpack.c.b16 %v397, %v396
        %vm402 = vcmask 261120
        %v404 = vsel %vm402, %v382, 0
        %v407 = vsel %vm402, %v383, 0
        %v410 = vsel %vm402, %v384, 0
        %v413 = vsel %vm402, %v385, 0
        %v416 = vsel %vm402, %v386, 0
        %v419 = vsel %vm402, %v387, 0
        %v422 = vsel %vm402, %v388, 0
        %v425 = vsel %vm402, %v389, 0
        %427 = vmatprep.subr.bf16.mxu0 0
        %428 = vmatpush1.bf16.msra.mxu0 %v398
        %429 = vmatprep.subr.bf16.mxu0 0
        %430 = vmatpush1.bf16.msra.mxu0 %v399
        %431 = vmatprep.subr.bf16.mxu0 0
        %432 = vmatpush1.bf16.msra.mxu0 0
        %433 = vmatprep.subr.bf16.mxu0 0
        %434 = vmatpush1.bf16.msra.mxu0 0
        %435 = vmatprep.subr.bf16.mxu0 0
        %436 = vmatpush1.bf16.msra.mxu0 0
        %437 = vmatprep.subr.bf16.mxu0 0
        %438 = vmatpush1.bf16.msra.mxu0 0
        %439 = vmatprep.subr.bf16.mxu0 0
        %440 = vmatpush1.bf16.msra.mxu0 0
        %441 = vmatprep.subr.bf16.mxu0 0
        %442 = vmatpush1.bf16.msra.mxu0 0
        %443 = vmatprep.subr.bf16.mxu0 0
        %444 = vmatpush1.bf16.msra.mxu0 0
        %445 = vmatprep.subr.bf16.mxu0 0
        %446 = vmatpush1.bf16.msra.mxu0 0
        %447 = vmatprep.subr.bf16.mxu0 0
        %448 = vmatpush1.bf16.msra.mxu0 0
        %449 = vmatprep.subr.bf16.mxu0 0
        %450 = vmatpush1.bf16.msra.mxu0 0
        %451 = vmatprep.subr.bf16.mxu0 0
        %452 = vmatpush1.bf16.msra.mxu0 0
        %453 = vmatprep.subr.bf16.mxu0 0
        %454 = vmatpush1.bf16.msra.mxu0 0
        %455 = vmatprep.subr.bf16.mxu0 0
        %456 = vmatpush1.bf16.msra.mxu0 0
        %457 = vmatprep.subr.bf16.mxu0 0
        %458 = vmatpush1.bf16.msra.mxu0 0
        %459 = vmatprep.mubr.bf16.mxu0 0
        %460 = vmatmul.mubr.bf16.gmra.mrb[0].mxu0 %v404
        %v461 = vpop.f32.mrb[0].mxu0
        %v462 = vadd.f32 0.0, %v461
        %v463 = vpop.f32.mrb[0].mxu0
        %v464 = vpop.f32.mrb[0].mxu0
        %v465 = vadd.f32 0.0, %v464
        %v466 = vpop.f32.mrb[0].mxu0
        %467 = vmatprep.mubr.bf16.mxu0 0
        %468 = vmatmul.mubr.bf16.gmra.mrb[0].mxu0 %v407
        %v469 = vpop.f32.mrb[0].mxu0
        %v470 = vadd.f32 0.0, %v469
        %v471 = vpop.f32.mrb[0].mxu0
        %v472 = vpop.f32.mrb[0].mxu0
        %v473 = vadd.f32 0.0, %v472
        %v474 = vpop.f32.mrb[0].mxu0
        %475 = vmatprep.mubr.bf16.mxu0 0
        %476 = vmatmul.mubr.bf16.gmra.mrb[0].mxu0 %v410
        %v477 = vpop.f32.mrb[0].mxu0
        %v478 = vadd.f32 0.0, %v477
        %v479 = vpop.f32.mrb[0].mxu0
        %v480 = vpop.f32.mrb[0].mxu0
        %v481 = vadd.f32 0.0, %v480
        %v482 = vpop.f32.mrb[0].mxu0
        %483 = vmatprep.mubr.bf16.mxu0 0
        %484 = vmatmul.mubr.bf16.gmra.mrb[0].mxu0 %v413
        %v485 = vpop.f32.mrb[0].mxu0
        %v486 = vadd.f32 0.0, %v485
        %v487 = vpop.f32.mrb[0].mxu0
        %v488 = vpop.f32.mrb[0].mxu0
        %v489 = vadd.f32 0.0, %v488
        %v490 = vpop.f32.mrb[0].mxu0
        %491 = vmatprep.mubr.bf16.mxu0 0
        %492 = vmatmul.mubr.bf16.gmra.mrb[0].mxu0 %v416
        %v493 = vpop.f32.mrb[0].mxu0
        %v494 = vadd.f32 0.0, %v493
        %v495 = vpop.f32.mrb[0].mxu0
        %v496 = vpop.f32.mrb[0].mxu0
        %v497 = vadd.f32 0.0, %v496
        %v498 = vpop.f32.mrb[0].mxu0
        %499 = vmatprep.mubr.bf16.mxu0 0
        %500 = vmatmul.mubr.bf16.gmra.mrb[0].mxu0 %v419
        %v501 = vpop.f32.mrb[0].mxu0
        %v502 = vadd.f32 0.0, %v501
        %v503 = vpop.f32.mrb[0].mxu0
        %v504 = vpop.f32.mrb[0].mxu0
        %v505 = vadd.f32 0.0, %v504
        %v506 = vpop.f32.mrb[0].mxu0
        %507 = vmatprep.mubr.bf16.mxu0 0
        %508 = vmatmul.mubr.bf16.gmra.mrb[0].mxu0 %v422
        %v509 = vpop.f32.mrb[0].mxu0
        %v510 = vadd.f32 0.0, %v509
        %v511 = vpop.f32.mrb[0].mxu0
        %v512 = vpop.f32.mrb[0].mxu0
        %v513 = vadd.f32 0.0, %v512
        %v514 = vpop.f32.mrb[0].mxu0
        %515 = vmatprep.mubr.bf16.mxu0 0
        %516 = vmatmul.mubr.bf16.gmra.mrb[0].mxu0 %v425
        %v517 = vpop.f32.mrb[0].mxu0
        %v518 = vadd.f32 0.0, %v517
        %v519 = vpop.f32.mrb[0].mxu0
        %v520 = vpop.f32.mrb[0].mxu0
        %v521 = vadd.f32 0.0, %v520
        %v522 = vpop.f32.mrb[0].mxu0
        %523 = vdwg.mxu0
        %v524 = vadd.f32 %v314, %v462
        %v525 = vadd.f32 %v315, %v465
        %v526 = vadd.f32 %v316, %v470
        %v527 = vadd.f32 %v317, %v473
        %v528 = vadd.f32 %v318, %v478
        %v529 = vadd.f32 %v319, %v481
        %v530 = vadd.f32 %v320, %v486
        %v531 = vadd.f32 %v321, %v489
        %v532 = vadd.f32 %v322, %v494
        %v533 = vadd.f32 %v323, %v497
        %v534 = vadd.f32 %v324, %v502
        %v535 = vadd.f32 %v325, %v505
        %v536 = vadd.f32 %v326, %v510
        %v537 = vadd.f32 %v327, %v513
        %v538 = vadd.f32 %v328, %v518
        %v539 = vadd.f32 %v329, %v521
        %540 = vst [vmem:[#allocation2] sm:$0xff] %v524
        %541 = vst [vmem:[#allocation2 + $0x8] sm:$0xff] %v525
        %542 = vst [vmem:[#allocation2 + $0x10] sm:$0xff] %v526
        %543 = vst [vmem:[#allocation2 + $0x18] sm:$0xff] %v527
        %544 = vst [vmem:[#allocation2 + $0x20] sm:$0xff] %v528
        %545 = vst [vmem:[#allocation2 + $0x28] sm:$0xff] %v529
        %546 = vst [vmem:[#allocation2 + $0x30] sm:$0xff] %v530
        %547 = vst [vmem:[#allocation2 + $0x38] sm:$0xff] %v531
        %548 = vst [vmem:[#allocation2 + $0x40] sm:$0xff] %v532
        %549 = vst [vmem:[#allocation2 + $0x48] sm:$0xff] %v533
        %550 = vst [vmem:[#allocation2 + $0x50] sm:$0xff] %v534
        %551 = vst [vmem:[#allocation2 + $0x58] sm:$0xff] %v535
        %552 = vst [vmem:[#allocation2 + $0x60] sm:$0xff] %v536
        %553 = vst [vmem:[#allocation2 + $0x68] sm:$0xff] %v537
        %554 = vst [vmem:[#allocation2 + $0x70] sm:$0xff] %v538
        %555 = vst [vmem:[#allocation2 + $0x78] sm:$0xff] %v539
        // Predicated region
        $region78: #{autoencoder_de_forward.8} parent=68 // pred_check
          %p556 = pneg %p294
        $region79: #{autoencoder_de_forward.8} parent=68 // pred_check_branch
          %558 = sbr.rel (%p556) target = $region81
        $region80: #{autoencoder_de_forward.8} parent=68 // pred_region
          %v559 = vld [vmem:[#allocation2] sm:$0xff]
          %v560 = vld [vmem:[#allocation2 + $0x8] sm:$0xff]
          %v561 = vld [vmem:[#allocation2 + $0x10] sm:$0xff]
          %v562 = vld [vmem:[#allocation2 + $0x18] sm:$0xff]
          %v563 = vld [vmem:[#allocation2 + $0x20] sm:$0xff]
          %v564 = vld [vmem:[#allocation2 + $0x28] sm:$0xff]
          %v565 = vld [vmem:[#allocation2 + $0x30] sm:$0xff]
          %v566 = vld [vmem:[#allocation2 + $0x38] sm:$0xff]
          %v567 = vld [vmem:[#allocation2 + $0x40] sm:$0xff]
          %v568 = vld [vmem:[#allocation2 + $0x48] sm:$0xff]
          %v569 = vld [vmem:[#allocation2 + $0x50] sm:$0xff]
          %v570 = vld [vmem:[#allocation2 + $0x58] sm:$0xff]
          %v571 = vld [vmem:[#allocation2 + $0x60] sm:$0xff]
          %v572 = vld [vmem:[#allocation2 + $0x68] sm:$0xff]
          %v573 = vld [vmem:[#allocation2 + $0x70] sm:$0xff]
          %v574 = vld [vmem:[#allocation2 + $0x78] sm:$0xff]
          %v575 = vld [vmem:[%s291] sm:$0x1]
          %v577 = vlaneseq
          %v578 = vshrl.u32 %v577, 7
          %v579 = vsub.s32 0, %v578
          %v580 = vrot.slane %v575, %v579
          %v582 = vadd.f32 %v559, %v580
          %v583 = vadd.f32 %v560, %v580
          %v584 = vadd.f32 %v561, %v580
          %v585 = vadd.f32 %v562, %v580
          %v586 = vadd.f32 %v563, %v580
          %v587 = vadd.f32 %v564, %v580
          %v588 = vadd.f32 %v565, %v580
          %v589 = vadd.f32 %v566, %v580
          %v590 = vadd.f32 %v567, %v580
          %v591 = vadd.f32 %v568, %v580
          %v592 = vadd.f32 %v569, %v580
          %v593 = vadd.f32 %v570, %v580
          %v594 = vadd.f32 %v571, %v580
          %v595 = vadd.f32 %v572, %v580
          %v596 = vadd.f32 %v573, %v580
          %v597 = vadd.f32 %v574, %v580
          %v598 = vpack.c.bf16 %v583, %v582
          %v599 = vpack.c.bf16 %v585, %v584
          %v600 = vpack.c.bf16 %v587, %v586
          %v601 = vpack.c.bf16 %v589, %v588
          %v602 = vpack.c.bf16 %v591, %v590
          %v603 = vpack.c.bf16 %v593, %v592
          %v604 = vpack.c.bf16 %v595, %v594
          %v605 = vpack.c.bf16 %v597, %v596
          %v614 = vunpack.c.l.b16 %v598
          %v615 = vunpack.c.h.b16 %v598
          %v616 = vunpack.c.l.b16 %v599
          %v617 = vunpack.c.h.b16 %v599
          %v618 = vunpack.c.l.b16 %v600
          %v619 = vunpack.c.h.b16 %v600
          %v620 = vunpack.c.l.b16 %v601
          %v621 = vunpack.c.h.b16 %v601
          %v622 = vunpack.c.l.b16 %v602
          %v623 = vunpack.c.h.b16 %v602
          %v624 = vunpack.c.l.b16 %v603
          %v625 = vunpack.c.h.b16 %v603
          %v626 = vunpack.c.l.b16 %v604
          %v627 = vunpack.c.h.b16 %v604
          %v628 = vunpack.c.l.b16 %v605
          %v629 = vunpack.c.h.b16 %v605
          %v630 = vpack.c.b16 %v614, %v614
          %v631 = vpack.c.b16 %v615, %v615
          %v632 = vpack.c.b16 %v616, %v616
          %v633 = vpack.c.b16 %v617, %v617
          %v634 = vpack.c.b16 %v618, %v618
          %v635 = vpack.c.b16 %v619, %v619
          %v636 = vpack.c.b16 %v620, %v620
          %v637 = vpack.c.b16 %v621, %v621
          %v638 = vpack.c.b16 %v622, %v622
          %v639 = vpack.c.b16 %v623, %v623
          %v640 = vpack.c.b16 %v624, %v624
          %v641 = vpack.c.b16 %v625, %v625
          %v642 = vpack.c.b16 %v626, %v626
          %v643 = vpack.c.b16 %v627, %v627
          %v644 = vpack.c.b16 %v628, %v628
          %v645 = vpack.c.b16 %v629, %v629
          %662 = vst [vmem:[%s278] sm:$0xf] %v630
          %663 = vst [vmem:[%s278 + $0x4] sm:$0xf] %v631
          %664 = vst [vmem:[%s278 + $0x8] sm:$0xf] %v632
          %665 = vst [vmem:[%s278 + $0xc] sm:$0xf] %v633
          %666 = vst [vmem:[%s278 + $0x10] sm:$0xf] %v634
          %667 = vst [vmem:[%s278 + $0x14] sm:$0xf] %v635
          %668 = vst [vmem:[%s278 + $0x18] sm:$0xf] %v636
          %669 = vst [vmem:[%s278 + $0x1c] sm:$0xf] %v637
          %670 = vst [vmem:[%s278 + $0x20] sm:$0xf] %v638
          %671 = vst [vmem:[%s278 + $0x24] sm:$0xf] %v639
          %672 = vst [vmem:[%s278 + $0x28] sm:$0xf] %v640
          %673 = vst [vmem:[%s278 + $0x2c] sm:$0xf] %v641
          %674 = vst [vmem:[%s278 + $0x30] sm:$0xf] %v642
          %675 = vst [vmem:[%s278 + $0x34] sm:$0xf] %v643
          %676 = vst [vmem:[%s278 + $0x38] sm:$0xf] %v644
          %677 = vst [vmem:[%s278 + $0x3c] sm:$0xf] %v645
        $region81: #{autoencoder_de_forward.8} parent=68 // pred_fallthru
          _
        %s678 = sand.u32 %s125, 1
        %s679 = sand.u32 %s125, 1
        %s680 = smul.addr %s679, 64
        %s681 = scalar_lea.vmem [#allocation4], %s680
        // Predicated region
        $region82: #{autoencoder_de_forward.8} parent=68 // pred_check
          %p682 = pneg %p135
        $region83: #{autoencoder_de_forward.8} parent=68 // pred_check_branch
          %684 = sbr.rel (%p682) target = $region85
        $region84: #{autoencoder_de_forward.8} parent=68 // pred_region
          %s685 = smul.u32 16, %s19
          %s686 = smul.addr %s685, 2
          %s687 = sadd.s32 %s20, %s686
          %s688 = smul.addr %s687, 4
          %s689 = scalar_lea.vmem %s3, %s688
          // Predicated region
          $region86: #{autoencoder_de_forward.8} parent=84 // pred_check
            _
          $region87: #{autoencoder_de_forward.8} parent=84 // pred_check_branch
            %691 = sbr.rel (0) target = $region89
          $region88: #{autoencoder_de_forward.8} parent=84 // pred_region
            // Predicated region
            $region90: #{autoencoder_de_forward.8} parent=88 // pred_check
              _
            $region91: #{autoencoder_de_forward.8} parent=88 // pred_check_branch
              %693 = sbr.rel target = $region93
            $region92: #{autoencoder_de_forward.8} parent=88 // pred_region
              // Predicated region
              $region105: #{autoencoder_de_forward.8} parent=92 // pred_check
                _
              $region106: #{autoencoder_de_forward.8} parent=92 // pred_check_branch
                %738 = sbr.rel (0) target = $region108
              $region107: #{autoencoder_de_forward.8} parent=92 // pred_region
                loop: start=0, step=1, limit=1
                $region109: #{autoencoder_de_forward.8} parent=107 // loop_pre_header
                  _
                $region110: #{autoencoder_de_forward.8} parent=107 // loop_header
                  %s740 = sphi 0, %s744
                  %p741 = scmp.ge.s32.totalorder %s740, 1
                  %s745 = sphi %s681, %s681
                  %s746 = sphi %s689, %s689
                $region111: #{autoencoder_de_forward.8} parent=107 // loop_header_branch
                  %743 = sbr.rel (%p741) target = $region115
                $region112: #{autoencoder_de_forward.8} parent=107 // loop_body
                  _
                $region113: #{autoencoder_de_forward.8} parent=107 // loop_footer
                  %s744 = sadd.s32 1, %s740
                $region114: #{autoencoder_de_forward.8} parent=107 // loop_footer_branch
                  %739 = sbr.rel target = $region110
                $region115: #{autoencoder_de_forward.8} parent=107 // loop_exit
                  _
                loop: start=0, step=1, limit=1
                $region116: #{autoencoder_de_forward.8} parent=107 // loop_pre_header
                  _
                $region117: #{autoencoder_de_forward.8} parent=107 // loop_header
                  %s749 = sphi 0, %s753
                  %p750 = scmp.ge.s32.totalorder %s749, 1
                  %s754 = sphi %s681, %s681
                  %s755 = sphi %s689, %s689
                $region118: #{autoencoder_de_forward.8} parent=107 // loop_header_branch
                  %752 = sbr.rel (%p750) target = $region122
                $region119: #{autoencoder_de_forward.8} parent=107 // loop_body
                  %v756 = vld [vmem:[%s754] sm:$0xf]
                  %757 = vst [vmem:[%s755] sm:$0xf] %v756
                  %v758 = vld [vmem:[%s754 + $0x4] sm:$0xf]
                  %759 = vst [vmem:[%s755 + $0x8] sm:$0xf] %v758
                  %v760 = vld [vmem:[%s754 + $0x8] sm:$0xf]
                  %761 = vst [vmem:[%s755 + $0x10] sm:$0xf] %v760
                  %v762 = vld [vmem:[%s754 + $0xc] sm:$0xf]
                  %763 = vst [vmem:[%s755 + $0x18] sm:$0xf] %v762
                  %v764 = vld [vmem:[%s754 + $0x10] sm:$0xf]
                  %765 = vst [vmem:[%s755 + $0x20] sm:$0xf] %v764
                  %v766 = vld [vmem:[%s754 + $0x14] sm:$0xf]
                  %767 = vst [vmem:[%s755 + $0x28] sm:$0xf] %v766
                  %v768 = vld [vmem:[%s754 + $0x18] sm:$0xf]
                  %769 = vst [vmem:[%s755 + $0x30] sm:$0xf] %v768
                  %v770 = vld [vmem:[%s754 + $0x1c] sm:$0xf]
                  %771 = vst [vmem:[%s755 + $0x38] sm:$0xf] %v770
                  %v772 = vld [vmem:[%s754 + $0x20] sm:$0xf]
                  %773 = vst [vmem:[%s755 + $0x40] sm:$0xf] %v772
                  %v774 = vld [vmem:[%s754 + $0x24] sm:$0xf]
                  %775 = vst [vmem:[%s755 + $0x48] sm:$0xf] %v774
                  %v776 = vld [vmem:[%s754 + $0x28] sm:$0xf]
                  %777 = vst [vmem:[%s755 + $0x50] sm:$0xf] %v776
                  %v778 = vld [vmem:[%s754 + $0x2c] sm:$0xf]
                  %779 = vst [vmem:[%s755 + $0x58] sm:$0xf] %v778
                  %v780 = vld [vmem:[%s754 + $0x30] sm:$0xf]
                  %781 = vst [vmem:[%s755 + $0x60] sm:$0xf] %v780
                  %v782 = vld [vmem:[%s754 + $0x34] sm:$0xf]
                  %783 = vst [vmem:[%s755 + $0x68] sm:$0xf] %v782
                  %v784 = vld [vmem:[%s754 + $0x38] sm:$0xf]
                  %785 = vst [vmem:[%s755 + $0x70] sm:$0xf] %v784
                  %v786 = vld [vmem:[%s754 + $0x3c] sm:$0xf]
                  %787 = vst [vmem:[%s755 + $0x78] sm:$0xf] %v786
                $region120: #{autoencoder_de_forward.8} parent=107 // loop_footer
                  %s753 = sadd.s32 1, %s749
                $region121: #{autoencoder_de_forward.8} parent=107 // loop_footer_branch
                  %748 = sbr.rel target = $region117
                $region122: #{autoencoder_de_forward.8} parent=107 // loop_exit
                  _
              $region108: #{autoencoder_de_forward.8} parent=92 // pred_fallthru
                _
            $region93: #{autoencoder_de_forward.8} parent=88 // pred_fallthru
              _
            // Predicated region
            $region94: #{autoencoder_de_forward.8} parent=88 // pred_check
              _
            $region95: #{autoencoder_de_forward.8} parent=88 // pred_check_branch
              %695 = sbr.rel (0) target = $region97
            $region96: #{autoencoder_de_forward.8} parent=88 // pred_region
              loop: start=0, step=1, limit=1
              $region98: #{autoencoder_de_forward.8} parent=96 // loop_pre_header
                _
              $region99: #{autoencoder_de_forward.8} parent=96 // loop_header
                %s698 = sphi 0, %s702
                %p699 = scmp.ge.s32.totalorder %s698, 1
                %s703 = sphi %s681, %s681
                %s704 = sphi %s689, %s689
              $region100: #{autoencoder_de_forward.8} parent=96 // loop_header_branch
                %701 = sbr.rel (%p699) target = $region104
              $region101: #{autoencoder_de_forward.8} parent=96 // loop_body
                %v705 = vld [vmem:[%s703] sm:$0xf]
                %706 = vst [vmem:[%s704] sm:$0xf] %v705
                %v707 = vld [vmem:[%s703 + $0x4] sm:$0xf]
                %708 = vst [vmem:[%s704 + $0x8] sm:$0xf] %v707
                %v709 = vld [vmem:[%s703 + $0x8] sm:$0xf]
                %710 = vst [vmem:[%s704 + $0x10] sm:$0xf] %v709
                %v711 = vld [vmem:[%s703 + $0xc] sm:$0xf]
                %712 = vst [vmem:[%s704 + $0x18] sm:$0xf] %v711
                %v713 = vld [vmem:[%s703 + $0x10] sm:$0xf]
                %714 = vst [vmem:[%s704 + $0x20] sm:$0xf] %v713
                %v715 = vld [vmem:[%s703 + $0x14] sm:$0xf]
                %716 = vst [vmem:[%s704 + $0x28] sm:$0xf] %v715
                %v717 = vld [vmem:[%s703 + $0x18] sm:$0xf]
                %718 = vst [vmem:[%s704 + $0x30] sm:$0xf] %v717
                %v719 = vld [vmem:[%s703 + $0x1c] sm:$0xf]
                %720 = vst [vmem:[%s704 + $0x38] sm:$0xf] %v719
                %v721 = vld [vmem:[%s703 + $0x20] sm:$0xf]
                %722 = vst [vmem:[%s704 + $0x40] sm:$0xf] %v721
                %v723 = vld [vmem:[%s703 + $0x24] sm:$0xf]
                %724 = vst [vmem:[%s704 + $0x48] sm:$0xf] %v723
                %v725 = vld [vmem:[%s703 + $0x28] sm:$0xf]
                %726 = vst [vmem:[%s704 + $0x50] sm:$0xf] %v725
                %v727 = vld [vmem:[%s703 + $0x2c] sm:$0xf]
                %728 = vst [vmem:[%s704 + $0x58] sm:$0xf] %v727
                %v729 = vld [vmem:[%s703 + $0x30] sm:$0xf]
                %730 = vst [vmem:[%s704 + $0x60] sm:$0xf] %v729
                %v731 = vld [vmem:[%s703 + $0x34] sm:$0xf]
                %732 = vst [vmem:[%s704 + $0x68] sm:$0xf] %v731
                %v733 = vld [vmem:[%s703 + $0x38] sm:$0xf]
                %734 = vst [vmem:[%s704 + $0x70] sm:$0xf] %v733
                %v735 = vld [vmem:[%s703 + $0x3c] sm:$0xf]
                %736 = vst [vmem:[%s704 + $0x78] sm:$0xf] %v735
              $region102: #{autoencoder_de_forward.8} parent=96 // loop_footer
                %s702 = sadd.s32 1, %s698
              $region103: #{autoencoder_de_forward.8} parent=96 // loop_footer_branch
                %697 = sbr.rel target = $region99
              $region104: #{autoencoder_de_forward.8} parent=96 // loop_exit
                _
            $region97: #{autoencoder_de_forward.8} parent=88 // pred_fallthru
              _
          $region89: #{autoencoder_de_forward.8} parent=84 // pred_fallthru
            _
          %788 = vnop
        $region85: #{autoencoder_de_forward.8} parent=68 // pred_fallthru
          _
      $region69: #{autoencoder_de_forward.8} parent=5 // pred_fallthru
        _
      %p789 = scmp.le.s32.totalorder 2, %s9
      // Predicated region
      $region123: #{autoencoder_de_forward.8} parent=5 // pred_check
        %p790 = pneg %p789
      $region124: #{autoencoder_de_forward.8} parent=5 // pred_check_branch
        %792 = sbr.rel (%p790) target = $region126
      $region125: #{autoencoder_de_forward.8} parent=5 // pred_region
        %s793 = ssub.s32 %s9, 2
        // Predicated region
        $region127: #{autoencoder_de_forward.8} parent=125 // pred_check
          %p794 = pneg %p141
        $region128: #{autoencoder_de_forward.8} parent=125 // pred_check_branch
          %796 = sbr.rel (%p794) target = $region130
        $region129: #{autoencoder_de_forward.8} parent=125 // pred_region
          %s797 = sand.u32 %s126, 1
          %s798 = sand.u32 %s126, 1
          %s799 = smul.addr %s798, 64
          %s800 = scalar_lea.vmem [#allocation4], %s799
        $region130: #{autoencoder_de_forward.8} parent=125 // pred_fallthru
          _
      $region126: #{autoencoder_de_forward.8} parent=5 // pred_fallthru
        _
    $region6: #{autoencoder_de_forward.8} parent=1 // loop_footer
      %s13 = sadd.s32 1, %s9
    $region7: #{autoencoder_de_forward.8} parent=1 // loop_footer_branch
      %8 = sbr.rel target = $region3
    $region8: #{autoencoder_de_forward.8} parent=1 // loop_exit
      _

// kernel: autoencoder_de_forward.9
$region0: #{autoencoder_de_forward.9}
  #allocation0 [shape = 'u32[]', space=smem, size = 0x4, offset = 0x4, fixed_abs, tag = 'smem constant byte address 0x4 - core index']
  #allocation1 [shape = 'u32[144,128]{1,0:T(1,128)}', space=vmem, size = 0x12000, scoped, tag = 'internal scratch']
  #allocation2 [shape = 'f32[512,128]{1,0:T(8,128)}', space=vmem, size = 0x40000, scoped, tag = 'scratch operand']
  %s0 = inlined_call_operand.vmem [shape: bf16[512,16], index: 0, kind: input, shape index: {}]
  %s1 = inlined_call_operand.vmem [shape: bf16[16,128], index: 1, kind: input, shape index: {}]
  %s2 = inlined_call_operand.vmem [shape: f32[1,128], index: 2, kind: input, shape index: {}]
  %s3 = inlined_call_operand.vmem [shape: bf16[512,128], index: 3, kind: output, shape index: {}]
  %s4 = sld [smem:[#allocation0]]
  $region30: #{autoencoder_de_forward.9} parent=0
    _
  %s6 = ssub.s32 1, %s4
  %s7 = scalar_select 0, %s6, %s4
  // Predicated region
  $region2: #{autoencoder_de_forward.9} parent=0 // pred_check
    _
  $region3: #{autoencoder_de_forward.9} parent=0 // pred_check_branch
    %9 = sbr.rel (0) target = $region5
  $region4: #{autoencoder_de_forward.9} parent=0 // pred_region
    _
  $region5: #{autoencoder_de_forward.9} parent=0 // pred_fallthru
    _
  // Predicated region
  $region6: #{autoencoder_de_forward.9} parent=0 // pred_check
    _
  $region7: #{autoencoder_de_forward.9} parent=0 // pred_check_branch
    %11 = sbr.rel (0) target = $region9
  $region8: #{autoencoder_de_forward.9} parent=0 // pred_region
    _
  $region9: #{autoencoder_de_forward.9} parent=0 // pred_fallthru
    _
  // Predicated region
  $region10: #{autoencoder_de_forward.9} parent=0 // pred_check
    _
  $region11: #{autoencoder_de_forward.9} parent=0 // pred_check_branch
    %13 = sbr.rel (0) target = $region13
  $region12: #{autoencoder_de_forward.9} parent=0 // pred_region
    _
  $region13: #{autoencoder_de_forward.9} parent=0 // pred_fallthru
    _
  %p15 = scmp.eq.s32.totalorder 0, 0
  // Predicated region
  $region14: #{autoencoder_de_forward.9} parent=0 // pred_check
    %p16 = pneg %p15
  $region15: #{autoencoder_de_forward.9} parent=0 // pred_check_branch
    %18 = sbr.rel (%p16) target = $region17
  $region16: #{autoencoder_de_forward.9} parent=0 // pred_region
    %19 = vst [vmem:[#allocation2] sm:$0xff] 0.0
    %20 = vst [vmem:[#allocation2 + $0x8] sm:$0xff] 0.0
    %21 = vst [vmem:[#allocation2 + $0x10] sm:$0xff] 0.0
    %22 = vst [vmem:[#allocation2 + $0x18] sm:$0xff] 0.0
    %23 = vst [vmem:[#allocation2 + $0x20] sm:$0xff] 0.0
    %24 = vst [vmem:[#allocation2 + $0x28] sm:$0xff] 0.0
    %25 = vst [vmem:[#allocation2 + $0x30] sm:$0xff] 0.0
    %26 = vst [vmem:[#allocation2 + $0x38] sm:$0xff] 0.0
    %27 = vst [vmem:[#allocation2 + $0x40] sm:$0xff] 0.0
    %28 = vst [vmem:[#allocation2 + $0x48] sm:$0xff] 0.0
    %29 = vst [vmem:[#allocation2 + $0x50] sm:$0xff] 0.0
    %30 = vst [vmem:[#allocation2 + $0x58] sm:$0xff] 0.0
    %31 = vst [vmem:[#allocation2 + $0x60] sm:$0xff] 0.0
    %32 = vst [vmem:[#allocation2 + $0x68] sm:$0xff] 0.0
    %33 = vst [vmem:[#allocation2 + $0x70] sm:$0xff] 0.0
    %34 = vst [vmem:[#allocation2 + $0x78] sm:$0xff] 0.0
    %35 = vst [vmem:[#allocation2 + $0x80] sm:$0xff] 0.0
    %36 = vst [vmem:[#allocation2 + $0x88] sm:$0xff] 0.0
    %37 = vst [vmem:[#allocation2 + $0x90] sm:$0xff] 0.0
    %38 = vst [vmem:[#allocation2 + $0x98] sm:$0xff] 0.0
    %39 = vst [vmem:[#allocation2 + $0xa0] sm:$0xff] 0.0
    %40 = vst [vmem:[#allocation2 + $0xa8] sm:$0xff] 0.0
    %41 = vst [vmem:[#allocation2 + $0xb0] sm:$0xff] 0.0
    %42 = vst [vmem:[#allocation2 + $0xb8] sm:$0xff] 0.0
    %43 = vst [vmem:[#allocation2 + $0xc0] sm:$0xff] 0.0
    %44 = vst [vmem:[#allocation2 + $0xc8] sm:$0xff] 0.0
    %45 = vst [vmem:[#allocation2 + $0xd0] sm:$0xff] 0.0
    %46 = vst [vmem:[#allocation2 + $0xd8] sm:$0xff] 0.0
    %47 = vst [vmem:[#allocation2 + $0xe0] sm:$0xff] 0.0
    %48 = vst [vmem:[#allocation2 + $0xe8] sm:$0xff] 0.0
    %49 = vst [vmem:[#allocation2 + $0xf0] sm:$0xff] 0.0
    %50 = vst [vmem:[#allocation2 + $0xf8] sm:$0xff] 0.0
    %51 = vst [vmem:[#allocation2 + $0x100] sm:$0xff] 0.0
    %52 = vst [vmem:[#allocation2 + $0x108] sm:$0xff] 0.0
    %53 = vst [vmem:[#allocation2 + $0x110] sm:$0xff] 0.0
    %54 = vst [vmem:[#allocation2 + $0x118] sm:$0xff] 0.0
    %55 = vst [vmem:[#allocation2 + $0x120] sm:$0xff] 0.0
    %56 = vst [vmem:[#allocation2 + $0x128] sm:$0xff] 0.0
    %57 = vst [vmem:[#allocation2 + $0x130] sm:$0xff] 0.0
    %58 = vst [vmem:[#allocation2 + $0x138] sm:$0xff] 0.0
    %59 = vst [vmem:[#allocation2 + $0x140] sm:$0xff] 0.0
    %60 = vst [vmem:[#allocation2 + $0x148] sm:$0xff] 0.0
    %61 = vst [vmem:[#allocation2 + $0x150] sm:$0xff] 0.0
    %62 = vst [vmem:[#allocation2 + $0x158] sm:$0xff] 0.0
    %63 = vst [vmem:[#allocation2 + $0x160] sm:$0xff] 0.0
    %64 = vst [vmem:[#allocation2 + $0x168] sm:$0xff] 0.0
    %65 = vst [vmem:[#allocation2 + $0x170] sm:$0xff] 0.0
    %66 = vst [vmem:[#allocation2 + $0x178] sm:$0xff] 0.0
    %67 = vst [vmem:[#allocation2 + $0x180] sm:$0xff] 0.0
    %68 = vst [vmem:[#allocation2 + $0x188] sm:$0xff] 0.0
    %69 = vst [vmem:[#allocation2 + $0x190] sm:$0xff] 0.0
    %70 = vst [vmem:[#allocation2 + $0x198] sm:$0xff] 0.0
    %71 = vst [vmem:[#allocation2 + $0x1a0] sm:$0xff] 0.0
    %72 = vst [vmem:[#allocation2 + $0x1a8] sm:$0xff] 0.0
    %73 = vst [vmem:[#allocation2 + $0x1b0] sm:$0xff] 0.0
    %74 = vst [vmem:[#allocation2 + $0x1b8] sm:$0xff] 0.0
    %75 = vst [vmem:[#allocation2 + $0x1c0] sm:$0xff] 0.0
    %76 = vst [vmem:[#allocation2 + $0x1c8] sm:$0xff] 0.0
    %77 = vst [vmem:[#allocation2 + $0x1d0] sm:$0xff] 0.0
    %78 = vst [vmem:[#allocation2 + $0x1d8] sm:$0xff] 0.0
    %79 = vst [vmem:[#allocation2 + $0x1e0] sm:$0xff] 0.0
    %80 = vst [vmem:[#allocation2 + $0x1e8] sm:$0xff] 0.0
    %81 = vst [vmem:[#allocation2 + $0x1f0] sm:$0xff] 0.0
    %82 = vst [vmem:[#allocation2 + $0x1f8] sm:$0xff] 0.0
  $region17: #{autoencoder_de_forward.9} parent=0 // pred_fallthru
    _
  %v83 = vld [vmem:[#allocation2] sm:$0xff]
  %v84 = vld [vmem:[#allocation2 + $0x8] sm:$0xff]
  %v85 = vld [vmem:[#allocation2 + $0x10] sm:$0xff]
  %v86 = vld [vmem:[#allocation2 + $0x18] sm:$0xff]
  %v87 = vld [vmem:[#allocation2 + $0x20] sm:$0xff]
  %v88 = vld [vmem:[#allocation2 + $0x28] sm:$0xff]
  %v89 = vld [vmem:[#allocation2 + $0x30] sm:$0xff]
  %v90 = vld [vmem:[#allocation2 + $0x38] sm:$0xff]
  %v91 = vld [vmem:[#allocation2 + $0x40] sm:$0xff]
  %v92 = vld [vmem:[#allocation2 + $0x48] sm:$0xff]
  %v93 = vld [vmem:[#allocation2 + $0x50] sm:$0xff]
  %v94 = vld [vmem:[#allocation2 + $0x58] sm:$0xff]
  %v95 = vld [vmem:[#allocation2 + $0x60] sm:$0xff]
  %v96 = vld [vmem:[#allocation2 + $0x68] sm:$0xff]
  %v97 = vld [vmem:[#allocation2 + $0x70] sm:$0xff]
  %v98 = vld [vmem:[#allocation2 + $0x78] sm:$0xff]
  %v99 = vld [vmem:[#allocation2 + $0x80] sm:$0xff]
  %v100 = vld [vmem:[#allocation2 + $0x88] sm:$0xff]
  %v101 = vld [vmem:[#allocation2 + $0x90] sm:$0xff]
  %v102 = vld [vmem:[#allocation2 + $0x98] sm:$0xff]
  %v103 = vld [vmem:[#allocation2 + $0xa0] sm:$0xff]
  %v104 = vld [vmem:[#allocation2 + $0xa8] sm:$0xff]
  %v105 = vld [vmem:[#allocation2 + $0xb0] sm:$0xff]
  %v106 = vld [vmem:[#allocation2 + $0xb8] sm:$0xff]
  %v107 = vld [vmem:[#allocation2 + $0xc0] sm:$0xff]
  %v108 = vld [vmem:[#allocation2 + $0xc8] sm:$0xff]
  %v109 = vld [vmem:[#allocation2 + $0xd0] sm:$0xff]
  %v110 = vld [vmem:[#allocation2 + $0xd8] sm:$0xff]
  %v111 = vld [vmem:[#allocation2 + $0xe0] sm:$0xff]
  %v112 = vld [vmem:[#allocation2 + $0xe8] sm:$0xff]
  %v113 = vld [vmem:[#allocation2 + $0xf0] sm:$0xff]
  %v114 = vld [vmem:[#allocation2 + $0xf8] sm:$0xff]
  %v115 = vld [vmem:[#allocation2 + $0x100] sm:$0xff]
  %v116 = vld [vmem:[#allocation2 + $0x108] sm:$0xff]
  %v117 = vld [vmem:[#allocation2 + $0x110] sm:$0xff]
  %v118 = vld [vmem:[#allocation2 + $0x118] sm:$0xff]
  %v119 = vld [vmem:[#allocation2 + $0x120] sm:$0xff]
  %v120 = vld [vmem:[#allocation2 + $0x128] sm:$0xff]
  %v121 = vld [vmem:[#allocation2 + $0x130] sm:$0xff]
  %v122 = vld [vmem:[#allocation2 + $0x138] sm:$0xff]
  %v123 = vld [vmem:[#allocation2 + $0x140] sm:$0xff]
  %v124 = vld [vmem:[#allocation2 + $0x148] sm:$0xff]
  %v125 = vld [vmem:[#allocation2 + $0x150] sm:$0xff]
  %v126 = vld [vmem:[#allocation2 + $0x158] sm:$0xff]
  %v127 = vld [vmem:[#allocation2 + $0x160] sm:$0xff]
  %v128 = vld [vmem:[#allocation2 + $0x168] sm:$0xff]
  %v129 = vld [vmem:[#allocation2 + $0x170] sm:$0xff]
  %v130 = vld [vmem:[#allocation2 + $0x178] sm:$0xff]
  %v131 = vld [vmem:[#allocation2 + $0x180] sm:$0xff]
  %v132 = vld [vmem:[#allocation2 + $0x188] sm:$0xff]
  %v133 = vld [vmem:[#allocation2 + $0x190] sm:$0xff]
  %v134 = vld [vmem:[#allocation2 + $0x198] sm:$0xff]
  %v135 = vld [vmem:[#allocation2 + $0x1a0] sm:$0xff]
  %v136 = vld [vmem:[#allocation2 + $0x1a8] sm:$0xff]
  %v137 = vld [vmem:[#allocation2 + $0x1b0] sm:$0xff]
  %v138 = vld [vmem:[#allocation2 + $0x1b8] sm:$0xff]
  %v139 = vld [vmem:[#allocation2 + $0x1c0] sm:$0xff]
  %v140 = vld [vmem:[#allocation2 + $0x1c8] sm:$0xff]
  %v141 = vld [vmem:[#allocation2 + $0x1d0] sm:$0xff]
  %v142 = vld [vmem:[#allocation2 + $0x1d8] sm:$0xff]
  %v143 = vld [vmem:[#allocation2 + $0x1e0] sm:$0xff]
  %v144 = vld [vmem:[#allocation2 + $0x1e8] sm:$0xff]
  %v145 = vld [vmem:[#allocation2 + $0x1f0] sm:$0xff]
  %v146 = vld [vmem:[#allocation2 + $0x1f8] sm:$0xff]
  %v147 = vld [vmem:[%s0] sm:$0xf]
  %v148 = vld [vmem:[%s0 + $0x4] sm:$0xf]
  %v149 = vld [vmem:[%s0 + $0x8] sm:$0xf]
  %v150 = vld [vmem:[%s0 + $0xc] sm:$0xf]
  %v151 = vld [vmem:[%s0 + $0x10] sm:$0xf]
  %v152 = vld [vmem:[%s0 + $0x14] sm:$0xf]
  %v153 = vld [vmem:[%s0 + $0x18] sm:$0xf]
  %v154 = vld [vmem:[%s0 + $0x1c] sm:$0xf]
  %v155 = vld [vmem:[%s0 + $0x20] sm:$0xf]
  %v156 = vld [vmem:[%s0 + $0x24] sm:$0xf]
  %v157 = vld [vmem:[%s0 + $0x28] sm:$0xf]
  %v158 = vld [vmem:[%s0 + $0x2c] sm:$0xf]
  %v159 = vld [vmem:[%s0 + $0x30] sm:$0xf]
  %v160 = vld [vmem:[%s0 + $0x34] sm:$0xf]
  %v161 = vld [vmem:[%s0 + $0x38] sm:$0xf]
  %v162 = vld [vmem:[%s0 + $0x3c] sm:$0xf]
  %v163 = vld [vmem:[%s0 + $0x40] sm:$0xf]
  %v164 = vld [vmem:[%s0 + $0x44] sm:$0xf]
  %v165 = vld [vmem:[%s0 + $0x48] sm:$0xf]
  %v166 = vld [vmem:[%s0 + $0x4c] sm:$0xf]
  %v167 = vld [vmem:[%s0 + $0x50] sm:$0xf]
  %v168 = vld [vmem:[%s0 + $0x54] sm:$0xf]
  %v169 = vld [vmem:[%s0 + $0x58] sm:$0xf]
  %v170 = vld [vmem:[%s0 + $0x5c] sm:$0xf]
  %v171 = vld [vmem:[%s0 + $0x60] sm:$0xf]
  %v172 = vld [vmem:[%s0 + $0x64] sm:$0xf]
  %v173 = vld [vmem:[%s0 + $0x68] sm:$0xf]
  %v174 = vld [vmem:[%s0 + $0x6c] sm:$0xf]
  %v175 = vld [vmem:[%s0 + $0x70] sm:$0xf]
  %v176 = vld [vmem:[%s0 + $0x74] sm:$0xf]
  %v177 = vld [vmem:[%s0 + $0x78] sm:$0xf]
  %v178 = vld [vmem:[%s0 + $0x7c] sm:$0xf]
  %v179 = vld [vmem:[%s0 + $0x80] sm:$0xf]
  %v180 = vld [vmem:[%s0 + $0x84] sm:$0xf]
  %v181 = vld [vmem:[%s0 + $0x88] sm:$0xf]
  %v182 = vld [vmem:[%s0 + $0x8c] sm:$0xf]
  %v183 = vld [vmem:[%s0 + $0x90] sm:$0xf]
  %v184 = vld [vmem:[%s0 + $0x94] sm:$0xf]
  %v185 = vld [vmem:[%s0 + $0x98] sm:$0xf]
  %v186 = vld [vmem:[%s0 + $0x9c] sm:$0xf]
  %v187 = vld [vmem:[%s0 + $0xa0] sm:$0xf]
  %v188 = vld [vmem:[%s0 + $0xa4] sm:$0xf]
  %v189 = vld [vmem:[%s0 + $0xa8] sm:$0xf]
  %v190 = vld [vmem:[%s0 + $0xac] sm:$0xf]
  %v191 = vld [vmem:[%s0 + $0xb0] sm:$0xf]
  %v192 = vld [vmem:[%s0 + $0xb4] sm:$0xf]
  %v193 = vld [vmem:[%s0 + $0xb8] sm:$0xf]
  %v194 = vld [vmem:[%s0 + $0xbc] sm:$0xf]
  %v195 = vld [vmem:[%s0 + $0xc0] sm:$0xf]
  %v196 = vld [vmem:[%s0 + $0xc4] sm:$0xf]
  %v197 = vld [vmem:[%s0 + $0xc8] sm:$0xf]
  %v198 = vld [vmem:[%s0 + $0xcc] sm:$0xf]
  %v199 = vld [vmem:[%s0 + $0xd0] sm:$0xf]
  %v200 = vld [vmem:[%s0 + $0xd4] sm:$0xf]
  %v201 = vld [vmem:[%s0 + $0xd8] sm:$0xf]
  %v202 = vld [vmem:[%s0 + $0xdc] sm:$0xf]
  %v203 = vld [vmem:[%s0 + $0xe0] sm:$0xf]
  %v204 = vld [vmem:[%s0 + $0xe4] sm:$0xf]
  %v205 = vld [vmem:[%s0 + $0xe8] sm:$0xf]
  %v206 = vld [vmem:[%s0 + $0xec] sm:$0xf]
  %v207 = vld [vmem:[%s0 + $0xf0] sm:$0xf]
  %v208 = vld [vmem:[%s0 + $0xf4] sm:$0xf]
  %v209 = vld [vmem:[%s0 + $0xf8] sm:$0xf]
  %v210 = vld [vmem:[%s0 + $0xfc] sm:$0xf]
  %v211 = vld [vmem:[%s1] sm:$0xf]
  %v212 = vld [vmem:[%s1 + $0x4] sm:$0xf]
  %v277 = vunpack.c.l.b16 %v147
  %v278 = vunpack.c.l.b16 %v148
  %v279 = vunpack.c.l.b16 %v149
  %v280 = vunpack.c.l.b16 %v150
  %v281 = vunpack.c.l.b16 %v151
  %v282 = vunpack.c.l.b16 %v152
  %v283 = vunpack.c.l.b16 %v153
  %v284 = vunpack.c.l.b16 %v154
  %v285 = vunpack.c.l.b16 %v155
  %v286 = vunpack.c.l.b16 %v156
  %v287 = vunpack.c.l.b16 %v157
  %v288 = vunpack.c.l.b16 %v158
  %v289 = vunpack.c.l.b16 %v159
  %v290 = vunpack.c.l.b16 %v160
  %v291 = vunpack.c.l.b16 %v161
  %v292 = vunpack.c.l.b16 %v162
  %v293 = vunpack.c.l.b16 %v163
  %v294 = vunpack.c.l.b16 %v164
  %v295 = vunpack.c.l.b16 %v165
  %v296 = vunpack.c.l.b16 %v166
  %v297 = vunpack.c.l.b16 %v167
  %v298 = vunpack.c.l.b16 %v168
  %v299 = vunpack.c.l.b16 %v169
  %v300 = vunpack.c.l.b16 %v170
  %v301 = vunpack.c.l.b16 %v171
  %v302 = vunpack.c.l.b16 %v172
  %v303 = vunpack.c.l.b16 %v173
  %v304 = vunpack.c.l.b16 %v174
  %v305 = vunpack.c.l.b16 %v175
  %v306 = vunpack.c.l.b16 %v176
  %v307 = vunpack.c.l.b16 %v177
  %v308 = vunpack.c.l.b16 %v178
  %v309 = vunpack.c.l.b16 %v179
  %v310 = vunpack.c.l.b16 %v180
  %v311 = vunpack.c.l.b16 %v181
  %v312 = vunpack.c.l.b16 %v182
  %v313 = vunpack.c.l.b16 %v183
  %v314 = vunpack.c.l.b16 %v184
  %v315 = vunpack.c.l.b16 %v185
  %v316 = vunpack.c.l.b16 %v186
  %v317 = vunpack.c.l.b16 %v187
  %v318 = vunpack.c.l.b16 %v188
  %v319 = vunpack.c.l.b16 %v189
  %v320 = vunpack.c.l.b16 %v190
  %v321 = vunpack.c.l.b16 %v191
  %v322 = vunpack.c.l.b16 %v192
  %v323 = vunpack.c.l.b16 %v193
  %v324 = vunpack.c.l.b16 %v194
  %v325 = vunpack.c.l.b16 %v195
  %v326 = vunpack.c.l.b16 %v196
  %v327 = vunpack.c.l.b16 %v197
  %v328 = vunpack.c.l.b16 %v198
  %v329 = vunpack.c.l.b16 %v199
  %v330 = vunpack.c.l.b16 %v200
  %v331 = vunpack.c.l.b16 %v201
  %v332 = vunpack.c.l.b16 %v202
  %v333 = vunpack.c.l.b16 %v203
  %v334 = vunpack.c.l.b16 %v204
  %v335 = vunpack.c.l.b16 %v205
  %v336 = vunpack.c.l.b16 %v206
  %v337 = vunpack.c.l.b16 %v207
  %v338 = vunpack.c.l.b16 %v208
  %v339 = vunpack.c.l.b16 %v209
  %v340 = vunpack.c.l.b16 %v210
  %v341 = vpack.c.b16 %v278, %v277
  %v342 = vpack.c.b16 %v280, %v279
  %v343 = vpack.c.b16 %v282, %v281
  %v344 = vpack.c.b16 %v284, %v283
  %v345 = vpack.c.b16 %v286, %v285
  %v346 = vpack.c.b16 %v288, %v287
  %v347 = vpack.c.b16 %v290, %v289
  %v348 = vpack.c.b16 %v292, %v291
  %v349 = vpack.c.b16 %v294, %v293
  %v350 = vpack.c.b16 %v296, %v295
  %v351 = vpack.c.b16 %v298, %v297
  %v352 = vpack.c.b16 %v300, %v299
  %v353 = vpack.c.b16 %v302, %v301
  %v354 = vpack.c.b16 %v304, %v303
  %v355 = vpack.c.b16 %v306, %v305
  %v356 = vpack.c.b16 %v308, %v307
  %v357 = vpack.c.b16 %v310, %v309
  %v358 = vpack.c.b16 %v312, %v311
  %v359 = vpack.c.b16 %v314, %v313
  %v360 = vpack.c.b16 %v316, %v315
  %v361 = vpack.c.b16 %v318, %v317
  %v362 = vpack.c.b16 %v320, %v319
  %v363 = vpack.c.b16 %v322, %v321
  %v364 = vpack.c.b16 %v324, %v323
  %v365 = vpack.c.b16 %v326, %v325
  %v366 = vpack.c.b16 %v328, %v327
  %v367 = vpack.c.b16 %v330, %v329
  %v368 = vpack.c.b16 %v332, %v331
  %v369 = vpack.c.b16 %v334, %v333
  %v370 = vpack.c.b16 %v336, %v335
  %v371 = vpack.c.b16 %v338, %v337
  %v372 = vpack.c.b16 %v340, %v339
  %v375 = vunpack.c.l.b16 %v211
  %v376 = vunpack.c.l.b16 %v212
  %v377 = vpack.c.b16 %v376, %v375
  %vm379 = vcmask 130048
  %v381 = vsel %vm379, %v341, 0
  %v384 = vsel %vm379, %v342, 0
  %v387 = vsel %vm379, %v343, 0
  %v390 = vsel %vm379, %v344, 0
  %v393 = vsel %vm379, %v345, 0
  %v396 = vsel %vm379, %v346, 0
  %v399 = vsel %vm379, %v347, 0
  %v402 = vsel %vm379, %v348, 0
  %v405 = vsel %vm379, %v349, 0
  %v408 = vsel %vm379, %v350, 0
  %v411 = vsel %vm379, %v351, 0
  %v414 = vsel %vm379, %v352, 0
  %v417 = vsel %vm379, %v353, 0
  %v420 = vsel %vm379, %v354, 0
  %v423 = vsel %vm379, %v355, 0
  %v426 = vsel %vm379, %v356, 0
  %v429 = vsel %vm379, %v357, 0
  %v432 = vsel %vm379, %v358, 0
  %v435 = vsel %vm379, %v359, 0
  %v438 = vsel %vm379, %v360, 0
  %v441 = vsel %vm379, %v361, 0
  %v444 = vsel %vm379, %v362, 0
  %v447 = vsel %vm379, %v363, 0
  %v450 = vsel %vm379, %v364, 0
  %v453 = vsel %vm379, %v365, 0
  %v456 = vsel %vm379, %v366, 0
  %v459 = vsel %vm379, %v367, 0
  %v462 = vsel %vm379, %v368, 0
  %v465 = vsel %vm379, %v369, 0
  %v468 = vsel %vm379, %v370, 0
  %v471 = vsel %vm379, %v371, 0
  %v474 = vsel %vm379, %v372, 0
  %476 = vmatprep.subr.bf16.mxu0 0
  %477 = vmatpush1.bf16.msra.mxu0 %v377
  %478 = vmatprep.subr.bf16.mxu0 0
  %479 = vmatpush1.bf16.msra.mxu0 0
  %480 = vmatprep.subr.bf16.mxu0 0
  %481 = vmatpush1.bf16.msra.mxu0 0
  %482 = vmatprep.subr.bf16.mxu0 0
  %483 = vmatpush1.bf16.msra.mxu0 0
  %484 = vmatprep.subr.bf16.mxu0 0
  %485 = vmatpush1.bf16.msra.mxu0 0
  %486 = vmatprep.subr.bf16.mxu0 0
  %487 = vmatpush1.bf16.msra.mxu0 0
  %488 = vmatprep.subr.bf16.mxu0 0
  %489 = vmatpush1.bf16.msra.mxu0 0
  %490 = vmatprep.subr.bf16.mxu0 0
  %491 = vmatpush1.bf16.msra.mxu0 0
  %492 = vmatprep.subr.bf16.mxu0 0
  %493 = vmatpush1.bf16.msra.mxu0 0
  %494 = vmatprep.subr.bf16.mxu0 0
  %495 = vmatpush1.bf16.msra.mxu0 0
  %496 = vmatprep.subr.bf16.mxu0 0
  %497 = vmatpush1.bf16.msra.mxu0 0
  %498 = vmatprep.subr.bf16.mxu0 0
  %499 = vmatpush1.bf16.msra.mxu0 0
  %500 = vmatprep.subr.bf16.mxu0 0
  %501 = vmatpush1.bf16.msra.mxu0 0
  %502 = vmatprep.subr.bf16.mxu0 0
  %503 = vmatpush1.bf16.msra.mxu0 0
  %504 = vmatprep.subr.bf16.mxu0 0
  %505 = vmatpush1.bf16.msra.mxu0 0
  %506 = vmatprep.subr.bf16.mxu0 0
  %507 = vmatpush1.bf16.msra.mxu0 0
  %508 = vmatprep.mubr.bf16.mxu0 0
  %509 = vmatmul.mubr.bf16.gmra.mrb[0].mxu0 %v381
  %v510 = vpop.f32.mrb[0].mxu0
  %v511 = vadd.f32 0.0, %v510
  %v512 = vpop.f32.mrb[0].mxu0
  %v513 = vpop.f32.mrb[0].mxu0
  %v514 = vadd.f32 0.0, %v513
  %v515 = vpop.f32.mrb[0].mxu0
  %516 = vmatprep.mubr.bf16.mxu0 0
  %517 = vmatmul.mubr.bf16.gmra.mrb[0].mxu0 %v384
  %v518 = vpop.f32.mrb[0].mxu0
  %v519 = vadd.f32 0.0, %v518
  %v520 = vpop.f32.mrb[0].mxu0
  %v521 = vpop.f32.mrb[0].mxu0
  %v522 = vadd.f32 0.0, %v521
  %v523 = vpop.f32.mrb[0].mxu0
  %524 = vmatprep.mubr.bf16.mxu0 0
  %525 = vmatmul.mubr.bf16.gmra.mrb[0].mxu0 %v387
  %v526 = vpop.f32.mrb[0].mxu0
  %v527 = vadd.f32 0.0, %v526
  %v528 = vpop.f32.mrb[0].mxu0
  %v529 = vpop.f32.mrb[0].mxu0
  %v530 = vadd.f32 0.0, %v529
  %v531 = vpop.f32.mrb[0].mxu0
  %532 = vmatprep.mubr.bf16.mxu0 0
  %533 = vmatmul.mubr.bf16.gmra.mrb[0].mxu0 %v390
  %v534 = vpop.f32.mrb[0].mxu0
  %v535 = vadd.f32 0.0, %v534
  %v536 = vpop.f32.mrb[0].mxu0
  %v537 = vpop.f32.mrb[0].mxu0
  %v538 = vadd.f32 0.0, %v537
  %v539 = vpop.f32.mrb[0].mxu0
  %540 = vmatprep.mubr.bf16.mxu0 0
  %541 = vmatmul.mubr.bf16.gmra.mrb[0].mxu0 %v393
  %v542 = vpop.f32.mrb[0].mxu0
  %v543 = vadd.f32 0.0, %v542
  %v544 = vpop.f32.mrb[0].mxu0
  %v545 = vpop.f32.mrb[0].mxu0
  %v546 = vadd.f32 0.0, %v545
  %v547 = vpop.f32.mrb[0].mxu0
  %548 = vmatprep.mubr.bf16.mxu0 0
  %549 = vmatmul.mubr.bf16.gmra.mrb[0].mxu0 %v396
  %v550 = vpop.f32.mrb[0].mxu0
  %v551 = vadd.f32 0.0, %v550
  %v552 = vpop.f32.mrb[0].mxu0
  %v553 = vpop.f32.mrb[0].mxu0
  %v554 = vadd.f32 0.0, %v553
  %v555 = vpop.f32.mrb[0].mxu0
  %556 = vmatprep.mubr.bf16.mxu0 0
  %557 = vmatmul.mubr.bf16.gmra.mrb[0].mxu0 %v399
  %v558 = vpop.f32.mrb[0].mxu0
  %v559 = vadd.f32 0.0, %v558
  %v560 = vpop.f32.mrb[0].mxu0
  %v561 = vpop.f32.mrb[0].mxu0
  %v562 = vadd.f32 0.0, %v561
  %v563 = vpop.f32.mrb[0].mxu0
  %564 = vmatprep.mubr.bf16.mxu0 0
  %565 = vmatmul.mubr.bf16.gmra.mrb[0].mxu0 %v402
  %v566 = vpop.f32.mrb[0].mxu0
  %v567 = vadd.f32 0.0, %v566
  %v568 = vpop.f32.mrb[0].mxu0
  %v569 = vpop.f32.mrb[0].mxu0
  %v570 = vadd.f32 0.0, %v569
  %v571 = vpop.f32.mrb[0].mxu0
  %572 = vmatprep.mubr.bf16.mxu0 0
  %573 = vmatmul.mubr.bf16.gmra.mrb[0].mxu0 %v405
  %v574 = vpop.f32.mrb[0].mxu0
  %v575 = vadd.f32 0.0, %v574
  %v576 = vpop.f32.mrb[0].mxu0
  %v577 = vpop.f32.mrb[0].mxu0
  %v578 = vadd.f32 0.0, %v577
  %v579 = vpop.f32.mrb[0].mxu0
  %580 = vmatprep.mubr.bf16.mxu0 0
  %581 = vmatmul.mubr.bf16.gmra.mrb[0].mxu0 %v408
  %v582 = vpop.f32.mrb[0].mxu0
  %v583 = vadd.f32 0.0, %v582
  %v584 = vpop.f32.mrb[0].mxu0
  %v585 = vpop.f32.mrb[0].mxu0
  %v586 = vadd.f32 0.0, %v585
  %v587 = vpop.f32.mrb[0].mxu0
  %588 = vmatprep.mubr.bf16.mxu0 0
  %589 = vmatmul.mubr.bf16.gmra.mrb[0].mxu0 %v411
  %v590 = vpop.f32.mrb[0].mxu0
  %v591 = vadd.f32 0.0, %v590
  %v592 = vpop.f32.mrb[0].mxu0
  %v593 = vpop.f32.mrb[0].mxu0
  %v594 = vadd.f32 0.0, %v593
  %v595 = vpop.f32.mrb[0].mxu0
  %596 = vmatprep.mubr.bf16.mxu0 0
  %597 = vmatmul.mubr.bf16.gmra.mrb[0].mxu0 %v414
  %v598 = vpop.f32.mrb[0].mxu0
  %v599 = vadd.f32 0.0, %v598
  %v600 = vpop.f32.mrb[0].mxu0
  %v601 = vpop.f32.mrb[0].mxu0
  %v602 = vadd.f32 0.0, %v601
  %v603 = vpop.f32.mrb[0].mxu0
  %604 = vmatprep.mubr.bf16.mxu0 0
  %605 = vmatmul.mubr.bf16.gmra.mrb[0].mxu0 %v417
  %v606 = vpop.f32.mrb[0].mxu0
  %v607 = vadd.f32 0.0, %v606
  %v608 = vpop.f32.mrb[0].mxu0
  %v609 = vpop.f32.mrb[0].mxu0
  %v610 = vadd.f32 0.0, %v609
  %v611 = vpop.f32.mrb[0].mxu0
  %612 = vmatprep.mubr.bf16.mxu0 0
  %613 = vmatmul.mubr.bf16.gmra.mrb[0].mxu0 %v420
  %v614 = vpop.f32.mrb[0].mxu0
  %v615 = vadd.f32 0.0, %v614
  %v616 = vpop.f32.mrb[0].mxu0
  %v617 = vpop.f32.mrb[0].mxu0
  %v618 = vadd.f32 0.0, %v617
  %v619 = vpop.f32.mrb[0].mxu0
  %620 = vmatprep.mubr.bf16.mxu0 0
  %621 = vmatmul.mubr.bf16.gmra.mrb[0].mxu0 %v423
  %v622 = vpop.f32.mrb[0].mxu0
  %v623 = vadd.f32 0.0, %v622
  %v624 = vpop.f32.mrb[0].mxu0
  %v625 = vpop.f32.mrb[0].mxu0
  %v626 = vadd.f32 0.0, %v625
  %v627 = vpop.f32.mrb[0].mxu0
  %628 = vmatprep.mubr.bf16.mxu0 0
  %629 = vmatmul.mubr.bf16.gmra.mrb[0].mxu0 %v426
  %v630 = vpop.f32.mrb[0].mxu0
  %v631 = vadd.f32 0.0, %v630
  %v632 = vpop.f32.mrb[0].mxu0
  %v633 = vpop.f32.mrb[0].mxu0
  %v634 = vadd.f32 0.0, %v633
  %v635 = vpop.f32.mrb[0].mxu0
  %636 = vmatprep.mubr.bf16.mxu0 0
  %637 = vmatmul.mubr.bf16.gmra.mrb[0].mxu0 %v429
  %v638 = vpop.f32.mrb[0].mxu0
  %v639 = vadd.f32 0.0, %v638
  %v640 = vpop.f32.mrb[0].mxu0
  %v641 = vpop.f32.mrb[0].mxu0
  %v642 = vadd.f32 0.0, %v641
  %v643 = vpop.f32.mrb[0].mxu0
  %644 = vmatprep.mubr.bf16.mxu0 0
  %645 = vmatmul.mubr.bf16.gmra.mrb[0].mxu0 %v432
  %v646 = vpop.f32.mrb[0].mxu0
  %v647 = vadd.f32 0.0, %v646
  %v648 = vpop.f32.mrb[0].mxu0
  %v649 = vpop.f32.mrb[0].mxu0
  %v650 = vadd.f32 0.0, %v649
  %v651 = vpop.f32.mrb[0].mxu0
  %652 = vmatprep.mubr.bf16.mxu0 0
  %653 = vmatmul.mubr.bf16.gmra.mrb[0].mxu0 %v435
  %v654 = vpop.f32.mrb[0].mxu0
  %v655 = vadd.f32 0.0, %v654
  %v656 = vpop.f32.mrb[0].mxu0
  %v657 = vpop.f32.mrb[0].mxu0
  %v658 = vadd.f32 0.0, %v657
  %v659 = vpop.f32.mrb[0].mxu0
  %660 = vmatprep.mubr.bf16.mxu0 0
  %661 = vmatmul.mubr.bf16.gmra.mrb[0].mxu0 %v438
  %v662 = vpop.f32.mrb[0].mxu0
  %v663 = vadd.f32 0.0, %v662
  %v664 = vpop.f32.mrb[0].mxu0
  %v665 = vpop.f32.mrb[0].mxu0
  %v666 = vadd.f32 0.0, %v665
  %v667 = vpop.f32.mrb[0].mxu0
  %668 = vmatprep.mubr.bf16.mxu0 0
  %669 = vmatmul.mubr.bf16.gmra.mrb[0].mxu0 %v441
  %v670 = vpop.f32.mrb[0].mxu0
  %v671 = vadd.f32 0.0, %v670
  %v672 = vpop.f32.mrb[0].mxu0
  %v673 = vpop.f32.mrb[0].mxu0
  %v674 = vadd.f32 0.0, %v673
  %v675 = vpop.f32.mrb[0].mxu0
  %676 = vmatprep.mubr.bf16.mxu0 0
  %677 = vmatmul.mubr.bf16.gmra.mrb[0].mxu0 %v444
  %v678 = vpop.f32.mrb[0].mxu0
  %v679 = vadd.f32 0.0, %v678
  %v680 = vpop.f32.mrb[0].mxu0
  %v681 = vpop.f32.mrb[0].mxu0
  %v682 = vadd.f32 0.0, %v681
  %v683 = vpop.f32.mrb[0].mxu0
  %684 = vmatprep.mubr.bf16.mxu0 0
  %685 = vmatmul.mubr.bf16.gmra.mrb[0].mxu0 %v447
  %v686 = vpop.f32.mrb[0].mxu0
  %v687 = vadd.f32 0.0, %v686
  %v688 = vpop.f32.mrb[0].mxu0
  %v689 = vpop.f32.mrb[0].mxu0
  %v690 = vadd.f32 0.0, %v689
  %v691 = vpop.f32.mrb[0].mxu0
  %692 = vmatprep.mubr.bf16.mxu0 0
  %693 = vmatmul.mubr.bf16.gmra.mrb[0].mxu0 %v450
  %v694 = vpop.f32.mrb[0].mxu0
  %v695 = vadd.f32 0.0, %v694
  %v696 = vpop.f32.mrb[0].mxu0
  %v697 = vpop.f32.mrb[0].mxu0
  %v698 = vadd.f32 0.0, %v697
  %v699 = vpop.f32.mrb[0].mxu0
  %700 = vmatprep.mubr.bf16.mxu0 0
  %701 = vmatmul.mubr.bf16.gmra.mrb[0].mxu0 %v453
  %v702 = vpop.f32.mrb[0].mxu0
  %v703 = vadd.f32 0.0, %v702
  %v704 = vpop.f32.mrb[0].mxu0
  %v705 = vpop.f32.mrb[0].mxu0
  %v706 = vadd.f32 0.0, %v705
  %v707 = vpop.f32.mrb[0].mxu0
  %708 = vmatprep.mubr.bf16.mxu0 0
  %709 = vmatmul.mubr.bf16.gmra.mrb[0].mxu0 %v456
  %v710 = vpop.f32.mrb[0].mxu0
  %v711 = vadd.f32 0.0, %v710
  %v712 = vpop.f32.mrb[0].mxu0
  %v713 = vpop.f32.mrb[0].mxu0
  %v714 = vadd.f32 0.0, %v713
  %v715 = vpop.f32.mrb[0].mxu0
  %716 = vmatprep.mubr.bf16.mxu0 0
  %717 = vmatmul.mubr.bf16.gmra.mrb[0].mxu0 %v459
  %v718 = vpop.f32.mrb[0].mxu0
  %v719 = vadd.f32 0.0, %v718
  %v720 = vpop.f32.mrb[0].mxu0
  %v721 = vpop.f32.mrb[0].mxu0
  %v722 = vadd.f32 0.0, %v721
  %v723 = vpop.f32.mrb[0].mxu0
  %724 = vmatprep.mubr.bf16.mxu0 0
  %725 = vmatmul.mubr.bf16.gmra.mrb[0].mxu0 %v462
  %v726 = vpop.f32.mrb[0].mxu0
  %v727 = vadd.f32 0.0, %v726
  %v728 = vpop.f32.mrb[0].mxu0
  %v729 = vpop.f32.mrb[0].mxu0
  %v730 = vadd.f32 0.0, %v729
  %v731 = vpop.f32.mrb[0].mxu0
  %732 = vmatprep.mubr.bf16.mxu0 0
  %733 = vmatmul.mubr.bf16.gmra.mrb[0].mxu0 %v465
  %v734 = vpop.f32.mrb[0].mxu0
  %v735 = vadd.f32 0.0, %v734
  %v736 = vpop.f32.mrb[0].mxu0
  %v737 = vpop.f32.mrb[0].mxu0
  %v738 = vadd.f32 0.0, %v737
  %v739 = vpop.f32.mrb[0].mxu0
  %740 = vmatprep.mubr.bf16.mxu0 0
  %741 = vmatmul.mubr.bf16.gmra.mrb[0].mxu0 %v468
  %v742 = vpop.f32.mrb[0].mxu0
  %v743 = vadd.f32 0.0, %v742
  %v744 = vpop.f32.mrb[0].mxu0
  %v745 = vpop.f32.mrb[0].mxu0
  %v746 = vadd.f32 0.0, %v745
  %v747 = vpop.f32.mrb[0].mxu0
  %748 = vmatprep.mubr.bf16.mxu0 0
  %749 = vmatmul.mubr.bf16.gmra.mrb[0].mxu0 %v471
  %v750 = vpop.f32.mrb[0].mxu0
  %v751 = vadd.f32 0.0, %v750
  %v752 = vpop.f32.mrb[0].mxu0
  %v753 = vpop.f32.mrb[0].mxu0
  %v754 = vadd.f32 0.0, %v753
  %v755 = vpop.f32.mrb[0].mxu0
  %756 = vmatprep.mubr.bf16.mxu0 0
  %757 = vmatmul.mubr.bf16.gmra.mrb[0].mxu0 %v474
  %v758 = vpop.f32.mrb[0].mxu0
  %v759 = vadd.f32 0.0, %v758
  %v760 = vpop.f32.mrb[0].mxu0
  %v761 = vpop.f32.mrb[0].mxu0
  %v762 = vadd.f32 0.0, %v761
  %v763 = vpop.f32.mrb[0].mxu0
  %764 = vdwg.mxu0
  %v765 = vadd.f32 %v83, %v511
  %v766 = vadd.f32 %v84, %v514
  %v767 = vadd.f32 %v85, %v519
  %v768 = vadd.f32 %v86, %v522
  %v769 = vadd.f32 %v87, %v527
  %v770 = vadd.f32 %v88, %v530
  %v771 = vadd.f32 %v89, %v535
  %v772 = vadd.f32 %v90, %v538
  %v773 = vadd.f32 %v91, %v543
  %v774 = vadd.f32 %v92, %v546
  %v775 = vadd.f32 %v93, %v551
  %v776 = vadd.f32 %v94, %v554
  %v777 = vadd.f32 %v95, %v559
  %v778 = vadd.f32 %v96, %v562
  %v779 = vadd.f32 %v97, %v567
  %v780 = vadd.f32 %v98, %v570
  %v781 = vadd.f32 %v99, %v575
  %v782 = vadd.f32 %v100, %v578
  %v783 = vadd.f32 %v101, %v583
  %v784 = vadd.f32 %v102, %v586
  %v785 = vadd.f32 %v103, %v591
  %v786 = vadd.f32 %v104, %v594
  %v787 = vadd.f32 %v105, %v599
  %v788 = vadd.f32 %v106, %v602
  %v789 = vadd.f32 %v107, %v607
  %v790 = vadd.f32 %v108, %v610
  %v791 = vadd.f32 %v109, %v615
  %v792 = vadd.f32 %v110, %v618
  %v793 = vadd.f32 %v111, %v623
  %v794 = vadd.f32 %v112, %v626
  %v795 = vadd.f32 %v113, %v631
  %v796 = vadd.f32 %v114, %v634
  %v797 = vadd.f32 %v115, %v639
  %v798 = vadd.f32 %v116, %v642
  %v799 = vadd.f32 %v117, %v647
  %v800 = vadd.f32 %v118, %v650
  %v801 = vadd.f32 %v119, %v655
  %v802 = vadd.f32 %v120, %v658
  %v803 = vadd.f32 %v121, %v663
  %v804 = vadd.f32 %v122, %v666
  %v805 = vadd.f32 %v123, %v671
  %v806 = vadd.f32 %v124, %v674
  %v807 = vadd.f32 %v125, %v679
  %v808 = vadd.f32 %v126, %v682
  %v809 = vadd.f32 %v127, %v687
  %v810 = vadd.f32 %v128, %v690
  %v811 = vadd.f32 %v129, %v695
  %v812 = vadd.f32 %v130, %v698
  %v813 = vadd.f32 %v131, %v703
  %v814 = vadd.f32 %v132, %v706
  %v815 = vadd.f32 %v133, %v711
  %v816 = vadd.f32 %v134, %v714
  %v817 = vadd.f32 %v135, %v719
  %v818 = vadd.f32 %v136, %v722
  %v819 = vadd.f32 %v137, %v727
  %v820 = vadd.f32 %v138, %v730
  %v821 = vadd.f32 %v139, %v735
  %v822 = vadd.f32 %v140, %v738
  %v823 = vadd.f32 %v141, %v743
  %v824 = vadd.f32 %v142, %v746
  %v825 = vadd.f32 %v143, %v751
  %v826 = vadd.f32 %v144, %v754
  %v827 = vadd.f32 %v145, %v759
  %v828 = vadd.f32 %v146, %v762
  %829 = vst [vmem:[#allocation2] sm:$0xff] %v765
  %830 = vst [vmem:[#allocation2 + $0x8] sm:$0xff] %v766
  %831 = vst [vmem:[#allocation2 + $0x10] sm:$0xff] %v767
  %832 = vst [vmem:[#allocation2 + $0x18] sm:$0xff] %v768
  %833 = vst [vmem:[#allocation2 + $0x20] sm:$0xff] %v769
  %834 = vst [vmem:[#allocation2 + $0x28] sm:$0xff] %v770
  %835 = vst [vmem:[#allocation2 + $0x30] sm:$0xff] %v771
  %836 = vst [vmem:[#allocation2 + $0x38] sm:$0xff] %v772
  %837 = vst [vmem:[#allocation2 + $0x40] sm:$0xff] %v773
  %838 = vst [vmem:[#allocation2 + $0x48] sm:$0xff] %v774
  %839 = vst [vmem:[#allocation2 + $0x50] sm:$0xff] %v775
  %840 = vst [vmem:[#allocation2 + $0x58] sm:$0xff] %v776
  %841 = vst [vmem:[#allocation2 + $0x60] sm:$0xff] %v777
  %842 = vst [vmem:[#allocation2 + $0x68] sm:$0xff] %v778
  %843 = vst [vmem:[#allocation2 + $0x70] sm:$0xff] %v779
  %844 = vst [vmem:[#allocation2 + $0x78] sm:$0xff] %v780
  %845 = vst [vmem:[#allocation2 + $0x80] sm:$0xff] %v781
  %846 = vst [vmem:[#allocation2 + $0x88] sm:$0xff] %v782
  %847 = vst [vmem:[#allocation2 + $0x90] sm:$0xff] %v783
  %848 = vst [vmem:[#allocation2 + $0x98] sm:$0xff] %v784
  %849 = vst [vmem:[#allocation2 + $0xa0] sm:$0xff] %v785
  %850 = vst [vmem:[#allocation2 + $0xa8] sm:$0xff] %v786
  %851 = vst [vmem:[#allocation2 + $0xb0] sm:$0xff] %v787
  %852 = vst [vmem:[#allocation2 + $0xb8] sm:$0xff] %v788
  %853 = vst [vmem:[#allocation2 + $0xc0] sm:$0xff] %v789
  %854 = vst [vmem:[#allocation2 + $0xc8] sm:$0xff] %v790
  %855 = vst [vmem:[#allocation2 + $0xd0] sm:$0xff] %v791
  %856 = vst [vmem:[#allocation2 + $0xd8] sm:$0xff] %v792
  %857 = vst [vmem:[#allocation2 + $0xe0] sm:$0xff] %v793
  %858 = vst [vmem:[#allocation2 + $0xe8] sm:$0xff] %v794
  %859 = vst [vmem:[#allocation2 + $0xf0] sm:$0xff] %v795
  %860 = vst [vmem:[#allocation2 + $0xf8] sm:$0xff] %v796
  %861 = vst [vmem:[#allocation2 + $0x100] sm:$0xff] %v797
  %862 = vst [vmem:[#allocation2 + $0x108] sm:$0xff] %v798
  %863 = vst [vmem:[#allocation2 + $0x110] sm:$0xff] %v799
  %864 = vst [vmem:[#allocation2 + $0x118] sm:$0xff] %v800
  %865 = vst [vmem:[#allocation2 + $0x120] sm:$0xff] %v801
  %866 = vst [vmem:[#allocation2 + $0x128] sm:$0xff] %v802
  %867 = vst [vmem:[#allocation2 + $0x130] sm:$0xff] %v803
  %868 = vst [vmem:[#allocation2 + $0x138] sm:$0xff] %v804
  %869 = vst [vmem:[#allocation2 + $0x140] sm:$0xff] %v805
  %870 = vst [vmem:[#allocation2 + $0x148] sm:$0xff] %v806
  %871 = vst [vmem:[#allocation2 + $0x150] sm:$0xff] %v807
  %872 = vst [vmem:[#allocation2 + $0x158] sm:$0xff] %v808
  %873 = vst [vmem:[#allocation2 + $0x160] sm:$0xff] %v809
  %874 = vst [vmem:[#allocation2 + $0x168] sm:$0xff] %v810
  %875 = vst [vmem:[#allocation2 + $0x170] sm:$0xff] %v811
  %876 = vst [vmem:[#allocation2 + $0x178] sm:$0xff] %v812
  %877 = vst [vmem:[#allocation2 + $0x180] sm:$0xff] %v813
  %878 = vst [vmem:[#allocation2 + $0x188] sm:$0xff] %v814
  %879 = vst [vmem:[#allocation2 + $0x190] sm:$0xff] %v815
  %880 = vst [vmem:[#allocation2 + $0x198] sm:$0xff] %v816
  %881 = vst [vmem:[#allocation2 + $0x1a0] sm:$0xff] %v817
  %882 = vst [vmem:[#allocation2 + $0x1a8] sm:$0xff] %v818
  %883 = vst [vmem:[#allocation2 + $0x1b0] sm:$0xff] %v819
  %884 = vst [vmem:[#allocation2 + $0x1b8] sm:$0xff] %v820
  %885 = vst [vmem:[#allocation2 + $0x1c0] sm:$0xff] %v821
  %886 = vst [vmem:[#allocation2 + $0x1c8] sm:$0xff] %v822
  %887 = vst [vmem:[#allocation2 + $0x1d0] sm:$0xff] %v823
  %888 = vst [vmem:[#allocation2 + $0x1d8] sm:$0xff] %v824
  %889 = vst [vmem:[#allocation2 + $0x1e0] sm:$0xff] %v825
  %890 = vst [vmem:[#allocation2 + $0x1e8] sm:$0xff] %v826
  %891 = vst [vmem:[#allocation2 + $0x1f0] sm:$0xff] %v827
  %892 = vst [vmem:[#allocation2 + $0x1f8] sm:$0xff] %v828
  // Predicated region
  $region18: #{autoencoder_de_forward.9} parent=0 // pred_check
    %p893 = pneg %p15
  $region19: #{autoencoder_de_forward.9} parent=0 // pred_check_branch
    %895 = sbr.rel (%p893) target = $region21
  $region20: #{autoencoder_de_forward.9} parent=0 // pred_region
    %v896 = vld [vmem:[#allocation2] sm:$0xff]
    %v897 = vld [vmem:[#allocation2 + $0x8] sm:$0xff]
    %v898 = vld [vmem:[#allocation2 + $0x10] sm:$0xff]
    %v899 = vld [vmem:[#allocation2 + $0x18] sm:$0xff]
    %v900 = vld [vmem:[#allocation2 + $0x20] sm:$0xff]
    %v901 = vld [vmem:[#allocation2 + $0x28] sm:$0xff]
    %v902 = vld [vmem:[#allocation2 + $0x30] sm:$0xff]
    %v903 = vld [vmem:[#allocation2 + $0x38] sm:$0xff]
    %v904 = vld [vmem:[#allocation2 + $0x40] sm:$0xff]
    %v905 = vld [vmem:[#allocation2 + $0x48] sm:$0xff]
    %v906 = vld [vmem:[#allocation2 + $0x50] sm:$0xff]
    %v907 = vld [vmem:[#allocation2 + $0x58] sm:$0xff]
    %v908 = vld [vmem:[#allocation2 + $0x60] sm:$0xff]
    %v909 = vld [vmem:[#allocation2 + $0x68] sm:$0xff]
    %v910 = vld [vmem:[#allocation2 + $0x70] sm:$0xff]
    %v911 = vld [vmem:[#allocation2 + $0x78] sm:$0xff]
    %v912 = vld [vmem:[#allocation2 + $0x80] sm:$0xff]
    %v913 = vld [vmem:[#allocation2 + $0x88] sm:$0xff]
    %v914 = vld [vmem:[#allocation2 + $0x90] sm:$0xff]
    %v915 = vld [vmem:[#allocation2 + $0x98] sm:$0xff]
    %v916 = vld [vmem:[#allocation2 + $0xa0] sm:$0xff]
    %v917 = vld [vmem:[#allocation2 + $0xa8] sm:$0xff]
    %v918 = vld [vmem:[#allocation2 + $0xb0] sm:$0xff]
    %v919 = vld [vmem:[#allocation2 + $0xb8] sm:$0xff]
    %v920 = vld [vmem:[#allocation2 + $0xc0] sm:$0xff]
    %v921 = vld [vmem:[#allocation2 + $0xc8] sm:$0xff]
    %v922 = vld [vmem:[#allocation2 + $0xd0] sm:$0xff]
    %v923 = vld [vmem:[#allocation2 + $0xd8] sm:$0xff]
    %v924 = vld [vmem:[#allocation2 + $0xe0] sm:$0xff]
    %v925 = vld [vmem:[#allocation2 + $0xe8] sm:$0xff]
    %v926 = vld [vmem:[#allocation2 + $0xf0] sm:$0xff]
    %v927 = vld [vmem:[#allocation2 + $0xf8] sm:$0xff]
    %v928 = vld [vmem:[#allocation2 + $0x100] sm:$0xff]
    %v929 = vld [vmem:[#allocation2 + $0x108] sm:$0xff]
    %v930 = vld [vmem:[#allocation2 + $0x110] sm:$0xff]
    %v931 = vld [vmem:[#allocation2 + $0x118] sm:$0xff]
    %v932 = vld [vmem:[#allocation2 + $0x120] sm:$0xff]
    %v933 = vld [vmem:[#allocation2 + $0x128] sm:$0xff]
    %v934 = vld [vmem:[#allocation2 + $0x130] sm:$0xff]
    %v935 = vld [vmem:[#allocation2 + $0x138] sm:$0xff]
    %v936 = vld [vmem:[#allocation2 + $0x140] sm:$0xff]
    %v937 = vld [vmem:[#allocation2 + $0x148] sm:$0xff]
    %v938 = vld [vmem:[#allocation2 + $0x150] sm:$0xff]
    %v939 = vld [vmem:[#allocation2 + $0x158] sm:$0xff]
    %v940 = vld [vmem:[#allocation2 + $0x160] sm:$0xff]
    %v941 = vld [vmem:[#allocation2 + $0x168] sm:$0xff]
    %v942 = vld [vmem:[#allocation2 + $0x170] sm:$0xff]
    %v943 = vld [vmem:[#allocation2 + $0x178] sm:$0xff]
    %v944 = vld [vmem:[#allocation2 + $0x180] sm:$0xff]
    %v945 = vld [vmem:[#allocation2 + $0x188] sm:$0xff]
    %v946 = vld [vmem:[#allocation2 + $0x190] sm:$0xff]
    %v947 = vld [vmem:[#allocation2 + $0x198] sm:$0xff]
    %v948 = vld [vmem:[#allocation2 + $0x1a0] sm:$0xff]
    %v949 = vld [vmem:[#allocation2 + $0x1a8] sm:$0xff]
    %v950 = vld [vmem:[#allocation2 + $0x1b0] sm:$0xff]
    %v951 = vld [vmem:[#allocation2 + $0x1b8] sm:$0xff]
    %v952 = vld [vmem:[#allocation2 + $0x1c0] sm:$0xff]
    %v953 = vld [vmem:[#allocation2 + $0x1c8] sm:$0xff]
    %v954 = vld [vmem:[#allocation2 + $0x1d0] sm:$0xff]
    %v955 = vld [vmem:[#allocation2 + $0x1d8] sm:$0xff]
    %v956 = vld [vmem:[#allocation2 + $0x1e0] sm:$0xff]
    %v957 = vld [vmem:[#allocation2 + $0x1e8] sm:$0xff]
    %v958 = vld [vmem:[#allocation2 + $0x1f0] sm:$0xff]
    %v959 = vld [vmem:[#allocation2 + $0x1f8] sm:$0xff]
    %v960 = vld [vmem:[%s2] sm:$0x1]
    %v962 = vlaneseq
    %v963 = vshrl.u32 %v962, 7
    %v964 = vsub.s32 0, %v963
    %v965 = vrot.slane %v960, %v964
    %v967 = vadd.f32 %v896, %v965
    %v968 = vadd.f32 %v897, %v965
    %v969 = vadd.f32 %v898, %v965
    %v970 = vadd.f32 %v899, %v965
    %v971 = vadd.f32 %v900, %v965
    %v972 = vadd.f32 %v901, %v965
    %v973 = vadd.f32 %v902, %v965
    %v974 = vadd.f32 %v903, %v965
    %v975 = vadd.f32 %v904, %v965
    %v976 = vadd.f32 %v905, %v965
    %v977 = vadd.f32 %v906, %v965
    %v978 = vadd.f32 %v907, %v965
    %v979 = vadd.f32 %v908, %v965
    %v980 = vadd.f32 %v909, %v965
    %v981 = vadd.f32 %v910, %v965
    %v982 = vadd.f32 %v911, %v965
    %v983 = vadd.f32 %v912, %v965
    %v984 = vadd.f32 %v913, %v965
    %v985 = vadd.f32 %v914, %v965
    %v986 = vadd.f32 %v915, %v965
    %v987 = vadd.f32 %v916, %v965
    %v988 = vadd.f32 %v917, %v965
    %v989 = vadd.f32 %v918, %v965
    %v990 = vadd.f32 %v919, %v965
    %v991 = vadd.f32 %v920, %v965
    %v992 = vadd.f32 %v921, %v965
    %v993 = vadd.f32 %v922, %v965
    %v994 = vadd.f32 %v923, %v965
    %v995 = vadd.f32 %v924, %v965
    %v996 = vadd.f32 %v925, %v965
    %v997 = vadd.f32 %v926, %v965
    %v998 = vadd.f32 %v927, %v965
    %v999 = vadd.f32 %v928, %v965
    %v1000 = vadd.f32 %v929, %v965
    %v1001 = vadd.f32 %v930, %v965
    %v1002 = vadd.f32 %v931, %v965
    %v1003 = vadd.f32 %v932, %v965
    %v1004 = vadd.f32 %v933, %v965
    %v1005 = vadd.f32 %v934, %v965
    %v1006 = vadd.f32 %v935, %v965
    %v1007 = vadd.f32 %v936, %v965
    %v1008 = vadd.f32 %v937, %v965
    %v1009 = vadd.f32 %v938, %v965
    %v1010 = vadd.f32 %v939, %v965
    %v1011 = vadd.f32 %v940, %v965
    %v1012 = vadd.f32 %v941, %v965
    %v1013 = vadd.f32 %v942, %v965
    %v1014 = vadd.f32 %v943, %v965
    %v1015 = vadd.f32 %v944, %v965
    %v1016 = vadd.f32 %v945, %v965
    %v1017 = vadd.f32 %v946, %v965
    %v1018 = vadd.f32 %v947, %v965
    %v1019 = vadd.f32 %v948, %v965
    %v1020 = vadd.f32 %v949, %v965
    %v1021 = vadd.f32 %v950, %v965
    %v1022 = vadd.f32 %v951, %v965
    %v1023 = vadd.f32 %v952, %v965
    %v1024 = vadd.f32 %v953, %v965
    %v1025 = vadd.f32 %v954, %v965
    %v1026 = vadd.f32 %v955, %v965
    %v1027 = vadd.f32 %v956, %v965
    %v1028 = vadd.f32 %v957, %v965
    %v1029 = vadd.f32 %v958, %v965
    %v1030 = vadd.f32 %v959, %v965
    %v1031 = vpack.c.bf16 %v968, %v967
    %v1032 = vpack.c.bf16 %v970, %v969
    %v1033 = vpack.c.bf16 %v972, %v971
    %v1034 = vpack.c.bf16 %v974, %v973
    %v1035 = vpack.c.bf16 %v976, %v975
    %v1036 = vpack.c.bf16 %v978, %v977
    %v1037 = vpack.c.bf16 %v980, %v979
    %v1038 = vpack.c.bf16 %v982, %v981
    %v1039 = vpack.c.bf16 %v984, %v983
    %v1040 = vpack.c.bf16 %v986, %v985
    %v1041 = vpack.c.bf16 %v988, %v987
    %v1042 = vpack.c.bf16 %v990, %v989
    %v1043 = vpack.c.bf16 %v992, %v991
    %v1044 = vpack.c.bf16 %v994, %v993
    %v1045 = vpack.c.bf16 %v996, %v995
    %v1046 = vpack.c.bf16 %v998, %v997
    %v1047 = vpack.c.bf16 %v1000, %v999
    %v1048 = vpack.c.bf16 %v1002, %v1001
    %v1049 = vpack.c.bf16 %v1004, %v1003
    %v1050 = vpack.c.bf16 %v1006, %v1005
    %v1051 = vpack.c.bf16 %v1008, %v1007
    %v1052 = vpack.c.bf16 %v1010, %v1009
    %v1053 = vpack.c.bf16 %v1012, %v1011
    %v1054 = vpack.c.bf16 %v1014, %v1013
    %v1055 = vpack.c.bf16 %v1016, %v1015
    %v1056 = vpack.c.bf16 %v1018, %v1017
    %v1057 = vpack.c.bf16 %v1020, %v1019
    %v1058 = vpack.c.bf16 %v1022, %v1021
    %v1059 = vpack.c.bf16 %v1024, %v1023
    %v1060 = vpack.c.bf16 %v1026, %v1025
    %v1061 = vpack.c.bf16 %v1028, %v1027
    %v1062 = vpack.c.bf16 %v1030, %v1029
    %v1095 = vunpack.c.l.b16 %v1031
    %v1096 = vunpack.c.h.b16 %v1031
    %v1097 = vunpack.c.l.b16 %v1032
    %v1098 = vunpack.c.h.b16 %v1032
    %v1099 = vunpack.c.l.b16 %v1033
    %v1100 = vunpack.c.h.b16 %v1033
    %v1101 = vunpack.c.l.b16 %v1034
    %v1102 = vunpack.c.h.b16 %v1034
    %v1103 = vunpack.c.l.b16 %v1035
    %v1104 = vunpack.c.h.b16 %v1035
    %v1105 = vunpack.c.l.b16 %v1036
    %v1106 = vunpack.c.h.b16 %v1036
    %v1107 = vunpack.c.l.b16 %v1037
    %v1108 = vunpack.c.h.b16 %v1037
    %v1109 = vunpack.c.l.b16 %v1038
    %v1110 = vunpack.c.h.b16 %v1038
    %v1111 = vunpack.c.l.b16 %v1039
    %v1112 = vunpack.c.h.b16 %v1039
    %v1113 = vunpack.c.l.b16 %v1040
    %v1114 = vunpack.c.h.b16 %v1040
    %v1115 = vunpack.c.l.b16 %v1041
    %v1116 = vunpack.c.h.b16 %v1041
    %v1117 = vunpack.c.l.b16 %v1042
    %v1118 = vunpack.c.h.b16 %v1042
    %v1119 = vunpack.c.l.b16 %v1043
    %v1120 = vunpack.c.h.b16 %v1043
    %v1121 = vunpack.c.l.b16 %v1044
    %v1122 = vunpack.c.h.b16 %v1044
    %v1123 = vunpack.c.l.b16 %v1045
    %v1124 = vunpack.c.h.b16 %v1045
    %v1125 = vunpack.c.l.b16 %v1046
    %v1126 = vunpack.c.h.b16 %v1046
    %v1127 = vunpack.c.l.b16 %v1047
    %v1128 = vunpack.c.h.b16 %v1047
    %v1129 = vunpack.c.l.b16 %v1048
    %v1130 = vunpack.c.h.b16 %v1048
    %v1131 = vunpack.c.l.b16 %v1049
    %v1132 = vunpack.c.h.b16 %v1049
    %v1133 = vunpack.c.l.b16 %v1050
    %v1134 = vunpack.c.h.b16 %v1050
    %v1135 = vunpack.c.l.b16 %v1051
    %v1136 = vunpack.c.h.b16 %v1051
    %v1137 = vunpack.c.l.b16 %v1052
    %v1138 = vunpack.c.h.b16 %v1052
    %v1139 = vunpack.c.l.b16 %v1053
    %v1140 = vunpack.c.h.b16 %v1053
    %v1141 = vunpack.c.l.b16 %v1054
    %v1142 = vunpack.c.h.b16 %v1054
    %v1143 = vunpack.c.l.b16 %v1055
    %v1144 = vunpack.c.h.b16 %v1055
    %v1145 = vunpack.c.l.b16 %v1056
    %v1146 = vunpack.c.h.b16 %v1056
    %v1147 = vunpack.c.l.b16 %v1057
    %v1148 = vunpack.c.h.b16 %v1057
    %v1149 = vunpack.c.l.b16 %v1058
    %v1150 = vunpack.c.h.b16 %v1058
    %v1151 = vunpack.c.l.b16 %v1059
    %v1152 = vunpack.c.h.b16 %v1059
    %v1153 = vunpack.c.l.b16 %v1060
    %v1154 = vunpack.c.h.b16 %v1060
    %v1155 = vunpack.c.l.b16 %v1061
    %v1156 = vunpack.c.h.b16 %v1061
    %v1157 = vunpack.c.l.b16 %v1062
    %v1158 = vunpack.c.h.b16 %v1062
    %v1159 = vpack.c.b16 %v1095, %v1095
    %v1160 = vpack.c.b16 %v1096, %v1096
    %v1161 = vpack.c.b16 %v1097, %v1097
    %v1162 = vpack.c.b16 %v1098, %v1098
    %v1163 = vpack.c.b16 %v1099, %v1099
    %v1164 = vpack.c.b16 %v1100, %v1100
    %v1165 = vpack.c.b16 %v1101, %v1101
    %v1166 = vpack.c.b16 %v1102, %v1102
    %v1167 = vpack.c.b16 %v1103, %v1103
    %v1168 = vpack.c.b16 %v1104, %v1104
    %v1169 = vpack.c.b16 %v1105, %v1105
    %v1170 = vpack.c.b16 %v1106, %v1106
    %v1171 = vpack.c.b16 %v1107, %v1107
    %v1172 = vpack.c.b16 %v1108, %v1108
    %v1173 = vpack.c.b16 %v1109, %v1109
    %v1174 = vpack.c.b16 %v1110, %v1110
    %v1175 = vpack.c.b16 %v1111, %v1111
    %v1176 = vpack.c.b16 %v1112, %v1112
    %v1177 = vpack.c.b16 %v1113, %v1113
    %v1178 = vpack.c.b16 %v1114, %v1114
    %v1179 = vpack.c.b16 %v1115, %v1115
    %v1180 = vpack.c.b16 %v1116, %v1116
    %v1181 = vpack.c.b16 %v1117, %v1117
    %v1182 = vpack.c.b16 %v1118, %v1118
    %v1183 = vpack.c.b16 %v1119, %v1119
    %v1184 = vpack.c.b16 %v1120, %v1120
    %v1185 = vpack.c.b16 %v1121, %v1121
    %v1186 = vpack.c.b16 %v1122, %v1122
    %v1187 = vpack.c.b16 %v1123, %v1123
    %v1188 = vpack.c.b16 %v1124, %v1124
    %v1189 = vpack.c.b16 %v1125, %v1125
    %v1190 = vpack.c.b16 %v1126, %v1126
    %v1191 = vpack.c.b16 %v1127, %v1127
    %v1192 = vpack.c.b16 %v1128, %v1128
    %v1193 = vpack.c.b16 %v1129, %v1129
    %v1194 = vpack.c.b16 %v1130, %v1130
    %v1195 = vpack.c.b16 %v1131, %v1131
    %v1196 = vpack.c.b16 %v1132, %v1132
    %v1197 = vpack.c.b16 %v1133, %v1133
    %v1198 = vpack.c.b16 %v1134, %v1134
    %v1199 = vpack.c.b16 %v1135, %v1135
    %v1200 = vpack.c.b16 %v1136, %v1136
    %v1201 = vpack.c.b16 %v1137, %v1137
    %v1202 = vpack.c.b16 %v1138, %v1138
    %v1203 = vpack.c.b16 %v1139, %v1139
    %v1204 = vpack.c.b16 %v1140, %v1140
    %v1205 = vpack.c.b16 %v1141, %v1141
    %v1206 = vpack.c.b16 %v1142, %v1142
    %v1207 = vpack.c.b16 %v1143, %v1143
    %v1208 = vpack.c.b16 %v1144, %v1144
    %v1209 = vpack.c.b16 %v1145, %v1145
    %v1210 = vpack.c.b16 %v1146, %v1146
    %v1211 = vpack.c.b16 %v1147, %v1147
    %v1212 = vpack.c.b16 %v1148, %v1148
    %v1213 = vpack.c.b16 %v1149, %v1149
    %v1214 = vpack.c.b16 %v1150, %v1150
    %v1215 = vpack.c.b16 %v1151, %v1151
    %v1216 = vpack.c.b16 %v1152, %v1152
    %v1217 = vpack.c.b16 %v1153, %v1153
    %v1218 = vpack.c.b16 %v1154, %v1154
    %v1219 = vpack.c.b16 %v1155, %v1155
    %v1220 = vpack.c.b16 %v1156, %v1156
    %v1221 = vpack.c.b16 %v1157, %v1157
    %v1222 = vpack.c.b16 %v1158, %v1158
    %1287 = vst [vmem:[%s3] sm:$0xf] %v1159
    %1288 = vst [vmem:[%s3 + $0x4] sm:$0xf] %v1160
    %1289 = vst [vmem:[%s3 + $0x8] sm:$0xf] %v1161
    %1290 = vst [vmem:[%s3 + $0xc] sm:$0xf] %v1162
    %1291 = vst [vmem:[%s3 + $0x10] sm:$0xf] %v1163
    %1292 = vst [vmem:[%s3 + $0x14] sm:$0xf] %v1164
    %1293 = vst [vmem:[%s3 + $0x18] sm:$0xf] %v1165
    %1294 = vst [vmem:[%s3 + $0x1c] sm:$0xf] %v1166
    %1295 = vst [vmem:[%s3 + $0x20] sm:$0xf] %v1167
    %1296 = vst [vmem:[%s3 + $0x24] sm:$0xf] %v1168
    %1297 = vst [vmem:[%s3 + $0x28] sm:$0xf] %v1169
    %1298 = vst [vmem:[%s3 + $0x2c] sm:$0xf] %v1170
    %1299 = vst [vmem:[%s3 + $0x30] sm:$0xf] %v1171
    %1300 = vst [vmem:[%s3 + $0x34] sm:$0xf] %v1172
    %1301 = vst [vmem:[%s3 + $0x38] sm:$0xf] %v1173
    %1302 = vst [vmem:[%s3 + $0x3c] sm:$0xf] %v1174
    %1303 = vst [vmem:[%s3 + $0x40] sm:$0xf] %v1175
    %1304 = vst [vmem:[%s3 + $0x44] sm:$0xf] %v1176
    %1305 = vst [vmem:[%s3 + $0x48] sm:$0xf] %v1177
    %1306 = vst [vmem:[%s3 + $0x4c] sm:$0xf] %v1178
    %1307 = vst [vmem:[%s3 + $0x50] sm:$0xf] %v1179
    %1308 = vst [vmem:[%s3 + $0x54] sm:$0xf] %v1180
    %1309 = vst [vmem:[%s3 + $0x58] sm:$0xf] %v1181
    %1310 = vst [vmem:[%s3 + $0x5c] sm:$0xf] %v1182
    %1311 = vst [vmem:[%s3 + $0x60] sm:$0xf] %v1183
    %1312 = vst [vmem:[%s3 + $0x64] sm:$0xf] %v1184
    %1313 = vst [vmem:[%s3 + $0x68] sm:$0xf] %v1185
    %1314 = vst [vmem:[%s3 + $0x6c] sm:$0xf] %v1186
    %1315 = vst [vmem:[%s3 + $0x70] sm:$0xf] %v1187
    %1316 = vst [vmem:[%s3 + $0x74] sm:$0xf] %v1188
    %1317 = vst [vmem:[%s3 + $0x78] sm:$0xf] %v1189
    %1318 = vst [vmem:[%s3 + $0x7c] sm:$0xf] %v1190
    %1319 = vst [vmem:[%s3 + $0x80] sm:$0xf] %v1191
    %1320 = vst [vmem:[%s3 + $0x84] sm:$0xf] %v1192
    %1321 = vst [vmem:[%s3 + $0x88] sm:$0xf] %v1193
    %1322 = vst [vmem:[%s3 + $0x8c] sm:$0xf] %v1194
    %1323 = vst [vmem:[%s3 + $0x90] sm:$0xf] %v1195
    %1324 = vst [vmem:[%s3 + $0x94] sm:$0xf] %v1196
    %1325 = vst [vmem:[%s3 + $0x98] sm:$0xf] %v1197
    %1326 = vst [vmem:[%s3 + $0x9c] sm:$0xf] %v1198
    %1327 = vst [vmem:[%s3 + $0xa0] sm:$0xf] %v1199
    %1328 = vst [vmem:[%s3 + $0xa4] sm:$0xf] %v1200
    %1329 = vst [vmem:[%s3 + $0xa8] sm:$0xf] %v1201
    %1330 = vst [vmem:[%s3 + $0xac] sm:$0xf] %v1202
    %1331 = vst [vmem:[%s3 + $0xb0] sm:$0xf] %v1203
    %1332 = vst [vmem:[%s3 + $0xb4] sm:$0xf] %v1204
    %1333 = vst [vmem:[%s3 + $0xb8] sm:$0xf] %v1205
    %1334 = vst [vmem:[%s3 + $0xbc] sm:$0xf] %v1206
    %1335 = vst [vmem:[%s3 + $0xc0] sm:$0xf] %v1207
    %1336 = vst [vmem:[%s3 + $0xc4] sm:$0xf] %v1208
    %1337 = vst [vmem:[%s3 + $0xc8] sm:$0xf] %v1209
    %1338 = vst [vmem:[%s3 + $0xcc] sm:$0xf] %v1210
    %1339 = vst [vmem:[%s3 + $0xd0] sm:$0xf] %v1211
    %1340 = vst [vmem:[%s3 + $0xd4] sm:$0xf] %v1212
    %1341 = vst [vmem:[%s3 + $0xd8] sm:$0xf] %v1213
    %1342 = vst [vmem:[%s3 + $0xdc] sm:$0xf] %v1214
    %1343 = vst [vmem:[%s3 + $0xe0] sm:$0xf] %v1215
    %1344 = vst [vmem:[%s3 + $0xe4] sm:$0xf] %v1216
    %1345 = vst [vmem:[%s3 + $0xe8] sm:$0xf] %v1217
    %1346 = vst [vmem:[%s3 + $0xec] sm:$0xf] %v1218
    %1347 = vst [vmem:[%s3 + $0xf0] sm:$0xf] %v1219
    %1348 = vst [vmem:[%s3 + $0xf4] sm:$0xf] %v1220
    %1349 = vst [vmem:[%s3 + $0xf8] sm:$0xf] %v1221
    %1350 = vst [vmem:[%s3 + $0xfc] sm:$0xf] %v1222
  $region21: #{autoencoder_de_forward.9} parent=0 // pred_fallthru
    _
  // Predicated region
  $region22: #{autoencoder_de_forward.9} parent=0 // pred_check
    _
  $region23: #{autoencoder_de_forward.9} parent=0 // pred_check_branch
    %1352 = sbr.rel (0) target = $region25
  $region24: #{autoencoder_de_forward.9} parent=0 // pred_region
    _
  $region25: #{autoencoder_de_forward.9} parent=0 // pred_fallthru
    _
  // Predicated region
  $region26: #{autoencoder_de_forward.9} parent=0 // pred_check
    _
  $region27: #{autoencoder_de_forward.9} parent=0 // pred_check_branch
    %1354 = sbr.rel (0) target = $region29
  $region28: #{autoencoder_de_forward.9} parent=0 // pred_region
    _
  $region29: #{autoencoder_de_forward.9} parent=0 // pred_fallthru
    _

// kernel: autoencoder_de_forward.10
$region0: #{autoencoder_de_forward.10}
  #allocation0 [shape = 'u32[]', space=smem, size = 0x4, offset = 0x4, fixed_abs, tag = 'smem constant byte address 0x4 - core index']
  #allocation1 [shape = 'u32[144,128]{1,0:T(1,128)}', space=vmem, size = 0x12000, scoped, tag = 'internal scratch']
  #allocation2 [shape = 'f32[1024,128]{1,0:T(8,128)}', space=vmem, size = 0x80000, scoped, tag = 'scratch operand']
  %s0 = inlined_call_operand.vmem [shape: bf16[2048,8], index: 0, kind: input, shape index: {}]
  %s1 = inlined_call_operand.vmem [shape: bf16[8,128], index: 1, kind: input, shape index: {}]
  %s2 = inlined_call_operand.vmem [shape: f32[1,128], index: 2, kind: input, shape index: {}]
  %s3 = inlined_call_operand.vmem [shape: bf16[2048,128], index: 3, kind: output, shape index: {}]
  %s4 = sld [smem:[#allocation0]]
  $region53: #{autoencoder_de_forward.10} parent=0
    _
  %s6 = ssub.s32 1, %s4
  %s7 = scalar_select 0, %s6, %s4
  loop: start=0, step=1, limit=4
  $region2: #{autoencoder_de_forward.10} parent=0 // loop_pre_header
    _
  $region3: #{autoencoder_de_forward.10} parent=0 // loop_header
    %s9 = sphi 0, %s13
    %p10 = scmp.ge.s32.totalorder %s9, 4
    %s16 = sphi 0, %s35
    %s17 = sphi 0, %s31
    %s18 = sphi 0, %s27
    %s19 = sphi 0, %s16
    %s20 = sphi 0, %s17
    %s21 = sphi 0, %s18
    %s22 = sphi 0, %s19
    %s23 = sphi 0, %s20
    %s24 = sphi 0, %s21
    %s40 = sphi 0, %s42
    %s43 = sphi 0, %s40
    %s44 = sphi 0, %s43
    %s60 = sphi 0, %s44
    %s68 = sphi 0, %s70
    %s71 = sphi 0, %s68
    %s72 = sphi 0, %s71
    %s88 = sphi 0, %s72
    %s94 = sphi 0, %s96
    %s97 = sphi 0, %s94
    %s98 = sphi 0, %s97
    %s114 = sphi 0, %s98
    %s122 = sphi 0, %s124
    %s125 = sphi 0, %s122
    %s126 = sphi 0, %s125
    %s142 = sphi 0, %s126
  $region4: #{autoencoder_de_forward.10} parent=0 // loop_header_branch
    %12 = sbr.rel (%p10) target = $region8
  $region5: #{autoencoder_de_forward.10} parent=0 // loop_body
    %s14 = ssub.s32 %s9, 1
    %s15 = ssub.s32 %s9, 2
    %s25 = sadd.s32 1, %s18
    %p26 = scmp.ge.s32.totalorder %s25, 1
    %s27 = scalar_select %p26, 0, %s25
    %s28 = sadd.s32 1, %s17
    %s29 = scalar_select %p26, %s28, %s17
    %p30 = scmp.ge.s32.totalorder %s29, 1
    %s31 = scalar_select %p30, 0, %s29
    %s32 = sadd.s32 1, %s16
    %s33 = scalar_select %p30, %s32, %s16
    %p34 = scmp.ge.s32.totalorder %s33, 2
    %s35 = scalar_select %p34, 0, %s33
    %s36 = ssub.s32 %s16, %s35
    %s37 = ssub.s32 %s18, %s27
    %s38 = sor.u32 %s36, %s37
    %p39 = scmp.eq.s32.totalorder %s38, 0
    %s41 = sadd.s32 %s40, 1
    %s42 = scalar_select %p39, %s40, %s41
    %p45 = pneg %p39
    %p46 = scmp.eq.s32.totalorder %s9, 1
    %p47 = por %p45, %p46
    %p48 = scmp.ne.s32.totalorder %s40, %s43
    %p49 = scmp.eq.s32.totalorder %s9, 0
    %p50 = por %p48, %p49
    %p51 = scmp.ne.s32.totalorder %s40, %s43
    %p52 = scmp.eq.s32.totalorder %s14, 1
    %p53 = por %p51, %p52
    %p54 = scmp.ne.s32.totalorder %s43, %s44
    %p55 = scmp.eq.s32.totalorder %s14, 0
    %p56 = por %p54, %p55
    %p57 = scmp.ne.s32.totalorder %s43, %s44
    %p58 = scmp.eq.s32.totalorder %s15, 1
    %p59 = por %p57, %p58
    %p61 = scmp.ne.s32.totalorder %s44, %s60
    %p62 = scmp.eq.s32.totalorder %s15, 0
    %p63 = por %p61, %p62
    %s64 = ssub.s32 %s18, %s27
    %s65 = ssub.s32 %s17, %s31
    %s66 = sor.u32 %s64, %s65
    %p67 = scmp.eq.s32.totalorder %s66, 0
    %s69 = sadd.s32 %s68, 1
    %s70 = scalar_select %p67, %s68, %s69
    %p73 = pneg %p67
    %p74 = scmp.eq.s32.totalorder %s9, 1
    %p75 = por %p73, %p74
    %p76 = scmp.ne.s32.totalorder %s68, %s71
    %p77 = scmp.eq.s32.totalorder %s9, 0
    %p78 = por %p76, %p77
    %p79 = scmp.ne.s32.totalorder %s68, %s71
    %p80 = scmp.eq.s32.totalorder %s14, 1
    %p81 = por %p79, %p80
    %p82 = scmp.ne.s32.totalorder %s71, %s72
    %p83 = scmp.eq.s32.totalorder %s14, 0
    %p84 = por %p82, %p83
    %p85 = scmp.ne.s32.totalorder %s71, %s72
    %p86 = scmp.eq.s32.totalorder %s15, 1
    %p87 = por %p85, %p86
    %p89 = scmp.ne.s32.totalorder %s72, %s88
    %p90 = scmp.eq.s32.totalorder %s15, 0
    %p91 = por %p89, %p90
    %s92 = ssub.s32 %s17, %s31
    %p93 = scmp.eq.s32.totalorder %s92, 0
    %s95 = sadd.s32 %s94, 1
    %s96 = scalar_select %p93, %s94, %s95
    %p99 = pneg %p93
    %p100 = scmp.eq.s32.totalorder %s9, 1
    %p101 = por %p99, %p100
    %p102 = scmp.ne.s32.totalorder %s94, %s97
    %p103 = scmp.eq.s32.totalorder %s9, 0
    %p104 = por %p102, %p103
    %p105 = scmp.ne.s32.totalorder %s94, %s97
    %p106 = scmp.eq.s32.totalorder %s14, 1
    %p107 = por %p105, %p106
    %p108 = scmp.ne.s32.totalorder %s97, %s98
    %p109 = scmp.eq.s32.totalorder %s14, 0
    %p110 = por %p108, %p109
    %p111 = scmp.ne.s32.totalorder %s97, %s98
    %p112 = scmp.eq.s32.totalorder %s15, 1
    %p113 = por %p111, %p112
    %p115 = scmp.ne.s32.totalorder %s98, %s114
    %p116 = scmp.eq.s32.totalorder %s15, 0
    %p117 = por %p115, %p116
    %s118 = ssub.s32 %s16, %s35
    %s119 = ssub.s32 %s17, %s31
    %s120 = sor.u32 %s118, %s119
    %p121 = scmp.eq.s32.totalorder %s120, 0
    %s123 = sadd.s32 %s122, 1
    %s124 = scalar_select %p121, %s122, %s123
    %p127 = pneg %p121
    %p128 = scmp.eq.s32.totalorder %s9, 1
    %p129 = por %p127, %p128
    %p130 = scmp.ne.s32.totalorder %s122, %s125
    %p131 = scmp.eq.s32.totalorder %s9, 0
    %p132 = por %p130, %p131
    %p133 = scmp.ne.s32.totalorder %s122, %s125
    %p134 = scmp.eq.s32.totalorder %s14, 1
    %p135 = por %p133, %p134
    %p136 = scmp.ne.s32.totalorder %s125, %s126
    %p137 = scmp.eq.s32.totalorder %s14, 0
    %p138 = por %p136, %p137
    %p139 = scmp.ne.s32.totalorder %s125, %s126
    %p140 = scmp.eq.s32.totalorder %s15, 1
    %p141 = por %p139, %p140
    %p143 = scmp.ne.s32.totalorder %s126, %s142
    %p144 = scmp.eq.s32.totalorder %s15, 0
    %p145 = por %p143, %p144
    %p146 = scmp.le.s32.totalorder 1, %s9
    %p147 = scmp.lt.s32.totalorder %s9, 3
    %p148 = pnand %p146, %p147
    %p149 = pneg %p148
    // Predicated region
    $region9: #{autoencoder_de_forward.10} parent=5 // pred_check
      _
    $region10: #{autoencoder_de_forward.10} parent=5 // pred_check_branch
      %151 = sbr.rel (%p148) target = $region12
    $region11: #{autoencoder_de_forward.10} parent=5 // pred_region
      %s152 = ssub.s32 %s9, 1
      // Predicated region
      $region13: #{autoencoder_de_forward.10} parent=11 // pred_check
        %p153 = pneg %p84
      $region14: #{autoencoder_de_forward.10} parent=11 // pred_check_branch
        %155 = sbr.rel (%p153) target = $region16
      $region15: #{autoencoder_de_forward.10} parent=11 // pred_region
        %p156 = scmp.lt.s32.totalorder %s21, 0
        %s157 = scalar_select %p156, %s21, 0
        %p158 = scmp.lt.s32.totalorder %s20, 0
        %s159 = scalar_select %p158, %s20, 0
        %s160 = sadd.s32 %s159, %s157
        %s161 = smul.addr %s160, 4
        %s162 = scalar_lea.vmem %s1, %s161
      $region16: #{autoencoder_de_forward.10} parent=11 // pred_fallthru
        _
      // Predicated region
      $region17: #{autoencoder_de_forward.10} parent=11 // pred_check
        %p163 = pneg %p110
      $region18: #{autoencoder_de_forward.10} parent=11 // pred_check_branch
        %165 = sbr.rel (%p163) target = $region20
      $region19: #{autoencoder_de_forward.10} parent=11 // pred_region
        %p166 = scmp.lt.s32.totalorder %s20, 0
        %s167 = scalar_select %p166, %s20, 0
        %s168 = scalar_lea.vmem %s2, %s167
      $region20: #{autoencoder_de_forward.10} parent=11 // pred_fallthru
        _
    $region12: #{autoencoder_de_forward.10} parent=5 // pred_fallthru
      _
    %p169 = scmp.lt.s32.totalorder %s9, 2
    // Predicated region
    $region21: #{autoencoder_de_forward.10} parent=5 // pred_check
      %p170 = pneg %p169
    $region22: #{autoencoder_de_forward.10} parent=5 // pred_check_branch
      %172 = sbr.rel (%p170) target = $region24
    $region23: #{autoencoder_de_forward.10} parent=5 // pred_region
      // Predicated region
      $region25: #{autoencoder_de_forward.10} parent=23 // pred_check
        %p173 = pneg %p50
      $region26: #{autoencoder_de_forward.10} parent=23 // pred_check_branch
        %175 = sbr.rel (%p173) target = $region28
      $region27: #{autoencoder_de_forward.10} parent=23 // pred_region
        %s176 = smul.u32 128, %s16
        %p177 = scmp.lt.s32.totalorder %s176, 255
        %s178 = scalar_select %p177, %s176, 255
        %p179 = scmp.lt.s32.totalorder %s18, 0
        %s180 = scalar_select %p179, %s18, 0
        %s181 = sadd.s32 %s180, %s178
        %s182 = smul.addr %s181, 4
        %s183 = scalar_lea.vmem %s0, %s182
        %s184 = smul.u32 128, %s16
      $region28: #{autoencoder_de_forward.10} parent=23 // pred_fallthru
        _
    $region24: #{autoencoder_de_forward.10} parent=5 // pred_fallthru
      _
    %p185 = scmp.le.s32.totalorder 1, %s9
    %p186 = scmp.lt.s32.totalorder %s9, 3
    %p187 = pnand %p185, %p186
    %p188 = pneg %p187
    // Predicated region
    $region29: #{autoencoder_de_forward.10} parent=5 // pred_check
      _
    $region30: #{autoencoder_de_forward.10} parent=5 // pred_check_branch
      %190 = sbr.rel (%p187) target = $region32
    $region31: #{autoencoder_de_forward.10} parent=5 // pred_region
      %s191 = ssub.s32 %s9, 1
      %s192 = smul.u32 128, %s19
      %p193 = scmp.lt.s32.totalorder %s192, 255
      %s194 = scalar_select %p193, %s192, 255
      %p195 = scmp.lt.s32.totalorder %s21, 0
      %s196 = scalar_select %p195, %s21, 0
      %s197 = sadd.s32 %s196, %s194
      %s198 = smul.addr %s197, 4
      %s199 = scalar_lea.vmem %s0, %s198
      %p200 = pneg %p56
      %p201 = pneg %p53
      %p202 = scmp.lt.s32.totalorder %s21, 0
      %s203 = scalar_select %p202, %s21, 0
      %p204 = scmp.lt.s32.totalorder %s20, 0
      %s205 = scalar_select %p204, %s20, 0
      %s206 = sadd.s32 %s205, %s203
      %s207 = smul.addr %s206, 4
      %s208 = scalar_lea.vmem %s1, %s207
      %p209 = pneg %p84
      %p210 = pneg %p81
      %p211 = scmp.lt.s32.totalorder %s20, 0
      %s212 = scalar_select %p211, %s20, 0
      %s213 = scalar_lea.vmem %s2, %s212
      %p214 = pneg %p110
      %p215 = pneg %p107
      %p216 = pneg %p138
      %p217 = pneg %p135
      %s218 = smul.u32 128, %s19
      %p219 = scmp.lt.s32.totalorder %s218, 255
      %s220 = scalar_select %p219, %s218, 255
      %p221 = scmp.lt.s32.totalorder %s20, 0
      %s222 = scalar_select %p221, %s20, 0
      %s223 = sadd.s32 %s222, %s220
      %s224 = smul.addr %s223, 4
      %s225 = scalar_lea.vmem %s3, %s224
      %s226 = smul.u32 128, %s19
      %p227 = scmp.lt.s32.totalorder %s226, 255
      %s228 = scalar_select %p227, %s226, 255
      %p229 = scmp.lt.s32.totalorder %s21, 0
      %s230 = scalar_select %p229, %s21, 0
      %s231 = sadd.s32 %s230, %s228
      %s232 = smul.addr %s231, 4
      %s233 = scalar_lea.vmem %s0, %s232
      %s234 = smul.u32 128, %s19
      %p235 = scmp.lt.s32.totalorder %s21, 0
      %s236 = scalar_select %p235, %s21, 0
      %p237 = scmp.lt.s32.totalorder %s20, 0
      %s238 = scalar_select %p237, %s20, 0
      %s239 = sadd.s32 %s238, %s236
      %s240 = smul.addr %s239, 4
      %s241 = scalar_lea.vmem %s1, %s240
      %p242 = scmp.lt.s32.totalorder %s20, 0
      %s243 = scalar_select %p242, %s20, 0
      %s244 = scalar_lea.vmem %s2, %s243
      %s245 = smul.u32 128, %s19
      %p246 = scmp.lt.s32.totalorder %s245, 255
      %s247 = scalar_select %p246, %s245, 255
      %p248 = scmp.lt.s32.totalorder %s20, 0
      %s249 = scalar_select %p248, %s20, 0
      %s250 = sadd.s32 %s249, %s247
      %s251 = smul.addr %s250, 4
      %s252 = scalar_lea.vmem %s3, %s251
      %s253 = smul.u32 128, %s19
      %p255 = scmp.eq.s32.totalorder %s21, 0
      // Predicated region
      $region33: #{autoencoder_de_forward.10} parent=31 // pred_check
        %p256 = pneg %p255
      $region34: #{autoencoder_de_forward.10} parent=31 // pred_check_branch
        %258 = sbr.rel (%p256) target = $region36
      $region35: #{autoencoder_de_forward.10} parent=31 // pred_region
        %259 = vst [vmem:[#allocation2] sm:$0xff] 0.0
        %260 = vst [vmem:[#allocation2 + $0x8] sm:$0xff] 0.0
        %261 = vst [vmem:[#allocation2 + $0x10] sm:$0xff] 0.0
        %262 = vst [vmem:[#allocation2 + $0x18] sm:$0xff] 0.0
        %263 = vst [vmem:[#allocation2 + $0x20] sm:$0xff] 0.0
        %264 = vst [vmem:[#allocation2 + $0x28] sm:$0xff] 0.0
        %265 = vst [vmem:[#allocation2 + $0x30] sm:$0xff] 0.0
        %266 = vst [vmem:[#allocation2 + $0x38] sm:$0xff] 0.0
        %267 = vst [vmem:[#allocation2 + $0x40] sm:$0xff] 0.0
        %268 = vst [vmem:[#allocation2 + $0x48] sm:$0xff] 0.0
        %269 = vst [vmem:[#allocation2 + $0x50] sm:$0xff] 0.0
        %270 = vst [vmem:[#allocation2 + $0x58] sm:$0xff] 0.0
        %271 = vst [vmem:[#allocation2 + $0x60] sm:$0xff] 0.0
        %272 = vst [vmem:[#allocation2 + $0x68] sm:$0xff] 0.0
        %273 = vst [vmem:[#allocation2 + $0x70] sm:$0xff] 0.0
        %274 = vst [vmem:[#allocation2 + $0x78] sm:$0xff] 0.0
        %275 = vst [vmem:[#allocation2 + $0x80] sm:$0xff] 0.0
        %276 = vst [vmem:[#allocation2 + $0x88] sm:$0xff] 0.0
        %277 = vst [vmem:[#allocation2 + $0x90] sm:$0xff] 0.0
        %278 = vst [vmem:[#allocation2 + $0x98] sm:$0xff] 0.0
        %279 = vst [vmem:[#allocation2 + $0xa0] sm:$0xff] 0.0
        %280 = vst [vmem:[#allocation2 + $0xa8] sm:$0xff] 0.0
        %281 = vst [vmem:[#allocation2 + $0xb0] sm:$0xff] 0.0
        %282 = vst [vmem:[#allocation2 + $0xb8] sm:$0xff] 0.0
        %283 = vst [vmem:[#allocation2 + $0xc0] sm:$0xff] 0.0
        %284 = vst [vmem:[#allocation2 + $0xc8] sm:$0xff] 0.0
        %285 = vst [vmem:[#allocation2 + $0xd0] sm:$0xff] 0.0
        %286 = vst [vmem:[#allocation2 + $0xd8] sm:$0xff] 0.0
        %287 = vst [vmem:[#allocation2 + $0xe0] sm:$0xff] 0.0
        %288 = vst [vmem:[#allocation2 + $0xe8] sm:$0xff] 0.0
        %289 = vst [vmem:[#allocation2 + $0xf0] sm:$0xff] 0.0
        %290 = vst [vmem:[#allocation2 + $0xf8] sm:$0xff] 0.0
        %291 = vst [vmem:[#allocation2 + $0x100] sm:$0xff] 0.0
        %292 = vst [vmem:[#allocation2 + $0x108] sm:$0xff] 0.0
        %293 = vst [vmem:[#allocation2 + $0x110] sm:$0xff] 0.0
        %294 = vst [vmem:[#allocation2 + $0x118] sm:$0xff] 0.0
        %295 = vst [vmem:[#allocation2 + $0x120] sm:$0xff] 0.0
        %296 = vst [vmem:[#allocation2 + $0x128] sm:$0xff] 0.0
        %297 = vst [vmem:[#allocation2 + $0x130] sm:$0xff] 0.0
        %298 = vst [vmem:[#allocation2 + $0x138] sm:$0xff] 0.0
        %299 = vst [vmem:[#allocation2 + $0x140] sm:$0xff] 0.0
        %300 = vst [vmem:[#allocation2 + $0x148] sm:$0xff] 0.0
        %301 = vst [vmem:[#allocation2 + $0x150] sm:$0xff] 0.0
        %302 = vst [vmem:[#allocation2 + $0x158] sm:$0xff] 0.0
        %303 = vst [vmem:[#allocation2 + $0x160] sm:$0xff] 0.0
        %304 = vst [vmem:[#allocation2 + $0x168] sm:$0xff] 0.0
        %305 = vst [vmem:[#allocation2 + $0x170] sm:$0xff] 0.0
        %306 = vst [vmem:[#allocation2 + $0x178] sm:$0xff] 0.0
        %307 = vst [vmem:[#allocation2 + $0x180] sm:$0xff] 0.0
        %308 = vst [vmem:[#allocation2 + $0x188] sm:$0xff] 0.0
        %309 = vst [vmem:[#allocation2 + $0x190] sm:$0xff] 0.0
        %310 = vst [vmem:[#allocation2 + $0x198] sm:$0xff] 0.0
        %311 = vst [vmem:[#allocation2 + $0x1a0] sm:$0xff] 0.0
        %312 = vst [vmem:[#allocation2 + $0x1a8] sm:$0xff] 0.0
        %313 = vst [vmem:[#allocation2 + $0x1b0] sm:$0xff] 0.0
        %314 = vst [vmem:[#allocation2 + $0x1b8] sm:$0xff] 0.0
        %315 = vst [vmem:[#allocation2 + $0x1c0] sm:$0xff] 0.0
        %316 = vst [vmem:[#allocation2 + $0x1c8] sm:$0xff] 0.0
        %317 = vst [vmem:[#allocation2 + $0x1d0] sm:$0xff] 0.0
        %318 = vst [vmem:[#allocation2 + $0x1d8] sm:$0xff] 0.0
        %319 = vst [vmem:[#allocation2 + $0x1e0] sm:$0xff] 0.0
        %320 = vst [vmem:[#allocation2 + $0x1e8] sm:$0xff] 0.0
        %321 = vst [vmem:[#allocation2 + $0x1f0] sm:$0xff] 0.0
        %322 = vst [vmem:[#allocation2 + $0x1f8] sm:$0xff] 0.0
        %323 = vst [vmem:[#allocation2 + $0x200] sm:$0xff] 0.0
        %324 = vst [vmem:[#allocation2 + $0x208] sm:$0xff] 0.0
        %325 = vst [vmem:[#allocation2 + $0x210] sm:$0xff] 0.0
        %326 = vst [vmem:[#allocation2 + $0x218] sm:$0xff] 0.0
        %327 = vst [vmem:[#allocation2 + $0x220] sm:$0xff] 0.0
        %328 = vst [vmem:[#allocation2 + $0x228] sm:$0xff] 0.0
        %329 = vst [vmem:[#allocation2 + $0x230] sm:$0xff] 0.0
        %330 = vst [vmem:[#allocation2 + $0x238] sm:$0xff] 0.0
        %331 = vst [vmem:[#allocation2 + $0x240] sm:$0xff] 0.0
        %332 = vst [vmem:[#allocation2 + $0x248] sm:$0xff] 0.0
        %333 = vst [vmem:[#allocation2 + $0x250] sm:$0xff] 0.0
        %334 = vst [vmem:[#allocation2 + $0x258] sm:$0xff] 0.0
        %335 = vst [vmem:[#allocation2 + $0x260] sm:$0xff] 0.0
        %336 = vst [vmem:[#allocation2 + $0x268] sm:$0xff] 0.0
        %337 = vst [vmem:[#allocation2 + $0x270] sm:$0xff] 0.0
        %338 = vst [vmem:[#allocation2 + $0x278] sm:$0xff] 0.0
        %339 = vst [vmem:[#allocation2 + $0x280] sm:$0xff] 0.0
        %340 = vst [vmem:[#allocation2 + $0x288] sm:$0xff] 0.0
        %341 = vst [vmem:[#allocation2 + $0x290] sm:$0xff] 0.0
        %342 = vst [vmem:[#allocation2 + $0x298] sm:$0xff] 0.0
        %343 = vst [vmem:[#allocation2 + $0x2a0] sm:$0xff] 0.0
        %344 = vst [vmem:[#allocation2 + $0x2a8] sm:$0xff] 0.0
        %345 = vst [vmem:[#allocation2 + $0x2b0] sm:$0xff] 0.0
        %346 = vst [vmem:[#allocation2 + $0x2b8] sm:$0xff] 0.0
        %347 = vst [vmem:[#allocation2 + $0x2c0] sm:$0xff] 0.0
        %348 = vst [vmem:[#allocation2 + $0x2c8] sm:$0xff] 0.0
        %349 = vst [vmem:[#allocation2 + $0x2d0] sm:$0xff] 0.0
        %350 = vst [vmem:[#allocation2 + $0x2d8] sm:$0xff] 0.0
        %351 = vst [vmem:[#allocation2 + $0x2e0] sm:$0xff] 0.0
        %352 = vst [vmem:[#allocation2 + $0x2e8] sm:$0xff] 0.0
        %353 = vst [vmem:[#allocation2 + $0x2f0] sm:$0xff] 0.0
        %354 = vst [vmem:[#allocation2 + $0x2f8] sm:$0xff] 0.0
        %355 = vst [vmem:[#allocation2 + $0x300] sm:$0xff] 0.0
        %356 = vst [vmem:[#allocation2 + $0x308] sm:$0xff] 0.0
        %357 = vst [vmem:[#allocation2 + $0x310] sm:$0xff] 0.0
        %358 = vst [vmem:[#allocation2 + $0x318] sm:$0xff] 0.0
        %359 = vst [vmem:[#allocation2 + $0x320] sm:$0xff] 0.0
        %360 = vst [vmem:[#allocation2 + $0x328] sm:$0xff] 0.0
        %361 = vst [vmem:[#allocation2 + $0x330] sm:$0xff] 0.0
        %362 = vst [vmem:[#allocation2 + $0x338] sm:$0xff] 0.0
        %363 = vst [vmem:[#allocation2 + $0x340] sm:$0xff] 0.0
        %364 = vst [vmem:[#allocation2 + $0x348] sm:$0xff] 0.0
        %365 = vst [vmem:[#allocation2 + $0x350] sm:$0xff] 0.0
        %366 = vst [vmem:[#allocation2 + $0x358] sm:$0xff] 0.0
        %367 = vst [vmem:[#allocation2 + $0x360] sm:$0xff] 0.0
        %368 = vst [vmem:[#allocation2 + $0x368] sm:$0xff] 0.0
        %369 = vst [vmem:[#allocation2 + $0x370] sm:$0xff] 0.0
        %370 = vst [vmem:[#allocation2 + $0x378] sm:$0xff] 0.0
        %371 = vst [vmem:[#allocation2 + $0x380] sm:$0xff] 0.0
        %372 = vst [vmem:[#allocation2 + $0x388] sm:$0xff] 0.0
        %373 = vst [vmem:[#allocation2 + $0x390] sm:$0xff] 0.0
        %374 = vst [vmem:[#allocation2 + $0x398] sm:$0xff] 0.0
        %375 = vst [vmem:[#allocation2 + $0x3a0] sm:$0xff] 0.0
        %376 = vst [vmem:[#allocation2 + $0x3a8] sm:$0xff] 0.0
        %377 = vst [vmem:[#allocation2 + $0x3b0] sm:$0xff] 0.0
        %378 = vst [vmem:[#allocation2 + $0x3b8] sm:$0xff] 0.0
        %379 = vst [vmem:[#allocation2 + $0x3c0] sm:$0xff] 0.0
        %380 = vst [vmem:[#allocation2 + $0x3c8] sm:$0xff] 0.0
        %381 = vst [vmem:[#allocation2 + $0x3d0] sm:$0xff] 0.0
        %382 = vst [vmem:[#allocation2 + $0x3d8] sm:$0xff] 0.0
        %383 = vst [vmem:[#allocation2 + $0x3e0] sm:$0xff] 0.0
        %384 = vst [vmem:[#allocation2 + $0x3e8] sm:$0xff] 0.0
        %385 = vst [vmem:[#allocation2 + $0x3f0] sm:$0xff] 0.0
        %386 = vst [vmem:[#allocation2 + $0x3f8] sm:$0xff] 0.0
      $region36: #{autoencoder_de_forward.10} parent=31 // pred_fallthru
        _
      %v387 = vld [vmem:[#allocation2] sm:$0xff]
      %v388 = vld [vmem:[#allocation2 + $0x8] sm:$0xff]
      %v389 = vld [vmem:[#allocation2 + $0x10] sm:$0xff]
      %v390 = vld [vmem:[#allocation2 + $0x18] sm:$0xff]
      %v391 = vld [vmem:[#allocation2 + $0x20] sm:$0xff]
      %v392 = vld [vmem:[#allocation2 + $0x28] sm:$0xff]
      %v393 = vld [vmem:[#allocation2 + $0x30] sm:$0xff]
      %v394 = vld [vmem:[#allocation2 + $0x38] sm:$0xff]
      %v395 = vld [vmem:[#allocation2 + $0x40] sm:$0xff]
      %v396 = vld [vmem:[#allocation2 + $0x48] sm:$0xff]
      %v397 = vld [vmem:[#allocation2 + $0x50] sm:$0xff]
      %v398 = vld [vmem:[#allocation2 + $0x58] sm:$0xff]
      %v399 = vld [vmem:[#allocation2 + $0x60] sm:$0xff]
      %v400 = vld [vmem:[#allocation2 + $0x68] sm:$0xff]
      %v401 = vld [vmem:[#allocation2 + $0x70] sm:$0xff]
      %v402 = vld [vmem:[#allocation2 + $0x78] sm:$0xff]
      %v403 = vld [vmem:[#allocation2 + $0x80] sm:$0xff]
      %v404 = vld [vmem:[#allocation2 + $0x88] sm:$0xff]
      %v405 = vld [vmem:[#allocation2 + $0x90] sm:$0xff]
      %v406 = vld [vmem:[#allocation2 + $0x98] sm:$0xff]
      %v407 = vld [vmem:[#allocation2 + $0xa0] sm:$0xff]
      %v408 = vld [vmem:[#allocation2 + $0xa8] sm:$0xff]
      %v409 = vld [vmem:[#allocation2 + $0xb0] sm:$0xff]
      %v410 = vld [vmem:[#allocation2 + $0xb8] sm:$0xff]
      %v411 = vld [vmem:[#allocation2 + $0xc0] sm:$0xff]
      %v412 = vld [vmem:[#allocation2 + $0xc8] sm:$0xff]
      %v413 = vld [vmem:[#allocation2 + $0xd0] sm:$0xff]
      %v414 = vld [vmem:[#allocation2 + $0xd8] sm:$0xff]
      %v415 = vld [vmem:[#allocation2 + $0xe0] sm:$0xff]
      %v416 = vld [vmem:[#allocation2 + $0xe8] sm:$0xff]
      %v417 = vld [vmem:[#allocation2 + $0xf0] sm:$0xff]
      %v418 = vld [vmem:[#allocation2 + $0xf8] sm:$0xff]
      %v419 = vld [vmem:[#allocation2 + $0x100] sm:$0xff]
      %v420 = vld [vmem:[#allocation2 + $0x108] sm:$0xff]
      %v421 = vld [vmem:[#allocation2 + $0x110] sm:$0xff]
      %v422 = vld [vmem:[#allocation2 + $0x118] sm:$0xff]
      %v423 = vld [vmem:[#allocation2 + $0x120] sm:$0xff]
      %v424 = vld [vmem:[#allocation2 + $0x128] sm:$0xff]
      %v425 = vld [vmem:[#allocation2 + $0x130] sm:$0xff]
      %v426 = vld [vmem:[#allocation2 + $0x138] sm:$0xff]
      %v427 = vld [vmem:[#allocation2 + $0x140] sm:$0xff]
      %v428 = vld [vmem:[#allocation2 + $0x148] sm:$0xff]
      %v429 = vld [vmem:[#allocation2 + $0x150] sm:$0xff]
      %v430 = vld [vmem:[#allocation2 + $0x158] sm:$0xff]
      %v431 = vld [vmem:[#allocation2 + $0x160] sm:$0xff]
      %v432 = vld [vmem:[#allocation2 + $0x168] sm:$0xff]
      %v433 = vld [vmem:[#allocation2 + $0x170] sm:$0xff]
      %v434 = vld [vmem:[#allocation2 + $0x178] sm:$0xff]
      %v435 = vld [vmem:[#allocation2 + $0x180] sm:$0xff]
      %v436 = vld [vmem:[#allocation2 + $0x188] sm:$0xff]
      %v437 = vld [vmem:[#allocation2 + $0x190] sm:$0xff]
      %v438 = vld [vmem:[#allocation2 + $0x198] sm:$0xff]
      %v439 = vld [vmem:[#allocation2 + $0x1a0] sm:$0xff]
      %v440 = vld [vmem:[#allocation2 + $0x1a8] sm:$0xff]
      %v441 = vld [vmem:[#allocation2 + $0x1b0] sm:$0xff]
      %v442 = vld [vmem:[#allocation2 + $0x1b8] sm:$0xff]
      %v443 = vld [vmem:[#allocation2 + $0x1c0] sm:$0xff]
      %v444 = vld [vmem:[#allocation2 + $0x1c8] sm:$0xff]
      %v445 = vld [vmem:[#allocation2 + $0x1d0] sm:$0xff]
      %v446 = vld [vmem:[#allocation2 + $0x1d8] sm:$0xff]
      %v447 = vld [vmem:[#allocation2 + $0x1e0] sm:$0xff]
      %v448 = vld [vmem:[#allocation2 + $0x1e8] sm:$0xff]
      %v449 = vld [vmem:[#allocation2 + $0x1f0] sm:$0xff]
      %v450 = vld [vmem:[#allocation2 + $0x1f8] sm:$0xff]
      %v451 = vld [vmem:[#allocation2 + $0x200] sm:$0xff]
      %v452 = vld [vmem:[#allocation2 + $0x208] sm:$0xff]
      %v453 = vld [vmem:[#allocation2 + $0x210] sm:$0xff]
      %v454 = vld [vmem:[#allocation2 + $0x218] sm:$0xff]
      %v455 = vld [vmem:[#allocation2 + $0x220] sm:$0xff]
      %v456 = vld [vmem:[#allocation2 + $0x228] sm:$0xff]
      %v457 = vld [vmem:[#allocation2 + $0x230] sm:$0xff]
      %v458 = vld [vmem:[#allocation2 + $0x238] sm:$0xff]
      %v459 = vld [vmem:[#allocation2 + $0x240] sm:$0xff]
      %v460 = vld [vmem:[#allocation2 + $0x248] sm:$0xff]
      %v461 = vld [vmem:[#allocation2 + $0x250] sm:$0xff]
      %v462 = vld [vmem:[#allocation2 + $0x258] sm:$0xff]
      %v463 = vld [vmem:[#allocation2 + $0x260] sm:$0xff]
      %v464 = vld [vmem:[#allocation2 + $0x268] sm:$0xff]
      %v465 = vld [vmem:[#allocation2 + $0x270] sm:$0xff]
      %v466 = vld [vmem:[#allocation2 + $0x278] sm:$0xff]
      %v467 = vld [vmem:[#allocation2 + $0x280] sm:$0xff]
      %v468 = vld [vmem:[#allocation2 + $0x288] sm:$0xff]
      %v469 = vld [vmem:[#allocation2 + $0x290] sm:$0xff]
      %v470 = vld [vmem:[#allocation2 + $0x298] sm:$0xff]
      %v471 = vld [vmem:[#allocation2 + $0x2a0] sm:$0xff]
      %v472 = vld [vmem:[#allocation2 + $0x2a8] sm:$0xff]
      %v473 = vld [vmem:[#allocation2 + $0x2b0] sm:$0xff]
      %v474 = vld [vmem:[#allocation2 + $0x2b8] sm:$0xff]
      %v475 = vld [vmem:[#allocation2 + $0x2c0] sm:$0xff]
      %v476 = vld [vmem:[#allocation2 + $0x2c8] sm:$0xff]
      %v477 = vld [vmem:[#allocation2 + $0x2d0] sm:$0xff]
      %v478 = vld [vmem:[#allocation2 + $0x2d8] sm:$0xff]
      %v479 = vld [vmem:[#allocation2 + $0x2e0] sm:$0xff]
      %v480 = vld [vmem:[#allocation2 + $0x2e8] sm:$0xff]
      %v481 = vld [vmem:[#allocation2 + $0x2f0] sm:$0xff]
      %v482 = vld [vmem:[#allocation2 + $0x2f8] sm:$0xff]
      %v483 = vld [vmem:[#allocation2 + $0x300] sm:$0xff]
      %v484 = vld [vmem:[#allocation2 + $0x308] sm:$0xff]
      %v485 = vld [vmem:[#allocation2 + $0x310] sm:$0xff]
      %v486 = vld [vmem:[#allocation2 + $0x318] sm:$0xff]
      %v487 = vld [vmem:[#allocation2 + $0x320] sm:$0xff]
      %v488 = vld [vmem:[#allocation2 + $0x328] sm:$0xff]
      %v489 = vld [vmem:[#allocation2 + $0x330] sm:$0xff]
      %v490 = vld [vmem:[#allocation2 + $0x338] sm:$0xff]
      %v491 = vld [vmem:[#allocation2 + $0x340] sm:$0xff]
      %v492 = vld [vmem:[#allocation2 + $0x348] sm:$0xff]
      %v493 = vld [vmem:[#allocation2 + $0x350] sm:$0xff]
      %v494 = vld [vmem:[#allocation2 + $0x358] sm:$0xff]
      %v495 = vld [vmem:[#allocation2 + $0x360] sm:$0xff]
      %v496 = vld [vmem:[#allocation2 + $0x368] sm:$0xff]
      %v497 = vld [vmem:[#allocation2 + $0x370] sm:$0xff]
      %v498 = vld [vmem:[#allocation2 + $0x378] sm:$0xff]
      %v499 = vld [vmem:[#allocation2 + $0x380] sm:$0xff]
      %v500 = vld [vmem:[#allocation2 + $0x388] sm:$0xff]
      %v501 = vld [vmem:[#allocation2 + $0x390] sm:$0xff]
      %v502 = vld [vmem:[#allocation2 + $0x398] sm:$0xff]
      %v503 = vld [vmem:[#allocation2 + $0x3a0] sm:$0xff]
      %v504 = vld [vmem:[#allocation2 + $0x3a8] sm:$0xff]
      %v505 = vld [vmem:[#allocation2 + $0x3b0] sm:$0xff]
      %v506 = vld [vmem:[#allocation2 + $0x3b8] sm:$0xff]
      %v507 = vld [vmem:[#allocation2 + $0x3c0] sm:$0xff]
      %v508 = vld [vmem:[#allocation2 + $0x3c8] sm:$0xff]
      %v509 = vld [vmem:[#allocation2 + $0x3d0] sm:$0xff]
      %v510 = vld [vmem:[#allocation2 + $0x3d8] sm:$0xff]
      %v511 = vld [vmem:[#allocation2 + $0x3e0] sm:$0xff]
      %v512 = vld [vmem:[#allocation2 + $0x3e8] sm:$0xff]
      %v513 = vld [vmem:[#allocation2 + $0x3f0] sm:$0xff]
      %v514 = vld [vmem:[#allocation2 + $0x3f8] sm:$0xff]
      %v515 = vld [vmem:[%s233] sm:$0xf]
      %v516 = vld [vmem:[%s233 + $0x4] sm:$0xf]
      %v517 = vld [vmem:[%s233 + $0x8] sm:$0xf]
      %v518 = vld [vmem:[%s233 + $0xc] sm:$0xf]
      %v519 = vld [vmem:[%s233 + $0x10] sm:$0xf]
      %v520 = vld [vmem:[%s233 + $0x14] sm:$0xf]
      %v521 = vld [vmem:[%s233 + $0x18] sm:$0xf]
      %v522 = vld [vmem:[%s233 + $0x1c] sm:$0xf]
      %v523 = vld [vmem:[%s233 + $0x20] sm:$0xf]
      %v524 = vld [vmem:[%s233 + $0x24] sm:$0xf]
      %v525 = vld [vmem:[%s233 + $0x28] sm:$0xf]
      %v526 = vld [vmem:[%s233 + $0x2c] sm:$0xf]
      %v527 = vld [vmem:[%s233 + $0x30] sm:$0xf]
      %v528 = vld [vmem:[%s233 + $0x34] sm:$0xf]
      %v529 = vld [vmem:[%s233 + $0x38] sm:$0xf]
      %v530 = vld [vmem:[%s233 + $0x3c] sm:$0xf]
      %v531 = vld [vmem:[%s233 + $0x40] sm:$0xf]
      %v532 = vld [vmem:[%s233 + $0x44] sm:$0xf]
      %v533 = vld [vmem:[%s233 + $0x48] sm:$0xf]
      %v534 = vld [vmem:[%s233 + $0x4c] sm:$0xf]
      %v535 = vld [vmem:[%s233 + $0x50] sm:$0xf]
      %v536 = vld [vmem:[%s233 + $0x54] sm:$0xf]
      %v537 = vld [vmem:[%s233 + $0x58] sm:$0xf]
      %v538 = vld [vmem:[%s233 + $0x5c] sm:$0xf]
      %v539 = vld [vmem:[%s233 + $0x60] sm:$0xf]
      %v540 = vld [vmem:[%s233 + $0x64] sm:$0xf]
      %v541 = vld [vmem:[%s233 + $0x68] sm:$0xf]
      %v542 = vld [vmem:[%s233 + $0x6c] sm:$0xf]
      %v543 = vld [vmem:[%s233 + $0x70] sm:$0xf]
      %v544 = vld [vmem:[%s233 + $0x74] sm:$0xf]
      %v545 = vld [vmem:[%s233 + $0x78] sm:$0xf]
      %v546 = vld [vmem:[%s233 + $0x7c] sm:$0xf]
      %v547 = vld [vmem:[%s233 + $0x80] sm:$0xf]
      %v548 = vld [vmem:[%s233 + $0x84] sm:$0xf]
      %v549 = vld [vmem:[%s233 + $0x88] sm:$0xf]
      %v550 = vld [vmem:[%s233 + $0x8c] sm:$0xf]
      %v551 = vld [vmem:[%s233 + $0x90] sm:$0xf]
      %v552 = vld [vmem:[%s233 + $0x94] sm:$0xf]
      %v553 = vld [vmem:[%s233 + $0x98] sm:$0xf]
      %v554 = vld [vmem:[%s233 + $0x9c] sm:$0xf]
      %v555 = vld [vmem:[%s233 + $0xa0] sm:$0xf]
      %v556 = vld [vmem:[%s233 + $0xa4] sm:$0xf]
      %v557 = vld [vmem:[%s233 + $0xa8] sm:$0xf]
      %v558 = vld [vmem:[%s233 + $0xac] sm:$0xf]
      %v559 = vld [vmem:[%s233 + $0xb0] sm:$0xf]
      %v560 = vld [vmem:[%s233 + $0xb4] sm:$0xf]
      %v561 = vld [vmem:[%s233 + $0xb8] sm:$0xf]
      %v562 = vld [vmem:[%s233 + $0xbc] sm:$0xf]
      %v563 = vld [vmem:[%s233 + $0xc0] sm:$0xf]
      %v564 = vld [vmem:[%s233 + $0xc4] sm:$0xf]
      %v565 = vld [vmem:[%s233 + $0xc8] sm:$0xf]
      %v566 = vld [vmem:[%s233 + $0xcc] sm:$0xf]
      %v567 = vld [vmem:[%s233 + $0xd0] sm:$0xf]
      %v568 = vld [vmem:[%s233 + $0xd4] sm:$0xf]
      %v569 = vld [vmem:[%s233 + $0xd8] sm:$0xf]
      %v570 = vld [vmem:[%s233 + $0xdc] sm:$0xf]
      %v571 = vld [vmem:[%s233 + $0xe0] sm:$0xf]
      %v572 = vld [vmem:[%s233 + $0xe4] sm:$0xf]
      %v573 = vld [vmem:[%s233 + $0xe8] sm:$0xf]
      %v574 = vld [vmem:[%s233 + $0xec] sm:$0xf]
      %v575 = vld [vmem:[%s233 + $0xf0] sm:$0xf]
      %v576 = vld [vmem:[%s233 + $0xf4] sm:$0xf]
      %v577 = vld [vmem:[%s233 + $0xf8] sm:$0xf]
      %v578 = vld [vmem:[%s233 + $0xfc] sm:$0xf]
      %v579 = vld [vmem:[%s233 + $0x100] sm:$0xf]
      %v580 = vld [vmem:[%s233 + $0x104] sm:$0xf]
      %v581 = vld [vmem:[%s233 + $0x108] sm:$0xf]
      %v582 = vld [vmem:[%s233 + $0x10c] sm:$0xf]
      %v583 = vld [vmem:[%s233 + $0x110] sm:$0xf]
      %v584 = vld [vmem:[%s233 + $0x114] sm:$0xf]
      %v585 = vld [vmem:[%s233 + $0x118] sm:$0xf]
      %v586 = vld [vmem:[%s233 + $0x11c] sm:$0xf]
      %v587 = vld [vmem:[%s233 + $0x120] sm:$0xf]
      %v588 = vld [vmem:[%s233 + $0x124] sm:$0xf]
      %v589 = vld [vmem:[%s233 + $0x128] sm:$0xf]
      %v590 = vld [vmem:[%s233 + $0x12c] sm:$0xf]
      %v591 = vld [vmem:[%s233 + $0x130] sm:$0xf]
      %v592 = vld [vmem:[%s233 + $0x134] sm:$0xf]
      %v593 = vld [vmem:[%s233 + $0x138] sm:$0xf]
      %v594 = vld [vmem:[%s233 + $0x13c] sm:$0xf]
      %v595 = vld [vmem:[%s233 + $0x140] sm:$0xf]
      %v596 = vld [vmem:[%s233 + $0x144] sm:$0xf]
      %v597 = vld [vmem:[%s233 + $0x148] sm:$0xf]
      %v598 = vld [vmem:[%s233 + $0x14c] sm:$0xf]
      %v599 = vld [vmem:[%s233 + $0x150] sm:$0xf]
      %v600 = vld [vmem:[%s233 + $0x154] sm:$0xf]
      %v601 = vld [vmem:[%s233 + $0x158] sm:$0xf]
      %v602 = vld [vmem:[%s233 + $0x15c] sm:$0xf]
      %v603 = vld [vmem:[%s233 + $0x160] sm:$0xf]
      %v604 = vld [vmem:[%s233 + $0x164] sm:$0xf]
      %v605 = vld [vmem:[%s233 + $0x168] sm:$0xf]
      %v606 = vld [vmem:[%s233 + $0x16c] sm:$0xf]
      %v607 = vld [vmem:[%s233 + $0x170] sm:$0xf]
      %v608 = vld [vmem:[%s233 + $0x174] sm:$0xf]
      %v609 = vld [vmem:[%s233 + $0x178] sm:$0xf]
      %v610 = vld [vmem:[%s233 + $0x17c] sm:$0xf]
      %v611 = vld [vmem:[%s233 + $0x180] sm:$0xf]
      %v612 = vld [vmem:[%s233 + $0x184] sm:$0xf]
      %v613 = vld [vmem:[%s233 + $0x188] sm:$0xf]
      %v614 = vld [vmem:[%s233 + $0x18c] sm:$0xf]
      %v615 = vld [vmem:[%s233 + $0x190] sm:$0xf]
      %v616 = vld [vmem:[%s233 + $0x194] sm:$0xf]
      %v617 = vld [vmem:[%s233 + $0x198] sm:$0xf]
      %v618 = vld [vmem:[%s233 + $0x19c] sm:$0xf]
      %v619 = vld [vmem:[%s233 + $0x1a0] sm:$0xf]
      %v620 = vld [vmem:[%s233 + $0x1a4] sm:$0xf]
      %v621 = vld [vmem:[%s233 + $0x1a8] sm:$0xf]
      %v622 = vld [vmem:[%s233 + $0x1ac] sm:$0xf]
      %v623 = vld [vmem:[%s233 + $0x1b0] sm:$0xf]
      %v624 = vld [vmem:[%s233 + $0x1b4] sm:$0xf]
      %v625 = vld [vmem:[%s233 + $0x1b8] sm:$0xf]
      %v626 = vld [vmem:[%s233 + $0x1bc] sm:$0xf]
      %v627 = vld [vmem:[%s233 + $0x1c0] sm:$0xf]
      %v628 = vld [vmem:[%s233 + $0x1c4] sm:$0xf]
      %v629 = vld [vmem:[%s233 + $0x1c8] sm:$0xf]
      %v630 = vld [vmem:[%s233 + $0x1cc] sm:$0xf]
      %v631 = vld [vmem:[%s233 + $0x1d0] sm:$0xf]
      %v632 = vld [vmem:[%s233 + $0x1d4] sm:$0xf]
      %v633 = vld [vmem:[%s233 + $0x1d8] sm:$0xf]
      %v634 = vld [vmem:[%s233 + $0x1dc] sm:$0xf]
      %v635 = vld [vmem:[%s233 + $0x1e0] sm:$0xf]
      %v636 = vld [vmem:[%s233 + $0x1e4] sm:$0xf]
      %v637 = vld [vmem:[%s233 + $0x1e8] sm:$0xf]
      %v638 = vld [vmem:[%s233 + $0x1ec] sm:$0xf]
      %v639 = vld [vmem:[%s233 + $0x1f0] sm:$0xf]
      %v640 = vld [vmem:[%s233 + $0x1f4] sm:$0xf]
      %v641 = vld [vmem:[%s233 + $0x1f8] sm:$0xf]
      %v642 = vld [vmem:[%s233 + $0x1fc] sm:$0xf]
      %v643 = vld [vmem:[%s241] sm:$0xf]
      %v772 = vunpack.c.l.b16 %v515
      %v773 = vunpack.c.l.b16 %v516
      %v774 = vunpack.c.l.b16 %v517
      %v775 = vunpack.c.l.b16 %v518
      %v776 = vunpack.c.l.b16 %v519
      %v777 = vunpack.c.l.b16 %v520
      %v778 = vunpack.c.l.b16 %v521
      %v779 = vunpack.c.l.b16 %v522
      %v780 = vunpack.c.l.b16 %v523
      %v781 = vunpack.c.l.b16 %v524
      %v782 = vunpack.c.l.b16 %v525
      %v783 = vunpack.c.l.b16 %v526
      %v784 = vunpack.c.l.b16 %v527
      %v785 = vunpack.c.l.b16 %v528
      %v786 = vunpack.c.l.b16 %v529
      %v787 = vunpack.c.l.b16 %v530
      %v788 = vunpack.c.l.b16 %v531
      %v789 = vunpack.c.l.b16 %v532
      %v790 = vunpack.c.l.b16 %v533
      %v791 = vunpack.c.l.b16 %v534
      %v792 = vunpack.c.l.b16 %v535
      %v793 = vunpack.c.l.b16 %v536
      %v794 = vunpack.c.l.b16 %v537
      %v795 = vunpack.c.l.b16 %v538
      %v796 = vunpack.c.l.b16 %v539
      %v797 = vunpack.c.l.b16 %v540
      %v798 = vunpack.c.l.b16 %v541
      %v799 = vunpack.c.l.b16 %v542
      %v800 = vunpack.c.l.b16 %v543
      %v801 = vunpack.c.l.b16 %v544
      %v802 = vunpack.c.l.b16 %v545
      %v803 = vunpack.c.l.b16 %v546
      %v804 = vunpack.c.l.b16 %v547
      %v805 = vunpack.c.l.b16 %v548
      %v806 = vunpack.c.l.b16 %v549
      %v807 = vunpack.c.l.b16 %v550
      %v808 = vunpack.c.l.b16 %v551
      %v809 = vunpack.c.l.b16 %v552
      %v810 = vunpack.c.l.b16 %v553
      %v811 = vunpack.c.l.b16 %v554
      %v812 = vunpack.c.l.b16 %v555
      %v813 = vunpack.c.l.b16 %v556
      %v814 = vunpack.c.l.b16 %v557
      %v815 = vunpack.c.l.b16 %v558
      %v816 = vunpack.c.l.b16 %v559
      %v817 = vunpack.c.l.b16 %v560
      %v818 = vunpack.c.l.b16 %v561
      %v819 = vunpack.c.l.b16 %v562
      %v820 = vunpack.c.l.b16 %v563
      %v821 = vunpack.c.l.b16 %v564
      %v822 = vunpack.c.l.b16 %v565
      %v823 = vunpack.c.l.b16 %v566
      %v824 = vunpack.c.l.b16 %v567
      %v825 = vunpack.c.l.b16 %v568
      %v826 = vunpack.c.l.b16 %v569
      %v827 = vunpack.c.l.b16 %v570
      %v828 = vunpack.c.l.b16 %v571
      %v829 = vunpack.c.l.b16 %v572
      %v830 = vunpack.c.l.b16 %v573
      %v831 = vunpack.c.l.b16 %v574
      %v832 = vunpack.c.l.b16 %v575
      %v833 = vunpack.c.l.b16 %v576
      %v834 = vunpack.c.l.b16 %v577
      %v835 = vunpack.c.l.b16 %v578
      %v836 = vunpack.c.l.b16 %v579
      %v837 = vunpack.c.l.b16 %v580
      %v838 = vunpack.c.l.b16 %v581
      %v839 = vunpack.c.l.b16 %v582
      %v840 = vunpack.c.l.b16 %v583
      %v841 = vunpack.c.l.b16 %v584
      %v842 = vunpack.c.l.b16 %v585
      %v843 = vunpack.c.l.b16 %v586
      %v844 = vunpack.c.l.b16 %v587
      %v845 = vunpack.c.l.b16 %v588
      %v846 = vunpack.c.l.b16 %v589
      %v847 = vunpack.c.l.b16 %v590
      %v848 = vunpack.c.l.b16 %v591
      %v849 = vunpack.c.l.b16 %v592
      %v850 = vunpack.c.l.b16 %v593
      %v851 = vunpack.c.l.b16 %v594
      %v852 = vunpack.c.l.b16 %v595
      %v853 = vunpack.c.l.b16 %v596
      %v854 = vunpack.c.l.b16 %v597
      %v855 = vunpack.c.l.b16 %v598
      %v856 = vunpack.c.l.b16 %v599
      %v857 = vunpack.c.l.b16 %v600
      %v858 = vunpack.c.l.b16 %v601
      %v859 = vunpack.c.l.b16 %v602
      %v860 = vunpack.c.l.b16 %v603
      %v861 = vunpack.c.l.b16 %v604
      %v862 = vunpack.c.l.b16 %v605
      %v863 = vunpack.c.l.b16 %v606
      %v864 = vunpack.c.l.b16 %v607
      %v865 = vunpack.c.l.b16 %v608
      %v866 = vunpack.c.l.b16 %v609
      %v867 = vunpack.c.l.b16 %v610
      %v868 = vunpack.c.l.b16 %v611
      %v869 = vunpack.c.l.b16 %v612
      %v870 = vunpack.c.l.b16 %v613
      %v871 = vunpack.c.l.b16 %v614
      %v872 = vunpack.c.l.b16 %v615
      %v873 = vunpack.c.l.b16 %v616
      %v874 = vunpack.c.l.b16 %v617
      %v875 = vunpack.c.l.b16 %v618
      %v876 = vunpack.c.l.b16 %v619
      %v877 = vunpack.c.l.b16 %v620
      %v878 = vunpack.c.l.b16 %v621
      %v879 = vunpack.c.l.b16 %v622
      %v880 = vunpack.c.l.b16 %v623
      %v881 = vunpack.c.l.b16 %v624
      %v882 = vunpack.c.l.b16 %v625
      %v883 = vunpack.c.l.b16 %v626
      %v884 = vunpack.c.l.b16 %v627
      %v885 = vunpack.c.l.b16 %v628
      %v886 = vunpack.c.l.b16 %v629
      %v887 = vunpack.c.l.b16 %v630
      %v888 = vunpack.c.l.b16 %v631
      %v889 = vunpack.c.l.b16 %v632
      %v890 = vunpack.c.l.b16 %v633
      %v891 = vunpack.c.l.b16 %v634
      %v892 = vunpack.c.l.b16 %v635
      %v893 = vunpack.c.l.b16 %v636
      %v894 = vunpack.c.l.b16 %v637
      %v895 = vunpack.c.l.b16 %v638
      %v896 = vunpack.c.l.b16 %v639
      %v897 = vunpack.c.l.b16 %v640
      %v898 = vunpack.c.l.b16 %v641
      %v899 = vunpack.c.l.b16 %v642
      %v900 = vpack.c.b16 %v773, %v772
      %v901 = vpack.c.b16 %v775, %v774
      %v902 = vpack.c.b16 %v777, %v776
      %v903 = vpack.c.b16 %v779, %v778
      %v904 = vpack.c.b16 %v781, %v780
      %v905 = vpack.c.b16 %v783, %v782
      %v906 = vpack.c.b16 %v785, %v784
      %v907 = vpack.c.b16 %v787, %v786
      %v908 = vpack.c.b16 %v789, %v788
      %v909 = vpack.c.b16 %v791, %v790
      %v910 = vpack.c.b16 %v793, %v792
      %v911 = vpack.c.b16 %v795, %v794
      %v912 = vpack.c.b16 %v797, %v796
      %v913 = vpack.c.b16 %v799, %v798
      %v914 = vpack.c.b16 %v801, %v800
      %v915 = vpack.c.b16 %v803, %v802
      %v916 = vpack.c.b16 %v805, %v804
      %v917 = vpack.c.b16 %v807, %v806
      %v918 = vpack.c.b16 %v809, %v808
      %v919 = vpack.c.b16 %v811, %v810
      %v920 = vpack.c.b16 %v813, %v812
      %v921 = vpack.c.b16 %v815, %v814
      %v922 = vpack.c.b16 %v817, %v816
      %v923 = vpack.c.b16 %v819, %v818
      %v924 = vpack.c.b16 %v821, %v820
      %v925 = vpack.c.b16 %v823, %v822
      %v926 = vpack.c.b16 %v825, %v824
      %v927 = vpack.c.b16 %v827, %v826
      %v928 = vpack.c.b16 %v829, %v828
      %v929 = vpack.c.b16 %v831, %v830
      %v930 = vpack.c.b16 %v833, %v832
      %v931 = vpack.c.b16 %v835, %v834
      %v932 = vpack.c.b16 %v837, %v836
      %v933 = vpack.c.b16 %v839, %v838
      %v934 = vpack.c.b16 %v841, %v840
      %v935 = vpack.c.b16 %v843, %v842
      %v936 = vpack.c.b16 %v845, %v844
      %v937 = vpack.c.b16 %v847, %v846
      %v938 = vpack.c.b16 %v849, %v848
      %v939 = vpack.c.b16 %v851, %v850
      %v940 = vpack.c.b16 %v853, %v852
      %v941 = vpack.c.b16 %v855, %v854
      %v942 = vpack.c.b16 %v857, %v856
      %v943 = vpack.c.b16 %v859, %v858
      %v944 = vpack.c.b16 %v861, %v860
      %v945 = vpack.c.b16 %v863, %v862
      %v946 = vpack.c.b16 %v865, %v864
      %v947 = vpack.c.b16 %v867, %v866
      %v948 = vpack.c.b16 %v869, %v868
      %v949 = vpack.c.b16 %v871, %v870
      %v950 = vpack.c.b16 %v873, %v872
      %v951 = vpack.c.b16 %v875, %v874
      %v952 = vpack.c.b16 %v877, %v876
      %v953 = vpack.c.b16 %v879, %v878
      %v954 = vpack.c.b16 %v881, %v880
      %v955 = vpack.c.b16 %v883, %v882
      %v956 = vpack.c.b16 %v885, %v884
      %v957 = vpack.c.b16 %v887, %v886
      %v958 = vpack.c.b16 %v889, %v888
      %v959 = vpack.c.b16 %v891, %v890
      %v960 = vpack.c.b16 %v893, %v892
      %v961 = vpack.c.b16 %v895, %v894
      %v962 = vpack.c.b16 %v897, %v896
      %v963 = vpack.c.b16 %v899, %v898
      %vm964 = vcmask 64512
      %v966 = vsel %vm964, %v900, 0
      %v969 = vsel %vm964, %v901, 0
      %v972 = vsel %vm964, %v902, 0
      %v975 = vsel %vm964, %v903, 0
      %v978 = vsel %vm964, %v904, 0
      %v981 = vsel %vm964, %v905, 0
      %v984 = vsel %vm964, %v906, 0
      %v987 = vsel %vm964, %v907, 0
      %v990 = vsel %vm964, %v908, 0
      %v993 = vsel %vm964, %v909, 0
      %v996 = vsel %vm964, %v910, 0
      %v999 = vsel %vm964, %v911, 0
      %v1002 = vsel %vm964, %v912, 0
      %v1005 = vsel %vm964, %v913, 0
      %v1008 = vsel %vm964, %v914, 0
      %v1011 = vsel %vm964, %v915, 0
      %v1014 = vsel %vm964, %v916, 0
      %v1017 = vsel %vm964, %v917, 0
      %v1020 = vsel %vm964, %v918, 0
      %v1023 = vsel %vm964, %v919, 0
      %v1026 = vsel %vm964, %v920, 0
      %v1029 = vsel %vm964, %v921, 0
      %v1032 = vsel %vm964, %v922, 0
      %v1035 = vsel %vm964, %v923, 0
      %v1038 = vsel %vm964, %v924, 0
      %v1041 = vsel %vm964, %v925, 0
      %v1044 = vsel %vm964, %v926, 0
      %v1047 = vsel %vm964, %v927, 0
      %v1050 = vsel %vm964, %v928, 0
      %v1053 = vsel %vm964, %v929, 0
      %v1056 = vsel %vm964, %v930, 0
      %v1059 = vsel %vm964, %v931, 0
      %v1062 = vsel %vm964, %v932, 0
      %v1065 = vsel %vm964, %v933, 0
      %v1068 = vsel %vm964, %v934, 0
      %v1071 = vsel %vm964, %v935, 0
      %v1074 = vsel %vm964, %v936, 0
      %v1077 = vsel %vm964, %v937, 0
      %v1080 = vsel %vm964, %v938, 0
      %v1083 = vsel %vm964, %v939, 0
      %v1086 = vsel %vm964, %v940, 0
      %v1089 = vsel %vm964, %v941, 0
      %v1092 = vsel %vm964, %v942, 0
      %v1095 = vsel %vm964, %v943, 0
      %v1098 = vsel %vm964, %v944, 0
      %v1101 = vsel %vm964, %v945, 0
      %v1104 = vsel %vm964, %v946, 0
      %v1107 = vsel %vm964, %v947, 0
      %v1110 = vsel %vm964, %v948, 0
      %v1113 = vsel %vm964, %v949, 0
      %v1116 = vsel %vm964, %v950, 0
      %v1119 = vsel %vm964, %v951, 0
      %v1122 = vsel %vm964, %v952, 0
      %v1125 = vsel %vm964, %v953, 0
      %v1128 = vsel %vm964, %v954, 0
      %v1131 = vsel %vm964, %v955, 0
      %v1134 = vsel %vm964, %v956, 0
      %v1137 = vsel %vm964, %v957, 0
      %v1140 = vsel %vm964, %v958, 0
      %v1143 = vsel %vm964, %v959, 0
      %v1146 = vsel %vm964, %v960, 0
      %v1149 = vsel %vm964, %v961, 0
      %v1152 = vsel %vm964, %v962, 0
      %v1155 = vsel %vm964, %v963, 0
      %vm1157 = vcmask 1043456
      %v1159 = vsel %vm1157, %v643, 0
      %1161 = vmatprep.subr.bf16.mxu0 0
      %1162 = vmatpush1.bf16.msra.mxu0 %v1159
      %1163 = vmatprep.subr.bf16.mxu0 0
      %1164 = vmatpush1.bf16.msra.mxu0 0
      %1165 = vmatprep.subr.bf16.mxu0 0
      %1166 = vmatpush1.bf16.msra.mxu0 0
      %1167 = vmatprep.subr.bf16.mxu0 0
      %1168 = vmatpush1.bf16.msra.mxu0 0
      %1169 = vmatprep.subr.bf16.mxu0 0
      %1170 = vmatpush1.bf16.msra.mxu0 0
      %1171 = vmatprep.subr.bf16.mxu0 0
      %1172 = vmatpush1.bf16.msra.mxu0 0
      %1173 = vmatprep.subr.bf16.mxu0 0
      %1174 = vmatpush1.bf16.msra.mxu0 0
      %1175 = vmatprep.subr.bf16.mxu0 0
      %1176 = vmatpush1.bf16.msra.mxu0 0
      %1177 = vmatprep.subr.bf16.mxu0 0
      %1178 = vmatpush1.bf16.msra.mxu0 0
      %1179 = vmatprep.subr.bf16.mxu0 0
      %1180 = vmatpush1.bf16.msra.mxu0 0
      %1181 = vmatprep.subr.bf16.mxu0 0
      %1182 = vmatpush1.bf16.msra.mxu0 0
      %1183 = vmatprep.subr.bf16.mxu0 0
      %1184 = vmatpush1.bf16.msra.mxu0 0
      %1185 = vmatprep.subr.bf16.mxu0 0
      %1186 = vmatpush1.bf16.msra.mxu0 0
      %1187 = vmatprep.subr.bf16.mxu0 0
      %1188 = vmatpush1.bf16.msra.mxu0 0
      %1189 = vmatprep.subr.bf16.mxu0 0
      %1190 = vmatpush1.bf16.msra.mxu0 0
      %1191 = vmatprep.subr.bf16.mxu0 0
      %1192 = vmatpush1.bf16.msra.mxu0 0
      %1193 = vmatprep.mubr.bf16.mxu0 0
      %1194 = vmatmul.mubr.bf16.gmra.mrb[0].mxu0 %v966
      %v1195 = vpop.f32.mrb[0].mxu0
      %v1196 = vadd.f32 0.0, %v1195
      %v1197 = vpop.f32.mrb[0].mxu0
      %v1198 = vpop.f32.mrb[0].mxu0
      %v1199 = vadd.f32 0.0, %v1198
      %v1200 = vpop.f32.mrb[0].mxu0
      %1201 = vmatprep.mubr.bf16.mxu0 0
      %1202 = vmatmul.mubr.bf16.gmra.mrb[0].mxu0 %v969
      %v1203 = vpop.f32.mrb[0].mxu0
      %v1204 = vadd.f32 0.0, %v1203
      %v1205 = vpop.f32.mrb[0].mxu0
      %v1206 = vpop.f32.mrb[0].mxu0
      %v1207 = vadd.f32 0.0, %v1206
      %v1208 = vpop.f32.mrb[0].mxu0
      %1209 = vmatprep.mubr.bf16.mxu0 0
      %1210 = vmatmul.mubr.bf16.gmra.mrb[0].mxu0 %v972
      %v1211 = vpop.f32.mrb[0].mxu0
      %v1212 = vadd.f32 0.0, %v1211
      %v1213 = vpop.f32.mrb[0].mxu0
      %v1214 = vpop.f32.mrb[0].mxu0
      %v1215 = vadd.f32 0.0, %v1214
      %v1216 = vpop.f32.mrb[0].mxu0
      %1217 = vmatprep.mubr.bf16.mxu0 0
      %1218 = vmatmul.mubr.bf16.gmra.mrb[0].mxu0 %v975
      %v1219 = vpop.f32.mrb[0].mxu0
      %v1220 = vadd.f32 0.0, %v1219
      %v1221 = vpop.f32.mrb[0].mxu0
      %v1222 = vpop.f32.mrb[0].mxu0
      %v1223 = vadd.f32 0.0, %v1222
      %v1224 = vpop.f32.mrb[0].mxu0
      %1225 = vmatprep.mubr.bf16.mxu0 0
      %1226 = vmatmul.mubr.bf16.gmra.mrb[0].mxu0 %v978
      %v1227 = vpop.f32.mrb[0].mxu0
      %v1228 = vadd.f32 0.0, %v1227
      %v1229 = vpop.f32.mrb[0].mxu0
      %v1230 = vpop.f32.mrb[0].mxu0
      %v1231 = vadd.f32 0.0, %v1230
      %v1232 = vpop.f32.mrb[0].mxu0
      %1233 = vmatprep.mubr.bf16.mxu0 0
      %1234 = vmatmul.mubr.bf16.gmra.mrb[0].mxu0 %v981
      %v1235 = vpop.f32.mrb[0].mxu0
      %v1236 = vadd.f32 0.0, %v1235
      %v1237 = vpop.f32.mrb[0].mxu0
      %v1238 = vpop.f32.mrb[0].mxu0
      %v1239 = vadd.f32 0.0, %v1238
      %v1240 = vpop.f32.mrb[0].mxu0
      %1241 = vmatprep.mubr.bf16.mxu0 0
      %1242 = vmatmul.mubr.bf16.gmra.mrb[0].mxu0 %v984
      %v1243 = vpop.f32.mrb[0].mxu0
      %v1244 = vadd.f32 0.0, %v1243
      %v1245 = vpop.f32.mrb[0].mxu0
      %v1246 = vpop.f32.mrb[0].mxu0
      %v1247 = vadd.f32 0.0, %v1246
      %v1248 = vpop.f32.mrb[0].mxu0
      %1249 = vmatprep.mubr.bf16.mxu0 0
      %1250 = vmatmul.mubr.bf16.gmra.mrb[0].mxu0 %v987
      %v1251 = vpop.f32.mrb[0].mxu0
      %v1252 = vadd.f32 0.0, %v1251
      %v1253 = vpop.f32.mrb[0].mxu0
      %v1254 = vpop.f32.mrb[0].mxu0
      %v1255 = vadd.f32 0.0, %v1254
      %v1256 = vpop.f32.mrb[0].mxu0
      %1257 = vmatprep.mubr.bf16.mxu0 0
      %1258 = vmatmul.mubr.bf16.gmra.mrb[0].mxu0 %v990
      %v1259 = vpop.f32.mrb[0].mxu0
      %v1260 = vadd.f32 0.0, %v1259
      %v1261 = vpop.f32.mrb[0].mxu0
      %v1262 = vpop.f32.mrb[0].mxu0
      %v1263 = vadd.f32 0.0, %v1262
      %v1264 = vpop.f32.mrb[0].mxu0
      %1265 = vmatprep.mubr.bf16.mxu0 0
      %1266 = vmatmul.mubr.bf16.gmra.mrb[0].mxu0 %v993
      %v1267 = vpop.f32.mrb[0].mxu0
      %v1268 = vadd.f32 0.0, %v1267
      %v1269 = vpop.f32.mrb[0].mxu0
      %v1270 = vpop.f32.mrb[0].mxu0
      %v1271 = vadd.f32 0.0, %v1270
      %v1272 = vpop.f32.mrb[0].mxu0
      %1273 = vmatprep.mubr.bf16.mxu0 0
      %1274 = vmatmul.mubr.bf16.gmra.mrb[0].mxu0 %v996
      %v1275 = vpop.f32.mrb[0].mxu0
      %v1276 = vadd.f32 0.0, %v1275
      %v1277 = vpop.f32.mrb[0].mxu0
      %v1278 = vpop.f32.mrb[0].mxu0
      %v1279 = vadd.f32 0.0, %v1278
      %v1280 = vpop.f32.mrb[0].mxu0
      %1281 = vmatprep.mubr.bf16.mxu0 0
      %1282 = vmatmul.mubr.bf16.gmra.mrb[0].mxu0 %v999
      %v1283 = vpop.f32.mrb[0].mxu0
      %v1284 = vadd.f32 0.0, %v1283
      %v1285 = vpop.f32.mrb[0].mxu0
      %v1286 = vpop.f32.mrb[0].mxu0
      %v1287 = vadd.f32 0.0, %v1286
      %v1288 = vpop.f32.mrb[0].mxu0
      %1289 = vmatprep.mubr.bf16.mxu0 0
      %1290 = vmatmul.mubr.bf16.gmra.mrb[0].mxu0 %v1002
      %v1291 = vpop.f32.mrb[0].mxu0
      %v1292 = vadd.f32 0.0, %v1291
      %v1293 = vpop.f32.mrb[0].mxu0
      %v1294 = vpop.f32.mrb[0].mxu0
      %v1295 = vadd.f32 0.0, %v1294
      %v1296 = vpop.f32.mrb[0].mxu0
      %1297 = vmatprep.mubr.bf16.mxu0 0
      %1298 = vmatmul.mubr.bf16.gmra.mrb[0].mxu0 %v1005
      %v1299 = vpop.f32.mrb[0].mxu0
      %v1300 = vadd.f32 0.0, %v1299
      %v1301 = vpop.f32.mrb[0].mxu0
      %v1302 = vpop.f32.mrb[0].mxu0
      %v1303 = vadd.f32 0.0, %v1302
      %v1304 = vpop.f32.mrb[0].mxu0
      %1305 = vmatprep.mubr.bf16.mxu0 0
      %1306 = vmatmul.mubr.bf16.gmra.mrb[0].mxu0 %v1008
      %v1307 = vpop.f32.mrb[0].mxu0
      %v1308 = vadd.f32 0.0, %v1307
      %v1309 = vpop.f32.mrb[0].mxu0
      %v1310 = vpop.f32.mrb[0].mxu0
      %v1311 = vadd.f32 0.0, %v1310
      %v1312 = vpop.f32.mrb[0].mxu0
      %1313 = vmatprep.mubr.bf16.mxu0 0
      %1314 = vmatmul.mubr.bf16.gmra.mrb[0].mxu0 %v1011
      %v1315 = vpop.f32.mrb[0].mxu0
      %v1316 = vadd.f32 0.0, %v1315
      %v1317 = vpop.f32.mrb[0].mxu0
      %v1318 = vpop.f32.mrb[0].mxu0
      %v1319 = vadd.f32 0.0, %v1318
      %v1320 = vpop.f32.mrb[0].mxu0
      %1321 = vmatprep.mubr.bf16.mxu0 0
      %1322 = vmatmul.mubr.bf16.gmra.mrb[0].mxu0 %v1014
      %v1323 = vpop.f32.mrb[0].mxu0
      %v1324 = vadd.f32 0.0, %v1323
      %v1325 = vpop.f32.mrb[0].mxu0
      %v1326 = vpop.f32.mrb[0].mxu0
      %v1327 = vadd.f32 0.0, %v1326
      %v1328 = vpop.f32.mrb[0].mxu0
      %1329 = vmatprep.mubr.bf16.mxu0 0
      %1330 = vmatmul.mubr.bf16.gmra.mrb[0].mxu0 %v1017
      %v1331 = vpop.f32.mrb[0].mxu0
      %v1332 = vadd.f32 0.0, %v1331
      %v1333 = vpop.f32.mrb[0].mxu0
      %v1334 = vpop.f32.mrb[0].mxu0
      %v1335 = vadd.f32 0.0, %v1334
      %v1336 = vpop.f32.mrb[0].mxu0
      %1337 = vmatprep.mubr.bf16.mxu0 0
      %1338 = vmatmul.mubr.bf16.gmra.mrb[0].mxu0 %v1020
      %v1339 = vpop.f32.mrb[0].mxu0
      %v1340 = vadd.f32 0.0, %v1339
      %v1341 = vpop.f32.mrb[0].mxu0
      %v1342 = vpop.f32.mrb[0].mxu0
      %v1343 = vadd.f32 0.0, %v1342
      %v1344 = vpop.f32.mrb[0].mxu0
      %1345 = vmatprep.mubr.bf16.mxu0 0
      %1346 = vmatmul.mubr.bf16.gmra.mrb[0].mxu0 %v1023
      %v1347 = vpop.f32.mrb[0].mxu0
      %v1348 = vadd.f32 0.0, %v1347
      %v1349 = vpop.f32.mrb[0].mxu0
      %v1350 = vpop.f32.mrb[0].mxu0
      %v1351 = vadd.f32 0.0, %v1350
      %v1352 = vpop.f32.mrb[0].mxu0
      %1353 = vmatprep.mubr.bf16.mxu0 0
      %1354 = vmatmul.mubr.bf16.gmra.mrb[0].mxu0 %v1026
      %v1355 = vpop.f32.mrb[0].mxu0
      %v1356 = vadd.f32 0.0, %v1355
      %v1357 = vpop.f32.mrb[0].mxu0
      %v1358 = vpop.f32.mrb[0].mxu0
      %v1359 = vadd.f32 0.0, %v1358
      %v1360 = vpop.f32.mrb[0].mxu0
      %1361 = vmatprep.mubr.bf16.mxu0 0
      %1362 = vmatmul.mubr.bf16.gmra.mrb[0].mxu0 %v1029
      %v1363 = vpop.f32.mrb[0].mxu0
      %v1364 = vadd.f32 0.0, %v1363
      %v1365 = vpop.f32.mrb[0].mxu0
      %v1366 = vpop.f32.mrb[0].mxu0
      %v1367 = vadd.f32 0.0, %v1366
      %v1368 = vpop.f32.mrb[0].mxu0
      %1369 = vmatprep.mubr.bf16.mxu0 0
      %1370 = vmatmul.mubr.bf16.gmra.mrb[0].mxu0 %v1032
      %v1371 = vpop.f32.mrb[0].mxu0
      %v1372 = vadd.f32 0.0, %v1371
      %v1373 = vpop.f32.mrb[0].mxu0
      %v1374 = vpop.f32.mrb[0].mxu0
      %v1375 = vadd.f32 0.0, %v1374
      %v1376 = vpop.f32.mrb[0].mxu0
      %1377 = vmatprep.mubr.bf16.mxu0 0
      %1378 = vmatmul.mubr.bf16.gmra.mrb[0].mxu0 %v1035
      %v1379 = vpop.f32.mrb[0].mxu0
      %v1380 = vadd.f32 0.0, %v1379
      %v1381 = vpop.f32.mrb[0].mxu0
      %v1382 = vpop.f32.mrb[0].mxu0
      %v1383 = vadd.f32 0.0, %v1382
      %v1384 = vpop.f32.mrb[0].mxu0
      %1385 = vmatprep.mubr.bf16.mxu0 0
      %1386 = vmatmul.mubr.bf16.gmra.mrb[0].mxu0 %v1038
      %v1387 = vpop.f32.mrb[0].mxu0
      %v1388 = vadd.f32 0.0, %v1387
      %v1389 = vpop.f32.mrb[0].mxu0
      %v1390 = vpop.f32.mrb[0].mxu0
      %v1391 = vadd.f32 0.0, %v1390
      %v1392 = vpop.f32.mrb[0].mxu0
      %1393 = vmatprep.mubr.bf16.mxu0 0
      %1394 = vmatmul.mubr.bf16.gmra.mrb[0].mxu0 %v1041
      %v1395 = vpop.f32.mrb[0].mxu0
      %v1396 = vadd.f32 0.0, %v1395
      %v1397 = vpop.f32.mrb[0].mxu0
      %v1398 = vpop.f32.mrb[0].mxu0
      %v1399 = vadd.f32 0.0, %v1398
      %v1400 = vpop.f32.mrb[0].mxu0
      %1401 = vmatprep.mubr.bf16.mxu0 0
      %1402 = vmatmul.mubr.bf16.gmra.mrb[0].mxu0 %v1044
      %v1403 = vpop.f32.mrb[0].mxu0
      %v1404 = vadd.f32 0.0, %v1403
      %v1405 = vpop.f32.mrb[0].mxu0
      %v1406 = vpop.f32.mrb[0].mxu0
      %v1407 = vadd.f32 0.0, %v1406
      %v1408 = vpop.f32.mrb[0].mxu0
      %1409 = vmatprep.mubr.bf16.mxu0 0
      %1410 = vmatmul.mubr.bf16.gmra.mrb[0].mxu0 %v1047
      %v1411 = vpop.f32.mrb[0].mxu0
      %v1412 = vadd.f32 0.0, %v1411
      %v1413 = vpop.f32.mrb[0].mxu0
      %v1414 = vpop.f32.mrb[0].mxu0
      %v1415 = vadd.f32 0.0, %v1414
      %v1416 = vpop.f32.mrb[0].mxu0
      %1417 = vmatprep.mubr.bf16.mxu0 0
      %1418 = vmatmul.mubr.bf16.gmra.mrb[0].mxu0 %v1050
      %v1419 = vpop.f32.mrb[0].mxu0
      %v1420 = vadd.f32 0.0, %v1419
      %v1421 = vpop.f32.mrb[0].mxu0
      %v1422 = vpop.f32.mrb[0].mxu0
      %v1423 = vadd.f32 0.0, %v1422
      %v1424 = vpop.f32.mrb[0].mxu0
      %1425 = vmatprep.mubr.bf16.mxu0 0
      %1426 = vmatmul.mubr.bf16.gmra.mrb[0].mxu0 %v1053
      %v1427 = vpop.f32.mrb[0].mxu0
      %v1428 = vadd.f32 0.0, %v1427
      %v1429 = vpop.f32.mrb[0].mxu0
      %v1430 = vpop.f32.mrb[0].mxu0
      %v1431 = vadd.f32 0.0, %v1430
      %v1432 = vpop.f32.mrb[0].mxu0
      %1433 = vmatprep.mubr.bf16.mxu0 0
      %1434 = vmatmul.mubr.bf16.gmra.mrb[0].mxu0 %v1056
      %v1435 = vpop.f32.mrb[0].mxu0
      %v1436 = vadd.f32 0.0, %v1435
      %v1437 = vpop.f32.mrb[0].mxu0
      %v1438 = vpop.f32.mrb[0].mxu0
      %v1439 = vadd.f32 0.0, %v1438
      %v1440 = vpop.f32.mrb[0].mxu0
      %1441 = vmatprep.mubr.bf16.mxu0 0
      %1442 = vmatmul.mubr.bf16.gmra.mrb[0].mxu0 %v1059
      %v1443 = vpop.f32.mrb[0].mxu0
      %v1444 = vadd.f32 0.0, %v1443
      %v1445 = vpop.f32.mrb[0].mxu0
      %v1446 = vpop.f32.mrb[0].mxu0
      %v1447 = vadd.f32 0.0, %v1446
      %v1448 = vpop.f32.mrb[0].mxu0
      %1449 = vmatprep.mubr.bf16.mxu0 0
      %1450 = vmatmul.mubr.bf16.gmra.mrb[0].mxu0 %v1062
      %v1451 = vpop.f32.mrb[0].mxu0
      %v1452 = vadd.f32 0.0, %v1451
      %v1453 = vpop.f32.mrb[0].mxu0
      %v1454 = vpop.f32.mrb[0].mxu0
      %v1455 = vadd.f32 0.0, %v1454
      %v1456 = vpop.f32.mrb[0].mxu0
      %1457 = vmatprep.mubr.bf16.mxu0 0
      %1458 = vmatmul.mubr.bf16.gmra.mrb[0].mxu0 %v1065
      %v1459 = vpop.f32.mrb[0].mxu0
      %v1460 = vadd.f32 0.0, %v1459
      %v1461 = vpop.f32.mrb[0].mxu0
      %v1462 = vpop.f32.mrb[0].mxu0
      %v1463 = vadd.f32 0.0, %v1462
      %v1464 = vpop.f32.mrb[0].mxu0
      %1465 = vmatprep.mubr.bf16.mxu0 0
      %1466 = vmatmul.mubr.bf16.gmra.mrb[0].mxu0 %v1068
      %v1467 = vpop.f32.mrb[0].mxu0
      %v1468 = vadd.f32 0.0, %v1467
      %v1469 = vpop.f32.mrb[0].mxu0
      %v1470 = vpop.f32.mrb[0].mxu0
      %v1471 = vadd.f32 0.0, %v1470
      %v1472 = vpop.f32.mrb[0].mxu0
      %1473 = vmatprep.mubr.bf16.mxu0 0
      %1474 = vmatmul.mubr.bf16.gmra.mrb[0].mxu0 %v1071
      %v1475 = vpop.f32.mrb[0].mxu0
      %v1476 = vadd.f32 0.0, %v1475
      %v1477 = vpop.f32.mrb[0].mxu0
      %v1478 = vpop.f32.mrb[0].mxu0
      %v1479 = vadd.f32 0.0, %v1478
      %v1480 = vpop.f32.mrb[0].mxu0
      %1481 = vmatprep.mubr.bf16.mxu0 0
      %1482 = vmatmul.mubr.bf16.gmra.mrb[0].mxu0 %v1074
      %v1483 = vpop.f32.mrb[0].mxu0
      %v1484 = vadd.f32 0.0, %v1483
      %v1485 = vpop.f32.mrb[0].mxu0
      %v1486 = vpop.f32.mrb[0].mxu0
      %v1487 = vadd.f32 0.0, %v1486
      %v1488 = vpop.f32.mrb[0].mxu0
      %1489 = vmatprep.mubr.bf16.mxu0 0
      %1490 = vmatmul.mubr.bf16.gmra.mrb[0].mxu0 %v1077
      %v1491 = vpop.f32.mrb[0].mxu0
      %v1492 = vadd.f32 0.0, %v1491
      %v1493 = vpop.f32.mrb[0].mxu0
      %v1494 = vpop.f32.mrb[0].mxu0
      %v1495 = vadd.f32 0.0, %v1494
      %v1496 = vpop.f32.mrb[0].mxu0
      %1497 = vmatprep.mubr.bf16.mxu0 0
      %1498 = vmatmul.mubr.bf16.gmra.mrb[0].mxu0 %v1080
      %v1499 = vpop.f32.mrb[0].mxu0
      %v1500 = vadd.f32 0.0, %v1499
      %v1501 = vpop.f32.mrb[0].mxu0
      %v1502 = vpop.f32.mrb[0].mxu0
      %v1503 = vadd.f32 0.0, %v1502
      %v1504 = vpop.f32.mrb[0].mxu0
      %1505 = vmatprep.mubr.bf16.mxu0 0
      %1506 = vmatmul.mubr.bf16.gmra.mrb[0].mxu0 %v1083
      %v1507 = vpop.f32.mrb[0].mxu0
      %v1508 = vadd.f32 0.0, %v1507
      %v1509 = vpop.f32.mrb[0].mxu0
      %v1510 = vpop.f32.mrb[0].mxu0
      %v1511 = vadd.f32 0.0, %v1510
      %v1512 = vpop.f32.mrb[0].mxu0
      %1513 = vmatprep.mubr.bf16.mxu0 0
      %1514 = vmatmul.mubr.bf16.gmra.mrb[0].mxu0 %v1086
      %v1515 = vpop.f32.mrb[0].mxu0
      %v1516 = vadd.f32 0.0, %v1515
      %v1517 = vpop.f32.mrb[0].mxu0
      %v1518 = vpop.f32.mrb[0].mxu0
      %v1519 = vadd.f32 0.0, %v1518
      %v1520 = vpop.f32.mrb[0].mxu0
      %1521 = vmatprep.mubr.bf16.mxu0 0
      %1522 = vmatmul.mubr.bf16.gmra.mrb[0].mxu0 %v1089
      %v1523 = vpop.f32.mrb[0].mxu0
      %v1524 = vadd.f32 0.0, %v1523
      %v1525 = vpop.f32.mrb[0].mxu0
      %v1526 = vpop.f32.mrb[0].mxu0
      %v1527 = vadd.f32 0.0, %v1526
      %v1528 = vpop.f32.mrb[0].mxu0
      %1529 = vmatprep.mubr.bf16.mxu0 0
      %1530 = vmatmul.mubr.bf16.gmra.mrb[0].mxu0 %v1092
      %v1531 = vpop.f32.mrb[0].mxu0
      %v1532 = vadd.f32 0.0, %v1531
      %v1533 = vpop.f32.mrb[0].mxu0
      %v1534 = vpop.f32.mrb[0].mxu0
      %v1535 = vadd.f32 0.0, %v1534
      %v1536 = vpop.f32.mrb[0].mxu0
      %1537 = vmatprep.mubr.bf16.mxu0 0
      %1538 = vmatmul.mubr.bf16.gmra.mrb[0].mxu0 %v1095
      %v1539 = vpop.f32.mrb[0].mxu0
      %v1540 = vadd.f32 0.0, %v1539
      %v1541 = vpop.f32.mrb[0].mxu0
      %v1542 = vpop.f32.mrb[0].mxu0
      %v1543 = vadd.f32 0.0, %v1542
      %v1544 = vpop.f32.mrb[0].mxu0
      %1545 = vmatprep.mubr.bf16.mxu0 0
      %1546 = vmatmul.mubr.bf16.gmra.mrb[0].mxu0 %v1098
      %v1547 = vpop.f32.mrb[0].mxu0
      %v1548 = vadd.f32 0.0, %v1547
      %v1549 = vpop.f32.mrb[0].mxu0
      %v1550 = vpop.f32.mrb[0].mxu0
      %v1551 = vadd.f32 0.0, %v1550
      %v1552 = vpop.f32.mrb[0].mxu0
      %1553 = vmatprep.mubr.bf16.mxu0 0
      %1554 = vmatmul.mubr.bf16.gmra.mrb[0].mxu0 %v1101
      %v1555 = vpop.f32.mrb[0].mxu0
      %v1556 = vadd.f32 0.0, %v1555
      %v1557 = vpop.f32.mrb[0].mxu0
      %v1558 = vpop.f32.mrb[0].mxu0
      %v1559 = vadd.f32 0.0, %v1558
      %v1560 = vpop.f32.mrb[0].mxu0
      %1561 = vmatprep.mubr.bf16.mxu0 0
      %1562 = vmatmul.mubr.bf16.gmra.mrb[0].mxu0 %v1104
      %v1563 = vpop.f32.mrb[0].mxu0
      %v1564 = vadd.f32 0.0, %v1563
      %v1565 = vpop.f32.mrb[0].mxu0
      %v1566 = vpop.f32.mrb[0].mxu0
      %v1567 = vadd.f32 0.0, %v1566
      %v1568 = vpop.f32.mrb[0].mxu0
      %1569 = vmatprep.mubr.bf16.mxu0 0
      %1570 = vmatmul.mubr.bf16.gmra.mrb[0].mxu0 %v1107
      %v1571 = vpop.f32.mrb[0].mxu0
      %v1572 = vadd.f32 0.0, %v1571
      %v1573 = vpop.f32.mrb[0].mxu0
      %v1574 = vpop.f32.mrb[0].mxu0
      %v1575 = vadd.f32 0.0, %v1574
      %v1576 = vpop.f32.mrb[0].mxu0
      %1577 = vmatprep.mubr.bf16.mxu0 0
      %1578 = vmatmul.mubr.bf16.gmra.mrb[0].mxu0 %v1110
      %v1579 = vpop.f32.mrb[0].mxu0
      %v1580 = vadd.f32 0.0, %v1579
      %v1581 = vpop.f32.mrb[0].mxu0
      %v1582 = vpop.f32.mrb[0].mxu0
      %v1583 = vadd.f32 0.0, %v1582
      %v1584 = vpop.f32.mrb[0].mxu0
      %1585 = vmatprep.mubr.bf16.mxu0 0
      %1586 = vmatmul.mubr.bf16.gmra.mrb[0].mxu0 %v1113
      %v1587 = vpop.f32.mrb[0].mxu0
      %v1588 = vadd.f32 0.0, %v1587
      %v1589 = vpop.f32.mrb[0].mxu0
      %v1590 = vpop.f32.mrb[0].mxu0
      %v1591 = vadd.f32 0.0, %v1590
      %v1592 = vpop.f32.mrb[0].mxu0
      %1593 = vmatprep.mubr.bf16.mxu0 0
      %1594 = vmatmul.mubr.bf16.gmra.mrb[0].mxu0 %v1116
      %v1595 = vpop.f32.mrb[0].mxu0
      %v1596 = vadd.f32 0.0, %v1595
      %v1597 = vpop.f32.mrb[0].mxu0
      %v1598 = vpop.f32.mrb[0].mxu0
      %v1599 = vadd.f32 0.0, %v1598
      %v1600 = vpop.f32.mrb[0].mxu0
      %1601 = vmatprep.mubr.bf16.mxu0 0
      %1602 = vmatmul.mubr.bf16.gmra.mrb[0].mxu0 %v1119
      %v1603 = vpop.f32.mrb[0].mxu0
      %v1604 = vadd.f32 0.0, %v1603
      %v1605 = vpop.f32.mrb[0].mxu0
      %v1606 = vpop.f32.mrb[0].mxu0
      %v1607 = vadd.f32 0.0, %v1606
      %v1608 = vpop.f32.mrb[0].mxu0
      %1609 = vmatprep.mubr.bf16.mxu0 0
      %1610 = vmatmul.mubr.bf16.gmra.mrb[0].mxu0 %v1122
      %v1611 = vpop.f32.mrb[0].mxu0
      %v1612 = vadd.f32 0.0, %v1611
      %v1613 = vpop.f32.mrb[0].mxu0
      %v1614 = vpop.f32.mrb[0].mxu0
      %v1615 = vadd.f32 0.0, %v1614
      %v1616 = vpop.f32.mrb[0].mxu0
      %1617 = vmatprep.mubr.bf16.mxu0 0
      %1618 = vmatmul.mubr.bf16.gmra.mrb[0].mxu0 %v1125
      %v1619 = vpop.f32.mrb[0].mxu0
      %v1620 = vadd.f32 0.0, %v1619
      %v1621 = vpop.f32.mrb[0].mxu0
      %v1622 = vpop.f32.mrb[0].mxu0
      %v1623 = vadd.f32 0.0, %v1622
      %v1624 = vpop.f32.mrb[0].mxu0
      %1625 = vmatprep.mubr.bf16.mxu0 0
      %1626 = vmatmul.mubr.bf16.gmra.mrb[0].mxu0 %v1128
      %v1627 = vpop.f32.mrb[0].mxu0
      %v1628 = vadd.f32 0.0, %v1627
      %v1629 = vpop.f32.mrb[0].mxu0
      %v1630 = vpop.f32.mrb[0].mxu0
      %v1631 = vadd.f32 0.0, %v1630
      %v1632 = vpop.f32.mrb[0].mxu0
      %1633 = vmatprep.mubr.bf16.mxu0 0
      %1634 = vmatmul.mubr.bf16.gmra.mrb[0].mxu0 %v1131
      %v1635 = vpop.f32.mrb[0].mxu0
      %v1636 = vadd.f32 0.0, %v1635
      %v1637 = vpop.f32.mrb[0].mxu0
      %v1638 = vpop.f32.mrb[0].mxu0
      %v1639 = vadd.f32 0.0, %v1638
      %v1640 = vpop.f32.mrb[0].mxu0
      %1641 = vmatprep.mubr.bf16.mxu0 0
      %1642 = vmatmul.mubr.bf16.gmra.mrb[0].mxu0 %v1134
      %v1643 = vpop.f32.mrb[0].mxu0
      %v1644 = vadd.f32 0.0, %v1643
      %v1645 = vpop.f32.mrb[0].mxu0
      %v1646 = vpop.f32.mrb[0].mxu0
      %v1647 = vadd.f32 0.0, %v1646
      %v1648 = vpop.f32.mrb[0].mxu0
      %1649 = vmatprep.mubr.bf16.mxu0 0
      %1650 = vmatmul.mubr.bf16.gmra.mrb[0].mxu0 %v1137
      %v1651 = vpop.f32.mrb[0].mxu0
      %v1652 = vadd.f32 0.0, %v1651
      %v1653 = vpop.f32.mrb[0].mxu0
      %v1654 = vpop.f32.mrb[0].mxu0
      %v1655 = vadd.f32 0.0, %v1654
      %v1656 = vpop.f32.mrb[0].mxu0
      %1657 = vmatprep.mubr.bf16.mxu0 0
      %1658 = vmatmul.mubr.bf16.gmra.mrb[0].mxu0 %v1140
      %v1659 = vpop.f32.mrb[0].mxu0
      %v1660 = vadd.f32 0.0, %v1659
      %v1661 = vpop.f32.mrb[0].mxu0
      %v1662 = vpop.f32.mrb[0].mxu0
      %v1663 = vadd.f32 0.0, %v1662
      %v1664 = vpop.f32.mrb[0].mxu0
      %1665 = vmatprep.mubr.bf16.mxu0 0
      %1666 = vmatmul.mubr.bf16.gmra.mrb[0].mxu0 %v1143
      %v1667 = vpop.f32.mrb[0].mxu0
      %v1668 = vadd.f32 0.0, %v1667
      %v1669 = vpop.f32.mrb[0].mxu0
      %v1670 = vpop.f32.mrb[0].mxu0
      %v1671 = vadd.f32 0.0, %v1670
      %v1672 = vpop.f32.mrb[0].mxu0
      %1673 = vmatprep.mubr.bf16.mxu0 0
      %1674 = vmatmul.mubr.bf16.gmra.mrb[0].mxu0 %v1146
      %v1675 = vpop.f32.mrb[0].mxu0
      %v1676 = vadd.f32 0.0, %v1675
      %v1677 = vpop.f32.mrb[0].mxu0
      %v1678 = vpop.f32.mrb[0].mxu0
      %v1679 = vadd.f32 0.0, %v1678
      %v1680 = vpop.f32.mrb[0].mxu0
      %1681 = vmatprep.mubr.bf16.mxu0 0
      %1682 = vmatmul.mubr.bf16.gmra.mrb[0].mxu0 %v1149
      %v1683 = vpop.f32.mrb[0].mxu0
      %v1684 = vadd.f32 0.0, %v1683
      %v1685 = vpop.f32.mrb[0].mxu0
      %v1686 = vpop.f32.mrb[0].mxu0
      %v1687 = vadd.f32 0.0, %v1686
      %v1688 = vpop.f32.mrb[0].mxu0
      %1689 = vmatprep.mubr.bf16.mxu0 0
      %1690 = vmatmul.mubr.bf16.gmra.mrb[0].mxu0 %v1152
      %v1691 = vpop.f32.mrb[0].mxu0
      %v1692 = vadd.f32 0.0, %v1691
      %v1693 = vpop.f32.mrb[0].mxu0
      %v1694 = vpop.f32.mrb[0].mxu0
      %v1695 = vadd.f32 0.0, %v1694
      %v1696 = vpop.f32.mrb[0].mxu0
      %1697 = vmatprep.mubr.bf16.mxu0 0
      %1698 = vmatmul.mubr.bf16.gmra.mrb[0].mxu0 %v1155
      %v1699 = vpop.f32.mrb[0].mxu0
      %v1700 = vadd.f32 0.0, %v1699
      %v1701 = vpop.f32.mrb[0].mxu0
      %v1702 = vpop.f32.mrb[0].mxu0
      %v1703 = vadd.f32 0.0, %v1702
      %v1704 = vpop.f32.mrb[0].mxu0
      %1705 = vdwg.mxu0
      %v1706 = vadd.f32 %v387, %v1196
      %v1707 = vadd.f32 %v388, %v1199
      %v1708 = vadd.f32 %v389, %v1204
      %v1709 = vadd.f32 %v390, %v1207
      %v1710 = vadd.f32 %v391, %v1212
      %v1711 = vadd.f32 %v392, %v1215
      %v1712 = vadd.f32 %v393, %v1220
      %v1713 = vadd.f32 %v394, %v1223
      %v1714 = vadd.f32 %v395, %v1228
      %v1715 = vadd.f32 %v396, %v1231
      %v1716 = vadd.f32 %v397, %v1236
      %v1717 = vadd.f32 %v398, %v1239
      %v1718 = vadd.f32 %v399, %v1244
      %v1719 = vadd.f32 %v400, %v1247
      %v1720 = vadd.f32 %v401, %v1252
      %v1721 = vadd.f32 %v402, %v1255
      %v1722 = vadd.f32 %v403, %v1260
      %v1723 = vadd.f32 %v404, %v1263
      %v1724 = vadd.f32 %v405, %v1268
      %v1725 = vadd.f32 %v406, %v1271
      %v1726 = vadd.f32 %v407, %v1276
      %v1727 = vadd.f32 %v408, %v1279
      %v1728 = vadd.f32 %v409, %v1284
      %v1729 = vadd.f32 %v410, %v1287
      %v1730 = vadd.f32 %v411, %v1292
      %v1731 = vadd.f32 %v412, %v1295
      %v1732 = vadd.f32 %v413, %v1300
      %v1733 = vadd.f32 %v414, %v1303
      %v1734 = vadd.f32 %v415, %v1308
      %v1735 = vadd.f32 %v416, %v1311
      %v1736 = vadd.f32 %v417, %v1316
      %v1737 = vadd.f32 %v418, %v1319
      %v1738 = vadd.f32 %v419, %v1324
      %v1739 = vadd.f32 %v420, %v1327
      %v1740 = vadd.f32 %v421, %v1332
      %v1741 = vadd.f32 %v422, %v1335
      %v1742 = vadd.f32 %v423, %v1340
      %v1743 = vadd.f32 %v424, %v1343
      %v1744 = vadd.f32 %v425, %v1348
      %v1745 = vadd.f32 %v426, %v1351
      %v1746 = vadd.f32 %v427, %v1356
      %v1747 = vadd.f32 %v428, %v1359
      %v1748 = vadd.f32 %v429, %v1364
      %v1749 = vadd.f32 %v430, %v1367
      %v1750 = vadd.f32 %v431, %v1372
      %v1751 = vadd.f32 %v432, %v1375
      %v1752 = vadd.f32 %v433, %v1380
      %v1753 = vadd.f32 %v434, %v1383
      %v1754 = vadd.f32 %v435, %v1388
      %v1755 = vadd.f32 %v436, %v1391
      %v1756 = vadd.f32 %v437, %v1396
      %v1757 = vadd.f32 %v438, %v1399
      %v1758 = vadd.f32 %v439, %v1404
      %v1759 = vadd.f32 %v440, %v1407
      %v1760 = vadd.f32 %v441, %v1412
      %v1761 = vadd.f32 %v442, %v1415
      %v1762 = vadd.f32 %v443, %v1420
      %v1763 = vadd.f32 %v444, %v1423
      %v1764 = vadd.f32 %v445, %v1428
      %v1765 = vadd.f32 %v446, %v1431
      %v1766 = vadd.f32 %v447, %v1436
      %v1767 = vadd.f32 %v448, %v1439
      %v1768 = vadd.f32 %v449, %v1444
      %v1769 = vadd.f32 %v450, %v1447
      %v1770 = vadd.f32 %v451, %v1452
      %v1771 = vadd.f32 %v452, %v1455
      %v1772 = vadd.f32 %v453, %v1460
      %v1773 = vadd.f32 %v454, %v1463
      %v1774 = vadd.f32 %v455, %v1468
      %v1775 = vadd.f32 %v456, %v1471
      %v1776 = vadd.f32 %v457, %v1476
      %v1777 = vadd.f32 %v458, %v1479
      %v1778 = vadd.f32 %v459, %v1484
      %v1779 = vadd.f32 %v460, %v1487
      %v1780 = vadd.f32 %v461, %v1492
      %v1781 = vadd.f32 %v462, %v1495
      %v1782 = vadd.f32 %v463, %v1500
      %v1783 = vadd.f32 %v464, %v1503
      %v1784 = vadd.f32 %v465, %v1508
      %v1785 = vadd.f32 %v466, %v1511
      %v1786 = vadd.f32 %v467, %v1516
      %v1787 = vadd.f32 %v468, %v1519
      %v1788 = vadd.f32 %v469, %v1524
      %v1789 = vadd.f32 %v470, %v1527
      %v1790 = vadd.f32 %v471, %v1532
      %v1791 = vadd.f32 %v472, %v1535
      %v1792 = vadd.f32 %v473, %v1540
      %v1793 = vadd.f32 %v474, %v1543
      %v1794 = vadd.f32 %v475, %v1548
      %v1795 = vadd.f32 %v476, %v1551
      %v1796 = vadd.f32 %v477, %v1556
      %v1797 = vadd.f32 %v478, %v1559
      %v1798 = vadd.f32 %v479, %v1564
      %v1799 = vadd.f32 %v480, %v1567
      %v1800 = vadd.f32 %v481, %v1572
      %v1801 = vadd.f32 %v482, %v1575
      %v1802 = vadd.f32 %v483, %v1580
      %v1803 = vadd.f32 %v484, %v1583
      %v1804 = vadd.f32 %v485, %v1588
      %v1805 = vadd.f32 %v486, %v1591
      %v1806 = vadd.f32 %v487, %v1596
      %v1807 = vadd.f32 %v488, %v1599
      %v1808 = vadd.f32 %v489, %v1604
      %v1809 = vadd.f32 %v490, %v1607
      %v1810 = vadd.f32 %v491, %v1612
      %v1811 = vadd.f32 %v492, %v1615
      %v1812 = vadd.f32 %v493, %v1620
      %v1813 = vadd.f32 %v494, %v1623
      %v1814 = vadd.f32 %v495, %v1628
      %v1815 = vadd.f32 %v496, %v1631
      %v1816 = vadd.f32 %v497, %v1636
      %v1817 = vadd.f32 %v498, %v1639
      %v1818 = vadd.f32 %v499, %v1644
      %v1819 = vadd.f32 %v500, %v1647
      %v1820 = vadd.f32 %v501, %v1652
      %v1821 = vadd.f32 %v502, %v1655
      %v1822 = vadd.f32 %v503, %v1660
      %v1823 = vadd.f32 %v504, %v1663
      %v1824 = vadd.f32 %v505, %v1668
      %v1825 = vadd.f32 %v506, %v1671
      %v1826 = vadd.f32 %v507, %v1676
      %v1827 = vadd.f32 %v508, %v1679
      %v1828 = vadd.f32 %v509, %v1684
      %v1829 = vadd.f32 %v510, %v1687
      %v1830 = vadd.f32 %v511, %v1692
      %v1831 = vadd.f32 %v512, %v1695
      %v1832 = vadd.f32 %v513, %v1700
      %v1833 = vadd.f32 %v514, %v1703
      %1834 = vst [vmem:[#allocation2] sm:$0xff] %v1706
      %1835 = vst [vmem:[#allocation2 + $0x8] sm:$0xff] %v1707
      %1836 = vst [vmem:[#allocation2 + $0x10] sm:$0xff] %v1708
      %1837 = vst [vmem:[#allocation2 + $0x18] sm:$0xff] %v1709
      %1838 = vst [vmem:[#allocation2 + $0x20] sm:$0xff] %v1710
      %1839 = vst [vmem:[#allocation2 + $0x28] sm:$0xff] %v1711
      %1840 = vst [vmem:[#allocation2 + $0x30] sm:$0xff] %v1712
      %1841 = vst [vmem:[#allocation2 + $0x38] sm:$0xff] %v1713
      %1842 = vst [vmem:[#allocation2 + $0x40] sm:$0xff] %v1714
      %1843 = vst [vmem:[#allocation2 + $0x48] sm:$0xff] %v1715
      %1844 = vst [vmem:[#allocation2 + $0x50] sm:$0xff] %v1716
      %1845 = vst [vmem:[#allocation2 + $0x58] sm:$0xff] %v1717
      %1846 = vst [vmem:[#allocation2 + $0x60] sm:$0xff] %v1718
      %1847 = vst [vmem:[#allocation2 + $0x68] sm:$0xff] %v1719
      %1848 = vst [vmem:[#allocation2 + $0x70] sm:$0xff] %v1720
      %1849 = vst [vmem:[#allocation2 + $0x78] sm:$0xff] %v1721
      %1850 = vst [vmem:[#allocation2 + $0x80] sm:$0xff] %v1722
      %1851 = vst [vmem:[#allocation2 + $0x88] sm:$0xff] %v1723
      %1852 = vst [vmem:[#allocation2 + $0x90] sm:$0xff] %v1724
      %1853 = vst [vmem:[#allocation2 + $0x98] sm:$0xff] %v1725
      %1854 = vst [vmem:[#allocation2 + $0xa0] sm:$0xff] %v1726
      %1855 = vst [vmem:[#allocation2 + $0xa8] sm:$0xff] %v1727
      %1856 = vst [vmem:[#allocation2 + $0xb0] sm:$0xff] %v1728
      %1857 = vst [vmem:[#allocation2 + $0xb8] sm:$0xff] %v1729
      %1858 = vst [vmem:[#allocation2 + $0xc0] sm:$0xff] %v1730
      %1859 = vst [vmem:[#allocation2 + $0xc8] sm:$0xff] %v1731
      %1860 = vst [vmem:[#allocation2 + $0xd0] sm:$0xff] %v1732
      %1861 = vst [vmem:[#allocation2 + $0xd8] sm:$0xff] %v1733
      %1862 = vst [vmem:[#allocation2 + $0xe0] sm:$0xff] %v1734
      %1863 = vst [vmem:[#allocation2 + $0xe8] sm:$0xff] %v1735
      %1864 = vst [vmem:[#allocation2 + $0xf0] sm:$0xff] %v1736
      %1865 = vst [vmem:[#allocation2 + $0xf8] sm:$0xff] %v1737
      %1866 = vst [vmem:[#allocation2 + $0x100] sm:$0xff] %v1738
      %1867 = vst [vmem:[#allocation2 + $0x108] sm:$0xff] %v1739
      %1868 = vst [vmem:[#allocation2 + $0x110] sm:$0xff] %v1740
      %1869 = vst [vmem:[#allocation2 + $0x118] sm:$0xff] %v1741
      %1870 = vst [vmem:[#allocation2 + $0x120] sm:$0xff] %v1742
      %1871 = vst [vmem:[#allocation2 + $0x128] sm:$0xff] %v1743
      %1872 = vst [vmem:[#allocation2 + $0x130] sm:$0xff] %v1744
      %1873 = vst [vmem:[#allocation2 + $0x138] sm:$0xff] %v1745
      %1874 = vst [vmem:[#allocation2 + $0x140] sm:$0xff] %v1746
      %1875 = vst [vmem:[#allocation2 + $0x148] sm:$0xff] %v1747
      %1876 = vst [vmem:[#allocation2 + $0x150] sm:$0xff] %v1748
      %1877 = vst [vmem:[#allocation2 + $0x158] sm:$0xff] %v1749
      %1878 = vst [vmem:[#allocation2 + $0x160] sm:$0xff] %v1750
      %1879 = vst [vmem:[#allocation2 + $0x168] sm:$0xff] %v1751
      %1880 = vst [vmem:[#allocation2 + $0x170] sm:$0xff] %v1752
      %1881 = vst [vmem:[#allocation2 + $0x178] sm:$0xff] %v1753
      %1882 = vst [vmem:[#allocation2 + $0x180] sm:$0xff] %v1754
      %1883 = vst [vmem:[#allocation2 + $0x188] sm:$0xff] %v1755
      %1884 = vst [vmem:[#allocation2 + $0x190] sm:$0xff] %v1756
      %1885 = vst [vmem:[#allocation2 + $0x198] sm:$0xff] %v1757
      %1886 = vst [vmem:[#allocation2 + $0x1a0] sm:$0xff] %v1758
      %1887 = vst [vmem:[#allocation2 + $0x1a8] sm:$0xff] %v1759
      %1888 = vst [vmem:[#allocation2 + $0x1b0] sm:$0xff] %v1760
      %1889 = vst [vmem:[#allocation2 + $0x1b8] sm:$0xff] %v1761
      %1890 = vst [vmem:[#allocation2 + $0x1c0] sm:$0xff] %v1762
      %1891 = vst [vmem:[#allocation2 + $0x1c8] sm:$0xff] %v1763
      %1892 = vst [vmem:[#allocation2 + $0x1d0] sm:$0xff] %v1764
      %1893 = vst [vmem:[#allocation2 + $0x1d8] sm:$0xff] %v1765
      %1894 = vst [vmem:[#allocation2 + $0x1e0] sm:$0xff] %v1766
      %1895 = vst [vmem:[#allocation2 + $0x1e8] sm:$0xff] %v1767
      %1896 = vst [vmem:[#allocation2 + $0x1f0] sm:$0xff] %v1768
      %1897 = vst [vmem:[#allocation2 + $0x1f8] sm:$0xff] %v1769
      %1898 = vst [vmem:[#allocation2 + $0x200] sm:$0xff] %v1770
      %1899 = vst [vmem:[#allocation2 + $0x208] sm:$0xff] %v1771
      %1900 = vst [vmem:[#allocation2 + $0x210] sm:$0xff] %v1772
      %1901 = vst [vmem:[#allocation2 + $0x218] sm:$0xff] %v1773
      %1902 = vst [vmem:[#allocation2 + $0x220] sm:$0xff] %v1774
      %1903 = vst [vmem:[#allocation2 + $0x228] sm:$0xff] %v1775
      %1904 = vst [vmem:[#allocation2 + $0x230] sm:$0xff] %v1776
      %1905 = vst [vmem:[#allocation2 + $0x238] sm:$0xff] %v1777
      %1906 = vst [vmem:[#allocation2 + $0x240] sm:$0xff] %v1778
      %1907 = vst [vmem:[#allocation2 + $0x248] sm:$0xff] %v1779
      %1908 = vst [vmem:[#allocation2 + $0x250] sm:$0xff] %v1780
      %1909 = vst [vmem:[#allocation2 + $0x258] sm:$0xff] %v1781
      %1910 = vst [vmem:[#allocation2 + $0x260] sm:$0xff] %v1782
      %1911 = vst [vmem:[#allocation2 + $0x268] sm:$0xff] %v1783
      %1912 = vst [vmem:[#allocation2 + $0x270] sm:$0xff] %v1784
      %1913 = vst [vmem:[#allocation2 + $0x278] sm:$0xff] %v1785
      %1914 = vst [vmem:[#allocation2 + $0x280] sm:$0xff] %v1786
      %1915 = vst [vmem:[#allocation2 + $0x288] sm:$0xff] %v1787
      %1916 = vst [vmem:[#allocation2 + $0x290] sm:$0xff] %v1788
      %1917 = vst [vmem:[#allocation2 + $0x298] sm:$0xff] %v1789
      %1918 = vst [vmem:[#allocation2 + $0x2a0] sm:$0xff] %v1790
      %1919 = vst [vmem:[#allocation2 + $0x2a8] sm:$0xff] %v1791
      %1920 = vst [vmem:[#allocation2 + $0x2b0] sm:$0xff] %v1792
      %1921 = vst [vmem:[#allocation2 + $0x2b8] sm:$0xff] %v1793
      %1922 = vst [vmem:[#allocation2 + $0x2c0] sm:$0xff] %v1794
      %1923 = vst [vmem:[#allocation2 + $0x2c8] sm:$0xff] %v1795
      %1924 = vst [vmem:[#allocation2 + $0x2d0] sm:$0xff] %v1796
      %1925 = vst [vmem:[#allocation2 + $0x2d8] sm:$0xff] %v1797
      %1926 = vst [vmem:[#allocation2 + $0x2e0] sm:$0xff] %v1798
      %1927 = vst [vmem:[#allocation2 + $0x2e8] sm:$0xff] %v1799
      %1928 = vst [vmem:[#allocation2 + $0x2f0] sm:$0xff] %v1800
      %1929 = vst [vmem:[#allocation2 + $0x2f8] sm:$0xff] %v1801
      %1930 = vst [vmem:[#allocation2 + $0x300] sm:$0xff] %v1802
      %1931 = vst [vmem:[#allocation2 + $0x308] sm:$0xff] %v1803
      %1932 = vst [vmem:[#allocation2 + $0x310] sm:$0xff] %v1804
      %1933 = vst [vmem:[#allocation2 + $0x318] sm:$0xff] %v1805
      %1934 = vst [vmem:[#allocation2 + $0x320] sm:$0xff] %v1806
      %1935 = vst [vmem:[#allocation2 + $0x328] sm:$0xff] %v1807
      %1936 = vst [vmem:[#allocation2 + $0x330] sm:$0xff] %v1808
      %1937 = vst [vmem:[#allocation2 + $0x338] sm:$0xff] %v1809
      %1938 = vst [vmem:[#allocation2 + $0x340] sm:$0xff] %v1810
      %1939 = vst [vmem:[#allocation2 + $0x348] sm:$0xff] %v1811
      %1940 = vst [vmem:[#allocation2 + $0x350] sm:$0xff] %v1812
      %1941 = vst [vmem:[#allocation2 + $0x358] sm:$0xff] %v1813
      %1942 = vst [vmem:[#allocation2 + $0x360] sm:$0xff] %v1814
      %1943 = vst [vmem:[#allocation2 + $0x368] sm:$0xff] %v1815
      %1944 = vst [vmem:[#allocation2 + $0x370] sm:$0xff] %v1816
      %1945 = vst [vmem:[#allocation2 + $0x378] sm:$0xff] %v1817
      %1946 = vst [vmem:[#allocation2 + $0x380] sm:$0xff] %v1818
      %1947 = vst [vmem:[#allocation2 + $0x388] sm:$0xff] %v1819
      %1948 = vst [vmem:[#allocation2 + $0x390] sm:$0xff] %v1820
      %1949 = vst [vmem:[#allocation2 + $0x398] sm:$0xff] %v1821
      %1950 = vst [vmem:[#allocation2 + $0x3a0] sm:$0xff] %v1822
      %1951 = vst [vmem:[#allocation2 + $0x3a8] sm:$0xff] %v1823
      %1952 = vst [vmem:[#allocation2 + $0x3b0] sm:$0xff] %v1824
      %1953 = vst [vmem:[#allocation2 + $0x3b8] sm:$0xff] %v1825
      %1954 = vst [vmem:[#allocation2 + $0x3c0] sm:$0xff] %v1826
      %1955 = vst [vmem:[#allocation2 + $0x3c8] sm:$0xff] %v1827
      %1956 = vst [vmem:[#allocation2 + $0x3d0] sm:$0xff] %v1828
      %1957 = vst [vmem:[#allocation2 + $0x3d8] sm:$0xff] %v1829
      %1958 = vst [vmem:[#allocation2 + $0x3e0] sm:$0xff] %v1830
      %1959 = vst [vmem:[#allocation2 + $0x3e8] sm:$0xff] %v1831
      %1960 = vst [vmem:[#allocation2 + $0x3f0] sm:$0xff] %v1832
      %1961 = vst [vmem:[#allocation2 + $0x3f8] sm:$0xff] %v1833
      // Predicated region
      $region37: #{autoencoder_de_forward.10} parent=31 // pred_check
        %p1962 = pneg %p255
      $region38: #{autoencoder_de_forward.10} parent=31 // pred_check_branch
        %1964 = sbr.rel (%p1962) target = $region40
      $region39: #{autoencoder_de_forward.10} parent=31 // pred_region
        %v1965 = vld [vmem:[#allocation2] sm:$0xff]
        %v1966 = vld [vmem:[#allocation2 + $0x8] sm:$0xff]
        %v1967 = vld [vmem:[#allocation2 + $0x10] sm:$0xff]
        %v1968 = vld [vmem:[#allocation2 + $0x18] sm:$0xff]
        %v1969 = vld [vmem:[#allocation2 + $0x20] sm:$0xff]
        %v1970 = vld [vmem:[#allocation2 + $0x28] sm:$0xff]
        %v1971 = vld [vmem:[#allocation2 + $0x30] sm:$0xff]
        %v1972 = vld [vmem:[#allocation2 + $0x38] sm:$0xff]
        %v1973 = vld [vmem:[#allocation2 + $0x40] sm:$0xff]
        %v1974 = vld [vmem:[#allocation2 + $0x48] sm:$0xff]
        %v1975 = vld [vmem:[#allocation2 + $0x50] sm:$0xff]
        %v1976 = vld [vmem:[#allocation2 + $0x58] sm:$0xff]
        %v1977 = vld [vmem:[#allocation2 + $0x60] sm:$0xff]
        %v1978 = vld [vmem:[#allocation2 + $0x68] sm:$0xff]
        %v1979 = vld [vmem:[#allocation2 + $0x70] sm:$0xff]
        %v1980 = vld [vmem:[#allocation2 + $0x78] sm:$0xff]
        %v1981 = vld [vmem:[#allocation2 + $0x80] sm:$0xff]
        %v1982 = vld [vmem:[#allocation2 + $0x88] sm:$0xff]
        %v1983 = vld [vmem:[#allocation2 + $0x90] sm:$0xff]
        %v1984 = vld [vmem:[#allocation2 + $0x98] sm:$0xff]
        %v1985 = vld [vmem:[#allocation2 + $0xa0] sm:$0xff]
        %v1986 = vld [vmem:[#allocation2 + $0xa8] sm:$0xff]
        %v1987 = vld [vmem:[#allocation2 + $0xb0] sm:$0xff]
        %v1988 = vld [vmem:[#allocation2 + $0xb8] sm:$0xff]
        %v1989 = vld [vmem:[#allocation2 + $0xc0] sm:$0xff]
        %v1990 = vld [vmem:[#allocation2 + $0xc8] sm:$0xff]
        %v1991 = vld [vmem:[#allocation2 + $0xd0] sm:$0xff]
        %v1992 = vld [vmem:[#allocation2 + $0xd8] sm:$0xff]
        %v1993 = vld [vmem:[#allocation2 + $0xe0] sm:$0xff]
        %v1994 = vld [vmem:[#allocation2 + $0xe8] sm:$0xff]
        %v1995 = vld [vmem:[#allocation2 + $0xf0] sm:$0xff]
        %v1996 = vld [vmem:[#allocation2 + $0xf8] sm:$0xff]
        %v1997 = vld [vmem:[#allocation2 + $0x100] sm:$0xff]
        %v1998 = vld [vmem:[#allocation2 + $0x108] sm:$0xff]
        %v1999 = vld [vmem:[#allocation2 + $0x110] sm:$0xff]
        %v2000 = vld [vmem:[#allocation2 + $0x118] sm:$0xff]
        %v2001 = vld [vmem:[#allocation2 + $0x120] sm:$0xff]
        %v2002 = vld [vmem:[#allocation2 + $0x128] sm:$0xff]
        %v2003 = vld [vmem:[#allocation2 + $0x130] sm:$0xff]
        %v2004 = vld [vmem:[#allocation2 + $0x138] sm:$0xff]
        %v2005 = vld [vmem:[#allocation2 + $0x140] sm:$0xff]
        %v2006 = vld [vmem:[#allocation2 + $0x148] sm:$0xff]
        %v2007 = vld [vmem:[#allocation2 + $0x150] sm:$0xff]
        %v2008 = vld [vmem:[#allocation2 + $0x158] sm:$0xff]
        %v2009 = vld [vmem:[#allocation2 + $0x160] sm:$0xff]
        %v2010 = vld [vmem:[#allocation2 + $0x168] sm:$0xff]
        %v2011 = vld [vmem:[#allocation2 + $0x170] sm:$0xff]
        %v2012 = vld [vmem:[#allocation2 + $0x178] sm:$0xff]
        %v2013 = vld [vmem:[#allocation2 + $0x180] sm:$0xff]
        %v2014 = vld [vmem:[#allocation2 + $0x188] sm:$0xff]
        %v2015 = vld [vmem:[#allocation2 + $0x190] sm:$0xff]
        %v2016 = vld [vmem:[#allocation2 + $0x198] sm:$0xff]
        %v2017 = vld [vmem:[#allocation2 + $0x1a0] sm:$0xff]
        %v2018 = vld [vmem:[#allocation2 + $0x1a8] sm:$0xff]
        %v2019 = vld [vmem:[#allocation2 + $0x1b0] sm:$0xff]
        %v2020 = vld [vmem:[#allocation2 + $0x1b8] sm:$0xff]
        %v2021 = vld [vmem:[#allocation2 + $0x1c0] sm:$0xff]
        %v2022 = vld [vmem:[#allocation2 + $0x1c8] sm:$0xff]
        %v2023 = vld [vmem:[#allocation2 + $0x1d0] sm:$0xff]
        %v2024 = vld [vmem:[#allocation2 + $0x1d8] sm:$0xff]
        %v2025 = vld [vmem:[#allocation2 + $0x1e0] sm:$0xff]
        %v2026 = vld [vmem:[#allocation2 + $0x1e8] sm:$0xff]
        %v2027 = vld [vmem:[#allocation2 + $0x1f0] sm:$0xff]
        %v2028 = vld [vmem:[#allocation2 + $0x1f8] sm:$0xff]
        %v2029 = vld [vmem:[#allocation2 + $0x200] sm:$0xff]
        %v2030 = vld [vmem:[#allocation2 + $0x208] sm:$0xff]
        %v2031 = vld [vmem:[#allocation2 + $0x210] sm:$0xff]
        %v2032 = vld [vmem:[#allocation2 + $0x218] sm:$0xff]
        %v2033 = vld [vmem:[#allocation2 + $0x220] sm:$0xff]
        %v2034 = vld [vmem:[#allocation2 + $0x228] sm:$0xff]
        %v2035 = vld [vmem:[#allocation2 + $0x230] sm:$0xff]
        %v2036 = vld [vmem:[#allocation2 + $0x238] sm:$0xff]
        %v2037 = vld [vmem:[#allocation2 + $0x240] sm:$0xff]
        %v2038 = vld [vmem:[#allocation2 + $0x248] sm:$0xff]
        %v2039 = vld [vmem:[#allocation2 + $0x250] sm:$0xff]
        %v2040 = vld [vmem:[#allocation2 + $0x258] sm:$0xff]
        %v2041 = vld [vmem:[#allocation2 + $0x260] sm:$0xff]
        %v2042 = vld [vmem:[#allocation2 + $0x268] sm:$0xff]
        %v2043 = vld [vmem:[#allocation2 + $0x270] sm:$0xff]
        %v2044 = vld [vmem:[#allocation2 + $0x278] sm:$0xff]
        %v2045 = vld [vmem:[#allocation2 + $0x280] sm:$0xff]
        %v2046 = vld [vmem:[#allocation2 + $0x288] sm:$0xff]
        %v2047 = vld [vmem:[#allocation2 + $0x290] sm:$0xff]
        %v2048 = vld [vmem:[#allocation2 + $0x298] sm:$0xff]
        %v2049 = vld [vmem:[#allocation2 + $0x2a0] sm:$0xff]
        %v2050 = vld [vmem:[#allocation2 + $0x2a8] sm:$0xff]
        %v2051 = vld [vmem:[#allocation2 + $0x2b0] sm:$0xff]
        %v2052 = vld [vmem:[#allocation2 + $0x2b8] sm:$0xff]
        %v2053 = vld [vmem:[#allocation2 + $0x2c0] sm:$0xff]
        %v2054 = vld [vmem:[#allocation2 + $0x2c8] sm:$0xff]
        %v2055 = vld [vmem:[#allocation2 + $0x2d0] sm:$0xff]
        %v2056 = vld [vmem:[#allocation2 + $0x2d8] sm:$0xff]
        %v2057 = vld [vmem:[#allocation2 + $0x2e0] sm:$0xff]
        %v2058 = vld [vmem:[#allocation2 + $0x2e8] sm:$0xff]
        %v2059 = vld [vmem:[#allocation2 + $0x2f0] sm:$0xff]
        %v2060 = vld [vmem:[#allocation2 + $0x2f8] sm:$0xff]
        %v2061 = vld [vmem:[#allocation2 + $0x300] sm:$0xff]
        %v2062 = vld [vmem:[#allocation2 + $0x308] sm:$0xff]
        %v2063 = vld [vmem:[#allocation2 + $0x310] sm:$0xff]
        %v2064 = vld [vmem:[#allocation2 + $0x318] sm:$0xff]
        %v2065 = vld [vmem:[#allocation2 + $0x320] sm:$0xff]
        %v2066 = vld [vmem:[#allocation2 + $0x328] sm:$0xff]
        %v2067 = vld [vmem:[#allocation2 + $0x330] sm:$0xff]
        %v2068 = vld [vmem:[#allocation2 + $0x338] sm:$0xff]
        %v2069 = vld [vmem:[#allocation2 + $0x340] sm:$0xff]
        %v2070 = vld [vmem:[#allocation2 + $0x348] sm:$0xff]
        %v2071 = vld [vmem:[#allocation2 + $0x350] sm:$0xff]
        %v2072 = vld [vmem:[#allocation2 + $0x358] sm:$0xff]
        %v2073 = vld [vmem:[#allocation2 + $0x360] sm:$0xff]
        %v2074 = vld [vmem:[#allocation2 + $0x368] sm:$0xff]
        %v2075 = vld [vmem:[#allocation2 + $0x370] sm:$0xff]
        %v2076 = vld [vmem:[#allocation2 + $0x378] sm:$0xff]
        %v2077 = vld [vmem:[#allocation2 + $0x380] sm:$0xff]
        %v2078 = vld [vmem:[#allocation2 + $0x388] sm:$0xff]
        %v2079 = vld [vmem:[#allocation2 + $0x390] sm:$0xff]
        %v2080 = vld [vmem:[#allocation2 + $0x398] sm:$0xff]
        %v2081 = vld [vmem:[#allocation2 + $0x3a0] sm:$0xff]
        %v2082 = vld [vmem:[#allocation2 + $0x3a8] sm:$0xff]
        %v2083 = vld [vmem:[#allocation2 + $0x3b0] sm:$0xff]
        %v2084 = vld [vmem:[#allocation2 + $0x3b8] sm:$0xff]
        %v2085 = vld [vmem:[#allocation2 + $0x3c0] sm:$0xff]
        %v2086 = vld [vmem:[#allocation2 + $0x3c8] sm:$0xff]
        %v2087 = vld [vmem:[#allocation2 + $0x3d0] sm:$0xff]
        %v2088 = vld [vmem:[#allocation2 + $0x3d8] sm:$0xff]
        %v2089 = vld [vmem:[#allocation2 + $0x3e0] sm:$0xff]
        %v2090 = vld [vmem:[#allocation2 + $0x3e8] sm:$0xff]
        %v2091 = vld [vmem:[#allocation2 + $0x3f0] sm:$0xff]
        %v2092 = vld [vmem:[#allocation2 + $0x3f8] sm:$0xff]
        %v2093 = vld [vmem:[%s244] sm:$0x1]
        %v2095 = vlaneseq
        %v2096 = vshrl.u32 %v2095, 7
        %v2097 = vsub.s32 0, %v2096
        %v2098 = vrot.slane %v2093, %v2097
        %v2100 = vadd.f32 %v1965, %v2098
        %v2101 = vadd.f32 %v1966, %v2098
        %v2102 = vadd.f32 %v1967, %v2098
        %v2103 = vadd.f32 %v1968, %v2098
        %v2104 = vadd.f32 %v1969, %v2098
        %v2105 = vadd.f32 %v1970, %v2098
        %v2106 = vadd.f32 %v1971, %v2098
        %v2107 = vadd.f32 %v1972, %v2098
        %v2108 = vadd.f32 %v1973, %v2098
        %v2109 = vadd.f32 %v1974, %v2098
        %v2110 = vadd.f32 %v1975, %v2098
        %v2111 = vadd.f32 %v1976, %v2098
        %v2112 = vadd.f32 %v1977, %v2098
        %v2113 = vadd.f32 %v1978, %v2098
        %v2114 = vadd.f32 %v1979, %v2098
        %v2115 = vadd.f32 %v1980, %v2098
        %v2116 = vadd.f32 %v1981, %v2098
        %v2117 = vadd.f32 %v1982, %v2098
        %v2118 = vadd.f32 %v1983, %v2098
        %v2119 = vadd.f32 %v1984, %v2098
        %v2120 = vadd.f32 %v1985, %v2098
        %v2121 = vadd.f32 %v1986, %v2098
        %v2122 = vadd.f32 %v1987, %v2098
        %v2123 = vadd.f32 %v1988, %v2098
        %v2124 = vadd.f32 %v1989, %v2098
        %v2125 = vadd.f32 %v1990, %v2098
        %v2126 = vadd.f32 %v1991, %v2098
        %v2127 = vadd.f32 %v1992, %v2098
        %v2128 = vadd.f32 %v1993, %v2098
        %v2129 = vadd.f32 %v1994, %v2098
        %v2130 = vadd.f32 %v1995, %v2098
        %v2131 = vadd.f32 %v1996, %v2098
        %v2132 = vadd.f32 %v1997, %v2098
        %v2133 = vadd.f32 %v1998, %v2098
        %v2134 = vadd.f32 %v1999, %v2098
        %v2135 = vadd.f32 %v2000, %v2098
        %v2136 = vadd.f32 %v2001, %v2098
        %v2137 = vadd.f32 %v2002, %v2098
        %v2138 = vadd.f32 %v2003, %v2098
        %v2139 = vadd.f32 %v2004, %v2098
        %v2140 = vadd.f32 %v2005, %v2098
        %v2141 = vadd.f32 %v2006, %v2098
        %v2142 = vadd.f32 %v2007, %v2098
        %v2143 = vadd.f32 %v2008, %v2098
        %v2144 = vadd.f32 %v2009, %v2098
        %v2145 = vadd.f32 %v2010, %v2098
        %v2146 = vadd.f32 %v2011, %v2098
        %v2147 = vadd.f32 %v2012, %v2098
        %v2148 = vadd.f32 %v2013, %v2098
        %v2149 = vadd.f32 %v2014, %v2098
        %v2150 = vadd.f32 %v2015, %v2098
        %v2151 = vadd.f32 %v2016, %v2098
        %v2152 = vadd.f32 %v2017, %v2098
        %v2153 = vadd.f32 %v2018, %v2098
        %v2154 = vadd.f32 %v2019, %v2098
        %v2155 = vadd.f32 %v2020, %v2098
        %v2156 = vadd.f32 %v2021, %v2098
        %v2157 = vadd.f32 %v2022, %v2098
        %v2158 = vadd.f32 %v2023, %v2098
        %v2159 = vadd.f32 %v2024, %v2098
        %v2160 = vadd.f32 %v2025, %v2098
        %v2161 = vadd.f32 %v2026, %v2098
        %v2162 = vadd.f32 %v2027, %v2098
        %v2163 = vadd.f32 %v2028, %v2098
        %v2164 = vadd.f32 %v2029, %v2098
        %v2165 = vadd.f32 %v2030, %v2098
        %v2166 = vadd.f32 %v2031, %v2098
        %v2167 = vadd.f32 %v2032, %v2098
        %v2168 = vadd.f32 %v2033, %v2098
        %v2169 = vadd.f32 %v2034, %v2098
        %v2170 = vadd.f32 %v2035, %v2098
        %v2171 = vadd.f32 %v2036, %v2098
        %v2172 = vadd.f32 %v2037, %v2098
        %v2173 = vadd.f32 %v2038, %v2098
        %v2174 = vadd.f32 %v2039, %v2098
        %v2175 = vadd.f32 %v2040, %v2098
        %v2176 = vadd.f32 %v2041, %v2098
        %v2177 = vadd.f32 %v2042, %v2098
        %v2178 = vadd.f32 %v2043, %v2098
        %v2179 = vadd.f32 %v2044, %v2098
        %v2180 = vadd.f32 %v2045, %v2098
        %v2181 = vadd.f32 %v2046, %v2098
        %v2182 = vadd.f32 %v2047, %v2098
        %v2183 = vadd.f32 %v2048, %v2098
        %v2184 = vadd.f32 %v2049, %v2098
        %v2185 = vadd.f32 %v2050, %v2098
        %v2186 = vadd.f32 %v2051, %v2098
        %v2187 = vadd.f32 %v2052, %v2098
        %v2188 = vadd.f32 %v2053, %v2098
        %v2189 = vadd.f32 %v2054, %v2098
        %v2190 = vadd.f32 %v2055, %v2098
        %v2191 = vadd.f32 %v2056, %v2098
        %v2192 = vadd.f32 %v2057, %v2098
        %v2193 = vadd.f32 %v2058, %v2098
        %v2194 = vadd.f32 %v2059, %v2098
        %v2195 = vadd.f32 %v2060, %v2098
        %v2196 = vadd.f32 %v2061, %v2098
        %v2197 = vadd.f32 %v2062, %v2098
        %v2198 = vadd.f32 %v2063, %v2098
        %v2199 = vadd.f32 %v2064, %v2098
        %v2200 = vadd.f32 %v2065, %v2098
        %v2201 = vadd.f32 %v2066, %v2098
        %v2202 = vadd.f32 %v2067, %v2098
        %v2203 = vadd.f32 %v2068, %v2098
        %v2204 = vadd.f32 %v2069, %v2098
        %v2205 = vadd.f32 %v2070, %v2098
        %v2206 = vadd.f32 %v2071, %v2098
        %v2207 = vadd.f32 %v2072, %v2098
        %v2208 = vadd.f32 %v2073, %v2098
        %v2209 = vadd.f32 %v2074, %v2098
        %v2210 = vadd.f32 %v2075, %v2098
        %v2211 = vadd.f32 %v2076, %v2098
        %v2212 = vadd.f32 %v2077, %v2098
        %v2213 = vadd.f32 %v2078, %v2098
        %v2214 = vadd.f32 %v2079, %v2098
        %v2215 = vadd.f32 %v2080, %v2098
        %v2216 = vadd.f32 %v2081, %v2098
        %v2217 = vadd.f32 %v2082, %v2098
        %v2218 = vadd.f32 %v2083, %v2098
        %v2219 = vadd.f32 %v2084, %v2098
        %v2220 = vadd.f32 %v2085, %v2098
        %v2221 = vadd.f32 %v2086, %v2098
        %v2222 = vadd.f32 %v2087, %v2098
        %v2223 = vadd.f32 %v2088, %v2098
        %v2224 = vadd.f32 %v2089, %v2098
        %v2225 = vadd.f32 %v2090, %v2098
        %v2226 = vadd.f32 %v2091, %v2098
        %v2227 = vadd.f32 %v2092, %v2098
        %v2228 = vpack.c.bf16 %v2101, %v2100
        %v2229 = vpack.c.bf16 %v2103, %v2102
        %v2230 = vpack.c.bf16 %v2105, %v2104
        %v2231 = vpack.c.bf16 %v2107, %v2106
        %v2232 = vpack.c.bf16 %v2109, %v2108
        %v2233 = vpack.c.bf16 %v2111, %v2110
        %v2234 = vpack.c.bf16 %v2113, %v2112
        %v2235 = vpack.c.bf16 %v2115, %v2114
        %v2236 = vpack.c.bf16 %v2117, %v2116
        %v2237 = vpack.c.bf16 %v2119, %v2118
        %v2238 = vpack.c.bf16 %v2121, %v2120
        %v2239 = vpack.c.bf16 %v2123, %v2122
        %v2240 = vpack.c.bf16 %v2125, %v2124
        %v2241 = vpack.c.bf16 %v2127, %v2126
        %v2242 = vpack.c.bf16 %v2129, %v2128
        %v2243 = vpack.c.bf16 %v2131, %v2130
        %v2244 = vpack.c.bf16 %v2133, %v2132
        %v2245 = vpack.c.bf16 %v2135, %v2134
        %v2246 = vpack.c.bf16 %v2137, %v2136
        %v2247 = vpack.c.bf16 %v2139, %v2138
        %v2248 = vpack.c.bf16 %v2141, %v2140
        %v2249 = vpack.c.bf16 %v2143, %v2142
        %v2250 = vpack.c.bf16 %v2145, %v2144
        %v2251 = vpack.c.bf16 %v2147, %v2146
        %v2252 = vpack.c.bf16 %v2149, %v2148
        %v2253 = vpack.c.bf16 %v2151, %v2150
        %v2254 = vpack.c.bf16 %v2153, %v2152
        %v2255 = vpack.c.bf16 %v2155, %v2154
        %v2256 = vpack.c.bf16 %v2157, %v2156
        %v2257 = vpack.c.bf16 %v2159, %v2158
        %v2258 = vpack.c.bf16 %v2161, %v2160
        %v2259 = vpack.c.bf16 %v2163, %v2162
        %v2260 = vpack.c.bf16 %v2165, %v2164
        %v2261 = vpack.c.bf16 %v2167, %v2166
        %v2262 = vpack.c.bf16 %v2169, %v2168
        %v2263 = vpack.c.bf16 %v2171, %v2170
        %v2264 = vpack.c.bf16 %v2173, %v2172
        %v2265 = vpack.c.bf16 %v2175, %v2174
        %v2266 = vpack.c.bf16 %v2177, %v2176
        %v2267 = vpack.c.bf16 %v2179, %v2178
        %v2268 = vpack.c.bf16 %v2181, %v2180
        %v2269 = vpack.c.bf16 %v2183, %v2182
        %v2270 = vpack.c.bf16 %v2185, %v2184
        %v2271 = vpack.c.bf16 %v2187, %v2186
        %v2272 = vpack.c.bf16 %v2189, %v2188
        %v2273 = vpack.c.bf16 %v2191, %v2190
        %v2274 = vpack.c.bf16 %v2193, %v2192
        %v2275 = vpack.c.bf16 %v2195, %v2194
        %v2276 = vpack.c.bf16 %v2197, %v2196
        %v2277 = vpack.c.bf16 %v2199, %v2198
        %v2278 = vpack.c.bf16 %v2201, %v2200
        %v2279 = vpack.c.bf16 %v2203, %v2202
        %v2280 = vpack.c.bf16 %v2205, %v2204
        %v2281 = vpack.c.bf16 %v2207, %v2206
        %v2282 = vpack.c.bf16 %v2209, %v2208
        %v2283 = vpack.c.bf16 %v2211, %v2210
        %v2284 = vpack.c.bf16 %v2213, %v2212
        %v2285 = vpack.c.bf16 %v2215, %v2214
        %v2286 = vpack.c.bf16 %v2217, %v2216
        %v2287 = vpack.c.bf16 %v2219, %v2218
        %v2288 = vpack.c.bf16 %v2221, %v2220
        %v2289 = vpack.c.bf16 %v2223, %v2222
        %v2290 = vpack.c.bf16 %v2225, %v2224
        %v2291 = vpack.c.bf16 %v2227, %v2226
        %v2356 = vunpack.c.l.b16 %v2228
        %v2357 = vunpack.c.h.b16 %v2228
        %v2358 = vunpack.c.l.b16 %v2229
        %v2359 = vunpack.c.h.b16 %v2229
        %v2360 = vunpack.c.l.b16 %v2230
        %v2361 = vunpack.c.h.b16 %v2230
        %v2362 = vunpack.c.l.b16 %v2231
        %v2363 = vunpack.c.h.b16 %v2231
        %v2364 = vunpack.c.l.b16 %v2232
        %v2365 = vunpack.c.h.b16 %v2232
        %v2366 = vunpack.c.l.b16 %v2233
        %v2367 = vunpack.c.h.b16 %v2233
        %v2368 = vunpack.c.l.b16 %v2234
        %v2369 = vunpack.c.h.b16 %v2234
        %v2370 = vunpack.c.l.b16 %v2235
        %v2371 = vunpack.c.h.b16 %v2235
        %v2372 = vunpack.c.l.b16 %v2236
        %v2373 = vunpack.c.h.b16 %v2236
        %v2374 = vunpack.c.l.b16 %v2237
        %v2375 = vunpack.c.h.b16 %v2237
        %v2376 = vunpack.c.l.b16 %v2238
        %v2377 = vunpack.c.h.b16 %v2238
        %v2378 = vunpack.c.l.b16 %v2239
        %v2379 = vunpack.c.h.b16 %v2239
        %v2380 = vunpack.c.l.b16 %v2240
        %v2381 = vunpack.c.h.b16 %v2240
        %v2382 = vunpack.c.l.b16 %v2241
        %v2383 = vunpack.c.h.b16 %v2241
        %v2384 = vunpack.c.l.b16 %v2242
        %v2385 = vunpack.c.h.b16 %v2242
        %v2386 = vunpack.c.l.b16 %v2243
        %v2387 = vunpack.c.h.b16 %v2243
        %v2388 = vunpack.c.l.b16 %v2244
        %v2389 = vunpack.c.h.b16 %v2244
        %v2390 = vunpack.c.l.b16 %v2245
        %v2391 = vunpack.c.h.b16 %v2245
        %v2392 = vunpack.c.l.b16 %v2246
        %v2393 = vunpack.c.h.b16 %v2246
        %v2394 = vunpack.c.l.b16 %v2247
        %v2395 = vunpack.c.h.b16 %v2247
        %v2396 = vunpack.c.l.b16 %v2248
        %v2397 = vunpack.c.h.b16 %v2248
        %v2398 = vunpack.c.l.b16 %v2249
        %v2399 = vunpack.c.h.b16 %v2249
        %v2400 = vunpack.c.l.b16 %v2250
        %v2401 = vunpack.c.h.b16 %v2250
        %v2402 = vunpack.c.l.b16 %v2251
        %v2403 = vunpack.c.h.b16 %v2251
        %v2404 = vunpack.c.l.b16 %v2252
        %v2405 = vunpack.c.h.b16 %v2252
        %v2406 = vunpack.c.l.b16 %v2253
        %v2407 = vunpack.c.h.b16 %v2253
        %v2408 = vunpack.c.l.b16 %v2254
        %v2409 = vunpack.c.h.b16 %v2254
        %v2410 = vunpack.c.l.b16 %v2255
        %v2411 = vunpack.c.h.b16 %v2255
        %v2412 = vunpack.c.l.b16 %v2256
        %v2413 = vunpack.c.h.b16 %v2256
        %v2414 = vunpack.c.l.b16 %v2257
        %v2415 = vunpack.c.h.b16 %v2257
        %v2416 = vunpack.c.l.b16 %v2258
        %v2417 = vunpack.c.h.b16 %v2258
        %v2418 = vunpack.c.l.b16 %v2259
        %v2419 = vunpack.c.h.b16 %v2259
        %v2420 = vunpack.c.l.b16 %v2260
        %v2421 = vunpack.c.h.b16 %v2260
        %v2422 = vunpack.c.l.b16 %v2261
        %v2423 = vunpack.c.h.b16 %v2261
        %v2424 = vunpack.c.l.b16 %v2262
        %v2425 = vunpack.c.h.b16 %v2262
        %v2426 = vunpack.c.l.b16 %v2263
        %v2427 = vunpack.c.h.b16 %v2263
        %v2428 = vunpack.c.l.b16 %v2264
        %v2429 = vunpack.c.h.b16 %v2264
        %v2430 = vunpack.c.l.b16 %v2265
        %v2431 = vunpack.c.h.b16 %v2265
        %v2432 = vunpack.c.l.b16 %v2266
        %v2433 = vunpack.c.h.b16 %v2266
        %v2434 = vunpack.c.l.b16 %v2267
        %v2435 = vunpack.c.h.b16 %v2267
        %v2436 = vunpack.c.l.b16 %v2268
        %v2437 = vunpack.c.h.b16 %v2268
        %v2438 = vunpack.c.l.b16 %v2269
        %v2439 = vunpack.c.h.b16 %v2269
        %v2440 = vunpack.c.l.b16 %v2270
        %v2441 = vunpack.c.h.b16 %v2270
        %v2442 = vunpack.c.l.b16 %v2271
        %v2443 = vunpack.c.h.b16 %v2271
        %v2444 = vunpack.c.l.b16 %v2272
        %v2445 = vunpack.c.h.b16 %v2272
        %v2446 = vunpack.c.l.b16 %v2273
        %v2447 = vunpack.c.h.b16 %v2273
        %v2448 = vunpack.c.l.b16 %v2274
        %v2449 = vunpack.c.h.b16 %v2274
        %v2450 = vunpack.c.l.b16 %v2275
        %v2451 = vunpack.c.h.b16 %v2275
        %v2452 = vunpack.c.l.b16 %v2276
        %v2453 = vunpack.c.h.b16 %v2276
        %v2454 = vunpack.c.l.b16 %v2277
        %v2455 = vunpack.c.h.b16 %v2277
        %v2456 = vunpack.c.l.b16 %v2278
        %v2457 = vunpack.c.h.b16 %v2278
        %v2458 = vunpack.c.l.b16 %v2279
        %v2459 = vunpack.c.h.b16 %v2279
        %v2460 = vunpack.c.l.b16 %v2280
        %v2461 = vunpack.c.h.b16 %v2280
        %v2462 = vunpack.c.l.b16 %v2281
        %v2463 = vunpack.c.h.b16 %v2281
        %v2464 = vunpack.c.l.b16 %v2282
        %v2465 = vunpack.c.h.b16 %v2282
        %v2466 = vunpack.c.l.b16 %v2283
        %v2467 = vunpack.c.h.b16 %v2283
        %v2468 = vunpack.c.l.b16 %v2284
        %v2469 = vunpack.c.h.b16 %v2284
        %v2470 = vunpack.c.l.b16 %v2285
        %v2471 = vunpack.c.h.b16 %v2285
        %v2472 = vunpack.c.l.b16 %v2286
        %v2473 = vunpack.c.h.b16 %v2286
        %v2474 = vunpack.c.l.b16 %v2287
        %v2475 = vunpack.c.h.b16 %v2287
        %v2476 = vunpack.c.l.b16 %v2288
        %v2477 = vunpack.c.h.b16 %v2288
        %v2478 = vunpack.c.l.b16 %v2289
        %v2479 = vunpack.c.h.b16 %v2289
        %v2480 = vunpack.c.l.b16 %v2290
        %v2481 = vunpack.c.h.b16 %v2290
        %v2482 = vunpack.c.l.b16 %v2291
        %v2483 = vunpack.c.h.b16 %v2291
        %v2484 = vpack.c.b16 %v2356, %v2356
        %v2485 = vpack.c.b16 %v2357, %v2357
        %v2486 = vpack.c.b16 %v2358, %v2358
        %v2487 = vpack.c.b16 %v2359, %v2359
        %v2488 = vpack.c.b16 %v2360, %v2360
        %v2489 = vpack.c.b16 %v2361, %v2361
        %v2490 = vpack.c.b16 %v2362, %v2362
        %v2491 = vpack.c.b16 %v2363, %v2363
        %v2492 = vpack.c.b16 %v2364, %v2364
        %v2493 = vpack.c.b16 %v2365, %v2365
        %v2494 = vpack.c.b16 %v2366, %v2366
        %v2495 = vpack.c.b16 %v2367, %v2367
        %v2496 = vpack.c.b16 %v2368, %v2368
        %v2497 = vpack.c.b16 %v2369, %v2369
        %v2498 = vpack.c.b16 %v2370, %v2370
        %v2499 = vpack.c.b16 %v2371, %v2371
        %v2500 = vpack.c.b16 %v2372, %v2372
        %v2501 = vpack.c.b16 %v2373, %v2373
        %v2502 = vpack.c.b16 %v2374, %v2374
        %v2503 = vpack.c.b16 %v2375, %v2375
        %v2504 = vpack.c.b16 %v2376, %v2376
        %v2505 = vpack.c.b16 %v2377, %v2377
        %v2506 = vpack.c.b16 %v2378, %v2378
        %v2507 = vpack.c.b16 %v2379, %v2379
        %v2508 = vpack.c.b16 %v2380, %v2380
        %v2509 = vpack.c.b16 %v2381, %v2381
        %v2510 = vpack.c.b16 %v2382, %v2382
        %v2511 = vpack.c.b16 %v2383, %v2383
        %v2512 = vpack.c.b16 %v2384, %v2384
        %v2513 = vpack.c.b16 %v2385, %v2385
        %v2514 = vpack.c.b16 %v2386, %v2386
        %v2515 = vpack.c.b16 %v2387, %v2387
        %v2516 = vpack.c.b16 %v2388, %v2388
        %v2517 = vpack.c.b16 %v2389, %v2389
        %v2518 = vpack.c.b16 %v2390, %v2390
        %v2519 = vpack.c.b16 %v2391, %v2391
        %v2520 = vpack.c.b16 %v2392, %v2392
        %v2521 = vpack.c.b16 %v2393, %v2393
        %v2522 = vpack.c.b16 %v2394, %v2394
        %v2523 = vpack.c.b16 %v2395, %v2395
        %v2524 = vpack.c.b16 %v2396, %v2396
        %v2525 = vpack.c.b16 %v2397, %v2397
        %v2526 = vpack.c.b16 %v2398, %v2398
        %v2527 = vpack.c.b16 %v2399, %v2399
        %v2528 = vpack.c.b16 %v2400, %v2400
        %v2529 = vpack.c.b16 %v2401, %v2401
        %v2530 = vpack.c.b16 %v2402, %v2402
        %v2531 = vpack.c.b16 %v2403, %v2403
        %v2532 = vpack.c.b16 %v2404, %v2404
        %v2533 = vpack.c.b16 %v2405, %v2405
        %v2534 = vpack.c.b16 %v2406, %v2406
        %v2535 = vpack.c.b16 %v2407, %v2407
        %v2536 = vpack.c.b16 %v2408, %v2408
        %v2537 = vpack.c.b16 %v2409, %v2409
        %v2538 = vpack.c.b16 %v2410, %v2410
        %v2539 = vpack.c.b16 %v2411, %v2411
        %v2540 = vpack.c.b16 %v2412, %v2412
        %v2541 = vpack.c.b16 %v2413, %v2413
        %v2542 = vpack.c.b16 %v2414, %v2414
        %v2543 = vpack.c.b16 %v2415, %v2415
        %v2544 = vpack.c.b16 %v2416, %v2416
        %v2545 = vpack.c.b16 %v2417, %v2417
        %v2546 = vpack.c.b16 %v2418, %v2418
        %v2547 = vpack.c.b16 %v2419, %v2419
        %v2548 = vpack.c.b16 %v2420, %v2420
        %v2549 = vpack.c.b16 %v2421, %v2421
        %v2550 = vpack.c.b16 %v2422, %v2422
        %v2551 = vpack.c.b16 %v2423, %v2423
        %v2552 = vpack.c.b16 %v2424, %v2424
        %v2553 = vpack.c.b16 %v2425, %v2425
        %v2554 = vpack.c.b16 %v2426, %v2426
        %v2555 = vpack.c.b16 %v2427, %v2427
        %v2556 = vpack.c.b16 %v2428, %v2428
        %v2557 = vpack.c.b16 %v2429, %v2429
        %v2558 = vpack.c.b16 %v2430, %v2430
        %v2559 = vpack.c.b16 %v2431, %v2431
        %v2560 = vpack.c.b16 %v2432, %v2432
        %v2561 = vpack.c.b16 %v2433, %v2433
        %v2562 = vpack.c.b16 %v2434, %v2434
        %v2563 = vpack.c.b16 %v2435, %v2435
        %v2564 = vpack.c.b16 %v2436, %v2436
        %v2565 = vpack.c.b16 %v2437, %v2437
        %v2566 = vpack.c.b16 %v2438, %v2438
        %v2567 = vpack.c.b16 %v2439, %v2439
        %v2568 = vpack.c.b16 %v2440, %v2440
        %v2569 = vpack.c.b16 %v2441, %v2441
        %v2570 = vpack.c.b16 %v2442, %v2442
        %v2571 = vpack.c.b16 %v2443, %v2443
        %v2572 = vpack.c.b16 %v2444, %v2444
        %v2573 = vpack.c.b16 %v2445, %v2445
        %v2574 = vpack.c.b16 %v2446, %v2446
        %v2575 = vpack.c.b16 %v2447, %v2447
        %v2576 = vpack.c.b16 %v2448, %v2448
        %v2577 = vpack.c.b16 %v2449, %v2449
        %v2578 = vpack.c.b16 %v2450, %v2450
        %v2579 = vpack.c.b16 %v2451, %v2451
        %v2580 = vpack.c.b16 %v2452, %v2452
        %v2581 = vpack.c.b16 %v2453, %v2453
        %v2582 = vpack.c.b16 %v2454, %v2454
        %v2583 = vpack.c.b16 %v2455, %v2455
        %v2584 = vpack.c.b16 %v2456, %v2456
        %v2585 = vpack.c.b16 %v2457, %v2457
        %v2586 = vpack.c.b16 %v2458, %v2458
        %v2587 = vpack.c.b16 %v2459, %v2459
        %v2588 = vpack.c.b16 %v2460, %v2460
        %v2589 = vpack.c.b16 %v2461, %v2461
        %v2590 = vpack.c.b16 %v2462, %v2462
        %v2591 = vpack.c.b16 %v2463, %v2463
        %v2592 = vpack.c.b16 %v2464, %v2464
        %v2593 = vpack.c.b16 %v2465, %v2465
        %v2594 = vpack.c.b16 %v2466, %v2466
        %v2595 = vpack.c.b16 %v2467, %v2467
        %v2596 = vpack.c.b16 %v2468, %v2468
        %v2597 = vpack.c.b16 %v2469, %v2469
        %v2598 = vpack.c.b16 %v2470, %v2470
        %v2599 = vpack.c.b16 %v2471, %v2471
        %v2600 = vpack.c.b16 %v2472, %v2472
        %v2601 = vpack.c.b16 %v2473, %v2473
        %v2602 = vpack.c.b16 %v2474, %v2474
        %v2603 = vpack.c.b16 %v2475, %v2475
        %v2604 = vpack.c.b16 %v2476, %v2476
        %v2605 = vpack.c.b16 %v2477, %v2477
        %v2606 = vpack.c.b16 %v2478, %v2478
        %v2607 = vpack.c.b16 %v2479, %v2479
        %v2608 = vpack.c.b16 %v2480, %v2480
        %v2609 = vpack.c.b16 %v2481, %v2481
        %v2610 = vpack.c.b16 %v2482, %v2482
        %v2611 = vpack.c.b16 %v2483, %v2483
        %2740 = vst [vmem:[%s252] sm:$0xf] %v2484
        %2741 = vst [vmem:[%s252 + $0x4] sm:$0xf] %v2485
        %2742 = vst [vmem:[%s252 + $0x8] sm:$0xf] %v2486
        %2743 = vst [vmem:[%s252 + $0xc] sm:$0xf] %v2487
        %2744 = vst [vmem:[%s252 + $0x10] sm:$0xf] %v2488
        %2745 = vst [vmem:[%s252 + $0x14] sm:$0xf] %v2489
        %2746 = vst [vmem:[%s252 + $0x18] sm:$0xf] %v2490
        %2747 = vst [vmem:[%s252 + $0x1c] sm:$0xf] %v2491
        %2748 = vst [vmem:[%s252 + $0x20] sm:$0xf] %v2492
        %2749 = vst [vmem:[%s252 + $0x24] sm:$0xf] %v2493
        %2750 = vst [vmem:[%s252 + $0x28] sm:$0xf] %v2494
        %2751 = vst [vmem:[%s252 + $0x2c] sm:$0xf] %v2495
        %2752 = vst [vmem:[%s252 + $0x30] sm:$0xf] %v2496
        %2753 = vst [vmem:[%s252 + $0x34] sm:$0xf] %v2497
        %2754 = vst [vmem:[%s252 + $0x38] sm:$0xf] %v2498
        %2755 = vst [vmem:[%s252 + $0x3c] sm:$0xf] %v2499
        %2756 = vst [vmem:[%s252 + $0x40] sm:$0xf] %v2500
        %2757 = vst [vmem:[%s252 + $0x44] sm:$0xf] %v2501
        %2758 = vst [vmem:[%s252 + $0x48] sm:$0xf] %v2502
        %2759 = vst [vmem:[%s252 + $0x4c] sm:$0xf] %v2503
        %2760 = vst [vmem:[%s252 + $0x50] sm:$0xf] %v2504
        %2761 = vst [vmem:[%s252 + $0x54] sm:$0xf] %v2505
        %2762 = vst [vmem:[%s252 + $0x58] sm:$0xf] %v2506
        %2763 = vst [vmem:[%s252 + $0x5c] sm:$0xf] %v2507
        %2764 = vst [vmem:[%s252 + $0x60] sm:$0xf] %v2508
        %2765 = vst [vmem:[%s252 + $0x64] sm:$0xf] %v2509
        %2766 = vst [vmem:[%s252 + $0x68] sm:$0xf] %v2510
        %2767 = vst [vmem:[%s252 + $0x6c] sm:$0xf] %v2511
        %2768 = vst [vmem:[%s252 + $0x70] sm:$0xf] %v2512
        %2769 = vst [vmem:[%s252 + $0x74] sm:$0xf] %v2513
        %2770 = vst [vmem:[%s252 + $0x78] sm:$0xf] %v2514
        %2771 = vst [vmem:[%s252 + $0x7c] sm:$0xf] %v2515
        %2772 = vst [vmem:[%s252 + $0x80] sm:$0xf] %v2516
        %2773 = vst [vmem:[%s252 + $0x84] sm:$0xf] %v2517
        %2774 = vst [vmem:[%s252 + $0x88] sm:$0xf] %v2518
        %2775 = vst [vmem:[%s252 + $0x8c] sm:$0xf] %v2519
        %2776 = vst [vmem:[%s252 + $0x90] sm:$0xf] %v2520
        %2777 = vst [vmem:[%s252 + $0x94] sm:$0xf] %v2521
        %2778 = vst [vmem:[%s252 + $0x98] sm:$0xf] %v2522
        %2779 = vst [vmem:[%s252 + $0x9c] sm:$0xf] %v2523
        %2780 = vst [vmem:[%s252 + $0xa0] sm:$0xf] %v2524
        %2781 = vst [vmem:[%s252 + $0xa4] sm:$0xf] %v2525
        %2782 = vst [vmem:[%s252 + $0xa8] sm:$0xf] %v2526
        %2783 = vst [vmem:[%s252 + $0xac] sm:$0xf] %v2527
        %2784 = vst [vmem:[%s252 + $0xb0] sm:$0xf] %v2528
        %2785 = vst [vmem:[%s252 + $0xb4] sm:$0xf] %v2529
        %2786 = vst [vmem:[%s252 + $0xb8] sm:$0xf] %v2530
        %2787 = vst [vmem:[%s252 + $0xbc] sm:$0xf] %v2531
        %2788 = vst [vmem:[%s252 + $0xc0] sm:$0xf] %v2532
        %2789 = vst [vmem:[%s252 + $0xc4] sm:$0xf] %v2533
        %2790 = vst [vmem:[%s252 + $0xc8] sm:$0xf] %v2534
        %2791 = vst [vmem:[%s252 + $0xcc] sm:$0xf] %v2535
        %2792 = vst [vmem:[%s252 + $0xd0] sm:$0xf] %v2536
        %2793 = vst [vmem:[%s252 + $0xd4] sm:$0xf] %v2537
        %2794 = vst [vmem:[%s252 + $0xd8] sm:$0xf] %v2538
        %2795 = vst [vmem:[%s252 + $0xdc] sm:$0xf] %v2539
        %2796 = vst [vmem:[%s252 + $0xe0] sm:$0xf] %v2540
        %2797 = vst [vmem:[%s252 + $0xe4] sm:$0xf] %v2541
        %2798 = vst [vmem:[%s252 + $0xe8] sm:$0xf] %v2542
        %2799 = vst [vmem:[%s252 + $0xec] sm:$0xf] %v2543
        %2800 = vst [vmem:[%s252 + $0xf0] sm:$0xf] %v2544
        %2801 = vst [vmem:[%s252 + $0xf4] sm:$0xf] %v2545
        %2802 = vst [vmem:[%s252 + $0xf8] sm:$0xf] %v2546
        %2803 = vst [vmem:[%s252 + $0xfc] sm:$0xf] %v2547
        %2804 = vst [vmem:[%s252 + $0x100] sm:$0xf] %v2548
        %2805 = vst [vmem:[%s252 + $0x104] sm:$0xf] %v2549
        %2806 = vst [vmem:[%s252 + $0x108] sm:$0xf] %v2550
        %2807 = vst [vmem:[%s252 + $0x10c] sm:$0xf] %v2551
        %2808 = vst [vmem:[%s252 + $0x110] sm:$0xf] %v2552
        %2809 = vst [vmem:[%s252 + $0x114] sm:$0xf] %v2553
        %2810 = vst [vmem:[%s252 + $0x118] sm:$0xf] %v2554
        %2811 = vst [vmem:[%s252 + $0x11c] sm:$0xf] %v2555
        %2812 = vst [vmem:[%s252 + $0x120] sm:$0xf] %v2556
        %2813 = vst [vmem:[%s252 + $0x124] sm:$0xf] %v2557
        %2814 = vst [vmem:[%s252 + $0x128] sm:$0xf] %v2558
        %2815 = vst [vmem:[%s252 + $0x12c] sm:$0xf] %v2559
        %2816 = vst [vmem:[%s252 + $0x130] sm:$0xf] %v2560
        %2817 = vst [vmem:[%s252 + $0x134] sm:$0xf] %v2561
        %2818 = vst [vmem:[%s252 + $0x138] sm:$0xf] %v2562
        %2819 = vst [vmem:[%s252 + $0x13c] sm:$0xf] %v2563
        %2820 = vst [vmem:[%s252 + $0x140] sm:$0xf] %v2564
        %2821 = vst [vmem:[%s252 + $0x144] sm:$0xf] %v2565
        %2822 = vst [vmem:[%s252 + $0x148] sm:$0xf] %v2566
        %2823 = vst [vmem:[%s252 + $0x14c] sm:$0xf] %v2567
        %2824 = vst [vmem:[%s252 + $0x150] sm:$0xf] %v2568
        %2825 = vst [vmem:[%s252 + $0x154] sm:$0xf] %v2569
        %2826 = vst [vmem:[%s252 + $0x158] sm:$0xf] %v2570
        %2827 = vst [vmem:[%s252 + $0x15c] sm:$0xf] %v2571
        %2828 = vst [vmem:[%s252 + $0x160] sm:$0xf] %v2572
        %2829 = vst [vmem:[%s252 + $0x164] sm:$0xf] %v2573
        %2830 = vst [vmem:[%s252 + $0x168] sm:$0xf] %v2574
        %2831 = vst [vmem:[%s252 + $0x16c] sm:$0xf] %v2575
        %2832 = vst [vmem:[%s252 + $0x170] sm:$0xf] %v2576
        %2833 = vst [vmem:[%s252 + $0x174] sm:$0xf] %v2577
        %2834 = vst [vmem:[%s252 + $0x178] sm:$0xf] %v2578
        %2835 = vst [vmem:[%s252 + $0x17c] sm:$0xf] %v2579
        %2836 = vst [vmem:[%s252 + $0x180] sm:$0xf] %v2580
        %2837 = vst [vmem:[%s252 + $0x184] sm:$0xf] %v2581
        %2838 = vst [vmem:[%s252 + $0x188] sm:$0xf] %v2582
        %2839 = vst [vmem:[%s252 + $0x18c] sm:$0xf] %v2583
        %2840 = vst [vmem:[%s252 + $0x190] sm:$0xf] %v2584
        %2841 = vst [vmem:[%s252 + $0x194] sm:$0xf] %v2585
        %2842 = vst [vmem:[%s252 + $0x198] sm:$0xf] %v2586
        %2843 = vst [vmem:[%s252 + $0x19c] sm:$0xf] %v2587
        %2844 = vst [vmem:[%s252 + $0x1a0] sm:$0xf] %v2588
        %2845 = vst [vmem:[%s252 + $0x1a4] sm:$0xf] %v2589
        %2846 = vst [vmem:[%s252 + $0x1a8] sm:$0xf] %v2590
        %2847 = vst [vmem:[%s252 + $0x1ac] sm:$0xf] %v2591
        %2848 = vst [vmem:[%s252 + $0x1b0] sm:$0xf] %v2592
        %2849 = vst [vmem:[%s252 + $0x1b4] sm:$0xf] %v2593
        %2850 = vst [vmem:[%s252 + $0x1b8] sm:$0xf] %v2594
        %2851 = vst [vmem:[%s252 + $0x1bc] sm:$0xf] %v2595
        %2852 = vst [vmem:[%s252 + $0x1c0] sm:$0xf] %v2596
        %2853 = vst [vmem:[%s252 + $0x1c4] sm:$0xf] %v2597
        %2854 = vst [vmem:[%s252 + $0x1c8] sm:$0xf] %v2598
        %2855 = vst [vmem:[%s252 + $0x1cc] sm:$0xf] %v2599
        %2856 = vst [vmem:[%s252 + $0x1d0] sm:$0xf] %v2600
        %2857 = vst [vmem:[%s252 + $0x1d4] sm:$0xf] %v2601
        %2858 = vst [vmem:[%s252 + $0x1d8] sm:$0xf] %v2602
        %2859 = vst [vmem:[%s252 + $0x1dc] sm:$0xf] %v2603
        %2860 = vst [vmem:[%s252 + $0x1e0] sm:$0xf] %v2604
        %2861 = vst [vmem:[%s252 + $0x1e4] sm:$0xf] %v2605
        %2862 = vst [vmem:[%s252 + $0x1e8] sm:$0xf] %v2606
        %2863 = vst [vmem:[%s252 + $0x1ec] sm:$0xf] %v2607
        %2864 = vst [vmem:[%s252 + $0x1f0] sm:$0xf] %v2608
        %2865 = vst [vmem:[%s252 + $0x1f4] sm:$0xf] %v2609
        %2866 = vst [vmem:[%s252 + $0x1f8] sm:$0xf] %v2610
        %2867 = vst [vmem:[%s252 + $0x1fc] sm:$0xf] %v2611
      $region40: #{autoencoder_de_forward.10} parent=31 // pred_fallthru
        _
      %s2868 = smul.u32 128, %s19
      %p2869 = scmp.lt.s32.totalorder %s2868, 255
      %s2870 = scalar_select %p2869, %s2868, 255
      %p2871 = scmp.lt.s32.totalorder %s20, 0
      %s2872 = scalar_select %p2871, %s20, 0
      %s2873 = sadd.s32 %s2872, %s2870
      %s2874 = smul.addr %s2873, 4
      %s2875 = scalar_lea.vmem %s3, %s2874
      // Predicated region
      $region41: #{autoencoder_de_forward.10} parent=31 // pred_check
        %p2876 = pneg %p135
      $region42: #{autoencoder_de_forward.10} parent=31 // pred_check_branch
        %2878 = sbr.rel (%p2876) target = $region44
      $region43: #{autoencoder_de_forward.10} parent=31 // pred_region
        %s2879 = smul.u32 128, %s19
      $region44: #{autoencoder_de_forward.10} parent=31 // pred_fallthru
        _
    $region32: #{autoencoder_de_forward.10} parent=5 // pred_fallthru
      _
    %p2880 = scmp.le.s32.totalorder 2, %s9
    // Predicated region
    $region45: #{autoencoder_de_forward.10} parent=5 // pred_check
      %p2881 = pneg %p2880
    $region46: #{autoencoder_de_forward.10} parent=5 // pred_check_branch
      %2883 = sbr.rel (%p2881) target = $region48
    $region47: #{autoencoder_de_forward.10} parent=5 // pred_region
      %s2884 = ssub.s32 %s9, 2
      // Predicated region
      $region49: #{autoencoder_de_forward.10} parent=47 // pred_check
        %p2885 = pneg %p141
      $region50: #{autoencoder_de_forward.10} parent=47 // pred_check_branch
        %2887 = sbr.rel (%p2885) target = $region52
      $region51: #{autoencoder_de_forward.10} parent=47 // pred_region
        %s2888 = smul.u32 128, %s22
        %p2889 = scmp.lt.s32.totalorder %s2888, 255
        %s2890 = scalar_select %p2889, %s2888, 255
        %p2891 = scmp.lt.s32.totalorder %s23, 0
        %s2892 = scalar_select %p2891, %s23, 0
        %s2893 = sadd.s32 %s2892, %s2890
        %s2894 = smul.addr %s2893, 4
        %s2895 = scalar_lea.vmem %s3, %s2894
      $region52: #{autoencoder_de_forward.10} parent=47 // pred_fallthru
        _
    $region48: #{autoencoder_de_forward.10} parent=5 // pred_fallthru
      _
  $region6: #{autoencoder_de_forward.10} parent=0 // loop_footer
    %s13 = sadd.s32 1, %s9
  $region7: #{autoencoder_de_forward.10} parent=0 // loop_footer_branch
    %8 = sbr.rel target = $region3
  $region8: #{autoencoder_de_forward.10} parent=0 // loop_exit
    _

// kernel: autoencoder_de_forward.11
$region0: #{autoencoder_de_forward.11}
  #allocation0 [shape = 'u32[]', space=smem, size = 0x4, offset = 0x4, fixed_abs, tag = 'smem constant byte address 0x4 - core index']
  #allocation1 [shape = 'u32[144,128]{1,0:T(1,128)}', space=vmem, size = 0x12000, scoped, tag = 'internal scratch']
  #allocation2 [shape = 'f32[1024,128]{1,0:T(8,128)}', space=vmem, size = 0x80000, scoped, tag = 'scratch operand']
  %s0 = inlined_call_operand.vmem [shape: bf16[8192,4], index: 0, kind: input, shape index: {}]
  %s1 = inlined_call_operand.vmem [shape: bf16[4,128], index: 1, kind: input, shape index: {}]
  %s2 = inlined_call_operand.vmem [shape: f32[1,128], index: 2, kind: input, shape index: {}]
  %s3 = inlined_call_operand.vmem [shape: bf16[8192,128], index: 3, kind: output, shape index: {}]
  %s4 = sld [smem:[#allocation0]]
  $region53: #{autoencoder_de_forward.11} parent=0
    _
  %s6 = ssub.s32 1, %s4
  %s7 = scalar_select 0, %s6, %s4
  loop: start=0, step=1, limit=10
  $region2: #{autoencoder_de_forward.11} parent=0 // loop_pre_header
    _
  $region3: #{autoencoder_de_forward.11} parent=0 // loop_header
    %s9 = sphi 0, %s13
    %p10 = scmp.ge.s32.totalorder %s9, 10
    %s16 = sphi 0, %s35
    %s17 = sphi 0, %s31
    %s18 = sphi 0, %s27
    %s19 = sphi 0, %s16
    %s20 = sphi 0, %s17
    %s21 = sphi 0, %s18
    %s22 = sphi 0, %s19
    %s23 = sphi 0, %s20
    %s24 = sphi 0, %s21
    %s40 = sphi 0, %s42
    %s43 = sphi 0, %s40
    %s44 = sphi 0, %s43
    %s60 = sphi 0, %s44
    %s68 = sphi 0, %s70
    %s71 = sphi 0, %s68
    %s72 = sphi 0, %s71
    %s88 = sphi 0, %s72
    %s94 = sphi 0, %s96
    %s97 = sphi 0, %s94
    %s98 = sphi 0, %s97
    %s114 = sphi 0, %s98
    %s122 = sphi 0, %s124
    %s125 = sphi 0, %s122
    %s126 = sphi 0, %s125
    %s142 = sphi 0, %s126
  $region4: #{autoencoder_de_forward.11} parent=0 // loop_header_branch
    %12 = sbr.rel (%p10) target = $region8
  $region5: #{autoencoder_de_forward.11} parent=0 // loop_body
    %s14 = ssub.s32 %s9, 1
    %s15 = ssub.s32 %s9, 2
    %s25 = sadd.s32 1, %s18
    %p26 = scmp.ge.s32.totalorder %s25, 1
    %s27 = scalar_select %p26, 0, %s25
    %s28 = sadd.s32 1, %s17
    %s29 = scalar_select %p26, %s28, %s17
    %p30 = scmp.ge.s32.totalorder %s29, 1
    %s31 = scalar_select %p30, 0, %s29
    %s32 = sadd.s32 1, %s16
    %s33 = scalar_select %p30, %s32, %s16
    %p34 = scmp.ge.s32.totalorder %s33, 8
    %s35 = scalar_select %p34, 0, %s33
    %s36 = ssub.s32 %s16, %s35
    %s37 = ssub.s32 %s18, %s27
    %s38 = sor.u32 %s36, %s37
    %p39 = scmp.eq.s32.totalorder %s38, 0
    %s41 = sadd.s32 %s40, 1
    %s42 = scalar_select %p39, %s40, %s41
    %p45 = pneg %p39
    %p46 = scmp.eq.s32.totalorder %s9, 7
    %p47 = por %p45, %p46
    %p48 = scmp.ne.s32.totalorder %s40, %s43
    %p49 = scmp.eq.s32.totalorder %s9, 0
    %p50 = por %p48, %p49
    %p51 = scmp.ne.s32.totalorder %s40, %s43
    %p52 = scmp.eq.s32.totalorder %s14, 7
    %p53 = por %p51, %p52
    %p54 = scmp.ne.s32.totalorder %s43, %s44
    %p55 = scmp.eq.s32.totalorder %s14, 0
    %p56 = por %p54, %p55
    %p57 = scmp.ne.s32.totalorder %s43, %s44
    %p58 = scmp.eq.s32.totalorder %s15, 7
    %p59 = por %p57, %p58
    %p61 = scmp.ne.s32.totalorder %s44, %s60
    %p62 = scmp.eq.s32.totalorder %s15, 0
    %p63 = por %p61, %p62
    %s64 = ssub.s32 %s18, %s27
    %s65 = ssub.s32 %s17, %s31
    %s66 = sor.u32 %s64, %s65
    %p67 = scmp.eq.s32.totalorder %s66, 0
    %s69 = sadd.s32 %s68, 1
    %s70 = scalar_select %p67, %s68, %s69
    %p73 = pneg %p67
    %p74 = scmp.eq.s32.totalorder %s9, 7
    %p75 = por %p73, %p74
    %p76 = scmp.ne.s32.totalorder %s68, %s71
    %p77 = scmp.eq.s32.totalorder %s9, 0
    %p78 = por %p76, %p77
    %p79 = scmp.ne.s32.totalorder %s68, %s71
    %p80 = scmp.eq.s32.totalorder %s14, 7
    %p81 = por %p79, %p80
    %p82 = scmp.ne.s32.totalorder %s71, %s72
    %p83 = scmp.eq.s32.totalorder %s14, 0
    %p84 = por %p82, %p83
    %p85 = scmp.ne.s32.totalorder %s71, %s72
    %p86 = scmp.eq.s32.totalorder %s15, 7
    %p87 = por %p85, %p86
    %p89 = scmp.ne.s32.totalorder %s72, %s88
    %p90 = scmp.eq.s32.totalorder %s15, 0
    %p91 = por %p89, %p90
    %s92 = ssub.s32 %s17, %s31
    %p93 = scmp.eq.s32.totalorder %s92, 0
    %s95 = sadd.s32 %s94, 1
    %s96 = scalar_select %p93, %s94, %s95
    %p99 = pneg %p93
    %p100 = scmp.eq.s32.totalorder %s9, 7
    %p101 = por %p99, %p100
    %p102 = scmp.ne.s32.totalorder %s94, %s97
    %p103 = scmp.eq.s32.totalorder %s9, 0
    %p104 = por %p102, %p103
    %p105 = scmp.ne.s32.totalorder %s94, %s97
    %p106 = scmp.eq.s32.totalorder %s14, 7
    %p107 = por %p105, %p106
    %p108 = scmp.ne.s32.totalorder %s97, %s98
    %p109 = scmp.eq.s32.totalorder %s14, 0
    %p110 = por %p108, %p109
    %p111 = scmp.ne.s32.totalorder %s97, %s98
    %p112 = scmp.eq.s32.totalorder %s15, 7
    %p113 = por %p111, %p112
    %p115 = scmp.ne.s32.totalorder %s98, %s114
    %p116 = scmp.eq.s32.totalorder %s15, 0
    %p117 = por %p115, %p116
    %s118 = ssub.s32 %s16, %s35
    %s119 = ssub.s32 %s17, %s31
    %s120 = sor.u32 %s118, %s119
    %p121 = scmp.eq.s32.totalorder %s120, 0
    %s123 = sadd.s32 %s122, 1
    %s124 = scalar_select %p121, %s122, %s123
    %p127 = pneg %p121
    %p128 = scmp.eq.s32.totalorder %s9, 7
    %p129 = por %p127, %p128
    %p130 = scmp.ne.s32.totalorder %s122, %s125
    %p131 = scmp.eq.s32.totalorder %s9, 0
    %p132 = por %p130, %p131
    %p133 = scmp.ne.s32.totalorder %s122, %s125
    %p134 = scmp.eq.s32.totalorder %s14, 7
    %p135 = por %p133, %p134
    %p136 = scmp.ne.s32.totalorder %s125, %s126
    %p137 = scmp.eq.s32.totalorder %s14, 0
    %p138 = por %p136, %p137
    %p139 = scmp.ne.s32.totalorder %s125, %s126
    %p140 = scmp.eq.s32.totalorder %s15, 7
    %p141 = por %p139, %p140
    %p143 = scmp.ne.s32.totalorder %s126, %s142
    %p144 = scmp.eq.s32.totalorder %s15, 0
    %p145 = por %p143, %p144
    %p146 = scmp.le.s32.totalorder 1, %s9
    %p147 = scmp.lt.s32.totalorder %s9, 9
    %p148 = pnand %p146, %p147
    %p149 = pneg %p148
    // Predicated region
    $region9: #{autoencoder_de_forward.11} parent=5 // pred_check
      _
    $region10: #{autoencoder_de_forward.11} parent=5 // pred_check_branch
      %151 = sbr.rel (%p148) target = $region12
    $region11: #{autoencoder_de_forward.11} parent=5 // pred_region
      %s152 = ssub.s32 %s9, 1
      // Predicated region
      $region13: #{autoencoder_de_forward.11} parent=11 // pred_check
        %p153 = pneg %p84
      $region14: #{autoencoder_de_forward.11} parent=11 // pred_check_branch
        %155 = sbr.rel (%p153) target = $region16
      $region15: #{autoencoder_de_forward.11} parent=11 // pred_region
        %p156 = scmp.lt.s32.totalorder %s21, 0
        %s157 = scalar_select %p156, %s21, 0
        %p158 = scmp.lt.s32.totalorder %s20, 0
        %s159 = scalar_select %p158, %s20, 0
        %s160 = sadd.s32 %s159, %s157
        %s161 = smul.addr %s160, 2
        %s162 = scalar_lea.vmem %s1, %s161
      $region16: #{autoencoder_de_forward.11} parent=11 // pred_fallthru
        _
      // Predicated region
      $region17: #{autoencoder_de_forward.11} parent=11 // pred_check
        %p163 = pneg %p110
      $region18: #{autoencoder_de_forward.11} parent=11 // pred_check_branch
        %165 = sbr.rel (%p163) target = $region20
      $region19: #{autoencoder_de_forward.11} parent=11 // pred_region
        %p166 = scmp.lt.s32.totalorder %s20, 0
        %s167 = scalar_select %p166, %s20, 0
        %s168 = scalar_lea.vmem %s2, %s167
      $region20: #{autoencoder_de_forward.11} parent=11 // pred_fallthru
        _
    $region12: #{autoencoder_de_forward.11} parent=5 // pred_fallthru
      _
    %p169 = scmp.lt.s32.totalorder %s9, 8
    // Predicated region
    $region21: #{autoencoder_de_forward.11} parent=5 // pred_check
      %p170 = pneg %p169
    $region22: #{autoencoder_de_forward.11} parent=5 // pred_check_branch
      %172 = sbr.rel (%p170) target = $region24
    $region23: #{autoencoder_de_forward.11} parent=5 // pred_region
      // Predicated region
      $region25: #{autoencoder_de_forward.11} parent=23 // pred_check
        %p173 = pneg %p50
      $region26: #{autoencoder_de_forward.11} parent=23 // pred_check_branch
        %175 = sbr.rel (%p173) target = $region28
      $region27: #{autoencoder_de_forward.11} parent=23 // pred_region
        %s176 = smul.u32 128, %s16
        %p177 = scmp.lt.s32.totalorder %s176, 1023
        %s178 = scalar_select %p177, %s176, 1023
        %p179 = scmp.lt.s32.totalorder %s18, 0
        %s180 = scalar_select %p179, %s18, 0
        %s181 = sadd.s32 %s180, %s178
        %s182 = smul.addr %s181, 4
        %s183 = scalar_lea.vmem %s0, %s182
        %s184 = smul.u32 128, %s16
      $region28: #{autoencoder_de_forward.11} parent=23 // pred_fallthru
        _
    $region24: #{autoencoder_de_forward.11} parent=5 // pred_fallthru
      _
    %p185 = scmp.le.s32.totalorder 1, %s9
    %p186 = scmp.lt.s32.totalorder %s9, 9
    %p187 = pnand %p185, %p186
    %p188 = pneg %p187
    // Predicated region
    $region29: #{autoencoder_de_forward.11} parent=5 // pred_check
      _
    $region30: #{autoencoder_de_forward.11} parent=5 // pred_check_branch
      %190 = sbr.rel (%p187) target = $region32
    $region31: #{autoencoder_de_forward.11} parent=5 // pred_region
      %s191 = ssub.s32 %s9, 1
      %s192 = smul.u32 128, %s19
      %p193 = scmp.lt.s32.totalorder %s192, 1023
      %s194 = scalar_select %p193, %s192, 1023
      %p195 = scmp.lt.s32.totalorder %s21, 0
      %s196 = scalar_select %p195, %s21, 0
      %s197 = sadd.s32 %s196, %s194
      %s198 = smul.addr %s197, 4
      %s199 = scalar_lea.vmem %s0, %s198
      %p200 = pneg %p56
      %p201 = pneg %p53
      %p202 = scmp.lt.s32.totalorder %s21, 0
      %s203 = scalar_select %p202, %s21, 0
      %p204 = scmp.lt.s32.totalorder %s20, 0
      %s205 = scalar_select %p204, %s20, 0
      %s206 = sadd.s32 %s205, %s203
      %s207 = smul.addr %s206, 2
      %s208 = scalar_lea.vmem %s1, %s207
      %p209 = pneg %p84
      %p210 = pneg %p81
      %p211 = scmp.lt.s32.totalorder %s20, 0
      %s212 = scalar_select %p211, %s20, 0
      %s213 = scalar_lea.vmem %s2, %s212
      %p214 = pneg %p110
      %p215 = pneg %p107
      %p216 = pneg %p138
      %p217 = pneg %p135
      %s218 = smul.u32 128, %s19
      %p219 = scmp.lt.s32.totalorder %s218, 1023
      %s220 = scalar_select %p219, %s218, 1023
      %p221 = scmp.lt.s32.totalorder %s20, 0
      %s222 = scalar_select %p221, %s20, 0
      %s223 = sadd.s32 %s222, %s220
      %s224 = smul.addr %s223, 4
      %s225 = scalar_lea.vmem %s3, %s224
      %s226 = smul.u32 128, %s19
      %p227 = scmp.lt.s32.totalorder %s226, 1023
      %s228 = scalar_select %p227, %s226, 1023
      %p229 = scmp.lt.s32.totalorder %s21, 0
      %s230 = scalar_select %p229, %s21, 0
      %s231 = sadd.s32 %s230, %s228
      %s232 = smul.addr %s231, 4
      %s233 = scalar_lea.vmem %s0, %s232
      %s234 = smul.u32 128, %s19
      %p235 = scmp.lt.s32.totalorder %s21, 0
      %s236 = scalar_select %p235, %s21, 0
      %p237 = scmp.lt.s32.totalorder %s20, 0
      %s238 = scalar_select %p237, %s20, 0
      %s239 = sadd.s32 %s238, %s236
      %s240 = smul.addr %s239, 2
      %s241 = scalar_lea.vmem %s1, %s240
      %p242 = scmp.lt.s32.totalorder %s20, 0
      %s243 = scalar_select %p242, %s20, 0
      %s244 = scalar_lea.vmem %s2, %s243
      %s245 = smul.u32 128, %s19
      %p246 = scmp.lt.s32.totalorder %s245, 1023
      %s247 = scalar_select %p246, %s245, 1023
      %p248 = scmp.lt.s32.totalorder %s20, 0
      %s249 = scalar_select %p248, %s20, 0
      %s250 = sadd.s32 %s249, %s247
      %s251 = smul.addr %s250, 4
      %s252 = scalar_lea.vmem %s3, %s251
      %s253 = smul.u32 128, %s19
      %p255 = scmp.eq.s32.totalorder %s21, 0
      // Predicated region
      $region33: #{autoencoder_de_forward.11} parent=31 // pred_check
        %p256 = pneg %p255
      $region34: #{autoencoder_de_forward.11} parent=31 // pred_check_branch
        %258 = sbr.rel (%p256) target = $region36
      $region35: #{autoencoder_de_forward.11} parent=31 // pred_region
        %259 = vst [vmem:[#allocation2] sm:$0xff] 0.0
        %260 = vst [vmem:[#allocation2 + $0x8] sm:$0xff] 0.0
        %261 = vst [vmem:[#allocation2 + $0x10] sm:$0xff] 0.0
        %262 = vst [vmem:[#allocation2 + $0x18] sm:$0xff] 0.0
        %263 = vst [vmem:[#allocation2 + $0x20] sm:$0xff] 0.0
        %264 = vst [vmem:[#allocation2 + $0x28] sm:$0xff] 0.0
        %265 = vst [vmem:[#allocation2 + $0x30] sm:$0xff] 0.0
        %266 = vst [vmem:[#allocation2 + $0x38] sm:$0xff] 0.0
        %267 = vst [vmem:[#allocation2 + $0x40] sm:$0xff] 0.0
        %268 = vst [vmem:[#allocation2 + $0x48] sm:$0xff] 0.0
        %269 = vst [vmem:[#allocation2 + $0x50] sm:$0xff] 0.0
        %270 = vst [vmem:[#allocation2 + $0x58] sm:$0xff] 0.0
        %271 = vst [vmem:[#allocation2 + $0x60] sm:$0xff] 0.0
        %272 = vst [vmem:[#allocation2 + $0x68] sm:$0xff] 0.0
        %273 = vst [vmem:[#allocation2 + $0x70] sm:$0xff] 0.0
        %274 = vst [vmem:[#allocation2 + $0x78] sm:$0xff] 0.0
        %275 = vst [vmem:[#allocation2 + $0x80] sm:$0xff] 0.0
        %276 = vst [vmem:[#allocation2 + $0x88] sm:$0xff] 0.0
        %277 = vst [vmem:[#allocation2 + $0x90] sm:$0xff] 0.0
        %278 = vst [vmem:[#allocation2 + $0x98] sm:$0xff] 0.0
        %279 = vst [vmem:[#allocation2 + $0xa0] sm:$0xff] 0.0
        %280 = vst [vmem:[#allocation2 + $0xa8] sm:$0xff] 0.0
        %281 = vst [vmem:[#allocation2 + $0xb0] sm:$0xff] 0.0
        %282 = vst [vmem:[#allocation2 + $0xb8] sm:$0xff] 0.0
        %283 = vst [vmem:[#allocation2 + $0xc0] sm:$0xff] 0.0
        %284 = vst [vmem:[#allocation2 + $0xc8] sm:$0xff] 0.0
        %285 = vst [vmem:[#allocation2 + $0xd0] sm:$0xff] 0.0
        %286 = vst [vmem:[#allocation2 + $0xd8] sm:$0xff] 0.0
        %287 = vst [vmem:[#allocation2 + $0xe0] sm:$0xff] 0.0
        %288 = vst [vmem:[#allocation2 + $0xe8] sm:$0xff] 0.0
        %289 = vst [vmem:[#allocation2 + $0xf0] sm:$0xff] 0.0
        %290 = vst [vmem:[#allocation2 + $0xf8] sm:$0xff] 0.0
        %291 = vst [vmem:[#allocation2 + $0x100] sm:$0xff] 0.0
        %292 = vst [vmem:[#allocation2 + $0x108] sm:$0xff] 0.0
        %293 = vst [vmem:[#allocation2 + $0x110] sm:$0xff] 0.0
        %294 = vst [vmem:[#allocation2 + $0x118] sm:$0xff] 0.0
        %295 = vst [vmem:[#allocation2 + $0x120] sm:$0xff] 0.0
        %296 = vst [vmem:[#allocation2 + $0x128] sm:$0xff] 0.0
        %297 = vst [vmem:[#allocation2 + $0x130] sm:$0xff] 0.0
        %298 = vst [vmem:[#allocation2 + $0x138] sm:$0xff] 0.0
        %299 = vst [vmem:[#allocation2 + $0x140] sm:$0xff] 0.0
        %300 = vst [vmem:[#allocation2 + $0x148] sm:$0xff] 0.0
        %301 = vst [vmem:[#allocation2 + $0x150] sm:$0xff] 0.0
        %302 = vst [vmem:[#allocation2 + $0x158] sm:$0xff] 0.0
        %303 = vst [vmem:[#allocation2 + $0x160] sm:$0xff] 0.0
        %304 = vst [vmem:[#allocation2 + $0x168] sm:$0xff] 0.0
        %305 = vst [vmem:[#allocation2 + $0x170] sm:$0xff] 0.0
        %306 = vst [vmem:[#allocation2 + $0x178] sm:$0xff] 0.0
        %307 = vst [vmem:[#allocation2 + $0x180] sm:$0xff] 0.0
        %308 = vst [vmem:[#allocation2 + $0x188] sm:$0xff] 0.0
        %309 = vst [vmem:[#allocation2 + $0x190] sm:$0xff] 0.0
        %310 = vst [vmem:[#allocation2 + $0x198] sm:$0xff] 0.0
        %311 = vst [vmem:[#allocation2 + $0x1a0] sm:$0xff] 0.0
        %312 = vst [vmem:[#allocation2 + $0x1a8] sm:$0xff] 0.0
        %313 = vst [vmem:[#allocation2 + $0x1b0] sm:$0xff] 0.0
        %314 = vst [vmem:[#allocation2 + $0x1b8] sm:$0xff] 0.0
        %315 = vst [vmem:[#allocation2 + $0x1c0] sm:$0xff] 0.0
        %316 = vst [vmem:[#allocation2 + $0x1c8] sm:$0xff] 0.0
        %317 = vst [vmem:[#allocation2 + $0x1d0] sm:$0xff] 0.0
        %318 = vst [vmem:[#allocation2 + $0x1d8] sm:$0xff] 0.0
        %319 = vst [vmem:[#allocation2 + $0x1e0] sm:$0xff] 0.0
        %320 = vst [vmem:[#allocation2 + $0x1e8] sm:$0xff] 0.0
        %321 = vst [vmem:[#allocation2 + $0x1f0] sm:$0xff] 0.0
        %322 = vst [vmem:[#allocation2 + $0x1f8] sm:$0xff] 0.0
        %323 = vst [vmem:[#allocation2 + $0x200] sm:$0xff] 0.0
        %324 = vst [vmem:[#allocation2 + $0x208] sm:$0xff] 0.0
        %325 = vst [vmem:[#allocation2 + $0x210] sm:$0xff] 0.0
        %326 = vst [vmem:[#allocation2 + $0x218] sm:$0xff] 0.0
        %327 = vst [vmem:[#allocation2 + $0x220] sm:$0xff] 0.0
        %328 = vst [vmem:[#allocation2 + $0x228] sm:$0xff] 0.0
        %329 = vst [vmem:[#allocation2 + $0x230] sm:$0xff] 0.0
        %330 = vst [vmem:[#allocation2 + $0x238] sm:$0xff] 0.0
        %331 = vst [vmem:[#allocation2 + $0x240] sm:$0xff] 0.0
        %332 = vst [vmem:[#allocation2 + $0x248] sm:$0xff] 0.0
        %333 = vst [vmem:[#allocation2 + $0x250] sm:$0xff] 0.0
        %334 = vst [vmem:[#allocation2 + $0x258] sm:$0xff] 0.0
        %335 = vst [vmem:[#allocation2 + $0x260] sm:$0xff] 0.0
        %336 = vst [vmem:[#allocation2 + $0x268] sm:$0xff] 0.0
        %337 = vst [vmem:[#allocation2 + $0x270] sm:$0xff] 0.0
        %338 = vst [vmem:[#allocation2 + $0x278] sm:$0xff] 0.0
        %339 = vst [vmem:[#allocation2 + $0x280] sm:$0xff] 0.0
        %340 = vst [vmem:[#allocation2 + $0x288] sm:$0xff] 0.0
        %341 = vst [vmem:[#allocation2 + $0x290] sm:$0xff] 0.0
        %342 = vst [vmem:[#allocation2 + $0x298] sm:$0xff] 0.0
        %343 = vst [vmem:[#allocation2 + $0x2a0] sm:$0xff] 0.0
        %344 = vst [vmem:[#allocation2 + $0x2a8] sm:$0xff] 0.0
        %345 = vst [vmem:[#allocation2 + $0x2b0] sm:$0xff] 0.0
        %346 = vst [vmem:[#allocation2 + $0x2b8] sm:$0xff] 0.0
        %347 = vst [vmem:[#allocation2 + $0x2c0] sm:$0xff] 0.0
        %348 = vst [vmem:[#allocation2 + $0x2c8] sm:$0xff] 0.0
        %349 = vst [vmem:[#allocation2 + $0x2d0] sm:$0xff] 0.0
        %350 = vst [vmem:[#allocation2 + $0x2d8] sm:$0xff] 0.0
        %351 = vst [vmem:[#allocation2 + $0x2e0] sm:$0xff] 0.0
        %352 = vst [vmem:[#allocation2 + $0x2e8] sm:$0xff] 0.0
        %353 = vst [vmem:[#allocation2 + $0x2f0] sm:$0xff] 0.0
        %354 = vst [vmem:[#allocation2 + $0x2f8] sm:$0xff] 0.0
        %355 = vst [vmem:[#allocation2 + $0x300] sm:$0xff] 0.0
        %356 = vst [vmem:[#allocation2 + $0x308] sm:$0xff] 0.0
        %357 = vst [vmem:[#allocation2 + $0x310] sm:$0xff] 0.0
        %358 = vst [vmem:[#allocation2 + $0x318] sm:$0xff] 0.0
        %359 = vst [vmem:[#allocation2 + $0x320] sm:$0xff] 0.0
        %360 = vst [vmem:[#allocation2 + $0x328] sm:$0xff] 0.0
        %361 = vst [vmem:[#allocation2 + $0x330] sm:$0xff] 0.0
        %362 = vst [vmem:[#allocation2 + $0x338] sm:$0xff] 0.0
        %363 = vst [vmem:[#allocation2 + $0x340] sm:$0xff] 0.0
        %364 = vst [vmem:[#allocation2 + $0x348] sm:$0xff] 0.0
        %365 = vst [vmem:[#allocation2 + $0x350] sm:$0xff] 0.0
        %366 = vst [vmem:[#allocation2 + $0x358] sm:$0xff] 0.0
        %367 = vst [vmem:[#allocation2 + $0x360] sm:$0xff] 0.0
        %368 = vst [vmem:[#allocation2 + $0x368] sm:$0xff] 0.0
        %369 = vst [vmem:[#allocation2 + $0x370] sm:$0xff] 0.0
        %370 = vst [vmem:[#allocation2 + $0x378] sm:$0xff] 0.0
        %371 = vst [vmem:[#allocation2 + $0x380] sm:$0xff] 0.0
        %372 = vst [vmem:[#allocation2 + $0x388] sm:$0xff] 0.0
        %373 = vst [vmem:[#allocation2 + $0x390] sm:$0xff] 0.0
        %374 = vst [vmem:[#allocation2 + $0x398] sm:$0xff] 0.0
        %375 = vst [vmem:[#allocation2 + $0x3a0] sm:$0xff] 0.0
        %376 = vst [vmem:[#allocation2 + $0x3a8] sm:$0xff] 0.0
        %377 = vst [vmem:[#allocation2 + $0x3b0] sm:$0xff] 0.0
        %378 = vst [vmem:[#allocation2 + $0x3b8] sm:$0xff] 0.0
        %379 = vst [vmem:[#allocation2 + $0x3c0] sm:$0xff] 0.0
        %380 = vst [vmem:[#allocation2 + $0x3c8] sm:$0xff] 0.0
        %381 = vst [vmem:[#allocation2 + $0x3d0] sm:$0xff] 0.0
        %382 = vst [vmem:[#allocation2 + $0x3d8] sm:$0xff] 0.0
        %383 = vst [vmem:[#allocation2 + $0x3e0] sm:$0xff] 0.0
        %384 = vst [vmem:[#allocation2 + $0x3e8] sm:$0xff] 0.0
        %385 = vst [vmem:[#allocation2 + $0x3f0] sm:$0xff] 0.0
        %386 = vst [vmem:[#allocation2 + $0x3f8] sm:$0xff] 0.0
      $region36: #{autoencoder_de_forward.11} parent=31 // pred_fallthru
        _
      %v387 = vld [vmem:[#allocation2] sm:$0xff]
      %v388 = vld [vmem:[#allocation2 + $0x8] sm:$0xff]
      %v389 = vld [vmem:[#allocation2 + $0x10] sm:$0xff]
      %v390 = vld [vmem:[#allocation2 + $0x18] sm:$0xff]
      %v391 = vld [vmem:[#allocation2 + $0x20] sm:$0xff]
      %v392 = vld [vmem:[#allocation2 + $0x28] sm:$0xff]
      %v393 = vld [vmem:[#allocation2 + $0x30] sm:$0xff]
      %v394 = vld [vmem:[#allocation2 + $0x38] sm:$0xff]
      %v395 = vld [vmem:[#allocation2 + $0x40] sm:$0xff]
      %v396 = vld [vmem:[#allocation2 + $0x48] sm:$0xff]
      %v397 = vld [vmem:[#allocation2 + $0x50] sm:$0xff]
      %v398 = vld [vmem:[#allocation2 + $0x58] sm:$0xff]
      %v399 = vld [vmem:[#allocation2 + $0x60] sm:$0xff]
      %v400 = vld [vmem:[#allocation2 + $0x68] sm:$0xff]
      %v401 = vld [vmem:[#allocation2 + $0x70] sm:$0xff]
      %v402 = vld [vmem:[#allocation2 + $0x78] sm:$0xff]
      %v403 = vld [vmem:[#allocation2 + $0x80] sm:$0xff]
      %v404 = vld [vmem:[#allocation2 + $0x88] sm:$0xff]
      %v405 = vld [vmem:[#allocation2 + $0x90] sm:$0xff]
      %v406 = vld [vmem:[#allocation2 + $0x98] sm:$0xff]
      %v407 = vld [vmem:[#allocation2 + $0xa0] sm:$0xff]
      %v408 = vld [vmem:[#allocation2 + $0xa8] sm:$0xff]
      %v409 = vld [vmem:[#allocation2 + $0xb0] sm:$0xff]
      %v410 = vld [vmem:[#allocation2 + $0xb8] sm:$0xff]
      %v411 = vld [vmem:[#allocation2 + $0xc0] sm:$0xff]
      %v412 = vld [vmem:[#allocation2 + $0xc8] sm:$0xff]
      %v413 = vld [vmem:[#allocation2 + $0xd0] sm:$0xff]
      %v414 = vld [vmem:[#allocation2 + $0xd8] sm:$0xff]
      %v415 = vld [vmem:[#allocation2 + $0xe0] sm:$0xff]
      %v416 = vld [vmem:[#allocation2 + $0xe8] sm:$0xff]
      %v417 = vld [vmem:[#allocation2 + $0xf0] sm:$0xff]
      %v418 = vld [vmem:[#allocation2 + $0xf8] sm:$0xff]
      %v419 = vld [vmem:[#allocation2 + $0x100] sm:$0xff]
      %v420 = vld [vmem:[#allocation2 + $0x108] sm:$0xff]
      %v421 = vld [vmem:[#allocation2 + $0x110] sm:$0xff]
      %v422 = vld [vmem:[#allocation2 + $0x118] sm:$0xff]
      %v423 = vld [vmem:[#allocation2 + $0x120] sm:$0xff]
      %v424 = vld [vmem:[#allocation2 + $0x128] sm:$0xff]
      %v425 = vld [vmem:[#allocation2 + $0x130] sm:$0xff]
      %v426 = vld [vmem:[#allocation2 + $0x138] sm:$0xff]
      %v427 = vld [vmem:[#allocation2 + $0x140] sm:$0xff]
      %v428 = vld [vmem:[#allocation2 + $0x148] sm:$0xff]
      %v429 = vld [vmem:[#allocation2 + $0x150] sm:$0xff]
      %v430 = vld [vmem:[#allocation2 + $0x158] sm:$0xff]
      %v431 = vld [vmem:[#allocation2 + $0x160] sm:$0xff]
      %v432 = vld [vmem:[#allocation2 + $0x168] sm:$0xff]
      %v433 = vld [vmem:[#allocation2 + $0x170] sm:$0xff]
      %v434 = vld [vmem:[#allocation2 + $0x178] sm:$0xff]
      %v435 = vld [vmem:[#allocation2 + $0x180] sm:$0xff]
      %v436 = vld [vmem:[#allocation2 + $0x188] sm:$0xff]
      %v437 = vld [vmem:[#allocation2 + $0x190] sm:$0xff]
      %v438 = vld [vmem:[#allocation2 + $0x198] sm:$0xff]
      %v439 = vld [vmem:[#allocation2 + $0x1a0] sm:$0xff]
      %v440 = vld [vmem:[#allocation2 + $0x1a8] sm:$0xff]
      %v441 = vld [vmem:[#allocation2 + $0x1b0] sm:$0xff]
      %v442 = vld [vmem:[#allocation2 + $0x1b8] sm:$0xff]
      %v443 = vld [vmem:[#allocation2 + $0x1c0] sm:$0xff]
      %v444 = vld [vmem:[#allocation2 + $0x1c8] sm:$0xff]
      %v445 = vld [vmem:[#allocation2 + $0x1d0] sm:$0xff]
      %v446 = vld [vmem:[#allocation2 + $0x1d8] sm:$0xff]
      %v447 = vld [vmem:[#allocation2 + $0x1e0] sm:$0xff]
      %v448 = vld [vmem:[#allocation2 + $0x1e8] sm:$0xff]
      %v449 = vld [vmem:[#allocation2 + $0x1f0] sm:$0xff]
      %v450 = vld [vmem:[#allocation2 + $0x1f8] sm:$0xff]
      %v451 = vld [vmem:[#allocation2 + $0x200] sm:$0xff]
      %v452 = vld [vmem:[#allocation2 + $0x208] sm:$0xff]
      %v453 = vld [vmem:[#allocation2 + $0x210] sm:$0xff]
      %v454 = vld [vmem:[#allocation2 + $0x218] sm:$0xff]
      %v455 = vld [vmem:[#allocation2 + $0x220] sm:$0xff]
      %v456 = vld [vmem:[#allocation2 + $0x228] sm:$0xff]
      %v457 = vld [vmem:[#allocation2 + $0x230] sm:$0xff]
      %v458 = vld [vmem:[#allocation2 + $0x238] sm:$0xff]
      %v459 = vld [vmem:[#allocation2 + $0x240] sm:$0xff]
      %v460 = vld [vmem:[#allocation2 + $0x248] sm:$0xff]
      %v461 = vld [vmem:[#allocation2 + $0x250] sm:$0xff]
      %v462 = vld [vmem:[#allocation2 + $0x258] sm:$0xff]
      %v463 = vld [vmem:[#allocation2 + $0x260] sm:$0xff]
      %v464 = vld [vmem:[#allocation2 + $0x268] sm:$0xff]
      %v465 = vld [vmem:[#allocation2 + $0x270] sm:$0xff]
      %v466 = vld [vmem:[#allocation2 + $0x278] sm:$0xff]
      %v467 = vld [vmem:[#allocation2 + $0x280] sm:$0xff]
      %v468 = vld [vmem:[#allocation2 + $0x288] sm:$0xff]
      %v469 = vld [vmem:[#allocation2 + $0x290] sm:$0xff]
      %v470 = vld [vmem:[#allocation2 + $0x298] sm:$0xff]
      %v471 = vld [vmem:[#allocation2 + $0x2a0] sm:$0xff]
      %v472 = vld [vmem:[#allocation2 + $0x2a8] sm:$0xff]
      %v473 = vld [vmem:[#allocation2 + $0x2b0] sm:$0xff]
      %v474 = vld [vmem:[#allocation2 + $0x2b8] sm:$0xff]
      %v475 = vld [vmem:[#allocation2 + $0x2c0] sm:$0xff]
      %v476 = vld [vmem:[#allocation2 + $0x2c8] sm:$0xff]
      %v477 = vld [vmem:[#allocation2 + $0x2d0] sm:$0xff]
      %v478 = vld [vmem:[#allocation2 + $0x2d8] sm:$0xff]
      %v479 = vld [vmem:[#allocation2 + $0x2e0] sm:$0xff]
      %v480 = vld [vmem:[#allocation2 + $0x2e8] sm:$0xff]
      %v481 = vld [vmem:[#allocation2 + $0x2f0] sm:$0xff]
      %v482 = vld [vmem:[#allocation2 + $0x2f8] sm:$0xff]
      %v483 = vld [vmem:[#allocation2 + $0x300] sm:$0xff]
      %v484 = vld [vmem:[#allocation2 + $0x308] sm:$0xff]
      %v485 = vld [vmem:[#allocation2 + $0x310] sm:$0xff]
      %v486 = vld [vmem:[#allocation2 + $0x318] sm:$0xff]
      %v487 = vld [vmem:[#allocation2 + $0x320] sm:$0xff]
      %v488 = vld [vmem:[#allocation2 + $0x328] sm:$0xff]
      %v489 = vld [vmem:[#allocation2 + $0x330] sm:$0xff]
      %v490 = vld [vmem:[#allocation2 + $0x338] sm:$0xff]
      %v491 = vld [vmem:[#allocation2 + $0x340] sm:$0xff]
      %v492 = vld [vmem:[#allocation2 + $0x348] sm:$0xff]
      %v493 = vld [vmem:[#allocation2 + $0x350] sm:$0xff]
      %v494 = vld [vmem:[#allocation2 + $0x358] sm:$0xff]
      %v495 = vld [vmem:[#allocation2 + $0x360] sm:$0xff]
      %v496 = vld [vmem:[#allocation2 + $0x368] sm:$0xff]
      %v497 = vld [vmem:[#allocation2 + $0x370] sm:$0xff]
      %v498 = vld [vmem:[#allocation2 + $0x378] sm:$0xff]
      %v499 = vld [vmem:[#allocation2 + $0x380] sm:$0xff]
      %v500 = vld [vmem:[#allocation2 + $0x388] sm:$0xff]
      %v501 = vld [vmem:[#allocation2 + $0x390] sm:$0xff]
      %v502 = vld [vmem:[#allocation2 + $0x398] sm:$0xff]
      %v503 = vld [vmem:[#allocation2 + $0x3a0] sm:$0xff]
      %v504 = vld [vmem:[#allocation2 + $0x3a8] sm:$0xff]
      %v505 = vld [vmem:[#allocation2 + $0x3b0] sm:$0xff]
      %v506 = vld [vmem:[#allocation2 + $0x3b8] sm:$0xff]
      %v507 = vld [vmem:[#allocation2 + $0x3c0] sm:$0xff]
      %v508 = vld [vmem:[#allocation2 + $0x3c8] sm:$0xff]
      %v509 = vld [vmem:[#allocation2 + $0x3d0] sm:$0xff]
      %v510 = vld [vmem:[#allocation2 + $0x3d8] sm:$0xff]
      %v511 = vld [vmem:[#allocation2 + $0x3e0] sm:$0xff]
      %v512 = vld [vmem:[#allocation2 + $0x3e8] sm:$0xff]
      %v513 = vld [vmem:[#allocation2 + $0x3f0] sm:$0xff]
      %v514 = vld [vmem:[#allocation2 + $0x3f8] sm:$0xff]
      %v515 = vld [vmem:[%s233] sm:$0xf]
      %v516 = vld [vmem:[%s233 + $0x4] sm:$0xf]
      %v517 = vld [vmem:[%s233 + $0x8] sm:$0xf]
      %v518 = vld [vmem:[%s233 + $0xc] sm:$0xf]
      %v519 = vld [vmem:[%s233 + $0x10] sm:$0xf]
      %v520 = vld [vmem:[%s233 + $0x14] sm:$0xf]
      %v521 = vld [vmem:[%s233 + $0x18] sm:$0xf]
      %v522 = vld [vmem:[%s233 + $0x1c] sm:$0xf]
      %v523 = vld [vmem:[%s233 + $0x20] sm:$0xf]
      %v524 = vld [vmem:[%s233 + $0x24] sm:$0xf]
      %v525 = vld [vmem:[%s233 + $0x28] sm:$0xf]
      %v526 = vld [vmem:[%s233 + $0x2c] sm:$0xf]
      %v527 = vld [vmem:[%s233 + $0x30] sm:$0xf]
      %v528 = vld [vmem:[%s233 + $0x34] sm:$0xf]
      %v529 = vld [vmem:[%s233 + $0x38] sm:$0xf]
      %v530 = vld [vmem:[%s233 + $0x3c] sm:$0xf]
      %v531 = vld [vmem:[%s233 + $0x40] sm:$0xf]
      %v532 = vld [vmem:[%s233 + $0x44] sm:$0xf]
      %v533 = vld [vmem:[%s233 + $0x48] sm:$0xf]
      %v534 = vld [vmem:[%s233 + $0x4c] sm:$0xf]
      %v535 = vld [vmem:[%s233 + $0x50] sm:$0xf]
      %v536 = vld [vmem:[%s233 + $0x54] sm:$0xf]
      %v537 = vld [vmem:[%s233 + $0x58] sm:$0xf]
      %v538 = vld [vmem:[%s233 + $0x5c] sm:$0xf]
      %v539 = vld [vmem:[%s233 + $0x60] sm:$0xf]
      %v540 = vld [vmem:[%s233 + $0x64] sm:$0xf]
      %v541 = vld [vmem:[%s233 + $0x68] sm:$0xf]
      %v542 = vld [vmem:[%s233 + $0x6c] sm:$0xf]
      %v543 = vld [vmem:[%s233 + $0x70] sm:$0xf]
      %v544 = vld [vmem:[%s233 + $0x74] sm:$0xf]
      %v545 = vld [vmem:[%s233 + $0x78] sm:$0xf]
      %v546 = vld [vmem:[%s233 + $0x7c] sm:$0xf]
      %v547 = vld [vmem:[%s233 + $0x80] sm:$0xf]
      %v548 = vld [vmem:[%s233 + $0x84] sm:$0xf]
      %v549 = vld [vmem:[%s233 + $0x88] sm:$0xf]
      %v550 = vld [vmem:[%s233 + $0x8c] sm:$0xf]
      %v551 = vld [vmem:[%s233 + $0x90] sm:$0xf]
      %v552 = vld [vmem:[%s233 + $0x94] sm:$0xf]
      %v553 = vld [vmem:[%s233 + $0x98] sm:$0xf]
      %v554 = vld [vmem:[%s233 + $0x9c] sm:$0xf]
      %v555 = vld [vmem:[%s233 + $0xa0] sm:$0xf]
      %v556 = vld [vmem:[%s233 + $0xa4] sm:$0xf]
      %v557 = vld [vmem:[%s233 + $0xa8] sm:$0xf]
      %v558 = vld [vmem:[%s233 + $0xac] sm:$0xf]
      %v559 = vld [vmem:[%s233 + $0xb0] sm:$0xf]
      %v560 = vld [vmem:[%s233 + $0xb4] sm:$0xf]
      %v561 = vld [vmem:[%s233 + $0xb8] sm:$0xf]
      %v562 = vld [vmem:[%s233 + $0xbc] sm:$0xf]
      %v563 = vld [vmem:[%s233 + $0xc0] sm:$0xf]
      %v564 = vld [vmem:[%s233 + $0xc4] sm:$0xf]
      %v565 = vld [vmem:[%s233 + $0xc8] sm:$0xf]
      %v566 = vld [vmem:[%s233 + $0xcc] sm:$0xf]
      %v567 = vld [vmem:[%s233 + $0xd0] sm:$0xf]
      %v568 = vld [vmem:[%s233 + $0xd4] sm:$0xf]
      %v569 = vld [vmem:[%s233 + $0xd8] sm:$0xf]
      %v570 = vld [vmem:[%s233 + $0xdc] sm:$0xf]
      %v571 = vld [vmem:[%s233 + $0xe0] sm:$0xf]
      %v572 = vld [vmem:[%s233 + $0xe4] sm:$0xf]
      %v573 = vld [vmem:[%s233 + $0xe8] sm:$0xf]
      %v574 = vld [vmem:[%s233 + $0xec] sm:$0xf]
      %v575 = vld [vmem:[%s233 + $0xf0] sm:$0xf]
      %v576 = vld [vmem:[%s233 + $0xf4] sm:$0xf]
      %v577 = vld [vmem:[%s233 + $0xf8] sm:$0xf]
      %v578 = vld [vmem:[%s233 + $0xfc] sm:$0xf]
      %v579 = vld [vmem:[%s233 + $0x100] sm:$0xf]
      %v580 = vld [vmem:[%s233 + $0x104] sm:$0xf]
      %v581 = vld [vmem:[%s233 + $0x108] sm:$0xf]
      %v582 = vld [vmem:[%s233 + $0x10c] sm:$0xf]
      %v583 = vld [vmem:[%s233 + $0x110] sm:$0xf]
      %v584 = vld [vmem:[%s233 + $0x114] sm:$0xf]
      %v585 = vld [vmem:[%s233 + $0x118] sm:$0xf]
      %v586 = vld [vmem:[%s233 + $0x11c] sm:$0xf]
      %v587 = vld [vmem:[%s233 + $0x120] sm:$0xf]
      %v588 = vld [vmem:[%s233 + $0x124] sm:$0xf]
      %v589 = vld [vmem:[%s233 + $0x128] sm:$0xf]
      %v590 = vld [vmem:[%s233 + $0x12c] sm:$0xf]
      %v591 = vld [vmem:[%s233 + $0x130] sm:$0xf]
      %v592 = vld [vmem:[%s233 + $0x134] sm:$0xf]
      %v593 = vld [vmem:[%s233 + $0x138] sm:$0xf]
      %v594 = vld [vmem:[%s233 + $0x13c] sm:$0xf]
      %v595 = vld [vmem:[%s233 + $0x140] sm:$0xf]
      %v596 = vld [vmem:[%s233 + $0x144] sm:$0xf]
      %v597 = vld [vmem:[%s233 + $0x148] sm:$0xf]
      %v598 = vld [vmem:[%s233 + $0x14c] sm:$0xf]
      %v599 = vld [vmem:[%s233 + $0x150] sm:$0xf]
      %v600 = vld [vmem:[%s233 + $0x154] sm:$0xf]
      %v601 = vld [vmem:[%s233 + $0x158] sm:$0xf]
      %v602 = vld [vmem:[%s233 + $0x15c] sm:$0xf]
      %v603 = vld [vmem:[%s233 + $0x160] sm:$0xf]
      %v604 = vld [vmem:[%s233 + $0x164] sm:$0xf]
      %v605 = vld [vmem:[%s233 + $0x168] sm:$0xf]
      %v606 = vld [vmem:[%s233 + $0x16c] sm:$0xf]
      %v607 = vld [vmem:[%s233 + $0x170] sm:$0xf]
      %v608 = vld [vmem:[%s233 + $0x174] sm:$0xf]
      %v609 = vld [vmem:[%s233 + $0x178] sm:$0xf]
      %v610 = vld [vmem:[%s233 + $0x17c] sm:$0xf]
      %v611 = vld [vmem:[%s233 + $0x180] sm:$0xf]
      %v612 = vld [vmem:[%s233 + $0x184] sm:$0xf]
      %v613 = vld [vmem:[%s233 + $0x188] sm:$0xf]
      %v614 = vld [vmem:[%s233 + $0x18c] sm:$0xf]
      %v615 = vld [vmem:[%s233 + $0x190] sm:$0xf]
      %v616 = vld [vmem:[%s233 + $0x194] sm:$0xf]
      %v617 = vld [vmem:[%s233 + $0x198] sm:$0xf]
      %v618 = vld [vmem:[%s233 + $0x19c] sm:$0xf]
      %v619 = vld [vmem:[%s233 + $0x1a0] sm:$0xf]
      %v620 = vld [vmem:[%s233 + $0x1a4] sm:$0xf]
      %v621 = vld [vmem:[%s233 + $0x1a8] sm:$0xf]
      %v622 = vld [vmem:[%s233 + $0x1ac] sm:$0xf]
      %v623 = vld [vmem:[%s233 + $0x1b0] sm:$0xf]
      %v624 = vld [vmem:[%s233 + $0x1b4] sm:$0xf]
      %v625 = vld [vmem:[%s233 + $0x1b8] sm:$0xf]
      %v626 = vld [vmem:[%s233 + $0x1bc] sm:$0xf]
      %v627 = vld [vmem:[%s233 + $0x1c0] sm:$0xf]
      %v628 = vld [vmem:[%s233 + $0x1c4] sm:$0xf]
      %v629 = vld [vmem:[%s233 + $0x1c8] sm:$0xf]
      %v630 = vld [vmem:[%s233 + $0x1cc] sm:$0xf]
      %v631 = vld [vmem:[%s233 + $0x1d0] sm:$0xf]
      %v632 = vld [vmem:[%s233 + $0x1d4] sm:$0xf]
      %v633 = vld [vmem:[%s233 + $0x1d8] sm:$0xf]
      %v634 = vld [vmem:[%s233 + $0x1dc] sm:$0xf]
      %v635 = vld [vmem:[%s233 + $0x1e0] sm:$0xf]
      %v636 = vld [vmem:[%s233 + $0x1e4] sm:$0xf]
      %v637 = vld [vmem:[%s233 + $0x1e8] sm:$0xf]
      %v638 = vld [vmem:[%s233 + $0x1ec] sm:$0xf]
      %v639 = vld [vmem:[%s233 + $0x1f0] sm:$0xf]
      %v640 = vld [vmem:[%s233 + $0x1f4] sm:$0xf]
      %v641 = vld [vmem:[%s233 + $0x1f8] sm:$0xf]
      %v642 = vld [vmem:[%s233 + $0x1fc] sm:$0xf]
      %v643 = vld [vmem:[%s241] sm:$0x3]
      %v772 = vunpack.c.l.b16 %v515
      %v773 = vunpack.c.l.b16 %v516
      %v774 = vunpack.c.l.b16 %v517
      %v775 = vunpack.c.l.b16 %v518
      %v776 = vunpack.c.l.b16 %v519
      %v777 = vunpack.c.l.b16 %v520
      %v778 = vunpack.c.l.b16 %v521
      %v779 = vunpack.c.l.b16 %v522
      %v780 = vunpack.c.l.b16 %v523
      %v781 = vunpack.c.l.b16 %v524
      %v782 = vunpack.c.l.b16 %v525
      %v783 = vunpack.c.l.b16 %v526
      %v784 = vunpack.c.l.b16 %v527
      %v785 = vunpack.c.l.b16 %v528
      %v786 = vunpack.c.l.b16 %v529
      %v787 = vunpack.c.l.b16 %v530
      %v788 = vunpack.c.l.b16 %v531
      %v789 = vunpack.c.l.b16 %v532
      %v790 = vunpack.c.l.b16 %v533
      %v791 = vunpack.c.l.b16 %v534
      %v792 = vunpack.c.l.b16 %v535
      %v793 = vunpack.c.l.b16 %v536
      %v794 = vunpack.c.l.b16 %v537
      %v795 = vunpack.c.l.b16 %v538
      %v796 = vunpack.c.l.b16 %v539
      %v797 = vunpack.c.l.b16 %v540
      %v798 = vunpack.c.l.b16 %v541
      %v799 = vunpack.c.l.b16 %v542
      %v800 = vunpack.c.l.b16 %v543
      %v801 = vunpack.c.l.b16 %v544
      %v802 = vunpack.c.l.b16 %v545
      %v803 = vunpack.c.l.b16 %v546
      %v804 = vunpack.c.l.b16 %v547
      %v805 = vunpack.c.l.b16 %v548
      %v806 = vunpack.c.l.b16 %v549
      %v807 = vunpack.c.l.b16 %v550
      %v808 = vunpack.c.l.b16 %v551
      %v809 = vunpack.c.l.b16 %v552
      %v810 = vunpack.c.l.b16 %v553
      %v811 = vunpack.c.l.b16 %v554
      %v812 = vunpack.c.l.b16 %v555
      %v813 = vunpack.c.l.b16 %v556
      %v814 = vunpack.c.l.b16 %v557
      %v815 = vunpack.c.l.b16 %v558
      %v816 = vunpack.c.l.b16 %v559
      %v817 = vunpack.c.l.b16 %v560
      %v818 = vunpack.c.l.b16 %v561
      %v819 = vunpack.c.l.b16 %v562
      %v820 = vunpack.c.l.b16 %v563
      %v821 = vunpack.c.l.b16 %v564
      %v822 = vunpack.c.l.b16 %v565
      %v823 = vunpack.c.l.b16 %v566
      %v824 = vunpack.c.l.b16 %v567
      %v825 = vunpack.c.l.b16 %v568
      %v826 = vunpack.c.l.b16 %v569
      %v827 = vunpack.c.l.b16 %v570
      %v828 = vunpack.c.l.b16 %v571
      %v829 = vunpack.c.l.b16 %v572
      %v830 = vunpack.c.l.b16 %v573
      %v831 = vunpack.c.l.b16 %v574
      %v832 = vunpack.c.l.b16 %v575
      %v833 = vunpack.c.l.b16 %v576
      %v834 = vunpack.c.l.b16 %v577
      %v835 = vunpack.c.l.b16 %v578
      %v836 = vunpack.c.l.b16 %v579
      %v837 = vunpack.c.l.b16 %v580
      %v838 = vunpack.c.l.b16 %v581
      %v839 = vunpack.c.l.b16 %v582
      %v840 = vunpack.c.l.b16 %v583
      %v841 = vunpack.c.l.b16 %v584
      %v842 = vunpack.c.l.b16 %v585
      %v843 = vunpack.c.l.b16 %v586
      %v844 = vunpack.c.l.b16 %v587
      %v845 = vunpack.c.l.b16 %v588
      %v846 = vunpack.c.l.b16 %v589
      %v847 = vunpack.c.l.b16 %v590
      %v848 = vunpack.c.l.b16 %v591
      %v849 = vunpack.c.l.b16 %v592
      %v850 = vunpack.c.l.b16 %v593
      %v851 = vunpack.c.l.b16 %v594
      %v852 = vunpack.c.l.b16 %v595
      %v853 = vunpack.c.l.b16 %v596
      %v854 = vunpack.c.l.b16 %v597
      %v855 = vunpack.c.l.b16 %v598
      %v856 = vunpack.c.l.b16 %v599
      %v857 = vunpack.c.l.b16 %v600
      %v858 = vunpack.c.l.b16 %v601
      %v859 = vunpack.c.l.b16 %v602
      %v860 = vunpack.c.l.b16 %v603
      %v861 = vunpack.c.l.b16 %v604
      %v862 = vunpack.c.l.b16 %v605
      %v863 = vunpack.c.l.b16 %v606
      %v864 = vunpack.c.l.b16 %v607
      %v865 = vunpack.c.l.b16 %v608
      %v866 = vunpack.c.l.b16 %v609
      %v867 = vunpack.c.l.b16 %v610
      %v868 = vunpack.c.l.b16 %v611
      %v869 = vunpack.c.l.b16 %v612
      %v870 = vunpack.c.l.b16 %v613
      %v871 = vunpack.c.l.b16 %v614
      %v872 = vunpack.c.l.b16 %v615
      %v873 = vunpack.c.l.b16 %v616
      %v874 = vunpack.c.l.b16 %v617
      %v875 = vunpack.c.l.b16 %v618
      %v876 = vunpack.c.l.b16 %v619
      %v877 = vunpack.c.l.b16 %v620
      %v878 = vunpack.c.l.b16 %v621
      %v879 = vunpack.c.l.b16 %v622
      %v880 = vunpack.c.l.b16 %v623
      %v881 = vunpack.c.l.b16 %v624
      %v882 = vunpack.c.l.b16 %v625
      %v883 = vunpack.c.l.b16 %v626
      %v884 = vunpack.c.l.b16 %v627
      %v885 = vunpack.c.l.b16 %v628
      %v886 = vunpack.c.l.b16 %v629
      %v887 = vunpack.c.l.b16 %v630
      %v888 = vunpack.c.l.b16 %v631
      %v889 = vunpack.c.l.b16 %v632
      %v890 = vunpack.c.l.b16 %v633
      %v891 = vunpack.c.l.b16 %v634
      %v892 = vunpack.c.l.b16 %v635
      %v893 = vunpack.c.l.b16 %v636
      %v894 = vunpack.c.l.b16 %v637
      %v895 = vunpack.c.l.b16 %v638
      %v896 = vunpack.c.l.b16 %v639
      %v897 = vunpack.c.l.b16 %v640
      %v898 = vunpack.c.l.b16 %v641
      %v899 = vunpack.c.l.b16 %v642
      %v900 = vpack.c.b16 %v773, %v772
      %v901 = vpack.c.b16 %v775, %v774
      %v902 = vpack.c.b16 %v777, %v776
      %v903 = vpack.c.b16 %v779, %v778
      %v904 = vpack.c.b16 %v781, %v780
      %v905 = vpack.c.b16 %v783, %v782
      %v906 = vpack.c.b16 %v785, %v784
      %v907 = vpack.c.b16 %v787, %v786
      %v908 = vpack.c.b16 %v789, %v788
      %v909 = vpack.c.b16 %v791, %v790
      %v910 = vpack.c.b16 %v793, %v792
      %v911 = vpack.c.b16 %v795, %v794
      %v912 = vpack.c.b16 %v797, %v796
      %v913 = vpack.c.b16 %v799, %v798
      %v914 = vpack.c.b16 %v801, %v800
      %v915 = vpack.c.b16 %v803, %v802
      %v916 = vpack.c.b16 %v805, %v804
      %v917 = vpack.c.b16 %v807, %v806
      %v918 = vpack.c.b16 %v809, %v808
      %v919 = vpack.c.b16 %v811, %v810
      %v920 = vpack.c.b16 %v813, %v812
      %v921 = vpack.c.b16 %v815, %v814
      %v922 = vpack.c.b16 %v817, %v816
      %v923 = vpack.c.b16 %v819, %v818
      %v924 = vpack.c.b16 %v821, %v820
      %v925 = vpack.c.b16 %v823, %v822
      %v926 = vpack.c.b16 %v825, %v824
      %v927 = vpack.c.b16 %v827, %v826
      %v928 = vpack.c.b16 %v829, %v828
      %v929 = vpack.c.b16 %v831, %v830
      %v930 = vpack.c.b16 %v833, %v832
      %v931 = vpack.c.b16 %v835, %v834
      %v932 = vpack.c.b16 %v837, %v836
      %v933 = vpack.c.b16 %v839, %v838
      %v934 = vpack.c.b16 %v841, %v840
      %v935 = vpack.c.b16 %v843, %v842
      %v936 = vpack.c.b16 %v845, %v844
      %v937 = vpack.c.b16 %v847, %v846
      %v938 = vpack.c.b16 %v849, %v848
      %v939 = vpack.c.b16 %v851, %v850
      %v940 = vpack.c.b16 %v853, %v852
      %v941 = vpack.c.b16 %v855, %v854
      %v942 = vpack.c.b16 %v857, %v856
      %v943 = vpack.c.b16 %v859, %v858
      %v944 = vpack.c.b16 %v861, %v860
      %v945 = vpack.c.b16 %v863, %v862
      %v946 = vpack.c.b16 %v865, %v864
      %v947 = vpack.c.b16 %v867, %v866
      %v948 = vpack.c.b16 %v869, %v868
      %v949 = vpack.c.b16 %v871, %v870
      %v950 = vpack.c.b16 %v873, %v872
      %v951 = vpack.c.b16 %v875, %v874
      %v952 = vpack.c.b16 %v877, %v876
      %v953 = vpack.c.b16 %v879, %v878
      %v954 = vpack.c.b16 %v881, %v880
      %v955 = vpack.c.b16 %v883, %v882
      %v956 = vpack.c.b16 %v885, %v884
      %v957 = vpack.c.b16 %v887, %v886
      %v958 = vpack.c.b16 %v889, %v888
      %v959 = vpack.c.b16 %v891, %v890
      %v960 = vpack.c.b16 %v893, %v892
      %v961 = vpack.c.b16 %v895, %v894
      %v962 = vpack.c.b16 %v897, %v896
      %v963 = vpack.c.b16 %v899, %v898
      %vm964 = vcmask 31744
      %v966 = vsel %vm964, %v900, 0
      %v969 = vsel %vm964, %v901, 0
      %v972 = vsel %vm964, %v902, 0
      %v975 = vsel %vm964, %v903, 0
      %v978 = vsel %vm964, %v904, 0
      %v981 = vsel %vm964, %v905, 0
      %v984 = vsel %vm964, %v906, 0
      %v987 = vsel %vm964, %v907, 0
      %v990 = vsel %vm964, %v908, 0
      %v993 = vsel %vm964, %v909, 0
      %v996 = vsel %vm964, %v910, 0
      %v999 = vsel %vm964, %v911, 0
      %v1002 = vsel %vm964, %v912, 0
      %v1005 = vsel %vm964, %v913, 0
      %v1008 = vsel %vm964, %v914, 0
      %v1011 = vsel %vm964, %v915, 0
      %v1014 = vsel %vm964, %v916, 0
      %v1017 = vsel %vm964, %v917, 0
      %v1020 = vsel %vm964, %v918, 0
      %v1023 = vsel %vm964, %v919, 0
      %v1026 = vsel %vm964, %v920, 0
      %v1029 = vsel %vm964, %v921, 0
      %v1032 = vsel %vm964, %v922, 0
      %v1035 = vsel %vm964, %v923, 0
      %v1038 = vsel %vm964, %v924, 0
      %v1041 = vsel %vm964, %v925, 0
      %v1044 = vsel %vm964, %v926, 0
      %v1047 = vsel %vm964, %v927, 0
      %v1050 = vsel %vm964, %v928, 0
      %v1053 = vsel %vm964, %v929, 0
      %v1056 = vsel %vm964, %v930, 0
      %v1059 = vsel %vm964, %v931, 0
      %v1062 = vsel %vm964, %v932, 0
      %v1065 = vsel %vm964, %v933, 0
      %v1068 = vsel %vm964, %v934, 0
      %v1071 = vsel %vm964, %v935, 0
      %v1074 = vsel %vm964, %v936, 0
      %v1077 = vsel %vm964, %v937, 0
      %v1080 = vsel %vm964, %v938, 0
      %v1083 = vsel %vm964, %v939, 0
      %v1086 = vsel %vm964, %v940, 0
      %v1089 = vsel %vm964, %v941, 0
      %v1092 = vsel %vm964, %v942, 0
      %v1095 = vsel %vm964, %v943, 0
      %v1098 = vsel %vm964, %v944, 0
      %v1101 = vsel %vm964, %v945, 0
      %v1104 = vsel %vm964, %v946, 0
      %v1107 = vsel %vm964, %v947, 0
      %v1110 = vsel %vm964, %v948, 0
      %v1113 = vsel %vm964, %v949, 0
      %v1116 = vsel %vm964, %v950, 0
      %v1119 = vsel %vm964, %v951, 0
      %v1122 = vsel %vm964, %v952, 0
      %v1125 = vsel %vm964, %v953, 0
      %v1128 = vsel %vm964, %v954, 0
      %v1131 = vsel %vm964, %v955, 0
      %v1134 = vsel %vm964, %v956, 0
      %v1137 = vsel %vm964, %v957, 0
      %v1140 = vsel %vm964, %v958, 0
      %v1143 = vsel %vm964, %v959, 0
      %v1146 = vsel %vm964, %v960, 0
      %v1149 = vsel %vm964, %v961, 0
      %v1152 = vsel %vm964, %v962, 0
      %v1155 = vsel %vm964, %v963, 0
      %vm1157 = vcmask 1041408
      %v1159 = vsel %vm1157, %v643, 0
      %1161 = vmatprep.subr.bf16.mxu0 0
      %1162 = vmatpush1.bf16.msra.mxu0 %v1159
      %1163 = vmatprep.subr.bf16.mxu0 0
      %1164 = vmatpush1.bf16.msra.mxu0 0
      %1165 = vmatprep.subr.bf16.mxu0 0
      %1166 = vmatpush1.bf16.msra.mxu0 0
      %1167 = vmatprep.subr.bf16.mxu0 0
      %1168 = vmatpush1.bf16.msra.mxu0 0
      %1169 = vmatprep.subr.bf16.mxu0 0
      %1170 = vmatpush1.bf16.msra.mxu0 0
      %1171 = vmatprep.subr.bf16.mxu0 0
      %1172 = vmatpush1.bf16.msra.mxu0 0
      %1173 = vmatprep.subr.bf16.mxu0 0
      %1174 = vmatpush1.bf16.msra.mxu0 0
      %1175 = vmatprep.subr.bf16.mxu0 0
      %1176 = vmatpush1.bf16.msra.mxu0 0
      %1177 = vmatprep.subr.bf16.mxu0 0
      %1178 = vmatpush1.bf16.msra.mxu0 0
      %1179 = vmatprep.subr.bf16.mxu0 0
      %1180 = vmatpush1.bf16.msra.mxu0 0
      %1181 = vmatprep.subr.bf16.mxu0 0
      %1182 = vmatpush1.bf16.msra.mxu0 0
      %1183 = vmatprep.subr.bf16.mxu0 0
      %1184 = vmatpush1.bf16.msra.mxu0 0
      %1185 = vmatprep.subr.bf16.mxu0 0
      %1186 = vmatpush1.bf16.msra.mxu0 0
      %1187 = vmatprep.subr.bf16.mxu0 0
      %1188 = vmatpush1.bf16.msra.mxu0 0
      %1189 = vmatprep.subr.bf16.mxu0 0
      %1190 = vmatpush1.bf16.msra.mxu0 0
      %1191 = vmatprep.subr.bf16.mxu0 0
      %1192 = vmatpush1.bf16.msra.mxu0 0
      %1193 = vmatprep.mubr.bf16.mxu0 0
      %1194 = vmatmul.mubr.bf16.gmra.mrb[0].mxu0 %v966
      %v1195 = vpop.f32.mrb[0].mxu0
      %v1196 = vadd.f32 0.0, %v1195
      %v1197 = vpop.f32.mrb[0].mxu0
      %v1198 = vpop.f32.mrb[0].mxu0
      %v1199 = vadd.f32 0.0, %v1198
      %v1200 = vpop.f32.mrb[0].mxu0
      %1201 = vmatprep.mubr.bf16.mxu0 0
      %1202 = vmatmul.mubr.bf16.gmra.mrb[0].mxu0 %v969
      %v1203 = vpop.f32.mrb[0].mxu0
      %v1204 = vadd.f32 0.0, %v1203
      %v1205 = vpop.f32.mrb[0].mxu0
      %v1206 = vpop.f32.mrb[0].mxu0
      %v1207 = vadd.f32 0.0, %v1206
      %v1208 = vpop.f32.mrb[0].mxu0
      %1209 = vmatprep.mubr.bf16.mxu0 0
      %1210 = vmatmul.mubr.bf16.gmra.mrb[0].mxu0 %v972
      %v1211 = vpop.f32.mrb[0].mxu0
      %v1212 = vadd.f32 0.0, %v1211
      %v1213 = vpop.f32.mrb[0].mxu0
      %v1214 = vpop.f32.mrb[0].mxu0
      %v1215 = vadd.f32 0.0, %v1214
      %v1216 = vpop.f32.mrb[0].mxu0
      %1217 = vmatprep.mubr.bf16.mxu0 0
      %1218 = vmatmul.mubr.bf16.gmra.mrb[0].mxu0 %v975
      %v1219 = vpop.f32.mrb[0].mxu0
      %v1220 = vadd.f32 0.0, %v1219
      %v1221 = vpop.f32.mrb[0].mxu0
      %v1222 = vpop.f32.mrb[0].mxu0
      %v1223 = vadd.f32 0.0, %v1222
      %v1224 = vpop.f32.mrb[0].mxu0
      %1225 = vmatprep.mubr.bf16.mxu0 0
      %1226 = vmatmul.mubr.bf16.gmra.mrb[0].mxu0 %v978
      %v1227 = vpop.f32.mrb[0].mxu0
      %v1228 = vadd.f32 0.0, %v1227
      %v1229 = vpop.f32.mrb[0].mxu0
      %v1230 = vpop.f32.mrb[0].mxu0
      %v1231 = vadd.f32 0.0, %v1230
      %v1232 = vpop.f32.mrb[0].mxu0
      %1233 = vmatprep.mubr.bf16.mxu0 0
      %1234 = vmatmul.mubr.bf16.gmra.mrb[0].mxu0 %v981
      %v1235 = vpop.f32.mrb[0].mxu0
      %v1236 = vadd.f32 0.0, %v1235
      %v1237 = vpop.f32.mrb[0].mxu0
      %v1238 = vpop.f32.mrb[0].mxu0
      %v1239 = vadd.f32 0.0, %v1238
      %v1240 = vpop.f32.mrb[0].mxu0
      %1241 = vmatprep.mubr.bf16.mxu0 0
      %1242 = vmatmul.mubr.bf16.gmra.mrb[0].mxu0 %v984
      %v1243 = vpop.f32.mrb[0].mxu0
      %v1244 = vadd.f32 0.0, %v1243
      %v1245 = vpop.f32.mrb[0].mxu0
      %v1246 = vpop.f32.mrb[0].mxu0
      %v1247 = vadd.f32 0.0, %v1246
      %v1248 = vpop.f32.mrb[0].mxu0
      %1249 = vmatprep.mubr.bf16.mxu0 0
      %1250 = vmatmul.mubr.bf16.gmra.mrb[0].mxu0 %v987
      %v1251 = vpop.f32.mrb[0].mxu0
      %v1252 = vadd.f32 0.0, %v1251
      %v1253 = vpop.f32.mrb[0].mxu0
      %v1254 = vpop.f32.mrb[0].mxu0
      %v1255 = vadd.f32 0.0, %v1254
      %v1256 = vpop.f32.mrb[0].mxu0
      %1257 = vmatprep.mubr.bf16.mxu0 0
      %1258 = vmatmul.mubr.bf16.gmra.mrb[0].mxu0 %v990
      %v1259 = vpop.f32.mrb[0].mxu0
      %v1260 = vadd.f32 0.0, %v1259
      %v1261 = vpop.f32.mrb[0].mxu0
      %v1262 = vpop.f32.mrb[0].mxu0
      %v1263 = vadd.f32 0.0, %v1262
      %v1264 = vpop.f32.mrb[0].mxu0
      %1265 = vmatprep.mubr.bf16.mxu0 0
      %1266 = vmatmul.mubr.bf16.gmra.mrb[0].mxu0 %v993
      %v1267 = vpop.f32.mrb[0].mxu0
      %v1268 = vadd.f32 0.0, %v1267
      %v1269 = vpop.f32.mrb[0].mxu0
      %v1270 = vpop.f32.mrb[0].mxu0
      %v1271 = vadd.f32 0.0, %v1270
      %v1272 = vpop.f32.mrb[0].mxu0
      %1273 = vmatprep.mubr.bf16.mxu0 0
      %1274 = vmatmul.mubr.bf16.gmra.mrb[0].mxu0 %v996
      %v1275 = vpop.f32.mrb[0].mxu0
      %v1276 = vadd.f32 0.0, %v1275
      %v1277 = vpop.f32.mrb[0].mxu0
      %v1278 = vpop.f32.mrb[0].mxu0
      %v1279 = vadd.f32 0.0, %v1278
      %v1280 = vpop.f32.mrb[0].mxu0
      %1281 = vmatprep.mubr.bf16.mxu0 0
      %1282 = vmatmul.mubr.bf16.gmra.mrb[0].mxu0 %v999
      %v1283 = vpop.f32.mrb[0].mxu0
      %v1284 = vadd.f32 0.0, %v1283
      %v1285 = vpop.f32.mrb[0].mxu0
      %v1286 = vpop.f32.mrb[0].mxu0
      %v1287 = vadd.f32 0.0, %v1286
      %v1288 = vpop.f32.mrb[0].mxu0
      %1289 = vmatprep.mubr.bf16.mxu0 0
      %1290 = vmatmul.mubr.bf16.gmra.mrb[0].mxu0 %v1002
      %v1291 = vpop.f32.mrb[0].mxu0
      %v1292 = vadd.f32 0.0, %v1291
      %v1293 = vpop.f32.mrb[0].mxu0
      %v1294 = vpop.f32.mrb[0].mxu0
      %v1295 = vadd.f32 0.0, %v1294
      %v1296 = vpop.f32.mrb[0].mxu0
      %1297 = vmatprep.mubr.bf16.mxu0 0
      %1298 = vmatmul.mubr.bf16.gmra.mrb[0].mxu0 %v1005
      %v1299 = vpop.f32.mrb[0].mxu0
      %v1300 = vadd.f32 0.0, %v1299
      %v1301 = vpop.f32.mrb[0].mxu0
      %v1302 = vpop.f32.mrb[0].mxu0
      %v1303 = vadd.f32 0.0, %v1302
      %v1304 = vpop.f32.mrb[0].mxu0
      %1305 = vmatprep.mubr.bf16.mxu0 0
      %1306 = vmatmul.mubr.bf16.gmra.mrb[0].mxu0 %v1008
      %v1307 = vpop.f32.mrb[0].mxu0
      %v1308 = vadd.f32 0.0, %v1307
      %v1309 = vpop.f32.mrb[0].mxu0
      %v1310 = vpop.f32.mrb[0].mxu0
      %v1311 = vadd.f32 0.0, %v1310
      %v1312 = vpop.f32.mrb[0].mxu0
      %1313 = vmatprep.mubr.bf16.mxu0 0
      %1314 = vmatmul.mubr.bf16.gmra.mrb[0].mxu0 %v1011
      %v1315 = vpop.f32.mrb[0].mxu0
      %v1316 = vadd.f32 0.0, %v1315
      %v1317 = vpop.f32.mrb[0].mxu0
      %v1318 = vpop.f32.mrb[0].mxu0
      %v1319 = vadd.f32 0.0, %v1318
      %v1320 = vpop.f32.mrb[0].mxu0
      %1321 = vmatprep.mubr.bf16.mxu0 0
      %1322 = vmatmul.mubr.bf16.gmra.mrb[0].mxu0 %v1014
      %v1323 = vpop.f32.mrb[0].mxu0
      %v1324 = vadd.f32 0.0, %v1323
      %v1325 = vpop.f32.mrb[0].mxu0
      %v1326 = vpop.f32.mrb[0].mxu0
      %v1327 = vadd.f32 0.0, %v1326
      %v1328 = vpop.f32.mrb[0].mxu0
      %1329 = vmatprep.mubr.bf16.mxu0 0
      %1330 = vmatmul.mubr.bf16.gmra.mrb[0].mxu0 %v1017
      %v1331 = vpop.f32.mrb[0].mxu0
      %v1332 = vadd.f32 0.0, %v1331
      %v1333 = vpop.f32.mrb[0].mxu0
      %v1334 = vpop.f32.mrb[0].mxu0
      %v1335 = vadd.f32 0.0, %v1334
      %v1336 = vpop.f32.mrb[0].mxu0
      %1337 = vmatprep.mubr.bf16.mxu0 0
      %1338 = vmatmul.mubr.bf16.gmra.mrb[0].mxu0 %v1020
      %v1339 = vpop.f32.mrb[0].mxu0
      %v1340 = vadd.f32 0.0, %v1339
      %v1341 = vpop.f32.mrb[0].mxu0
      %v1342 = vpop.f32.mrb[0].mxu0
      %v1343 = vadd.f32 0.0, %v1342
      %v1344 = vpop.f32.mrb[0].mxu0
      %1345 = vmatprep.mubr.bf16.mxu0 0
      %1346 = vmatmul.mubr.bf16.gmra.mrb[0].mxu0 %v1023
      %v1347 = vpop.f32.mrb[0].mxu0
      %v1348 = vadd.f32 0.0, %v1347
      %v1349 = vpop.f32.mrb[0].mxu0
      %v1350 = vpop.f32.mrb[0].mxu0
      %v1351 = vadd.f32 0.0, %v1350
      %v1352 = vpop.f32.mrb[0].mxu0
      %1353 = vmatprep.mubr.bf16.mxu0 0
      %1354 = vmatmul.mubr.bf16.gmra.mrb[0].mxu0 %v1026
      %v1355 = vpop.f32.mrb[0].mxu0
      %v1356 = vadd.f32 0.0, %v1355
      %v1357 = vpop.f32.mrb[0].mxu0
      %v1358 = vpop.f32.mrb[0].mxu0
      %v1359 = vadd.f32 0.0, %v1358
      %v1360 = vpop.f32.mrb[0].mxu0
      %1361 = vmatprep.mubr.bf16.mxu0 0
      %1362 = vmatmul.mubr.bf16.gmra.mrb[0].mxu0 %v1029
      %v1363 = vpop.f32.mrb[0].mxu0
      %v1364 = vadd.f32 0.0, %v1363
      %v1365 = vpop.f32.mrb[0].mxu0
      %v1366 = vpop.f32.mrb[0].mxu0
      %v1367 = vadd.f32 0.0, %v1366
      %v1368 = vpop.f32.mrb[0].mxu0
      %1369 = vmatprep.mubr.bf16.mxu0 0
      %1370 = vmatmul.mubr.bf16.gmra.mrb[0].mxu0 %v1032
      %v1371 = vpop.f32.mrb[0].mxu0
      %v1372 = vadd.f32 0.0, %v1371
      %v1373 = vpop.f32.mrb[0].mxu0
      %v1374 = vpop.f32.mrb[0].mxu0
      %v1375 = vadd.f32 0.0, %v1374
      %v1376 = vpop.f32.mrb[0].mxu0
      %1377 = vmatprep.mubr.bf16.mxu0 0
      %1378 = vmatmul.mubr.bf16.gmra.mrb[0].mxu0 %v1035
      %v1379 = vpop.f32.mrb[0].mxu0
      %v1380 = vadd.f32 0.0, %v1379
      %v1381 = vpop.f32.mrb[0].mxu0
      %v1382 = vpop.f32.mrb[0].mxu0
      %v1383 = vadd.f32 0.0, %v1382
      %v1384 = vpop.f32.mrb[0].mxu0
      %1385 = vmatprep.mubr.bf16.mxu0 0
      %1386 = vmatmul.mubr.bf16.gmra.mrb[0].mxu0 %v1038
      %v1387 = vpop.f32.mrb[0].mxu0
      %v1388 = vadd.f32 0.0, %v1387
      %v1389 = vpop.f32.mrb[0].mxu0
      %v1390 = vpop.f32.mrb[0].mxu0
      %v1391 = vadd.f32 0.0, %v1390
      %v1392 = vpop.f32.mrb[0].mxu0
      %1393 = vmatprep.mubr.bf16.mxu0 0
      %1394 = vmatmul.mubr.bf16.gmra.mrb[0].mxu0 %v1041
      %v1395 = vpop.f32.mrb[0].mxu0
      %v1396 = vadd.f32 0.0, %v1395
      %v1397 = vpop.f32.mrb[0].mxu0
      %v1398 = vpop.f32.mrb[0].mxu0
      %v1399 = vadd.f32 0.0, %v1398
      %v1400 = vpop.f32.mrb[0].mxu0
      %1401 = vmatprep.mubr.bf16.mxu0 0
      %1402 = vmatmul.mubr.bf16.gmra.mrb[0].mxu0 %v1044
      %v1403 = vpop.f32.mrb[0].mxu0
      %v1404 = vadd.f32 0.0, %v1403
      %v1405 = vpop.f32.mrb[0].mxu0
      %v1406 = vpop.f32.mrb[0].mxu0
      %v1407 = vadd.f32 0.0, %v1406
      %v1408 = vpop.f32.mrb[0].mxu0
      %1409 = vmatprep.mubr.bf16.mxu0 0
      %1410 = vmatmul.mubr.bf16.gmra.mrb[0].mxu0 %v1047
      %v1411 = vpop.f32.mrb[0].mxu0
      %v1412 = vadd.f32 0.0, %v1411
      %v1413 = vpop.f32.mrb[0].mxu0
      %v1414 = vpop.f32.mrb[0].mxu0
      %v1415 = vadd.f32 0.0, %v1414
      %v1416 = vpop.f32.mrb[0].mxu0
      %1417 = vmatprep.mubr.bf16.mxu0 0
      %1418 = vmatmul.mubr.bf16.gmra.mrb[0].mxu0 %v1050
      %v1419 = vpop.f32.mrb[0].mxu0
      %v1420 = vadd.f32 0.0, %v1419
      %v1421 = vpop.f32.mrb[0].mxu0
      %v1422 = vpop.f32.mrb[0].mxu0
      %v1423 = vadd.f32 0.0, %v1422
      %v1424 = vpop.f32.mrb[0].mxu0
      %1425 = vmatprep.mubr.bf16.mxu0 0
      %1426 = vmatmul.mubr.bf16.gmra.mrb[0].mxu0 %v1053
      %v1427 = vpop.f32.mrb[0].mxu0
      %v1428 = vadd.f32 0.0, %v1427
      %v1429 = vpop.f32.mrb[0].mxu0
      %v1430 = vpop.f32.mrb[0].mxu0
      %v1431 = vadd.f32 0.0, %v1430
      %v1432 = vpop.f32.mrb[0].mxu0
      %1433 = vmatprep.mubr.bf16.mxu0 0
      %1434 = vmatmul.mubr.bf16.gmra.mrb[0].mxu0 %v1056
      %v1435 = vpop.f32.mrb[0].mxu0
      %v1436 = vadd.f32 0.0, %v1435
      %v1437 = vpop.f32.mrb[0].mxu0
      %v1438 = vpop.f32.mrb[0].mxu0
      %v1439 = vadd.f32 0.0, %v1438
      %v1440 = vpop.f32.mrb[0].mxu0
      %1441 = vmatprep.mubr.bf16.mxu0 0
      %1442 = vmatmul.mubr.bf16.gmra.mrb[0].mxu0 %v1059
      %v1443 = vpop.f32.mrb[0].mxu0
      %v1444 = vadd.f32 0.0, %v1443
      %v1445 = vpop.f32.mrb[0].mxu0
      %v1446 = vpop.f32.mrb[0].mxu0
      %v1447 = vadd.f32 0.0, %v1446
      %v1448 = vpop.f32.mrb[0].mxu0
      %1449 = vmatprep.mubr.bf16.mxu0 0
      %1450 = vmatmul.mubr.bf16.gmra.mrb[0].mxu0 %v1062
      %v1451 = vpop.f32.mrb[0].mxu0
      %v1452 = vadd.f32 0.0, %v1451
      %v1453 = vpop.f32.mrb[0].mxu0
      %v1454 = vpop.f32.mrb[0].mxu0
      %v1455 = vadd.f32 0.0, %v1454
      %v1456 = vpop.f32.mrb[0].mxu0
      %1457 = vmatprep.mubr.bf16.mxu0 0
      %1458 = vmatmul.mubr.bf16.gmra.mrb[0].mxu0 %v1065
      %v1459 = vpop.f32.mrb[0].mxu0
      %v1460 = vadd.f32 0.0, %v1459
      %v1461 = vpop.f32.mrb[0].mxu0
      %v1462 = vpop.f32.mrb[0].mxu0
      %v1463 = vadd.f32 0.0, %v1462
      %v1464 = vpop.f32.mrb[0].mxu0
      %1465 = vmatprep.mubr.bf16.mxu0 0
      %1466 = vmatmul.mubr.bf16.gmra.mrb[0].mxu0 %v1068
      %v1467 = vpop.f32.mrb[0].mxu0
      %v1468 = vadd.f32 0.0, %v1467
      %v1469 = vpop.f32.mrb[0].mxu0
      %v1470 = vpop.f32.mrb[0].mxu0
      %v1471 = vadd.f32 0.0, %v1470
      %v1472 = vpop.f32.mrb[0].mxu0
      %1473 = vmatprep.mubr.bf16.mxu0 0
      %1474 = vmatmul.mubr.bf16.gmra.mrb[0].mxu0 %v1071
      %v1475 = vpop.f32.mrb[0].mxu0
      %v1476 = vadd.f32 0.0, %v1475
      %v1477 = vpop.f32.mrb[0].mxu0
      %v1478 = vpop.f32.mrb[0].mxu0
      %v1479 = vadd.f32 0.0, %v1478
      %v1480 = vpop.f32.mrb[0].mxu0
      %1481 = vmatprep.mubr.bf16.mxu0 0
      %1482 = vmatmul.mubr.bf16.gmra.mrb[0].mxu0 %v1074
      %v1483 = vpop.f32.mrb[0].mxu0
      %v1484 = vadd.f32 0.0, %v1483
      %v1485 = vpop.f32.mrb[0].mxu0
      %v1486 = vpop.f32.mrb[0].mxu0
      %v1487 = vadd.f32 0.0, %v1486
      %v1488 = vpop.f32.mrb[0].mxu0
      %1489 = vmatprep.mubr.bf16.mxu0 0
      %1490 = vmatmul.mubr.bf16.gmra.mrb[0].mxu0 %v1077
      %v1491 = vpop.f32.mrb[0].mxu0
      %v1492 = vadd.f32 0.0, %v1491
      %v1493 = vpop.f32.mrb[0].mxu0
      %v1494 = vpop.f32.mrb[0].mxu0
      %v1495 = vadd.f32 0.0, %v1494
      %v1496 = vpop.f32.mrb[0].mxu0
      %1497 = vmatprep.mubr.bf16.mxu0 0
      %1498 = vmatmul.mubr.bf16.gmra.mrb[0].mxu0 %v1080
      %v1499 = vpop.f32.mrb[0].mxu0
      %v1500 = vadd.f32 0.0, %v1499
      %v1501 = vpop.f32.mrb[0].mxu0
      %v1502 = vpop.f32.mrb[0].mxu0
      %v1503 = vadd.f32 0.0, %v1502
      %v1504 = vpop.f32.mrb[0].mxu0
      %1505 = vmatprep.mubr.bf16.mxu0 0
      %1506 = vmatmul.mubr.bf16.gmra.mrb[0].mxu0 %v1083
      %v1507 = vpop.f32.mrb[0].mxu0
      %v1508 = vadd.f32 0.0, %v1507
      %v1509 = vpop.f32.mrb[0].mxu0
      %v1510 = vpop.f32.mrb[0].mxu0
      %v1511 = vadd.f32 0.0, %v1510
      %v1512 = vpop.f32.mrb[0].mxu0
      %1513 = vmatprep.mubr.bf16.mxu0 0
      %1514 = vmatmul.mubr.bf16.gmra.mrb[0].mxu0 %v1086
      %v1515 = vpop.f32.mrb[0].mxu0
      %v1516 = vadd.f32 0.0, %v1515
      %v1517 = vpop.f32.mrb[0].mxu0
      %v1518 = vpop.f32.mrb[0].mxu0
      %v1519 = vadd.f32 0.0, %v1518
      %v1520 = vpop.f32.mrb[0].mxu0
      %1521 = vmatprep.mubr.bf16.mxu0 0
      %1522 = vmatmul.mubr.bf16.gmra.mrb[0].mxu0 %v1089
      %v1523 = vpop.f32.mrb[0].mxu0
      %v1524 = vadd.f32 0.0, %v1523
      %v1525 = vpop.f32.mrb[0].mxu0
      %v1526 = vpop.f32.mrb[0].mxu0
      %v1527 = vadd.f32 0.0, %v1526
      %v1528 = vpop.f32.mrb[0].mxu0
      %1529 = vmatprep.mubr.bf16.mxu0 0
      %1530 = vmatmul.mubr.bf16.gmra.mrb[0].mxu0 %v1092
      %v1531 = vpop.f32.mrb[0].mxu0
      %v1532 = vadd.f32 0.0, %v1531
      %v1533 = vpop.f32.mrb[0].mxu0
      %v1534 = vpop.f32.mrb[0].mxu0
      %v1535 = vadd.f32 0.0, %v1534
      %v1536 = vpop.f32.mrb[0].mxu0
      %1537 = vmatprep.mubr.bf16.mxu0 0
      %1538 = vmatmul.mubr.bf16.gmra.mrb[0].mxu0 %v1095
      %v1539 = vpop.f32.mrb[0].mxu0
      %v1540 = vadd.f32 0.0, %v1539
      %v1541 = vpop.f32.mrb[0].mxu0
      %v1542 = vpop.f32.mrb[0].mxu0
      %v1543 = vadd.f32 0.0, %v1542
      %v1544 = vpop.f32.mrb[0].mxu0
      %1545 = vmatprep.mubr.bf16.mxu0 0
      %1546 = vmatmul.mubr.bf16.gmra.mrb[0].mxu0 %v1098
      %v1547 = vpop.f32.mrb[0].mxu0
      %v1548 = vadd.f32 0.0, %v1547
      %v1549 = vpop.f32.mrb[0].mxu0
      %v1550 = vpop.f32.mrb[0].mxu0
      %v1551 = vadd.f32 0.0, %v1550
      %v1552 = vpop.f32.mrb[0].mxu0
      %1553 = vmatprep.mubr.bf16.mxu0 0
      %1554 = vmatmul.mubr.bf16.gmra.mrb[0].mxu0 %v1101
      %v1555 = vpop.f32.mrb[0].mxu0
      %v1556 = vadd.f32 0.0, %v1555
      %v1557 = vpop.f32.mrb[0].mxu0
      %v1558 = vpop.f32.mrb[0].mxu0
      %v1559 = vadd.f32 0.0, %v1558
      %v1560 = vpop.f32.mrb[0].mxu0
      %1561 = vmatprep.mubr.bf16.mxu0 0
      %1562 = vmatmul.mubr.bf16.gmra.mrb[0].mxu0 %v1104
      %v1563 = vpop.f32.mrb[0].mxu0
      %v1564 = vadd.f32 0.0, %v1563
      %v1565 = vpop.f32.mrb[0].mxu0
      %v1566 = vpop.f32.mrb[0].mxu0
      %v1567 = vadd.f32 0.0, %v1566
      %v1568 = vpop.f32.mrb[0].mxu0
      %1569 = vmatprep.mubr.bf16.mxu0 0
      %1570 = vmatmul.mubr.bf16.gmra.mrb[0].mxu0 %v1107
      %v1571 = vpop.f32.mrb[0].mxu0
      %v1572 = vadd.f32 0.0, %v1571
      %v1573 = vpop.f32.mrb[0].mxu0
      %v1574 = vpop.f32.mrb[0].mxu0
      %v1575 = vadd.f32 0.0, %v1574
      %v1576 = vpop.f32.mrb[0].mxu0
      %1577 = vmatprep.mubr.bf16.mxu0 0
      %1578 = vmatmul.mubr.bf16.gmra.mrb[0].mxu0 %v1110
      %v1579 = vpop.f32.mrb[0].mxu0
      %v1580 = vadd.f32 0.0, %v1579
      %v1581 = vpop.f32.mrb[0].mxu0
      %v1582 = vpop.f32.mrb[0].mxu0
      %v1583 = vadd.f32 0.0, %v1582
      %v1584 = vpop.f32.mrb[0].mxu0
      %1585 = vmatprep.mubr.bf16.mxu0 0
      %1586 = vmatmul.mubr.bf16.gmra.mrb[0].mxu0 %v1113
      %v1587 = vpop.f32.mrb[0].mxu0
      %v1588 = vadd.f32 0.0, %v1587
      %v1589 = vpop.f32.mrb[0].mxu0
      %v1590 = vpop.f32.mrb[0].mxu0
      %v1591 = vadd.f32 0.0, %v1590
      %v1592 = vpop.f32.mrb[0].mxu0
      %1593 = vmatprep.mubr.bf16.mxu0 0
      %1594 = vmatmul.mubr.bf16.gmra.mrb[0].mxu0 %v1116
      %v1595 = vpop.f32.mrb[0].mxu0
      %v1596 = vadd.f32 0.0, %v1595
      %v1597 = vpop.f32.mrb[0].mxu0
      %v1598 = vpop.f32.mrb[0].mxu0
      %v1599 = vadd.f32 0.0, %v1598
      %v1600 = vpop.f32.mrb[0].mxu0
      %1601 = vmatprep.mubr.bf16.mxu0 0
      %1602 = vmatmul.mubr.bf16.gmra.mrb[0].mxu0 %v1119
      %v1603 = vpop.f32.mrb[0].mxu0
      %v1604 = vadd.f32 0.0, %v1603
      %v1605 = vpop.f32.mrb[0].mxu0
      %v1606 = vpop.f32.mrb[0].mxu0
      %v1607 = vadd.f32 0.0, %v1606
      %v1608 = vpop.f32.mrb[0].mxu0
      %1609 = vmatprep.mubr.bf16.mxu0 0
      %1610 = vmatmul.mubr.bf16.gmra.mrb[0].mxu0 %v1122
      %v1611 = vpop.f32.mrb[0].mxu0
      %v1612 = vadd.f32 0.0, %v1611
      %v1613 = vpop.f32.mrb[0].mxu0
      %v1614 = vpop.f32.mrb[0].mxu0
      %v1615 = vadd.f32 0.0, %v1614
      %v1616 = vpop.f32.mrb[0].mxu0
      %1617 = vmatprep.mubr.bf16.mxu0 0
      %1618 = vmatmul.mubr.bf16.gmra.mrb[0].mxu0 %v1125
      %v1619 = vpop.f32.mrb[0].mxu0
      %v1620 = vadd.f32 0.0, %v1619
      %v1621 = vpop.f32.mrb[0].mxu0
      %v1622 = vpop.f32.mrb[0].mxu0
      %v1623 = vadd.f32 0.0, %v1622
      %v1624 = vpop.f32.mrb[0].mxu0
      %1625 = vmatprep.mubr.bf16.mxu0 0
      %1626 = vmatmul.mubr.bf16.gmra.mrb[0].mxu0 %v1128
      %v1627 = vpop.f32.mrb[0].mxu0
      %v1628 = vadd.f32 0.0, %v1627
      %v1629 = vpop.f32.mrb[0].mxu0
      %v1630 = vpop.f32.mrb[0].mxu0
      %v1631 = vadd.f32 0.0, %v1630
      %v1632 = vpop.f32.mrb[0].mxu0
      %1633 = vmatprep.mubr.bf16.mxu0 0
      %1634 = vmatmul.mubr.bf16.gmra.mrb[0].mxu0 %v1131
      %v1635 = vpop.f32.mrb[0].mxu0
      %v1636 = vadd.f32 0.0, %v1635
      %v1637 = vpop.f32.mrb[0].mxu0
      %v1638 = vpop.f32.mrb[0].mxu0
      %v1639 = vadd.f32 0.0, %v1638
      %v1640 = vpop.f32.mrb[0].mxu0
      %1641 = vmatprep.mubr.bf16.mxu0 0
      %1642 = vmatmul.mubr.bf16.gmra.mrb[0].mxu0 %v1134
      %v1643 = vpop.f32.mrb[0].mxu0
      %v1644 = vadd.f32 0.0, %v1643
      %v1645 = vpop.f32.mrb[0].mxu0
      %v1646 = vpop.f32.mrb[0].mxu0
      %v1647 = vadd.f32 0.0, %v1646
      %v1648 = vpop.f32.mrb[0].mxu0
      %1649 = vmatprep.mubr.bf16.mxu0 0
      %1650 = vmatmul.mubr.bf16.gmra.mrb[0].mxu0 %v1137
      %v1651 = vpop.f32.mrb[0].mxu0
      %v1652 = vadd.f32 0.0, %v1651
      %v1653 = vpop.f32.mrb[0].mxu0
      %v1654 = vpop.f32.mrb[0].mxu0
      %v1655 = vadd.f32 0.0, %v1654
      %v1656 = vpop.f32.mrb[0].mxu0
      %1657 = vmatprep.mubr.bf16.mxu0 0
      %1658 = vmatmul.mubr.bf16.gmra.mrb[0].mxu0 %v1140
      %v1659 = vpop.f32.mrb[0].mxu0
      %v1660 = vadd.f32 0.0, %v1659
      %v1661 = vpop.f32.mrb[0].mxu0
      %v1662 = vpop.f32.mrb[0].mxu0
      %v1663 = vadd.f32 0.0, %v1662
      %v1664 = vpop.f32.mrb[0].mxu0
      %1665 = vmatprep.mubr.bf16.mxu0 0
      %1666 = vmatmul.mubr.bf16.gmra.mrb[0].mxu0 %v1143
      %v1667 = vpop.f32.mrb[0].mxu0
      %v1668 = vadd.f32 0.0, %v1667
      %v1669 = vpop.f32.mrb[0].mxu0
      %v1670 = vpop.f32.mrb[0].mxu0
      %v1671 = vadd.f32 0.0, %v1670
      %v1672 = vpop.f32.mrb[0].mxu0
      %1673 = vmatprep.mubr.bf16.mxu0 0
      %1674 = vmatmul.mubr.bf16.gmra.mrb[0].mxu0 %v1146
      %v1675 = vpop.f32.mrb[0].mxu0
      %v1676 = vadd.f32 0.0, %v1675
      %v1677 = vpop.f32.mrb[0].mxu0
      %v1678 = vpop.f32.mrb[0].mxu0
      %v1679 = vadd.f32 0.0, %v1678
      %v1680 = vpop.f32.mrb[0].mxu0
      %1681 = vmatprep.mubr.bf16.mxu0 0
      %1682 = vmatmul.mubr.bf16.gmra.mrb[0].mxu0 %v1149
      %v1683 = vpop.f32.mrb[0].mxu0
      %v1684 = vadd.f32 0.0, %v1683
      %v1685 = vpop.f32.mrb[0].mxu0
      %v1686 = vpop.f32.mrb[0].mxu0
      %v1687 = vadd.f32 0.0, %v1686
      %v1688 = vpop.f32.mrb[0].mxu0
      %1689 = vmatprep.mubr.bf16.mxu0 0
      %1690 = vmatmul.mubr.bf16.gmra.mrb[0].mxu0 %v1152
      %v1691 = vpop.f32.mrb[0].mxu0
      %v1692 = vadd.f32 0.0, %v1691
      %v1693 = vpop.f32.mrb[0].mxu0
      %v1694 = vpop.f32.mrb[0].mxu0
      %v1695 = vadd.f32 0.0, %v1694
      %v1696 = vpop.f32.mrb[0].mxu0
      %1697 = vmatprep.mubr.bf16.mxu0 0
      %1698 = vmatmul.mubr.bf16.gmra.mrb[0].mxu0 %v1155
      %v1699 = vpop.f32.mrb[0].mxu0
      %v1700 = vadd.f32 0.0, %v1699
      %v1701 = vpop.f32.mrb[0].mxu0
      %v1702 = vpop.f32.mrb[0].mxu0
      %v1703 = vadd.f32 0.0, %v1702
      %v1704 = vpop.f32.mrb[0].mxu0
      %1705 = vdwg.mxu0
      %v1706 = vadd.f32 %v387, %v1196
      %v1707 = vadd.f32 %v388, %v1199
      %v1708 = vadd.f32 %v389, %v1204
      %v1709 = vadd.f32 %v390, %v1207
      %v1710 = vadd.f32 %v391, %v1212
      %v1711 = vadd.f32 %v392, %v1215
      %v1712 = vadd.f32 %v393, %v1220
      %v1713 = vadd.f32 %v394, %v1223
      %v1714 = vadd.f32 %v395, %v1228
      %v1715 = vadd.f32 %v396, %v1231
      %v1716 = vadd.f32 %v397, %v1236
      %v1717 = vadd.f32 %v398, %v1239
      %v1718 = vadd.f32 %v399, %v1244
      %v1719 = vadd.f32 %v400, %v1247
      %v1720 = vadd.f32 %v401, %v1252
      %v1721 = vadd.f32 %v402, %v1255
      %v1722 = vadd.f32 %v403, %v1260
      %v1723 = vadd.f32 %v404, %v1263
      %v1724 = vadd.f32 %v405, %v1268
      %v1725 = vadd.f32 %v406, %v1271
      %v1726 = vadd.f32 %v407, %v1276
      %v1727 = vadd.f32 %v408, %v1279
      %v1728 = vadd.f32 %v409, %v1284
      %v1729 = vadd.f32 %v410, %v1287
      %v1730 = vadd.f32 %v411, %v1292
      %v1731 = vadd.f32 %v412, %v1295
      %v1732 = vadd.f32 %v413, %v1300
      %v1733 = vadd.f32 %v414, %v1303
      %v1734 = vadd.f32 %v415, %v1308
      %v1735 = vadd.f32 %v416, %v1311
      %v1736 = vadd.f32 %v417, %v1316
      %v1737 = vadd.f32 %v418, %v1319
      %v1738 = vadd.f32 %v419, %v1324
      %v1739 = vadd.f32 %v420, %v1327
      %v1740 = vadd.f32 %v421, %v1332
      %v1741 = vadd.f32 %v422, %v1335
      %v1742 = vadd.f32 %v423, %v1340
      %v1743 = vadd.f32 %v424, %v1343
      %v1744 = vadd.f32 %v425, %v1348
      %v1745 = vadd.f32 %v426, %v1351
      %v1746 = vadd.f32 %v427, %v1356
      %v1747 = vadd.f32 %v428, %v1359
      %v1748 = vadd.f32 %v429, %v1364
      %v1749 = vadd.f32 %v430, %v1367
      %v1750 = vadd.f32 %v431, %v1372
      %v1751 = vadd.f32 %v432, %v1375
      %v1752 = vadd.f32 %v433, %v1380
      %v1753 = vadd.f32 %v434, %v1383
      %v1754 = vadd.f32 %v435, %v1388
      %v1755 = vadd.f32 %v436, %v1391
      %v1756 = vadd.f32 %v437, %v1396
      %v1757 = vadd.f32 %v438, %v1399
      %v1758 = vadd.f32 %v439, %v1404
      %v1759 = vadd.f32 %v440, %v1407
      %v1760 = vadd.f32 %v441, %v1412
      %v1761 = vadd.f32 %v442, %v1415
      %v1762 = vadd.f32 %v443, %v1420
      %v1763 = vadd.f32 %v444, %v1423
      %v1764 = vadd.f32 %v445, %v1428
      %v1765 = vadd.f32 %v446, %v1431
      %v1766 = vadd.f32 %v447, %v1436
      %v1767 = vadd.f32 %v448, %v1439
      %v1768 = vadd.f32 %v449, %v1444
      %v1769 = vadd.f32 %v450, %v1447
      %v1770 = vadd.f32 %v451, %v1452
      %v1771 = vadd.f32 %v452, %v1455
      %v1772 = vadd.f32 %v453, %v1460
      %v1773 = vadd.f32 %v454, %v1463
      %v1774 = vadd.f32 %v455, %v1468
      %v1775 = vadd.f32 %v456, %v1471
      %v1776 = vadd.f32 %v457, %v1476
      %v1777 = vadd.f32 %v458, %v1479
      %v1778 = vadd.f32 %v459, %v1484
      %v1779 = vadd.f32 %v460, %v1487
      %v1780 = vadd.f32 %v461, %v1492
      %v1781 = vadd.f32 %v462, %v1495
      %v1782 = vadd.f32 %v463, %v1500
      %v1783 = vadd.f32 %v464, %v1503
      %v1784 = vadd.f32 %v465, %v1508
      %v1785 = vadd.f32 %v466, %v1511
      %v1786 = vadd.f32 %v467, %v1516
      %v1787 = vadd.f32 %v468, %v1519
      %v1788 = vadd.f32 %v469, %v1524
      %v1789 = vadd.f32 %v470, %v1527
      %v1790 = vadd.f32 %v471, %v1532
      %v1791 = vadd.f32 %v472, %v1535
      %v1792 = vadd.f32 %v473, %v1540
      %v1793 = vadd.f32 %v474, %v1543
      %v1794 = vadd.f32 %v475, %v1548
      %v1795 = vadd.f32 %v476, %v1551
      %v1796 = vadd.f32 %v477, %v1556
      %v1797 = vadd.f32 %v478, %v1559
      %v1798 = vadd.f32 %v479, %v1564
      %v1799 = vadd.f32 %v480, %v1567
      %v1800 = vadd.f32 %v481, %v1572
      %v1801 = vadd.f32 %v482, %v1575
      %v1802 = vadd.f32 %v483, %v1580
      %v1803 = vadd.f32 %v484, %v1583
      %v1804 = vadd.f32 %v485, %v1588
      %v1805 = vadd.f32 %v486, %v1591
      %v1806 = vadd.f32 %v487, %v1596
      %v1807 = vadd.f32 %v488, %v1599
      %v1808 = vadd.f32 %v489, %v1604
      %v1809 = vadd.f32 %v490, %v1607
      %v1810 = vadd.f32 %v491, %v1612
      %v1811 = vadd.f32 %v492, %v1615
      %v1812 = vadd.f32 %v493, %v1620
      %v1813 = vadd.f32 %v494, %v1623
      %v1814 = vadd.f32 %v495, %v1628
      %v1815 = vadd.f32 %v496, %v1631
      %v1816 = vadd.f32 %v497, %v1636
      %v1817 = vadd.f32 %v498, %v1639
      %v1818 = vadd.f32 %v499, %v1644
      %v1819 = vadd.f32 %v500, %v1647
      %v1820 = vadd.f32 %v501, %v1652
      %v1821 = vadd.f32 %v502, %v1655
      %v1822 = vadd.f32 %v503, %v1660
      %v1823 = vadd.f32 %v504, %v1663
      %v1824 = vadd.f32 %v505, %v1668
      %v1825 = vadd.f32 %v506, %v1671
      %v1826 = vadd.f32 %v507, %v1676
      %v1827 = vadd.f32 %v508, %v1679
      %v1828 = vadd.f32 %v509, %v1684
      %v1829 = vadd.f32 %v510, %v1687
      %v1830 = vadd.f32 %v511, %v1692
      %v1831 = vadd.f32 %v512, %v1695
      %v1832 = vadd.f32 %v513, %v1700
      %v1833 = vadd.f32 %v514, %v1703
      %1834 = vst [vmem:[#allocation2] sm:$0xff] %v1706
      %1835 = vst [vmem:[#allocation2 + $0x8] sm:$0xff] %v1707
      %1836 = vst [vmem:[#allocation2 + $0x10] sm:$0xff] %v1708
      %1837 = vst [vmem:[#allocation2 + $0x18] sm:$0xff] %v1709
      %1838 = vst [vmem:[#allocation2 + $0x20] sm:$0xff] %v1710
      %1839 = vst [vmem:[#allocation2 + $0x28] sm:$0xff] %v1711
      %1840 = vst [vmem:[#allocation2 + $0x30] sm:$0xff] %v1712
      %1841 = vst [vmem:[#allocation2 + $0x38] sm:$0xff] %v1713
      %1842 = vst [vmem:[#allocation2 + $0x40] sm:$0xff] %v1714
      %1843 = vst [vmem:[#allocation2 + $0x48] sm:$0xff] %v1715
      %1844 = vst [vmem:[#allocation2 + $0x50] sm:$0xff] %v1716
      %1845 = vst [vmem:[#allocation2 + $0x58] sm:$0xff] %v1717
      %1846 = vst [vmem:[#allocation2 + $0x60] sm:$0xff] %v1718
      %1847 = vst [vmem:[#allocation2 + $0x68] sm:$0xff] %v1719
      %1848 = vst [vmem:[#allocation2 + $0x70] sm:$0xff] %v1720
      %1849 = vst [vmem:[#allocation2 + $0x78] sm:$0xff] %v1721
      %1850 = vst [vmem:[#allocation2 + $0x80] sm:$0xff] %v1722
      %1851 = vst [vmem:[#allocation2 + $0x88] sm:$0xff] %v1723
      %1852 = vst [vmem:[#allocation2 + $0x90] sm:$0xff] %v1724
      %1853 = vst [vmem:[#allocation2 + $0x98] sm:$0xff] %v1725
      %1854 = vst [vmem:[#allocation2 + $0xa0] sm:$0xff] %v1726
      %1855 = vst [vmem:[#allocation2 + $0xa8] sm:$0xff] %v1727
      %1856 = vst [vmem:[#allocation2 + $0xb0] sm:$0xff] %v1728
      %1857 = vst [vmem:[#allocation2 + $0xb8] sm:$0xff] %v1729
      %1858 = vst [vmem:[#allocation2 + $0xc0] sm:$0xff] %v1730
      %1859 = vst [vmem:[#allocation2 + $0xc8] sm:$0xff] %v1731
      %1860 = vst [vmem:[#allocation2 + $0xd0] sm:$0xff] %v1732
      %1861 = vst [vmem:[#allocation2 + $0xd8] sm:$0xff] %v1733
      %1862 = vst [vmem:[#allocation2 + $0xe0] sm:$0xff] %v1734
      %1863 = vst [vmem:[#allocation2 + $0xe8] sm:$0xff] %v1735
      %1864 = vst [vmem:[#allocation2 + $0xf0] sm:$0xff] %v1736
      %1865 = vst [vmem:[#allocation2 + $0xf8] sm:$0xff] %v1737
      %1866 = vst [vmem:[#allocation2 + $0x100] sm:$0xff] %v1738
      %1867 = vst [vmem:[#allocation2 + $0x108] sm:$0xff] %v1739
      %1868 = vst [vmem:[#allocation2 + $0x110] sm:$0xff] %v1740
      %1869 = vst [vmem:[#allocation2 + $0x118] sm:$0xff] %v1741
      %1870 = vst [vmem:[#allocation2 + $0x120] sm:$0xff] %v1742
      %1871 = vst [vmem:[#allocation2 + $0x128] sm:$0xff] %v1743
      %1872 = vst [vmem:[#allocation2 + $0x130] sm:$0xff] %v1744
      %1873 = vst [vmem:[#allocation2 + $0x138] sm:$0xff] %v1745
      %1874 = vst [vmem:[#allocation2 + $0x140] sm:$0xff] %v1746
      %1875 = vst [vmem:[#allocation2 + $0x148] sm:$0xff] %v1747
      %1876 = vst [vmem:[#allocation2 + $0x150] sm:$0xff] %v1748
      %1877 = vst [vmem:[#allocation2 + $0x158] sm:$0xff] %v1749
      %1878 = vst [vmem:[#allocation2 + $0x160] sm:$0xff] %v1750
      %1879 = vst [vmem:[#allocation2 + $0x168] sm:$0xff] %v1751
      %1880 = vst [vmem:[#allocation2 + $0x170] sm:$0xff] %v1752
      %1881 = vst [vmem:[#allocation2 + $0x178] sm:$0xff] %v1753
      %1882 = vst [vmem:[#allocation2 + $0x180] sm:$0xff] %v1754
      %1883 = vst [vmem:[#allocation2 + $0x188] sm:$0xff] %v1755
      %1884 = vst [vmem:[#allocation2 + $0x190] sm:$0xff] %v1756
      %1885 = vst [vmem:[#allocation2 + $0x198] sm:$0xff] %v1757
      %1886 = vst [vmem:[#allocation2 + $0x1a0] sm:$0xff] %v1758
      %1887 = vst [vmem:[#allocation2 + $0x1a8] sm:$0xff] %v1759
      %1888 = vst [vmem:[#allocation2 + $0x1b0] sm:$0xff] %v1760
      %1889 = vst [vmem:[#allocation2 + $0x1b8] sm:$0xff] %v1761
      %1890 = vst [vmem:[#allocation2 + $0x1c0] sm:$0xff] %v1762
      %1891 = vst [vmem:[#allocation2 + $0x1c8] sm:$0xff] %v1763
      %1892 = vst [vmem:[#allocation2 + $0x1d0] sm:$0xff] %v1764
      %1893 = vst [vmem:[#allocation2 + $0x1d8] sm:$0xff] %v1765
      %1894 = vst [vmem:[#allocation2 + $0x1e0] sm:$0xff] %v1766
      %1895 = vst [vmem:[#allocation2 + $0x1e8] sm:$0xff] %v1767
      %1896 = vst [vmem:[#allocation2 + $0x1f0] sm:$0xff] %v1768
      %1897 = vst [vmem:[#allocation2 + $0x1f8] sm:$0xff] %v1769
      %1898 = vst [vmem:[#allocation2 + $0x200] sm:$0xff] %v1770
      %1899 = vst [vmem:[#allocation2 + $0x208] sm:$0xff] %v1771
      %1900 = vst [vmem:[#allocation2 + $0x210] sm:$0xff] %v1772
      %1901 = vst [vmem:[#allocation2 + $0x218] sm:$0xff] %v1773
      %1902 = vst [vmem:[#allocation2 + $0x220] sm:$0xff] %v1774
      %1903 = vst [vmem:[#allocation2 + $0x228] sm:$0xff] %v1775
      %1904 = vst [vmem:[#allocation2 + $0x230] sm:$0xff] %v1776
      %1905 = vst [vmem:[#allocation2 + $0x238] sm:$0xff] %v1777
      %1906 = vst [vmem:[#allocation2 + $0x240] sm:$0xff] %v1778
      %1907 = vst [vmem:[#allocation2 + $0x248] sm:$0xff] %v1779
      %1908 = vst [vmem:[#allocation2 + $0x250] sm:$0xff] %v1780
      %1909 = vst [vmem:[#allocation2 + $0x258] sm:$0xff] %v1781
      %1910 = vst [vmem:[#allocation2 + $0x260] sm:$0xff] %v1782
      %1911 = vst [vmem:[#allocation2 + $0x268] sm:$0xff] %v1783
      %1912 = vst [vmem:[#allocation2 + $0x270] sm:$0xff] %v1784
      %1913 = vst [vmem:[#allocation2 + $0x278] sm:$0xff] %v1785
      %1914 = vst [vmem:[#allocation2 + $0x280] sm:$0xff] %v1786
      %1915 = vst [vmem:[#allocation2 + $0x288] sm:$0xff] %v1787
      %1916 = vst [vmem:[#allocation2 + $0x290] sm:$0xff] %v1788
      %1917 = vst [vmem:[#allocation2 + $0x298] sm:$0xff] %v1789
      %1918 = vst [vmem:[#allocation2 + $0x2a0] sm:$0xff] %v1790
      %1919 = vst [vmem:[#allocation2 + $0x2a8] sm:$0xff] %v1791
      %1920 = vst [vmem:[#allocation2 + $0x2b0] sm:$0xff] %v1792
      %1921 = vst [vmem:[#allocation2 + $0x2b8] sm:$0xff] %v1793
      %1922 = vst [vmem:[#allocation2 + $0x2c0] sm:$0xff] %v1794
      %1923 = vst [vmem:[#allocation2 + $0x2c8] sm:$0xff] %v1795
      %1924 = vst [vmem:[#allocation2 + $0x2d0] sm:$0xff] %v1796
      %1925 = vst [vmem:[#allocation2 + $0x2d8] sm:$0xff] %v1797
      %1926 = vst [vmem:[#allocation2 + $0x2e0] sm:$0xff] %v1798
      %1927 = vst [vmem:[#allocation2 + $0x2e8] sm:$0xff] %v1799
      %1928 = vst [vmem:[#allocation2 + $0x2f0] sm:$0xff] %v1800
      %1929 = vst [vmem:[#allocation2 + $0x2f8] sm:$0xff] %v1801
      %1930 = vst [vmem:[#allocation2 + $0x300] sm:$0xff] %v1802
      %1931 = vst [vmem:[#allocation2 + $0x308] sm:$0xff] %v1803
      %1932 = vst [vmem:[#allocation2 + $0x310] sm:$0xff] %v1804
      %1933 = vst [vmem:[#allocation2 + $0x318] sm:$0xff] %v1805
      %1934 = vst [vmem:[#allocation2 + $0x320] sm:$0xff] %v1806
      %1935 = vst [vmem:[#allocation2 + $0x328] sm:$0xff] %v1807
      %1936 = vst [vmem:[#allocation2 + $0x330] sm:$0xff] %v1808
      %1937 = vst [vmem:[#allocation2 + $0x338] sm:$0xff] %v1809
      %1938 = vst [vmem:[#allocation2 + $0x340] sm:$0xff] %v1810
      %1939 = vst [vmem:[#allocation2 + $0x348] sm:$0xff] %v1811
      %1940 = vst [vmem:[#allocation2 + $0x350] sm:$0xff] %v1812
      %1941 = vst [vmem:[#allocation2 + $0x358] sm:$0xff] %v1813
      %1942 = vst [vmem:[#allocation2 + $0x360] sm:$0xff] %v1814
      %1943 = vst [vmem:[#allocation2 + $0x368] sm:$0xff] %v1815
      %1944 = vst [vmem:[#allocation2 + $0x370] sm:$0xff] %v1816
      %1945 = vst [vmem:[#allocation2 + $0x378] sm:$0xff] %v1817
      %1946 = vst [vmem:[#allocation2 + $0x380] sm:$0xff] %v1818
      %1947 = vst [vmem:[#allocation2 + $0x388] sm:$0xff] %v1819
      %1948 = vst [vmem:[#allocation2 + $0x390] sm:$0xff] %v1820
      %1949 = vst [vmem:[#allocation2 + $0x398] sm:$0xff] %v1821
      %1950 = vst [vmem:[#allocation2 + $0x3a0] sm:$0xff] %v1822
      %1951 = vst [vmem:[#allocation2 + $0x3a8] sm:$0xff] %v1823
      %1952 = vst [vmem:[#allocation2 + $0x3b0] sm:$0xff] %v1824
      %1953 = vst [vmem:[#allocation2 + $0x3b8] sm:$0xff] %v1825
      %1954 = vst [vmem:[#allocation2 + $0x3c0] sm:$0xff] %v1826
      %1955 = vst [vmem:[#allocation2 + $0x3c8] sm:$0xff] %v1827
      %1956 = vst [vmem:[#allocation2 + $0x3d0] sm:$0xff] %v1828
      %1957 = vst [vmem:[#allocation2 + $0x3d8] sm:$0xff] %v1829
      %1958 = vst [vmem:[#allocation2 + $0x3e0] sm:$0xff] %v1830
      %1959 = vst [vmem:[#allocation2 + $0x3e8] sm:$0xff] %v1831
      %1960 = vst [vmem:[#allocation2 + $0x3f0] sm:$0xff] %v1832
      %1961 = vst [vmem:[#allocation2 + $0x3f8] sm:$0xff] %v1833
      // Predicated region
      $region37: #{autoencoder_de_forward.11} parent=31 // pred_check
        %p1962 = pneg %p255
      $region38: #{autoencoder_de_forward.11} parent=31 // pred_check_branch
        %1964 = sbr.rel (%p1962) target = $region40
      $region39: #{autoencoder_de_forward.11} parent=31 // pred_region
        %v1965 = vld [vmem:[#allocation2] sm:$0xff]
        %v1966 = vld [vmem:[#allocation2 + $0x8] sm:$0xff]
        %v1967 = vld [vmem:[#allocation2 + $0x10] sm:$0xff]
        %v1968 = vld [vmem:[#allocation2 + $0x18] sm:$0xff]
        %v1969 = vld [vmem:[#allocation2 + $0x20] sm:$0xff]
        %v1970 = vld [vmem:[#allocation2 + $0x28] sm:$0xff]
        %v1971 = vld [vmem:[#allocation2 + $0x30] sm:$0xff]
        %v1972 = vld [vmem:[#allocation2 + $0x38] sm:$0xff]
        %v1973 = vld [vmem:[#allocation2 + $0x40] sm:$0xff]
        %v1974 = vld [vmem:[#allocation2 + $0x48] sm:$0xff]
        %v1975 = vld [vmem:[#allocation2 + $0x50] sm:$0xff]
        %v1976 = vld [vmem:[#allocation2 + $0x58] sm:$0xff]
        %v1977 = vld [vmem:[#allocation2 + $0x60] sm:$0xff]
        %v1978 = vld [vmem:[#allocation2 + $0x68] sm:$0xff]
        %v1979 = vld [vmem:[#allocation2 + $0x70] sm:$0xff]
        %v1980 = vld [vmem:[#allocation2 + $0x78] sm:$0xff]
        %v1981 = vld [vmem:[#allocation2 + $0x80] sm:$0xff]
        %v1982 = vld [vmem:[#allocation2 + $0x88] sm:$0xff]
        %v1983 = vld [vmem:[#allocation2 + $0x90] sm:$0xff]
        %v1984 = vld [vmem:[#allocation2 + $0x98] sm:$0xff]
        %v1985 = vld [vmem:[#allocation2 + $0xa0] sm:$0xff]
        %v1986 = vld [vmem:[#allocation2 + $0xa8] sm:$0xff]
        %v1987 = vld [vmem:[#allocation2 + $0xb0] sm:$0xff]
        %v1988 = vld [vmem:[#allocation2 + $0xb8] sm:$0xff]
        %v1989 = vld [vmem:[#allocation2 + $0xc0] sm:$0xff]
        %v1990 = vld [vmem:[#allocation2 + $0xc8] sm:$0xff]
        %v1991 = vld [vmem:[#allocation2 + $0xd0] sm:$0xff]
        %v1992 = vld [vmem:[#allocation2 + $0xd8] sm:$0xff]
        %v1993 = vld [vmem:[#allocation2 + $0xe0] sm:$0xff]
        %v1994 = vld [vmem:[#allocation2 + $0xe8] sm:$0xff]
        %v1995 = vld [vmem:[#allocation2 + $0xf0] sm:$0xff]
        %v1996 = vld [vmem:[#allocation2 + $0xf8] sm:$0xff]
        %v1997 = vld [vmem:[#allocation2 + $0x100] sm:$0xff]
        %v1998 = vld [vmem:[#allocation2 + $0x108] sm:$0xff]
        %v1999 = vld [vmem:[#allocation2 + $0x110] sm:$0xff]
        %v2000 = vld [vmem:[#allocation2 + $0x118] sm:$0xff]
        %v2001 = vld [vmem:[#allocation2 + $0x120] sm:$0xff]
        %v2002 = vld [vmem:[#allocation2 + $0x128] sm:$0xff]
        %v2003 = vld [vmem:[#allocation2 + $0x130] sm:$0xff]
        %v2004 = vld [vmem:[#allocation2 + $0x138] sm:$0xff]
        %v2005 = vld [vmem:[#allocation2 + $0x140] sm:$0xff]
        %v2006 = vld [vmem:[#allocation2 + $0x148] sm:$0xff]
        %v2007 = vld [vmem:[#allocation2 + $0x150] sm:$0xff]
        %v2008 = vld [vmem:[#allocation2 + $0x158] sm:$0xff]
        %v2009 = vld [vmem:[#allocation2 + $0x160] sm:$0xff]
        %v2010 = vld [vmem:[#allocation2 + $0x168] sm:$0xff]
        %v2011 = vld [vmem:[#allocation2 + $0x170] sm:$0xff]
        %v2012 = vld [vmem:[#allocation2 + $0x178] sm:$0xff]
        %v2013 = vld [vmem:[#allocation2 + $0x180] sm:$0xff]
        %v2014 = vld [vmem:[#allocation2 + $0x188] sm:$0xff]
        %v2015 = vld [vmem:[#allocation2 + $0x190] sm:$0xff]
        %v2016 = vld [vmem:[#allocation2 + $0x198] sm:$0xff]
        %v2017 = vld [vmem:[#allocation2 + $0x1a0] sm:$0xff]
        %v2018 = vld [vmem:[#allocation2 + $0x1a8] sm:$0xff]
        %v2019 = vld [vmem:[#allocation2 + $0x1b0] sm:$0xff]
        %v2020 = vld [vmem:[#allocation2 + $0x1b8] sm:$0xff]
        %v2021 = vld [vmem:[#allocation2 + $0x1c0] sm:$0xff]
        %v2022 = vld [vmem:[#allocation2 + $0x1c8] sm:$0xff]
        %v2023 = vld [vmem:[#allocation2 + $0x1d0] sm:$0xff]
        %v2024 = vld [vmem:[#allocation2 + $0x1d8] sm:$0xff]
        %v2025 = vld [vmem:[#allocation2 + $0x1e0] sm:$0xff]
        %v2026 = vld [vmem:[#allocation2 + $0x1e8] sm:$0xff]
        %v2027 = vld [vmem:[#allocation2 + $0x1f0] sm:$0xff]
        %v2028 = vld [vmem:[#allocation2 + $0x1f8] sm:$0xff]
        %v2029 = vld [vmem:[#allocation2 + $0x200] sm:$0xff]
        %v2030 = vld [vmem:[#allocation2 + $0x208] sm:$0xff]
        %v2031 = vld [vmem:[#allocation2 + $0x210] sm:$0xff]
        %v2032 = vld [vmem:[#allocation2 + $0x218] sm:$0xff]
        %v2033 = vld [vmem:[#allocation2 + $0x220] sm:$0xff]
        %v2034 = vld [vmem:[#allocation2 + $0x228] sm:$0xff]
        %v2035 = vld [vmem:[#allocation2 + $0x230] sm:$0xff]
        %v2036 = vld [vmem:[#allocation2 + $0x238] sm:$0xff]
        %v2037 = vld [vmem:[#allocation2 + $0x240] sm:$0xff]
        %v2038 = vld [vmem:[#allocation2 + $0x248] sm:$0xff]
        %v2039 = vld [vmem:[#allocation2 + $0x250] sm:$0xff]
        %v2040 = vld [vmem:[#allocation2 + $0x258] sm:$0xff]
        %v2041 = vld [vmem:[#allocation2 + $0x260] sm:$0xff]
        %v2042 = vld [vmem:[#allocation2 + $0x268] sm:$0xff]
        %v2043 = vld [vmem:[#allocation2 + $0x270] sm:$0xff]
        %v2044 = vld [vmem:[#allocation2 + $0x278] sm:$0xff]
        %v2045 = vld [vmem:[#allocation2 + $0x280] sm:$0xff]
        %v2046 = vld [vmem:[#allocation2 + $0x288] sm:$0xff]
        %v2047 = vld [vmem:[#allocation2 + $0x290] sm:$0xff]
        %v2048 = vld [vmem:[#allocation2 + $0x298] sm:$0xff]
        %v2049 = vld [vmem:[#allocation2 + $0x2a0] sm:$0xff]
        %v2050 = vld [vmem:[#allocation2 + $0x2a8] sm:$0xff]
        %v2051 = vld [vmem:[#allocation2 + $0x2b0] sm:$0xff]
        %v2052 = vld [vmem:[#allocation2 + $0x2b8] sm:$0xff]
        %v2053 = vld [vmem:[#allocation2 + $0x2c0] sm:$0xff]
        %v2054 = vld [vmem:[#allocation2 + $0x2c8] sm:$0xff]
        %v2055 = vld [vmem:[#allocation2 + $0x2d0] sm:$0xff]
        %v2056 = vld [vmem:[#allocation2 + $0x2d8] sm:$0xff]
        %v2057 = vld [vmem:[#allocation2 + $0x2e0] sm:$0xff]
        %v2058 = vld [vmem:[#allocation2 + $0x2e8] sm:$0xff]
        %v2059 = vld [vmem:[#allocation2 + $0x2f0] sm:$0xff]
        %v2060 = vld [vmem:[#allocation2 + $0x2f8] sm:$0xff]
        %v2061 = vld [vmem:[#allocation2 + $0x300] sm:$0xff]
        %v2062 = vld [vmem:[#allocation2 + $0x308] sm:$0xff]
        %v2063 = vld [vmem:[#allocation2 + $0x310] sm:$0xff]
        %v2064 = vld [vmem:[#allocation2 + $0x318] sm:$0xff]
        %v2065 = vld [vmem:[#allocation2 + $0x320] sm:$0xff]
        %v2066 = vld [vmem:[#allocation2 + $0x328] sm:$0xff]
        %v2067 = vld [vmem:[#allocation2 + $0x330] sm:$0xff]
        %v2068 = vld [vmem:[#allocation2 + $0x338] sm:$0xff]
        %v2069 = vld [vmem:[#allocation2 + $0x340] sm:$0xff]
        %v2070 = vld [vmem:[#allocation2 + $0x348] sm:$0xff]
        %v2071 = vld [vmem:[#allocation2 + $0x350] sm:$0xff]
        %v2072 = vld [vmem:[#allocation2 + $0x358] sm:$0xff]
        %v2073 = vld [vmem:[#allocation2 + $0x360] sm:$0xff]
        %v2074 = vld [vmem:[#allocation2 + $0x368] sm:$0xff]
        %v2075 = vld [vmem:[#allocation2 + $0x370] sm:$0xff]
        %v2076 = vld [vmem:[#allocation2 + $0x378] sm:$0xff]
        %v2077 = vld [vmem:[#allocation2 + $0x380] sm:$0xff]
        %v2078 = vld [vmem:[#allocation2 + $0x388] sm:$0xff]
        %v2079 = vld [vmem:[#allocation2 + $0x390] sm:$0xff]
        %v2080 = vld [vmem:[#allocation2 + $0x398] sm:$0xff]
        %v2081 = vld [vmem:[#allocation2 + $0x3a0] sm:$0xff]
        %v2082 = vld [vmem:[#allocation2 + $0x3a8] sm:$0xff]
        %v2083 = vld [vmem:[#allocation2 + $0x3b0] sm:$0xff]
        %v2084 = vld [vmem:[#allocation2 + $0x3b8] sm:$0xff]
        %v2085 = vld [vmem:[#allocation2 + $0x3c0] sm:$0xff]
        %v2086 = vld [vmem:[#allocation2 + $0x3c8] sm:$0xff]
        %v2087 = vld [vmem:[#allocation2 + $0x3d0] sm:$0xff]
        %v2088 = vld [vmem:[#allocation2 + $0x3d8] sm:$0xff]
        %v2089 = vld [vmem:[#allocation2 + $0x3e0] sm:$0xff]
        %v2090 = vld [vmem:[#allocation2 + $0x3e8] sm:$0xff]
        %v2091 = vld [vmem:[#allocation2 + $0x3f0] sm:$0xff]
        %v2092 = vld [vmem:[#allocation2 + $0x3f8] sm:$0xff]
        %v2093 = vld [vmem:[%s244] sm:$0x1]
        %v2095 = vlaneseq
        %v2096 = vshrl.u32 %v2095, 7
        %v2097 = vsub.s32 0, %v2096
        %v2098 = vrot.slane %v2093, %v2097
        %v2100 = vadd.f32 %v1965, %v2098
        %v2101 = vadd.f32 %v1966, %v2098
        %v2102 = vadd.f32 %v1967, %v2098
        %v2103 = vadd.f32 %v1968, %v2098
        %v2104 = vadd.f32 %v1969, %v2098
        %v2105 = vadd.f32 %v1970, %v2098
        %v2106 = vadd.f32 %v1971, %v2098
        %v2107 = vadd.f32 %v1972, %v2098
        %v2108 = vadd.f32 %v1973, %v2098
        %v2109 = vadd.f32 %v1974, %v2098
        %v2110 = vadd.f32 %v1975, %v2098
        %v2111 = vadd.f32 %v1976, %v2098
        %v2112 = vadd.f32 %v1977, %v2098
        %v2113 = vadd.f32 %v1978, %v2098
        %v2114 = vadd.f32 %v1979, %v2098
        %v2115 = vadd.f32 %v1980, %v2098
        %v2116 = vadd.f32 %v1981, %v2098
        %v2117 = vadd.f32 %v1982, %v2098
        %v2118 = vadd.f32 %v1983, %v2098
        %v2119 = vadd.f32 %v1984, %v2098
        %v2120 = vadd.f32 %v1985, %v2098
        %v2121 = vadd.f32 %v1986, %v2098
        %v2122 = vadd.f32 %v1987, %v2098
        %v2123 = vadd.f32 %v1988, %v2098
        %v2124 = vadd.f32 %v1989, %v2098
        %v2125 = vadd.f32 %v1990, %v2098
        %v2126 = vadd.f32 %v1991, %v2098
        %v2127 = vadd.f32 %v1992, %v2098
        %v2128 = vadd.f32 %v1993, %v2098
        %v2129 = vadd.f32 %v1994, %v2098
        %v2130 = vadd.f32 %v1995, %v2098
        %v2131 = vadd.f32 %v1996, %v2098
        %v2132 = vadd.f32 %v1997, %v2098
        %v2133 = vadd.f32 %v1998, %v2098
        %v2134 = vadd.f32 %v1999, %v2098
        %v2135 = vadd.f32 %v2000, %v2098
        %v2136 = vadd.f32 %v2001, %v2098
        %v2137 = vadd.f32 %v2002, %v2098
        %v2138 = vadd.f32 %v2003, %v2098
        %v2139 = vadd.f32 %v2004, %v2098
        %v2140 = vadd.f32 %v2005, %v2098
        %v2141 = vadd.f32 %v2006, %v2098
        %v2142 = vadd.f32 %v2007, %v2098
        %v2143 = vadd.f32 %v2008, %v2098
        %v2144 = vadd.f32 %v2009, %v2098
        %v2145 = vadd.f32 %v2010, %v2098
        %v2146 = vadd.f32 %v2011, %v2098
        %v2147 = vadd.f32 %v2012, %v2098
        %v2148 = vadd.f32 %v2013, %v2098
        %v2149 = vadd.f32 %v2014, %v2098
        %v2150 = vadd.f32 %v2015, %v2098
        %v2151 = vadd.f32 %v2016, %v2098
        %v2152 = vadd.f32 %v2017, %v2098
        %v2153 = vadd.f32 %v2018, %v2098
        %v2154 = vadd.f32 %v2019, %v2098
        %v2155 = vadd.f32 %v2020, %v2098
        %v2156 = vadd.f32 %v2021, %v2098
        %v2157 = vadd.f32 %v2022, %v2098
        %v2158 = vadd.f32 %v2023, %v2098
        %v2159 = vadd.f32 %v2024, %v2098
        %v2160 = vadd.f32 %v2025, %v2098
        %v2161 = vadd.f32 %v2026, %v2098
        %v2162 = vadd.f32 %v2027, %v2098
        %v2163 = vadd.f32 %v2028, %v2098
        %v2164 = vadd.f32 %v2029, %v2098
        %v2165 = vadd.f32 %v2030, %v2098
        %v2166 = vadd.f32 %v2031, %v2098
        %v2167 = vadd.f32 %v2032, %v2098
        %v2168 = vadd.f32 %v2033, %v2098
        %v2169 = vadd.f32 %v2034, %v2098
        %v2170 = vadd.f32 %v2035, %v2098
        %v2171 = vadd.f32 %v2036, %v2098
        %v2172 = vadd.f32 %v2037, %v2098
        %v2173 = vadd.f32 %v2038, %v2098
        %v2174 = vadd.f32 %v2039, %v2098
        %v2175 = vadd.f32 %v2040, %v2098
        %v2176 = vadd.f32 %v2041, %v2098
        %v2177 = vadd.f32 %v2042, %v2098
        %v2178 = vadd.f32 %v2043, %v2098
        %v2179 = vadd.f32 %v2044, %v2098
        %v2180 = vadd.f32 %v2045, %v2098
        %v2181 = vadd.f32 %v2046, %v2098
        %v2182 = vadd.f32 %v2047, %v2098
        %v2183 = vadd.f32 %v2048, %v2098
        %v2184 = vadd.f32 %v2049, %v2098
        %v2185 = vadd.f32 %v2050, %v2098
        %v2186 = vadd.f32 %v2051, %v2098
        %v2187 = vadd.f32 %v2052, %v2098
        %v2188 = vadd.f32 %v2053, %v2098
        %v2189 = vadd.f32 %v2054, %v2098
        %v2190 = vadd.f32 %v2055, %v2098
        %v2191 = vadd.f32 %v2056, %v2098
        %v2192 = vadd.f32 %v2057, %v2098
        %v2193 = vadd.f32 %v2058, %v2098
        %v2194 = vadd.f32 %v2059, %v2098
        %v2195 = vadd.f32 %v2060, %v2098
        %v2196 = vadd.f32 %v2061, %v2098
        %v2197 = vadd.f32 %v2062, %v2098
        %v2198 = vadd.f32 %v2063, %v2098
        %v2199 = vadd.f32 %v2064, %v2098
        %v2200 = vadd.f32 %v2065, %v2098
        %v2201 = vadd.f32 %v2066, %v2098
        %v2202 = vadd.f32 %v2067, %v2098
        %v2203 = vadd.f32 %v2068, %v2098
        %v2204 = vadd.f32 %v2069, %v2098
        %v2205 = vadd.f32 %v2070, %v2098
        %v2206 = vadd.f32 %v2071, %v2098
        %v2207 = vadd.f32 %v2072, %v2098
        %v2208 = vadd.f32 %v2073, %v2098
        %v2209 = vadd.f32 %v2074, %v2098
        %v2210 = vadd.f32 %v2075, %v2098
        %v2211 = vadd.f32 %v2076, %v2098
        %v2212 = vadd.f32 %v2077, %v2098
        %v2213 = vadd.f32 %v2078, %v2098
        %v2214 = vadd.f32 %v2079, %v2098
        %v2215 = vadd.f32 %v2080, %v2098
        %v2216 = vadd.f32 %v2081, %v2098
        %v2217 = vadd.f32 %v2082, %v2098
        %v2218 = vadd.f32 %v2083, %v2098
        %v2219 = vadd.f32 %v2084, %v2098
        %v2220 = vadd.f32 %v2085, %v2098
        %v2221 = vadd.f32 %v2086, %v2098
        %v2222 = vadd.f32 %v2087, %v2098
        %v2223 = vadd.f32 %v2088, %v2098
        %v2224 = vadd.f32 %v2089, %v2098
        %v2225 = vadd.f32 %v2090, %v2098
        %v2226 = vadd.f32 %v2091, %v2098
        %v2227 = vadd.f32 %v2092, %v2098
        %v2228 = vpack.c.bf16 %v2101, %v2100
        %v2229 = vpack.c.bf16 %v2103, %v2102
        %v2230 = vpack.c.bf16 %v2105, %v2104
        %v2231 = vpack.c.bf16 %v2107, %v2106
        %v2232 = vpack.c.bf16 %v2109, %v2108
        %v2233 = vpack.c.bf16 %v2111, %v2110
        %v2234 = vpack.c.bf16 %v2113, %v2112
        %v2235 = vpack.c.bf16 %v2115, %v2114
        %v2236 = vpack.c.bf16 %v2117, %v2116
        %v2237 = vpack.c.bf16 %v2119, %v2118
        %v2238 = vpack.c.bf16 %v2121, %v2120
        %v2239 = vpack.c.bf16 %v2123, %v2122
        %v2240 = vpack.c.bf16 %v2125, %v2124
        %v2241 = vpack.c.bf16 %v2127, %v2126
        %v2242 = vpack.c.bf16 %v2129, %v2128
        %v2243 = vpack.c.bf16 %v2131, %v2130
        %v2244 = vpack.c.bf16 %v2133, %v2132
        %v2245 = vpack.c.bf16 %v2135, %v2134
        %v2246 = vpack.c.bf16 %v2137, %v2136
        %v2247 = vpack.c.bf16 %v2139, %v2138
        %v2248 = vpack.c.bf16 %v2141, %v2140
        %v2249 = vpack.c.bf16 %v2143, %v2142
        %v2250 = vpack.c.bf16 %v2145, %v2144
        %v2251 = vpack.c.bf16 %v2147, %v2146
        %v2252 = vpack.c.bf16 %v2149, %v2148
        %v2253 = vpack.c.bf16 %v2151, %v2150
        %v2254 = vpack.c.bf16 %v2153, %v2152
        %v2255 = vpack.c.bf16 %v2155, %v2154
        %v2256 = vpack.c.bf16 %v2157, %v2156
        %v2257 = vpack.c.bf16 %v2159, %v2158
        %v2258 = vpack.c.bf16 %v2161, %v2160
        %v2259 = vpack.c.bf16 %v2163, %v2162
        %v2260 = vpack.c.bf16 %v2165, %v2164
        %v2261 = vpack.c.bf16 %v2167, %v2166
        %v2262 = vpack.c.bf16 %v2169, %v2168
        %v2263 = vpack.c.bf16 %v2171, %v2170
        %v2264 = vpack.c.bf16 %v2173, %v2172
        %v2265 = vpack.c.bf16 %v2175, %v2174
        %v2266 = vpack.c.bf16 %v2177, %v2176
        %v2267 = vpack.c.bf16 %v2179, %v2178
        %v2268 = vpack.c.bf16 %v2181, %v2180
        %v2269 = vpack.c.bf16 %v2183, %v2182
        %v2270 = vpack.c.bf16 %v2185, %v2184
        %v2271 = vpack.c.bf16 %v2187, %v2186
        %v2272 = vpack.c.bf16 %v2189, %v2188
        %v2273 = vpack.c.bf16 %v2191, %v2190
        %v2274 = vpack.c.bf16 %v2193, %v2192
        %v2275 = vpack.c.bf16 %v2195, %v2194
        %v2276 = vpack.c.bf16 %v2197, %v2196
        %v2277 = vpack.c.bf16 %v2199, %v2198
        %v2278 = vpack.c.bf16 %v2201, %v2200
        %v2279 = vpack.c.bf16 %v2203, %v2202
        %v2280 = vpack.c.bf16 %v2205, %v2204
        %v2281 = vpack.c.bf16 %v2207, %v2206
        %v2282 = vpack.c.bf16 %v2209, %v2208
        %v2283 = vpack.c.bf16 %v2211, %v2210
        %v2284 = vpack.c.bf16 %v2213, %v2212
        %v2285 = vpack.c.bf16 %v2215, %v2214
        %v2286 = vpack.c.bf16 %v2217, %v2216
        %v2287 = vpack.c.bf16 %v2219, %v2218
        %v2288 = vpack.c.bf16 %v2221, %v2220
        %v2289 = vpack.c.bf16 %v2223, %v2222
        %v2290 = vpack.c.bf16 %v2225, %v2224
        %v2291 = vpack.c.bf16 %v2227, %v2226
        %v2356 = vunpack.c.l.b16 %v2228
        %v2357 = vunpack.c.h.b16 %v2228
        %v2358 = vunpack.c.l.b16 %v2229
        %v2359 = vunpack.c.h.b16 %v2229
        %v2360 = vunpack.c.l.b16 %v2230
        %v2361 = vunpack.c.h.b16 %v2230
        %v2362 = vunpack.c.l.b16 %v2231
        %v2363 = vunpack.c.h.b16 %v2231
        %v2364 = vunpack.c.l.b16 %v2232
        %v2365 = vunpack.c.h.b16 %v2232
        %v2366 = vunpack.c.l.b16 %v2233
        %v2367 = vunpack.c.h.b16 %v2233
        %v2368 = vunpack.c.l.b16 %v2234
        %v2369 = vunpack.c.h.b16 %v2234
        %v2370 = vunpack.c.l.b16 %v2235
        %v2371 = vunpack.c.h.b16 %v2235
        %v2372 = vunpack.c.l.b16 %v2236
        %v2373 = vunpack.c.h.b16 %v2236
        %v2374 = vunpack.c.l.b16 %v2237
        %v2375 = vunpack.c.h.b16 %v2237
        %v2376 = vunpack.c.l.b16 %v2238
        %v2377 = vunpack.c.h.b16 %v2238
        %v2378 = vunpack.c.l.b16 %v2239
        %v2379 = vunpack.c.h.b16 %v2239
        %v2380 = vunpack.c.l.b16 %v2240
        %v2381 = vunpack.c.h.b16 %v2240
        %v2382 = vunpack.c.l.b16 %v2241
        %v2383 = vunpack.c.h.b16 %v2241
        %v2384 = vunpack.c.l.b16 %v2242
        %v2385 = vunpack.c.h.b16 %v2242
        %v2386 = vunpack.c.l.b16 %v2243
        %v2387 = vunpack.c.h.b16 %v2243
        %v2388 = vunpack.c.l.b16 %v2244
        %v2389 = vunpack.c.h.b16 %v2244
        %v2390 = vunpack.c.l.b16 %v2245
        %v2391 = vunpack.c.h.b16 %v2245
        %v2392 = vunpack.c.l.b16 %v2246
        %v2393 = vunpack.c.h.b16 %v2246
        %v2394 = vunpack.c.l.b16 %v2247
        %v2395 = vunpack.c.h.b16 %v2247
        %v2396 = vunpack.c.l.b16 %v2248
        %v2397 = vunpack.c.h.b16 %v2248
        %v2398 = vunpack.c.l.b16 %v2249
        %v2399 = vunpack.c.h.b16 %v2249
        %v2400 = vunpack.c.l.b16 %v2250
        %v2401 = vunpack.c.h.b16 %v2250
        %v2402 = vunpack.c.l.b16 %v2251
        %v2403 = vunpack.c.h.b16 %v2251
        %v2404 = vunpack.c.l.b16 %v2252
        %v2405 = vunpack.c.h.b16 %v2252
        %v2406 = vunpack.c.l.b16 %v2253
        %v2407 = vunpack.c.h.b16 %v2253
        %v2408 = vunpack.c.l.b16 %v2254
        %v2409 = vunpack.c.h.b16 %v2254
        %v2410 = vunpack.c.l.b16 %v2255
        %v2411 = vunpack.c.h.b16 %v2255
        %v2412 = vunpack.c.l.b16 %v2256
        %v2413 = vunpack.c.h.b16 %v2256
        %v2414 = vunpack.c.l.b16 %v2257
        %v2415 = vunpack.c.h.b16 %v2257
        %v2416 = vunpack.c.l.b16 %v2258
        %v2417 = vunpack.c.h.b16 %v2258
        %v2418 = vunpack.c.l.b16 %v2259
        %v2419 = vunpack.c.h.b16 %v2259
        %v2420 = vunpack.c.l.b16 %v2260
        %v2421 = vunpack.c.h.b16 %v2260
        %v2422 = vunpack.c.l.b16 %v2261
        %v2423 = vunpack.c.h.b16 %v2261
        %v2424 = vunpack.c.l.b16 %v2262
        %v2425 = vunpack.c.h.b16 %v2262
        %v2426 = vunpack.c.l.b16 %v2263
        %v2427 = vunpack.c.h.b16 %v2263
        %v2428 = vunpack.c.l.b16 %v2264
        %v2429 = vunpack.c.h.b16 %v2264
        %v2430 = vunpack.c.l.b16 %v2265
        %v2431 = vunpack.c.h.b16 %v2265
        %v2432 = vunpack.c.l.b16 %v2266
        %v2433 = vunpack.c.h.b16 %v2266
        %v2434 = vunpack.c.l.b16 %v2267
        %v2435 = vunpack.c.h.b16 %v2267
        %v2436 = vunpack.c.l.b16 %v2268
        %v2437 = vunpack.c.h.b16 %v2268
        %v2438 = vunpack.c.l.b16 %v2269
        %v2439 = vunpack.c.h.b16 %v2269
        %v2440 = vunpack.c.l.b16 %v2270
        %v2441 = vunpack.c.h.b16 %v2270
        %v2442 = vunpack.c.l.b16 %v2271
        %v2443 = vunpack.c.h.b16 %v2271
        %v2444 = vunpack.c.l.b16 %v2272
        %v2445 = vunpack.c.h.b16 %v2272
        %v2446 = vunpack.c.l.b16 %v2273
        %v2447 = vunpack.c.h.b16 %v2273
        %v2448 = vunpack.c.l.b16 %v2274
        %v2449 = vunpack.c.h.b16 %v2274
        %v2450 = vunpack.c.l.b16 %v2275
        %v2451 = vunpack.c.h.b16 %v2275
        %v2452 = vunpack.c.l.b16 %v2276
        %v2453 = vunpack.c.h.b16 %v2276
        %v2454 = vunpack.c.l.b16 %v2277
        %v2455 = vunpack.c.h.b16 %v2277
        %v2456 = vunpack.c.l.b16 %v2278
        %v2457 = vunpack.c.h.b16 %v2278
        %v2458 = vunpack.c.l.b16 %v2279
        %v2459 = vunpack.c.h.b16 %v2279
        %v2460 = vunpack.c.l.b16 %v2280
        %v2461 = vunpack.c.h.b16 %v2280
        %v2462 = vunpack.c.l.b16 %v2281
        %v2463 = vunpack.c.h.b16 %v2281
        %v2464 = vunpack.c.l.b16 %v2282
        %v2465 = vunpack.c.h.b16 %v2282
        %v2466 = vunpack.c.l.b16 %v2283
        %v2467 = vunpack.c.h.b16 %v2283
        %v2468 = vunpack.c.l.b16 %v2284
        %v2469 = vunpack.c.h.b16 %v2284
        %v2470 = vunpack.c.l.b16 %v2285
        %v2471 = vunpack.c.h.b16 %v2285
        %v2472 = vunpack.c.l.b16 %v2286
        %v2473 = vunpack.c.h.b16 %v2286
        %v2474 = vunpack.c.l.b16 %v2287
        %v2475 = vunpack.c.h.b16 %v2287
        %v2476 = vunpack.c.l.b16 %v2288
        %v2477 = vunpack.c.h.b16 %v2288
        %v2478 = vunpack.c.l.b16 %v2289
        %v2479 = vunpack.c.h.b16 %v2289
        %v2480 = vunpack.c.l.b16 %v2290
        %v2481 = vunpack.c.h.b16 %v2290
        %v2482 = vunpack.c.l.b16 %v2291
        %v2483 = vunpack.c.h.b16 %v2291
        %v2484 = vpack.c.b16 %v2356, %v2356
        %v2485 = vpack.c.b16 %v2357, %v2357
        %v2486 = vpack.c.b16 %v2358, %v2358
        %v2487 = vpack.c.b16 %v2359, %v2359
        %v2488 = vpack.c.b16 %v2360, %v2360
        %v2489 = vpack.c.b16 %v2361, %v2361
        %v2490 = vpack.c.b16 %v2362, %v2362
        %v2491 = vpack.c.b16 %v2363, %v2363
        %v2492 = vpack.c.b16 %v2364, %v2364
        %v2493 = vpack.c.b16 %v2365, %v2365
        %v2494 = vpack.c.b16 %v2366, %v2366
        %v2495 = vpack.c.b16 %v2367, %v2367
        %v2496 = vpack.c.b16 %v2368, %v2368
        %v2497 = vpack.c.b16 %v2369, %v2369
        %v2498 = vpack.c.b16 %v2370, %v2370
        %v2499 = vpack.c.b16 %v2371, %v2371
        %v2500 = vpack.c.b16 %v2372, %v2372
        %v2501 = vpack.c.b16 %v2373, %v2373
        %v2502 = vpack.c.b16 %v2374, %v2374
        %v2503 = vpack.c.b16 %v2375, %v2375
        %v2504 = vpack.c.b16 %v2376, %v2376
        %v2505 = vpack.c.b16 %v2377, %v2377
        %v2506 = vpack.c.b16 %v2378, %v2378
        %v2507 = vpack.c.b16 %v2379, %v2379
        %v2508 = vpack.c.b16 %v2380, %v2380
        %v2509 = vpack.c.b16 %v2381, %v2381
        %v2510 = vpack.c.b16 %v2382, %v2382
        %v2511 = vpack.c.b16 %v2383, %v2383
        %v2512 = vpack.c.b16 %v2384, %v2384
        %v2513 = vpack.c.b16 %v2385, %v2385
        %v2514 = vpack.c.b16 %v2386, %v2386
        %v2515 = vpack.c.b16 %v2387, %v2387
        %v2516 = vpack.c.b16 %v2388, %v2388
        %v2517 = vpack.c.b16 %v2389, %v2389
        %v2518 = vpack.c.b16 %v2390, %v2390
        %v2519 = vpack.c.b16 %v2391, %v2391
        %v2520 = vpack.c.b16 %v2392, %v2392
        %v2521 = vpack.c.b16 %v2393, %v2393
        %v2522 = vpack.c.b16 %v2394, %v2394
        %v2523 = vpack.c.b16 %v2395, %v2395
        %v2524 = vpack.c.b16 %v2396, %v2396
        %v2525 = vpack.c.b16 %v2397, %v2397
        %v2526 = vpack.c.b16 %v2398, %v2398
        %v2527 = vpack.c.b16 %v2399, %v2399
        %v2528 = vpack.c.b16 %v2400, %v2400
        %v2529 = vpack.c.b16 %v2401, %v2401
        %v2530 = vpack.c.b16 %v2402, %v2402
        %v2531 = vpack.c.b16 %v2403, %v2403
        %v2532 = vpack.c.b16 %v2404, %v2404
        %v2533 = vpack.c.b16 %v2405, %v2405
        %v2534 = vpack.c.b16 %v2406, %v2406
        %v2535 = vpack.c.b16 %v2407, %v2407
        %v2536 = vpack.c.b16 %v2408, %v2408
        %v2537 = vpack.c.b16 %v2409, %v2409
        %v2538 = vpack.c.b16 %v2410, %v2410
        %v2539 = vpack.c.b16 %v2411, %v2411
        %v2540 = vpack.c.b16 %v2412, %v2412
        %v2541 = vpack.c.b16 %v2413, %v2413
        %v2542 = vpack.c.b16 %v2414, %v2414
        %v2543 = vpack.c.b16 %v2415, %v2415
        %v2544 = vpack.c.b16 %v2416, %v2416
        %v2545 = vpack.c.b16 %v2417, %v2417
        %v2546 = vpack.c.b16 %v2418, %v2418
        %v2547 = vpack.c.b16 %v2419, %v2419
        %v2548 = vpack.c.b16 %v2420, %v2420
        %v2549 = vpack.c.b16 %v2421, %v2421
        %v2550 = vpack.c.b16 %v2422, %v2422
        %v2551 = vpack.c.b16 %v2423, %v2423
        %v2552 = vpack.c.b16 %v2424, %v2424
        %v2553 = vpack.c.b16 %v2425, %v2425
        %v2554 = vpack.c.b16 %v2426, %v2426
        %v2555 = vpack.c.b16 %v2427, %v2427
        %v2556 = vpack.c.b16 %v2428, %v2428
        %v2557 = vpack.c.b16 %v2429, %v2429
        %v2558 = vpack.c.b16 %v2430, %v2430
        %v2559 = vpack.c.b16 %v2431, %v2431
        %v2560 = vpack.c.b16 %v2432, %v2432
        %v2561 = vpack.c.b16 %v2433, %v2433
        %v2562 = vpack.c.b16 %v2434, %v2434
        %v2563 = vpack.c.b16 %v2435, %v2435
        %v2564 = vpack.c.b16 %v2436, %v2436
        %v2565 = vpack.c.b16 %v2437, %v2437
        %v2566 = vpack.c.b16 %v2438, %v2438
        %v2567 = vpack.c.b16 %v2439, %v2439
        %v2568 = vpack.c.b16 %v2440, %v2440
        %v2569 = vpack.c.b16 %v2441, %v2441
        %v2570 = vpack.c.b16 %v2442, %v2442
        %v2571 = vpack.c.b16 %v2443, %v2443
        %v2572 = vpack.c.b16 %v2444, %v2444
        %v2573 = vpack.c.b16 %v2445, %v2445
        %v2574 = vpack.c.b16 %v2446, %v2446
        %v2575 = vpack.c.b16 %v2447, %v2447
        %v2576 = vpack.c.b16 %v2448, %v2448
        %v2577 = vpack.c.b16 %v2449, %v2449
        %v2578 = vpack.c.b16 %v2450, %v2450
        %v2579 = vpack.c.b16 %v2451, %v2451
        %v2580 = vpack.c.b16 %v2452, %v2452
        %v2581 = vpack.c.b16 %v2453, %v2453
        %v2582 = vpack.c.b16 %v2454, %v2454
        %v2583 = vpack.c.b16 %v2455, %v2455
        %v2584 = vpack.c.b16 %v2456, %v2456
        %v2585 = vpack.c.b16 %v2457, %v2457
        %v2586 = vpack.c.b16 %v2458, %v2458
        %v2587 = vpack.c.b16 %v2459, %v2459
        %v2588 = vpack.c.b16 %v2460, %v2460
        %v2589 = vpack.c.b16 %v2461, %v2461
        %v2590 = vpack.c.b16 %v2462, %v2462
        %v2591 = vpack.c.b16 %v2463, %v2463
        %v2592 = vpack.c.b16 %v2464, %v2464
        %v2593 = vpack.c.b16 %v2465, %v2465
        %v2594 = vpack.c.b16 %v2466, %v2466
        %v2595 = vpack.c.b16 %v2467, %v2467
        %v2596 = vpack.c.b16 %v2468, %v2468
        %v2597 = vpack.c.b16 %v2469, %v2469
        %v2598 = vpack.c.b16 %v2470, %v2470
        %v2599 = vpack.c.b16 %v2471, %v2471
        %v2600 = vpack.c.b16 %v2472, %v2472
        %v2601 = vpack.c.b16 %v2473, %v2473
        %v2602 = vpack.c.b16 %v2474, %v2474
        %v2603 = vpack.c.b16 %v2475, %v2475
        %v2604 = vpack.c.b16 %v2476, %v2476
        %v2605 = vpack.c.b16 %v2477, %v2477
        %v2606 = vpack.c.b16 %v2478, %v2478
        %v2607 = vpack.c.b16 %v2479, %v2479
        %v2608 = vpack.c.b16 %v2480, %v2480
        %v2609 = vpack.c.b16 %v2481, %v2481
        %v2610 = vpack.c.b16 %v2482, %v2482
        %v2611 = vpack.c.b16 %v2483, %v2483
        %2740 = vst [vmem:[%s252] sm:$0xf] %v2484
        %2741 = vst [vmem:[%s252 + $0x4] sm:$0xf] %v2485
        %2742 = vst [vmem:[%s252 + $0x8] sm:$0xf] %v2486
        %2743 = vst [vmem:[%s252 + $0xc] sm:$0xf] %v2487
        %2744 = vst [vmem:[%s252 + $0x10] sm:$0xf] %v2488
        %2745 = vst [vmem:[%s252 + $0x14] sm:$0xf] %v2489
        %2746 = vst [vmem:[%s252 + $0x18] sm:$0xf] %v2490
        %2747 = vst [vmem:[%s252 + $0x1c] sm:$0xf] %v2491
        %2748 = vst [vmem:[%s252 + $0x20] sm:$0xf] %v2492
        %2749 = vst [vmem:[%s252 + $0x24] sm:$0xf] %v2493
        %2750 = vst [vmem:[%s252 + $0x28] sm:$0xf] %v2494
        %2751 = vst [vmem:[%s252 + $0x2c] sm:$0xf] %v2495
        %2752 = vst [vmem:[%s252 + $0x30] sm:$0xf] %v2496
        %2753 = vst [vmem:[%s252 + $0x34] sm:$0xf] %v2497
        %2754 = vst [vmem:[%s252 + $0x38] sm:$0xf] %v2498
        %2755 = vst [vmem:[%s252 + $0x3c] sm:$0xf] %v2499
        %2756 = vst [vmem:[%s252 + $0x40] sm:$0xf] %v2500
        %2757 = vst [vmem:[%s252 + $0x44] sm:$0xf] %v2501
        %2758 = vst [vmem:[%s252 + $0x48] sm:$0xf] %v2502
        %2759 = vst [vmem:[%s252 + $0x4c] sm:$0xf] %v2503
        %2760 = vst [vmem:[%s252 + $0x50] sm:$0xf] %v2504
        %2761 = vst [vmem:[%s252 + $0x54] sm:$0xf] %v2505
        %2762 = vst [vmem:[%s252 + $0x58] sm:$0xf] %v2506
        %2763 = vst [vmem:[%s252 + $0x5c] sm:$0xf] %v2507
        %2764 = vst [vmem:[%s252 + $0x60] sm:$0xf] %v2508
        %2765 = vst [vmem:[%s252 + $0x64] sm:$0xf] %v2509
        %2766 = vst [vmem:[%s252 + $0x68] sm:$0xf] %v2510
        %2767 = vst [vmem:[%s252 + $0x6c] sm:$0xf] %v2511
        %2768 = vst [vmem:[%s252 + $0x70] sm:$0xf] %v2512
        %2769 = vst [vmem:[%s252 + $0x74] sm:$0xf] %v2513
        %2770 = vst [vmem:[%s252 + $0x78] sm:$0xf] %v2514
        %2771 = vst [vmem:[%s252 + $0x7c] sm:$0xf] %v2515
        %2772 = vst [vmem:[%s252 + $0x80] sm:$0xf] %v2516
        %2773 = vst [vmem:[%s252 + $0x84] sm:$0xf] %v2517
        %2774 = vst [vmem:[%s252 + $0x88] sm:$0xf] %v2518
        %2775 = vst [vmem:[%s252 + $0x8c] sm:$0xf] %v2519
        %2776 = vst [vmem:[%s252 + $0x90] sm:$0xf] %v2520
        %2777 = vst [vmem:[%s252 + $0x94] sm:$0xf] %v2521
        %2778 = vst [vmem:[%s252 + $0x98] sm:$0xf] %v2522
        %2779 = vst [vmem:[%s252 + $0x9c] sm:$0xf] %v2523
        %2780 = vst [vmem:[%s252 + $0xa0] sm:$0xf] %v2524
        %2781 = vst [vmem:[%s252 + $0xa4] sm:$0xf] %v2525
        %2782 = vst [vmem:[%s252 + $0xa8] sm:$0xf] %v2526
        %2783 = vst [vmem:[%s252 + $0xac] sm:$0xf] %v2527
        %2784 = vst [vmem:[%s252 + $0xb0] sm:$0xf] %v2528
        %2785 = vst [vmem:[%s252 + $0xb4] sm:$0xf] %v2529
        %2786 = vst [vmem:[%s252 + $0xb8] sm:$0xf] %v2530
        %2787 = vst [vmem:[%s252 + $0xbc] sm:$0xf] %v2531
        %2788 = vst [vmem:[%s252 + $0xc0] sm:$0xf] %v2532
        %2789 = vst [vmem:[%s252 + $0xc4] sm:$0xf] %v2533
        %2790 = vst [vmem:[%s252 + $0xc8] sm:$0xf] %v2534
        %2791 = vst [vmem:[%s252 + $0xcc] sm:$0xf] %v2535
        %2792 = vst [vmem:[%s252 + $0xd0] sm:$0xf] %v2536
        %2793 = vst [vmem:[%s252 + $0xd4] sm:$0xf] %v2537
        %2794 = vst [vmem:[%s252 + $0xd8] sm:$0xf] %v2538
        %2795 = vst [vmem:[%s252 + $0xdc] sm:$0xf] %v2539
        %2796 = vst [vmem:[%s252 + $0xe0] sm:$0xf] %v2540
        %2797 = vst [vmem:[%s252 + $0xe4] sm:$0xf] %v2541
        %2798 = vst [vmem:[%s252 + $0xe8] sm:$0xf] %v2542
        %2799 = vst [vmem:[%s252 + $0xec] sm:$0xf] %v2543
        %2800 = vst [vmem:[%s252 + $0xf0] sm:$0xf] %v2544
        %2801 = vst [vmem:[%s252 + $0xf4] sm:$0xf] %v2545
        %2802 = vst [vmem:[%s252 + $0xf8] sm:$0xf] %v2546
        %2803 = vst [vmem:[%s252 + $0xfc] sm:$0xf] %v2547
        %2804 = vst [vmem:[%s252 + $0x100] sm:$0xf] %v2548
        %2805 = vst [vmem:[%s252 + $0x104] sm:$0xf] %v2549
        %2806 = vst [vmem:[%s252 + $0x108] sm:$0xf] %v2550
        %2807 = vst [vmem:[%s252 + $0x10c] sm:$0xf] %v2551
        %2808 = vst [vmem:[%s252 + $0x110] sm:$0xf] %v2552
        %2809 = vst [vmem:[%s252 + $0x114] sm:$0xf] %v2553
        %2810 = vst [vmem:[%s252 + $0x118] sm:$0xf] %v2554
        %2811 = vst [vmem:[%s252 + $0x11c] sm:$0xf] %v2555
        %2812 = vst [vmem:[%s252 + $0x120] sm:$0xf] %v2556
        %2813 = vst [vmem:[%s252 + $0x124] sm:$0xf] %v2557
        %2814 = vst [vmem:[%s252 + $0x128] sm:$0xf] %v2558
        %2815 = vst [vmem:[%s252 + $0x12c] sm:$0xf] %v2559
        %2816 = vst [vmem:[%s252 + $0x130] sm:$0xf] %v2560
        %2817 = vst [vmem:[%s252 + $0x134] sm:$0xf] %v2561
        %2818 = vst [vmem:[%s252 + $0x138] sm:$0xf] %v2562
        %2819 = vst [vmem:[%s252 + $0x13c] sm:$0xf] %v2563
        %2820 = vst [vmem:[%s252 + $0x140] sm:$0xf] %v2564
        %2821 = vst [vmem:[%s252 + $0x144] sm:$0xf] %v2565
        %2822 = vst [vmem:[%s252 + $0x148] sm:$0xf] %v2566
        %2823 = vst [vmem:[%s252 + $0x14c] sm:$0xf] %v2567
        %2824 = vst [vmem:[%s252 + $0x150] sm:$0xf] %v2568
        %2825 = vst [vmem:[%s252 + $0x154] sm:$0xf] %v2569
        %2826 = vst [vmem:[%s252 + $0x158] sm:$0xf] %v2570
        %2827 = vst [vmem:[%s252 + $0x15c] sm:$0xf] %v2571
        %2828 = vst [vmem:[%s252 + $0x160] sm:$0xf] %v2572
        %2829 = vst [vmem:[%s252 + $0x164] sm:$0xf] %v2573
        %2830 = vst [vmem:[%s252 + $0x168] sm:$0xf] %v2574
        %2831 = vst [vmem:[%s252 + $0x16c] sm:$0xf] %v2575
        %2832 = vst [vmem:[%s252 + $0x170] sm:$0xf] %v2576
        %2833 = vst [vmem:[%s252 + $0x174] sm:$0xf] %v2577
        %2834 = vst [vmem:[%s252 + $0x178] sm:$0xf] %v2578
        %2835 = vst [vmem:[%s252 + $0x17c] sm:$0xf] %v2579
        %2836 = vst [vmem:[%s252 + $0x180] sm:$0xf] %v2580
        %2837 = vst [vmem:[%s252 + $0x184] sm:$0xf] %v2581
        %2838 = vst [vmem:[%s252 + $0x188] sm:$0xf] %v2582
        %2839 = vst [vmem:[%s252 + $0x18c] sm:$0xf] %v2583
        %2840 = vst [vmem:[%s252 + $0x190] sm:$0xf] %v2584
        %2841 = vst [vmem:[%s252 + $0x194] sm:$0xf] %v2585
        %2842 = vst [vmem:[%s252 + $0x198] sm:$0xf] %v2586
        %2843 = vst [vmem:[%s252 + $0x19c] sm:$0xf] %v2587
        %2844 = vst [vmem:[%s252 + $0x1a0] sm:$0xf] %v2588
        %2845 = vst [vmem:[%s252 + $0x1a4] sm:$0xf] %v2589
        %2846 = vst [vmem:[%s252 + $0x1a8] sm:$0xf] %v2590
        %2847 = vst [vmem:[%s252 + $0x1ac] sm:$0xf] %v2591
        %2848 = vst [vmem:[%s252 + $0x1b0] sm:$0xf] %v2592
        %2849 = vst [vmem:[%s252 + $0x1b4] sm:$0xf] %v2593
        %2850 = vst [vmem:[%s252 + $0x1b8] sm:$0xf] %v2594
        %2851 = vst [vmem:[%s252 + $0x1bc] sm:$0xf] %v2595
        %2852 = vst [vmem:[%s252 + $0x1c0] sm:$0xf] %v2596
        %2853 = vst [vmem:[%s252 + $0x1c4] sm:$0xf] %v2597
        %2854 = vst [vmem:[%s252 + $0x1c8] sm:$0xf] %v2598
        %2855 = vst [vmem:[%s252 + $0x1cc] sm:$0xf] %v2599
        %2856 = vst [vmem:[%s252 + $0x1d0] sm:$0xf] %v2600
        %2857 = vst [vmem:[%s252 + $0x1d4] sm:$0xf] %v2601
        %2858 = vst [vmem:[%s252 + $0x1d8] sm:$0xf] %v2602
        %2859 = vst [vmem:[%s252 + $0x1dc] sm:$0xf] %v2603
        %2860 = vst [vmem:[%s252 + $0x1e0] sm:$0xf] %v2604
        %2861 = vst [vmem:[%s252 + $0x1e4] sm:$0xf] %v2605
        %2862 = vst [vmem:[%s252 + $0x1e8] sm:$0xf] %v2606
        %2863 = vst [vmem:[%s252 + $0x1ec] sm:$0xf] %v2607
        %2864 = vst [vmem:[%s252 + $0x1f0] sm:$0xf] %v2608
        %2865 = vst [vmem:[%s252 + $0x1f4] sm:$0xf] %v2609
        %2866 = vst [vmem:[%s252 + $0x1f8] sm:$0xf] %v2610
        %2867 = vst [vmem:[%s252 + $0x1fc] sm:$0xf] %v2611
      $region40: #{autoencoder_de_forward.11} parent=31 // pred_fallthru
        _
      %s2868 = smul.u32 128, %s19
      %p2869 = scmp.lt.s32.totalorder %s2868, 1023
      %s2870 = scalar_select %p2869, %s2868, 1023
      %p2871 = scmp.lt.s32.totalorder %s20, 0
      %s2872 = scalar_select %p2871, %s20, 0
      %s2873 = sadd.s32 %s2872, %s2870
      %s2874 = smul.addr %s2873, 4
      %s2875 = scalar_lea.vmem %s3, %s2874
      // Predicated region
      $region41: #{autoencoder_de_forward.11} parent=31 // pred_check
        %p2876 = pneg %p135
      $region42: #{autoencoder_de_forward.11} parent=31 // pred_check_branch
        %2878 = sbr.rel (%p2876) target = $region44
      $region43: #{autoencoder_de_forward.11} parent=31 // pred_region
        %s2879 = smul.u32 128, %s19
      $region44: #{autoencoder_de_forward.11} parent=31 // pred_fallthru
        _
    $region32: #{autoencoder_de_forward.11} parent=5 // pred_fallthru
      _
    %p2880 = scmp.le.s32.totalorder 2, %s9
    // Predicated region
    $region45: #{autoencoder_de_forward.11} parent=5 // pred_check
      %p2881 = pneg %p2880
    $region46: #{autoencoder_de_forward.11} parent=5 // pred_check_branch
      %2883 = sbr.rel (%p2881) target = $region48
    $region47: #{autoencoder_de_forward.11} parent=5 // pred_region
      %s2884 = ssub.s32 %s9, 2
      // Predicated region
      $region49: #{autoencoder_de_forward.11} parent=47 // pred_check
        %p2885 = pneg %p141
      $region50: #{autoencoder_de_forward.11} parent=47 // pred_check_branch
        %2887 = sbr.rel (%p2885) target = $region52
      $region51: #{autoencoder_de_forward.11} parent=47 // pred_region
        %s2888 = smul.u32 128, %s22
        %p2889 = scmp.lt.s32.totalorder %s2888, 1023
        %s2890 = scalar_select %p2889, %s2888, 1023
        %p2891 = scmp.lt.s32.totalorder %s23, 0
        %s2892 = scalar_select %p2891, %s23, 0
        %s2893 = sadd.s32 %s2892, %s2890
        %s2894 = smul.addr %s2893, 4
        %s2895 = scalar_lea.vmem %s3, %s2894
      $region52: #{autoencoder_de_forward.11} parent=47 // pred_fallthru
        _
    $region48: #{autoencoder_de_forward.11} parent=5 // pred_fallthru
      _
  $region6: #{autoencoder_de_forward.11} parent=0 // loop_footer
    %s13 = sadd.s32 1, %s9
  $region7: #{autoencoder_de_forward.11} parent=0 // loop_footer_branch
    %8 = sbr.rel target = $region3
  $region8: #{autoencoder_de_forward.11} parent=0 // loop_exit
    _

</llo_original>
